<compile_context>
chip_gen: v5e
topology: v5e:2x2
jax: 0.10.0
libtpu: 0.0.40
codegen_flags: <defaults>
</compile_context>

<pallas_src>
import functools

import jax
import jax.numpy as jnp
from jax import lax
from jax.experimental import pallas as pl
from jax.experimental.pallas import tpu as pltpu

# Fixed (deterministic) fake-quant observer parameters (quint8).
QSCALE = 0.05
INV_QSCALE = 1.0 / QSCALE          # constant multiply, never a divide
QZERO = 128.0
QMIN, QMAX = 0.0, 255.0
LEAKY_SLOPE = 0.1

# Target rows per grid step; rounded to a multiple of the halo so the halo
# block index stays integral.  (v6e: ~512 amortizes the ~0.35us/step overhead;
# v5e: 256-512 also fine; v7x: per-step VMEM is ~MBs either way.)
M_TARGET = 512


def _round_up(v, m):
    return (v + m - 1) // m * m


def _fake_quant(x):
    # Per-tensor affine FakeQuantize (quint8) - QAT forward semantics. FQ(0)==0.
    # NOTE: round(x * INV_QSCALE) can differ from round(x / scale) by 1 LSB at
    # exact ties; fine for the 2e-3 tolerance used here.
    q = jnp.clip(jnp.round(x * INV_QSCALE) + QZERO, QMIN, QMAX)
    return (q - QZERO) * QSCALE


# ---------------------------------------------------------------------------
# Fused kernel: FakeQuant (once/tile) + K-folded Conv3x3 + bias + LeakyReLU.
# ---------------------------------------------------------------------------
def _qat_conv_kernel(x_ref, halo_ref, w_ref, b_ref, o_ref, win_ref, patch_ref,
                     *, wp2, c, m_tile, kpad):
    # x_ref    : (m_tile, C)          f32  main activation rows of this tile
    # halo_ref : (halo_pad, C)        f32  next rows (max tap shift overhang)
    # w_ref    : (kpad, cout_tile)    bf16 K-folded weights (taps along K)
    # b_ref    : (1, cout_tile)       f32
    # o_ref    : (m_tile, cout_tile)  f32  lane-dense output tile
    # win_ref  : (m_tile+halo_pad, C) bf16 scratch: fake-quantized window
    # patch_ref: (m_tile, kpad)       bf16 scratch: K-folded patch (cached
    #                                      across the Cout-tile grid axis)
    j = pl.program_id(1)

    @pl.when(j == 0)
    def _build_patch():
        # FakeQuantize (QuantStub under QAT) + bf16 cast: exactly ONCE per row
        # tile (previously 9x, once per tap).  Zero halo rows stay zero.
        win_ref[:m_tile, :] = _fake_quant(x_ref[...]).astype(jnp.bfloat16)
        win_ref[m_tile:, :] = _fake_quant(halo_ref[...]).astype(jnp.bfloat16)

        # Fold the 3x3 taps into the contraction dim (K = 9*C), zero-pad to
        # kpad so the MXU sees one clean (m_tile, 128)x(128, cout_tile) matmul.
        if kpad > 9 * c:
            patch_ref[:, 9 * c:] = jnp.zeros((m_tile, kpad - 9 * c),
                                             jnp.bfloat16)
        for t in range(9):                    # static unroll over taps
            dh, dw = divmod(t, 3)
            off = dh * wp2 + dw               # static per-tap row shift
            patch_ref[:, t * c:(t + 1) * c] = win_ref[pl.ds(off, m_tile), :]

    acc = jnp.dot(patch_ref[...], w_ref[...],
                  preferred_element_type=jnp.float32)
    acc = acc + b_ref[...]
    acc = jnp.where(acc >= 0.0, acc, LEAKY_SLOPE * acc)     # LeakyReLU(0.1)
    # DeQuantStub is the identity in the QAT fake-quant forward; keep f32 at
    # the module boundary.
    o_ref[...] = acc.astype(o_ref.dtype)


# ---------------------------------------------------------------------------
# One-time parameter repack (hoisted out of the per-call forward path).
# ---------------------------------------------------------------------------
def prepare_conv_params(weight, bias):
    # weight: (Cout, C, 3, 3) OIHW | bias: (Cout,)
    cout, c, kh, kw = weight.shape
    assert (kh, kw) == (3, 3)
    cout_tile = 128 if cout <= 128 else 256   # 256-wide N tiles for big layers
    cout_pad = _round_up(cout, cout_tile)
    kpad = _round_up(9 * c, 128)
    # w_fold[(3*dh+dw)*C + cin, o] = weight[o, cin, dh, dw]
    w_fold = jnp.transpose(weight, (2, 3, 1, 0)).reshape(9 * c, cout)
    w_full = jnp.zeros((kpad, cout_pad), jnp.bfloat16)
    w_full = w_full.at[:9 * c, :cout].set(w_fold.astype(jnp.bfloat16))
    b_full = jnp.zeros((1, cout_pad), jnp.float32).at[0, :cout].set(bias)
    return w_full, b_full


# ---------------------------------------------------------------------------
# Forward wrapper (NCHW <-> NHWC only at the PyTorch boundary).
# ---------------------------------------------------------------------------
@functools.partial(jax.jit, static_argnames=("cout",))
def qat_forward(x, w_full, b_full, *, cout):
    N, C, H, W = x.shape
    kpad, cout_pad = w_full.shape
    assert kpad >= 9 * C
    cout_tile = 128 if cout_pad == 128 else 256
    assert cout_pad % cout_tile == 0
    num_n = cout_pad // cout_tile

    wp2 = W + 2
    halo_pad = _round_up(2 * wp2 + 2, 8)       # max tap row shift, 8-aligned
    m_tile = halo_pad * max(1, M_TARGET // halo_pad)
    halo_ratio = m_tile // halo_pad

    # NHWC internally, spatial zero-pad only -- NO 128-lane channel padding of
    # the activation in HBM (it crosses HBM exactly once at width C).
    x_nhwc = jnp.transpose(x, (0, 2, 3, 1))
    xpad = jnp.pad(x_nhwc, ((0, 0), (1, 1), (1, 1), (0, 0)))
    mp = N * (H + 2) * wp2
    xflat = xpad.reshape(mp, C)

    num_m = int(pl.cdiv(mp, m_tile))
    rows_total = num_m * m_tile + halo_pad     # room for the last halo block
    xflat = jnp.pad(xflat, ((0, rows_total - mp), (0, 0)))

    kernel = functools.partial(_qat_conv_kernel,
                               wp2=wp2, c=C, m_tile=m_tile, kpad=kpad)
    flops = 2 * num_m * m_tile * kpad * cout_pad
    bytes_accessed = int(rows_total * C * 4 + kpad * cout_pad * 2
                         + num_m * m_tile * cout_pad * 4)

    out = pl.pallas_call(
        kernel,
        out_shape=jax.ShapeDtypeStruct((num_m * m_tile, cout_pad), jnp.float32),
        grid=(num_m, num_n),
        in_specs=[
            # Main activation rows for tile i (streamed, double-buffered).
            pl.BlockSpec((m_tile, C), lambda i, j: (i, 0)),
            # Small halo block right after the main block (tap overhang);
            # ~halo_pad/m_tile (~8%) extra HBM reads, VMEM independent of HxW.
            pl.BlockSpec((halo_pad, C), lambda i, j: ((i + 1) * halo_ratio, 0)),
            # K-folded weights / bias, tiled along Cout only (tiny after fold).
            pl.BlockSpec((kpad, cout_tile), lambda i, j: (0, j)),
            pl.BlockSpec((1, cout_tile), lambda i, j: (0, j)),
        ],
        out_specs=pl.BlockSpec((m_tile, cout_tile), lambda i, j: (i, j)),
        scratch_shapes=[
            pltpu.VMEM((m_tile + halo_pad, C), jnp.bfloat16),   # FQ'd window
            pltpu.VMEM((m_tile, kpad), jnp.bfloat16),           # folded patch
        ],
        compiler_params=pltpu.CompilerParams(
            # m axis parallel (megacore); Cout axis arbitrary so the cached
            # patch scratch is always built (j==0) before it is consumed.
            dimension_semantics=("parallel", "arbitrary"),
            # Safe on v7x (64 MiB/TC); actual per-step footprint is ~1 MiB.
            # Raise toward ~112 MiB on v5e/v6e only if tiles are grown.
            vmem_limit_bytes=48 * 1024 * 1024,
        ),
        cost_estimate=pl.CostEstimate(flops=flops, transcendentals=0,
                                      bytes_accessed=bytes_accessed),
    )(xflat, xflat, w_full, b_full)

    # Valid outputs live at flattened padded positions (n, h<H, w<W).
    y = out[:mp, :cout].reshape(N, H + 2, wp2, cout)[:, :H, :W, :]
    # DeQuantStub is the identity in the QAT fake-quant forward.
    return jnp.transpose(y, (0, 3, 1, 2))      # back to NCHW (PyTorch boundary)


# ---------------------------------------------------------------------------
# Pure-JAX reference (matches the kernel's bf16 MXU inputs, f32 accumulation).
# ---------------------------------------------------------------------------
def ref_forward(x, weight, bias):
    xq = _fake_quant(x)
    xq = xq.astype(jnp.bfloat16).astype(jnp.float32)
    w = weight.astype(jnp.bfloat16).astype(jnp.float32)
    y = lax.conv_general_dilated(
        xq, w, window_strides=(1, 1), padding="SAME",
        dimension_numbers=("NCHW", "OIHW", "NCHW"))
    y = y + bias[None, :, None, None]
    return jnp.where(y >= 0, y, LEAKY_SLOPE * y)


if __name__ == "__main__":
    key = jax.random.PRNGKey(0)
    kx, kw, kb = jax.random.split(key, 3)

    N, C, H, W, Cout = 2, 4, 16, 16, 8
    x = jax.random.normal(kx, (N, C, H, W), dtype=jnp.float32)
    weight = 0.1 * jax.random.normal(kw, (Cout, C, 3, 3), dtype=jnp.float32)
    bias = 0.05 * jax.random.normal(kb, (Cout,), dtype=jnp.float32)

    w_full, b_full = prepare_conv_params(weight, bias)   # one-time repack
    y = jax.block_until_ready(qat_forward(x, w_full, b_full, cout=Cout))
    y_ref = jax.block_until_ready(ref_forward(x, weight, bias))

    assert y.shape == (N, Cout, H, W), y.shape
    if not jnp.allclose(y, y_ref, atol=2e-3, rtol=2e-3):
        err = float(jnp.max(jnp.abs(y - y_ref)))
        raise AssertionError(
            f"Pallas QAT forward mismatch vs reference (max abs err {err})")
    print("KERNEL_OK")
</pallas_src>

<mosaic_0001>
module attributes {stable_mosaic.version = 11 : i64} {
  func.func @_qat_conv_kernel(%arg0: i32, %arg1: i32, %arg2: memref<480x4xf32, #tpu.memory_space<vmem>>, %arg3: memref<40x4xf32, #tpu.memory_space<vmem>>, %arg4: memref<128x128xbf16, #tpu.memory_space<vmem>>, %arg5: memref<1x128xf32, #tpu.memory_space<vmem>>, %arg6: memref<480x128xf32, #tpu.memory_space<vmem>>, %arg7: memref<520x4xbf16, #tpu.memory_space<vmem>>, %arg8: memref<480x128xbf16, #tpu.memory_space<vmem>>) attributes {dimension_semantics = [#tpu.dimension_semantics<parallel>, #tpu.dimension_semantics<arbitrary>], iteration_bounds = array<i64: 2, 1>, scalar_prefetch = 0 : i64, scratch_operands = 2 : i64, tpu.core_type = #tpu.core_type<tc>, window_params = [{transform_indices = @transform_0, window_bounds = array<i64: 480, 4>}, {transform_indices = @transform_1, window_bounds = array<i64: 40, 4>}, {transform_indices = @transform_2, window_bounds = array<i64: 128, 128>}, {transform_indices = @transform_3, window_bounds = array<i64: 1, 128>}, {transform_indices = @transform_4, window_bounds = array<i64: 480, 128>}]} {
    %c0_i32 = arith.constant 0 : i32
    %0 = arith.cmpi eq, %arg1, %c0_i32 : i32
    %1 = arith.extui %0 : i1 to i32
    %c0_i32_0 = arith.constant 0 : i32
    %2 = arith.cmpi ne, %1, %c0_i32_0 : i32
    scf.if %2 {
      %c0_10 = arith.constant 0 : index
      %c0_11 = arith.constant 0 : index
      %15 = vector.load %arg2[%c0_10, %c0_11] : memref<480x4xf32, #tpu.memory_space<vmem>>, vector<480x4xf32>
      %cst_12 = arith.constant 2.000000e+01 : f32
      %16 = vector.broadcast %cst_12 : f32 to vector<480x4xf32>
      %17 = arith.mulf %15, %16 : vector<480x4xf32>
      %18 = math.roundeven %17 : vector<480x4xf32>
      %cst_13 = arith.constant 1.280000e+02 : f32
      %19 = vector.broadcast %cst_13 : f32 to vector<480x4xf32>
      %20 = arith.addf %18, %19 : vector<480x4xf32>
      %cst_14 = arith.constant 0.000000e+00 : f32
      %cst_15 = arith.constant 2.550000e+02 : f32
      %21 = vector.broadcast %cst_14 : f32 to vector<480x4xf32>
      %22 = arith.maximumf %21, %20 : vector<480x4xf32>
      %23 = vector.broadcast %cst_15 : f32 to vector<480x4xf32>
      %24 = arith.minimumf %23, %22 : vector<480x4xf32>
      %cst_16 = arith.constant 1.280000e+02 : f32
      %25 = vector.broadcast %cst_16 : f32 to vector<480x4xf32>
      %26 = arith.subf %24, %25 : vector<480x4xf32>
      %cst_17 = arith.constant 5.000000e-02 : f32
      %27 = vector.broadcast %cst_17 : f32 to vector<480x4xf32>
      %28 = arith.mulf %26, %27 : vector<480x4xf32>
      %29 = arith.truncf %28 : vector<480x4xf32> to vector<480x4xbf16>
      %c0_18 = arith.constant 0 : index
      %c0_19 = arith.constant 0 : index
      %30 = vector.load %arg7[%c0_18, %c0_19] : memref<520x4xbf16, #tpu.memory_space<vmem>>, vector<480x4xbf16>
      tpu.vector_store %arg7[%c0_18, %c0_19], %29 {strides = array<i32>} : memref<520x4xbf16, #tpu.memory_space<vmem>>, vector<480x4xbf16>,
      %c0_20 = arith.constant 0 : index
      %c0_21 = arith.constant 0 : index
      %31 = vector.load %arg3[%c0_20, %c0_21] : memref<40x4xf32, #tpu.memory_space<vmem>>, vector<40x4xf32>
      %cst_22 = arith.constant 2.000000e+01 : f32
      %32 = vector.broadcast %cst_22 : f32 to vector<40x4xf32>
      %33 = arith.mulf %31, %32 : vector<40x4xf32>
      %34 = math.roundeven %33 : vector<40x4xf32>
      %cst_23 = arith.constant 1.280000e+02 : f32
      %35 = vector.broadcast %cst_23 : f32 to vector<40x4xf32>
      %36 = arith.addf %34, %35 : vector<40x4xf32>
      %cst_24 = arith.constant 0.000000e+00 : f32
      %cst_25 = arith.constant 2.550000e+02 : f32
      %37 = vector.broadcast %cst_24 : f32 to vector<40x4xf32>
      %38 = arith.maximumf %37, %36 : vector<40x4xf32>
      %39 = vector.broadcast %cst_25 : f32 to vector<40x4xf32>
      %40 = arith.minimumf %39, %38 : vector<40x4xf32>
      %cst_26 = arith.constant 1.280000e+02 : f32
      %41 = vector.broadcast %cst_26 : f32 to vector<40x4xf32>
      %42 = arith.subf %40, %41 : vector<40x4xf32>
      %cst_27 = arith.constant 5.000000e-02 : f32
      %43 = vector.broadcast %cst_27 : f32 to vector<40x4xf32>
      %44 = arith.mulf %42, %43 : vector<40x4xf32>
      %45 = arith.truncf %44 : vector<40x4xf32> to vector<40x4xbf16>
      %c480 = arith.constant 480 : index
      %c0_28 = arith.constant 0 : index
      %46 = vector.load %arg7[%c480, %c0_28] : memref<520x4xbf16, #tpu.memory_space<vmem>>, vector<40x4xbf16>
      tpu.vector_store %arg7[%c480, %c0_28], %45 {strides = array<i32>} : memref<520x4xbf16, #tpu.memory_space<vmem>>, vector<40x4xbf16>,
      %cst_29 = arith.constant 0.000000e+00 : bf16
      %47 = vector.broadcast %cst_29 : bf16 to vector<480x92xbf16>
      %c0_30 = arith.constant 0 : index
      %c36 = arith.constant 36 : index
      %48 = vector.load %arg8[%c0_30, %c36] : memref<480x128xbf16, #tpu.memory_space<vmem>>, vector<480x92xbf16>
      tpu.vector_store %arg8[%c0_30, %c36], %47 {strides = array<i32>} : memref<480x128xbf16, #tpu.memory_space<vmem>>, vector<480x92xbf16>,
      %c0_31 = arith.constant 0 : index
      %c0_32 = arith.constant 0 : index
      %49 = vector.load %arg7[%c0_31, %c0_32] : memref<520x4xbf16, #tpu.memory_space<vmem>>, vector<480x4xbf16>
      %c0_33 = arith.constant 0 : index
      %c0_34 = arith.constant 0 : index
      %50 = vector.load %arg8[%c0_33, %c0_34] : memref<480x128xbf16, #tpu.memory_space<vmem>>, vector<480x4xbf16>
      tpu.vector_store %arg8[%c0_33, %c0_34], %49 {strides = array<i32>} : memref<480x128xbf16, #tpu.memory_space<vmem>>, vector<480x4xbf16>,
      %c1 = arith.constant 1 : index
      %c0_35 = arith.constant 0 : index
      %51 = vector.load %arg7[%c1, %c0_35] : memref<520x4xbf16, #tpu.memory_space<vmem>>, vector<480x4xbf16>
      %c0_36 = arith.constant 0 : index
      %c4 = arith.constant 4 : index
      %52 = vector.load %arg8[%c0_36, %c4] : memref<480x128xbf16, #tpu.memory_space<vmem>>, vector<480x4xbf16>
      tpu.vector_store %arg8[%c0_36, %c4], %51 {strides = array<i32>} : memref<480x128xbf16, #tpu.memory_space<vmem>>, vector<480x4xbf16>,
      %c2 = arith.constant 2 : index
      %c0_37 = arith.constant 0 : index
      %53 = vector.load %arg7[%c2, %c0_37] : memref<520x4xbf16, #tpu.memory_space<vmem>>, vector<480x4xbf16>
      %c0_38 = arith.constant 0 : index
      %c8 = arith.constant 8 : index
      %54 = vector.load %arg8[%c0_38, %c8] : memref<480x128xbf16, #tpu.memory_space<vmem>>, vector<480x4xbf16>
      tpu.vector_store %arg8[%c0_38, %c8], %53 {strides = array<i32>} : memref<480x128xbf16, #tpu.memory_space<vmem>>, vector<480x4xbf16>,
      %c18 = arith.constant 18 : index
      %c0_39 = arith.constant 0 : index
      %55 = vector.load %arg7[%c18, %c0_39] : memref<520x4xbf16, #tpu.memory_space<vmem>>, vector<480x4xbf16>
      %c0_40 = arith.constant 0 : index
      %c12 = arith.constant 12 : index
      %56 = vector.load %arg8[%c0_40, %c12] : memref<480x128xbf16, #tpu.memory_space<vmem>>, vector<480x4xbf16>
      tpu.vector_store %arg8[%c0_40, %c12], %55 {strides = array<i32>} : memref<480x128xbf16, #tpu.memory_space<vmem>>, vector<480x4xbf16>,
      %c19 = arith.constant 19 : index
      %c0_41 = arith.constant 0 : index
      %57 = vector.load %arg7[%c19, %c0_41] : memref<520x4xbf16, #tpu.memory_space<vmem>>, vector<480x4xbf16>
      %c0_42 = arith.constant 0 : index
      %c16 = arith.constant 16 : index
      %58 = vector.load %arg8[%c0_42, %c16] : memref<480x128xbf16, #tpu.memory_space<vmem>>, vector<480x4xbf16>
      tpu.vector_store %arg8[%c0_42, %c16], %57 {strides = array<i32>} : memref<480x128xbf16, #tpu.memory_space<vmem>>, vector<480x4xbf16>,
      %c20 = arith.constant 20 : index
      %c0_43 = arith.constant 0 : index
      %59 = vector.load %arg7[%c20, %c0_43] : memref<520x4xbf16, #tpu.memory_space<vmem>>, vector<480x4xbf16>
      %c0_44 = arith.constant 0 : index
      %c20_45 = arith.constant 20 : index
      %60 = vector.load %arg8[%c0_44, %c20_45] : memref<480x128xbf16, #tpu.memory_space<vmem>>, vector<480x4xbf16>
      tpu.vector_store %arg8[%c0_44, %c20_45], %59 {strides = array<i32>} : memref<480x128xbf16, #tpu.memory_space<vmem>>, vector<480x4xbf16>,
      %c36_46 = arith.constant 36 : index
      %c0_47 = arith.constant 0 : index
      %61 = vector.load %arg7[%c36_46, %c0_47] : memref<520x4xbf16, #tpu.memory_space<vmem>>, vector<480x4xbf16>
      %c0_48 = arith.constant 0 : index
      %c24 = arith.constant 24 : index
      %62 = vector.load %arg8[%c0_48, %c24] : memref<480x128xbf16, #tpu.memory_space<vmem>>, vector<480x4xbf16>
      tpu.vector_store %arg8[%c0_48, %c24], %61 {strides = array<i32>} : memref<480x128xbf16, #tpu.memory_space<vmem>>, vector<480x4xbf16>,
      %c37 = arith.constant 37 : index
      %c0_49 = arith.constant 0 : index
      %63 = vector.load %arg7[%c37, %c0_49] : memref<520x4xbf16, #tpu.memory_space<vmem>>, vector<480x4xbf16>
      %c0_50 = arith.constant 0 : index
      %c28 = arith.constant 28 : index
      %64 = vector.load %arg8[%c0_50, %c28] : memref<480x128xbf16, #tpu.memory_space<vmem>>, vector<480x4xbf16>
      tpu.vector_store %arg8[%c0_50, %c28], %63 {strides = array<i32>} : memref<480x128xbf16, #tpu.memory_space<vmem>>, vector<480x4xbf16>,
      %c38 = arith.constant 38 : index
      %c0_51 = arith.constant 0 : index
      %65 = vector.load %arg7[%c38, %c0_51] : memref<520x4xbf16, #tpu.memory_space<vmem>>, vector<480x4xbf16>
      %c0_52 = arith.constant 0 : index
      %c32 = arith.constant 32 : index
      %66 = vector.load %arg8[%c0_52, %c32] : memref<480x128xbf16, #tpu.memory_space<vmem>>, vector<480x4xbf16>
      tpu.vector_store %arg8[%c0_52, %c32], %65 {strides = array<i32>} : memref<480x128xbf16, #tpu.memory_space<vmem>>, vector<480x4xbf16>,
    } else {
    }
    %c0 = arith.constant 0 : index
    %c0_1 = arith.constant 0 : index
    %3 = vector.load %arg8[%c0, %c0_1] : memref<480x128xbf16, #tpu.memory_space<vmem>>, vector<480x128xbf16>
    %c0_2 = arith.constant 0 : index
    %c0_3 = arith.constant 0 : index
    %4 = vector.load %arg4[%c0_2, %c0_3] : memref<128x128xbf16, #tpu.memory_space<vmem>>, vector<128x128xbf16>
    %cst = arith.constant dense<0.000000e+00> : vector<480x128xf32>
    %5 = tpu.matmul %3, %4, %cst {dimension_numbers = #tpu.dot_dimension_numbers<[1], [0], [0], [1], [0, 0, 1, 1], [], []>} : vector<480x128xbf16>, vector<128x128xbf16>, vector<480x128xf32> -> vector<480x128xf32>
    %c0_4 = arith.constant 0 : index
    %c0_5 = arith.constant 0 : index
    %6 = vector.load %arg5[%c0_4, %c0_5] : memref<1x128xf32, #tpu.memory_space<vmem>>, vector<1x128xf32>
    %7 = vector.broadcast %6 : vector<1x128xf32> to vector<480x128xf32>
    %8 = arith.addf %5, %7 : vector<480x128xf32>
    %cst_6 = arith.constant 0.000000e+00 : f32
    %9 = vector.broadcast %cst_6 : f32 to vector<480x128xf32>
    %10 = arith.cmpf oge, %8, %9 : vector<480x128xf32>
    %cst_7 = arith.constant 1.000000e-01 : f32
    %11 = vector.broadcast %cst_7 : f32 to vector<480x128xf32>
    %12 = arith.mulf %11, %8 : vector<480x128xf32>
    %13 = arith.select %10, %8, %12 : vector<480x128xi1>, vector<480x128xf32>
    %c0_8 = arith.constant 0 : index
    %c0_9 = arith.constant 0 : index
    %14 = vector.load %arg6[%c0_8, %c0_9] : memref<480x128xf32, #tpu.memory_space<vmem>>, vector<480x128xf32>
    tpu.vector_store %arg6[%c0_8, %c0_9], %13 {strides = array<i32>} : memref<480x128xf32, #tpu.memory_space<vmem>>, vector<480x128xf32>,
    return
  }
  func.func @transform_0(%arg0: i32, %arg1: i32) -> (i32, i32) {
    %c0_i32 = arith.constant 0 : i32
    %c0_i32_0 = arith.constant 0 : i32
    return %arg0, %c0_i32 : i32, i32
  }
  func.func @transform_1(%arg0: i32, %arg1: i32) -> (i32, i32) {
    %c1_i32 = arith.constant 1 : i32
    %0 = arith.addi %arg0, %c1_i32 : i32
    %c12_i32 = arith.constant 12 : i32
    %1 = arith.muli %0, %c12_i32 : i32
    %c0_i32 = arith.constant 0 : i32
    %c0_i32_0 = arith.constant 0 : i32
    return %1, %c0_i32 : i32, i32
  }
  func.func @transform_2(%arg0: i32, %arg1: i32) -> (i32, i32) {
    %c0_i32 = arith.constant 0 : i32
    %c0_i32_0 = arith.constant 0 : i32
    return %c0_i32, %arg1 : i32, i32
  }
  func.func @transform_3(%arg0: i32, %arg1: i32) -> (i32, i32) {
    %c0_i32 = arith.constant 0 : i32
    %c0_i32_0 = arith.constant 0 : i32
    return %c0_i32, %arg1 : i32, i32
  }
  func.func @transform_4(%arg0: i32, %arg1: i32) -> (i32, i32) {
    %c0_i32 = arith.constant 0 : i32
    return %arg0, %arg1 : i32, i32
  }
}

</mosaic_0001>

<llo_original>
// kernel: qat_forward.1
$region0: #{qat_forward.1}
  #allocation0 [shape = 'u32[]', space=smem, size = 0x4, offset = 0x4, fixed_abs, tag = 'smem constant byte address 0x4 - core index']
  #allocation1 [shape = 'u32[72,128]{1,0:T(1,128)}', space=vmem, size = 0x9000, scoped, tag = 'internal scratch']
  #allocation2 [shape = 'bf16[520,4]{1,0:T(8,128)(2,1)}', space=vmem, size = 0x20800, scoped, tag = 'scratch operand']
  #allocation3 [shape = 'bf16[480,128]{1,0:T(8,128)(2,1)}', space=vmem, size = 0x1e000, scoped, tag = 'scratch operand']
  %s0 = inlined_call_operand.vmem [shape: f32[1000,4], index: 0, kind: input, shape index: {}, may-alias: {0,1}]
  %s1 = inlined_call_operand.vmem [shape: f32[1000,4], index: 1, kind: input, shape index: {}, may-alias: {0,1}]
  %s2 = inlined_call_operand.vmem [shape: bf16[128,128], index: 2, kind: input, shape index: {}]
  %s3 = inlined_call_operand.vmem [shape: f32[1,128], index: 3, kind: input, shape index: {}]
  %s4 = inlined_call_operand.vmem [shape: f32[960,128], index: 4, kind: output, shape index: {}]
  %s5 = sld [smem:[#allocation0]]
  $region53: #{qat_forward.1} parent=0
    _
  %s7 = ssub.s32 1, %s5
  %s8 = scalar_select 0, %s7, %s5
  loop: start=0, step=1, limit=4
  $region2: #{qat_forward.1} parent=0 // loop_pre_header
    _
  $region3: #{qat_forward.1} parent=0 // loop_header
    %s10 = sphi 0, %s14
    %p11 = scmp.ge.s32.totalorder %s10, 4
    %s17 = sphi 0, %s29
    %s18 = sphi 0, %s25
    %s19 = sphi 0, %s17
    %s20 = sphi 0, %s18
    %s21 = sphi 0, %s19
    %s22 = sphi 0, %s20
    %s32 = sphi 0, %s34
    %s35 = sphi 0, %s32
    %s36 = sphi 0, %s35
    %s52 = sphi 0, %s36
    %s62 = sphi 0, %s64
    %s65 = sphi 0, %s62
    %s66 = sphi 0, %s65
    %s82 = sphi 0, %s66
    %s88 = sphi 0, %s90
    %s91 = sphi 0, %s88
    %s92 = sphi 0, %s91
    %s108 = sphi 0, %s92
    %s114 = sphi 0, %s116
    %s117 = sphi 0, %s114
    %s118 = sphi 0, %s117
    %s134 = sphi 0, %s118
    %s142 = sphi 0, %s144
    %s145 = sphi 0, %s142
    %s146 = sphi 0, %s145
    %s162 = sphi 0, %s146
  $region4: #{qat_forward.1} parent=0 // loop_header_branch
    %13 = sbr.rel (%p11) target = $region8
  $region5: #{qat_forward.1} parent=0 // loop_body
    %s15 = ssub.s32 %s10, 1
    %s16 = ssub.s32 %s10, 2
    %s23 = sadd.s32 1, %s18
    %p24 = scmp.ge.s32.totalorder %s23, 1
    %s25 = scalar_select %p24, 0, %s23
    %s26 = sadd.s32 1, %s17
    %s27 = scalar_select %p24, %s26, %s17
    %p28 = scmp.ge.s32.totalorder %s27, 2
    %s29 = scalar_select %p28, 0, %s27
    %s30 = ssub.s32 %s17, %s29
    %p31 = scmp.eq.s32.totalorder %s30, 0
    %s33 = sadd.s32 %s32, 1
    %s34 = scalar_select %p31, %s32, %s33
    %p37 = pneg %p31
    %p38 = scmp.eq.s32.totalorder %s10, 1
    %p39 = por %p37, %p38
    %p40 = scmp.ne.s32.totalorder %s32, %s35
    %p41 = scmp.eq.s32.totalorder %s10, 0
    %p42 = por %p40, %p41
    %p43 = scmp.ne.s32.totalorder %s32, %s35
    %p44 = scmp.eq.s32.totalorder %s15, 1
    %p45 = por %p43, %p44
    %p46 = scmp.ne.s32.totalorder %s35, %s36
    %p47 = scmp.eq.s32.totalorder %s15, 0
    %p48 = por %p46, %p47
    %p49 = scmp.ne.s32.totalorder %s35, %s36
    %p50 = scmp.eq.s32.totalorder %s16, 1
    %p51 = por %p49, %p50
    %p53 = scmp.ne.s32.totalorder %s36, %s52
    %p54 = scmp.eq.s32.totalorder %s16, 0
    %p55 = por %p53, %p54
    %s56 = sadd.s32 %s17, 1
    %s57 = smul.u32 %s56, 12
    %s58 = sadd.s32 %s29, 1
    %s59 = smul.u32 %s58, 12
    %s60 = ssub.s32 %s57, %s59
    %p61 = scmp.eq.s32.totalorder %s60, 0
    %s63 = sadd.s32 %s62, 1
    %s64 = scalar_select %p61, %s62, %s63
    %p67 = pneg %p61
    %p68 = scmp.eq.s32.totalorder %s10, 1
    %p69 = por %p67, %p68
    %p70 = scmp.ne.s32.totalorder %s62, %s65
    %p71 = scmp.eq.s32.totalorder %s10, 0
    %p72 = por %p70, %p71
    %p73 = scmp.ne.s32.totalorder %s62, %s65
    %p74 = scmp.eq.s32.totalorder %s15, 1
    %p75 = por %p73, %p74
    %p76 = scmp.ne.s32.totalorder %s65, %s66
    %p77 = scmp.eq.s32.totalorder %s15, 0
    %p78 = por %p76, %p77
    %p79 = scmp.ne.s32.totalorder %s65, %s66
    %p80 = scmp.eq.s32.totalorder %s16, 1
    %p81 = por %p79, %p80
    %p83 = scmp.ne.s32.totalorder %s66, %s82
    %p84 = scmp.eq.s32.totalorder %s16, 0
    %p85 = por %p83, %p84
    %s86 = ssub.s32 %s18, %s25
    %p87 = scmp.eq.s32.totalorder %s86, 0
    %s89 = sadd.s32 %s88, 1
    %s90 = scalar_select %p87, %s88, %s89
    %p93 = pneg %p87
    %p94 = scmp.eq.s32.totalorder %s10, 1
    %p95 = por %p93, %p94
    %p96 = scmp.ne.s32.totalorder %s88, %s91
    %p97 = scmp.eq.s32.totalorder %s10, 0
    %p98 = por %p96, %p97
    %p99 = scmp.ne.s32.totalorder %s88, %s91
    %p100 = scmp.eq.s32.totalorder %s15, 1
    %p101 = por %p99, %p100
    %p102 = scmp.ne.s32.totalorder %s91, %s92
    %p103 = scmp.eq.s32.totalorder %s15, 0
    %p104 = por %p102, %p103
    %p105 = scmp.ne.s32.totalorder %s91, %s92
    %p106 = scmp.eq.s32.totalorder %s16, 1
    %p107 = por %p105, %p106
    %p109 = scmp.ne.s32.totalorder %s92, %s108
    %p110 = scmp.eq.s32.totalorder %s16, 0
    %p111 = por %p109, %p110
    %s112 = ssub.s32 %s18, %s25
    %p113 = scmp.eq.s32.totalorder %s112, 0
    %s115 = sadd.s32 %s114, 1
    %s116 = scalar_select %p113, %s114, %s115
    %p119 = pneg %p113
    %p120 = scmp.eq.s32.totalorder %s10, 1
    %p121 = por %p119, %p120
    %p122 = scmp.ne.s32.totalorder %s114, %s117
    %p123 = scmp.eq.s32.totalorder %s10, 0
    %p124 = por %p122, %p123
    %p125 = scmp.ne.s32.totalorder %s114, %s117
    %p126 = scmp.eq.s32.totalorder %s15, 1
    %p127 = por %p125, %p126
    %p128 = scmp.ne.s32.totalorder %s117, %s118
    %p129 = scmp.eq.s32.totalorder %s15, 0
    %p130 = por %p128, %p129
    %p131 = scmp.ne.s32.totalorder %s117, %s118
    %p132 = scmp.eq.s32.totalorder %s16, 1
    %p133 = por %p131, %p132
    %p135 = scmp.ne.s32.totalorder %s118, %s134
    %p136 = scmp.eq.s32.totalorder %s16, 0
    %p137 = por %p135, %p136
    %s138 = ssub.s32 %s17, %s29
    %s139 = ssub.s32 %s18, %s25
    %s140 = sor.u32 %s138, %s139
    %p141 = scmp.eq.s32.totalorder %s140, 0
    %s143 = sadd.s32 %s142, 1
    %s144 = scalar_select %p141, %s142, %s143
    %p147 = pneg %p141
    %p148 = scmp.eq.s32.totalorder %s10, 1
    %p149 = por %p147, %p148
    %p150 = scmp.ne.s32.totalorder %s142, %s145
    %p151 = scmp.eq.s32.totalorder %s10, 0
    %p152 = por %p150, %p151
    %p153 = scmp.ne.s32.totalorder %s142, %s145
    %p154 = scmp.eq.s32.totalorder %s15, 1
    %p155 = por %p153, %p154
    %p156 = scmp.ne.s32.totalorder %s145, %s146
    %p157 = scmp.eq.s32.totalorder %s15, 0
    %p158 = por %p156, %p157
    %p159 = scmp.ne.s32.totalorder %s145, %s146
    %p160 = scmp.eq.s32.totalorder %s16, 1
    %p161 = por %p159, %p160
    %p163 = scmp.ne.s32.totalorder %s146, %s162
    %p164 = scmp.eq.s32.totalorder %s16, 0
    %p165 = por %p163, %p164
    %p166 = scmp.le.s32.totalorder 1, %s10
    %p167 = scmp.lt.s32.totalorder %s10, 3
    %p168 = pnand %p166, %p167
    %p169 = pneg %p168
    // Predicated region
    $region9: #{qat_forward.1} parent=5 // pred_check
      _
    $region10: #{qat_forward.1} parent=5 // pred_check_branch
      %171 = sbr.rel (%p168) target = $region12
    $region11: #{qat_forward.1} parent=5 // pred_region
      %s172 = ssub.s32 %s10, 1
      // Predicated region
      $region13: #{qat_forward.1} parent=11 // pred_check
        %p173 = pneg %p104
      $region14: #{qat_forward.1} parent=11 // pred_check_branch
        %175 = sbr.rel (%p173) target = $region16
      $region15: #{qat_forward.1} parent=11 // pred_region
        %p176 = scmp.lt.s32.totalorder %s20, 0
        %s177 = scalar_select %p176, %s20, 0
        %s178 = smul.addr %s177, 4
        %s179 = scalar_lea.vmem %s2, %s178
      $region16: #{qat_forward.1} parent=11 // pred_fallthru
        _
      // Predicated region
      $region17: #{qat_forward.1} parent=11 // pred_check
        %p180 = pneg %p130
      $region18: #{qat_forward.1} parent=11 // pred_check_branch
        %182 = sbr.rel (%p180) target = $region20
      $region19: #{qat_forward.1} parent=11 // pred_region
        %p183 = scmp.lt.s32.totalorder %s20, 0
        %s184 = scalar_select %p183, %s20, 0
        %s185 = scalar_lea.vmem %s3, %s184
      $region20: #{qat_forward.1} parent=11 // pred_fallthru
        _
    $region12: #{qat_forward.1} parent=5 // pred_fallthru
      _
    %p186 = scmp.lt.s32.totalorder %s10, 2
    // Predicated region
    $region21: #{qat_forward.1} parent=5 // pred_check
      %p187 = pneg %p186
    $region22: #{qat_forward.1} parent=5 // pred_check_branch
      %189 = sbr.rel (%p187) target = $region24
    $region23: #{qat_forward.1} parent=5 // pred_region
      // Predicated region
      $region25: #{qat_forward.1} parent=23 // pred_check
        %p190 = pneg %p42
      $region26: #{qat_forward.1} parent=23 // pred_check_branch
        %192 = sbr.rel (%p190) target = $region28
      $region27: #{qat_forward.1} parent=23 // pred_region
        %s193 = smul.u32 60, %s17
        %s194 = ssub.s32 125, %s193
        %p195 = scmp.lt.s32.totalorder %s194, 60
        %s196 = scalar_select %p195, %s194, 60
        %s197 = smul.u32 8, %s196
        %p198 = scmp.lt.s32.totalorder %s193, 124
        %s199 = scalar_select %p198, %s193, 124
        %s200 = smul.addr %s199, 8
        %s201 = scalar_lea.vmem %s0, %s200
        %s202 = smul.u32 60, %s17
        %s203 = ssub.s32 125, %s202
        %p204 = scmp.lt.s32.totalorder %s203, 60
        %s205 = scalar_select %p204, %s203, 60
        %s206 = smul.u32 8, %s205
      $region28: #{qat_forward.1} parent=23 // pred_fallthru
        _
      // Predicated region
      $region29: #{qat_forward.1} parent=23 // pred_check
        %p207 = pneg %p72
      $region30: #{qat_forward.1} parent=23 // pred_check_branch
        %209 = sbr.rel (%p207) target = $region32
      $region31: #{qat_forward.1} parent=23 // pred_region
        %s210 = sadd.s32 %s17, 1
        %s211 = smul.u32 %s210, 12
        %s212 = smul.u32 5, %s211
        %p213 = scmp.lt.s32.totalorder %s212, 124
        %s214 = scalar_select %p213, %s212, 124
        %s215 = smul.addr %s214, 8
        %s216 = scalar_lea.vmem %s1, %s215
        %s217 = sadd.s32 %s17, 1
        %s218 = smul.u32 %s217, 12
        %s219 = smul.u32 5, %s218
      $region32: #{qat_forward.1} parent=23 // pred_fallthru
        _
    $region24: #{qat_forward.1} parent=5 // pred_fallthru
      _
    %p220 = scmp.le.s32.totalorder 1, %s10
    %p221 = scmp.lt.s32.totalorder %s10, 3
    %p222 = pnand %p220, %p221
    %p223 = pneg %p222
    // Predicated region
    $region33: #{qat_forward.1} parent=5 // pred_check
      _
    $region34: #{qat_forward.1} parent=5 // pred_check_branch
      %225 = sbr.rel (%p222) target = $region36
    $region35: #{qat_forward.1} parent=5 // pred_region
      %s226 = ssub.s32 %s10, 1
      %s227 = smul.u32 60, %s19
      %s228 = ssub.s32 125, %s227
      %p229 = scmp.lt.s32.totalorder %s228, 60
      %s230 = scalar_select %p229, %s228, 60
      %s231 = smul.u32 8, %s230
      %p232 = scmp.lt.s32.totalorder %s227, 124
      %s233 = scalar_select %p232, %s227, 124
      %s234 = smul.addr %s233, 8
      %s235 = scalar_lea.vmem %s0, %s234
      %p236 = pneg %p48
      %p237 = pneg %p45
      %s238 = sadd.s32 %s19, 1
      %s239 = smul.u32 %s238, 12
      %s240 = smul.u32 5, %s239
      %p241 = scmp.lt.s32.totalorder %s240, 124
      %s242 = scalar_select %p241, %s240, 124
      %s243 = smul.addr %s242, 8
      %s244 = scalar_lea.vmem %s1, %s243
      %p245 = pneg %p78
      %p246 = pneg %p75
      %p247 = scmp.lt.s32.totalorder %s20, 0
      %s248 = scalar_select %p247, %s20, 0
      %s249 = smul.addr %s248, 4
      %s250 = scalar_lea.vmem %s2, %s249
      %p251 = pneg %p104
      %p252 = pneg %p101
      %p253 = scmp.lt.s32.totalorder %s20, 0
      %s254 = scalar_select %p253, %s20, 0
      %s255 = scalar_lea.vmem %s3, %s254
      %p256 = pneg %p130
      %p257 = pneg %p127
      %p258 = pneg %p158
      %p259 = pneg %p155
      %s260 = smul.u32 60, %s19
      %p261 = scmp.lt.s32.totalorder %s260, 119
      %s262 = scalar_select %p261, %s260, 119
      %p263 = scmp.lt.s32.totalorder %s20, 0
      %s264 = scalar_select %p263, %s20, 0
      %s265 = sadd.s32 %s264, %s262
      %s266 = smul.addr %s265, 8
      %s267 = scalar_lea.vmem %s4, %s266
      %s268 = smul.u32 60, %s19
      %s269 = ssub.s32 125, %s268
      %p270 = scmp.lt.s32.totalorder %s269, 60
      %s271 = scalar_select %p270, %s269, 60
      %s272 = smul.u32 8, %s271
      %p273 = scmp.lt.s32.totalorder %s268, 124
      %s274 = scalar_select %p273, %s268, 124
      %s275 = smul.addr %s274, 8
      %s276 = scalar_lea.vmem %s0, %s275
      %s277 = smul.u32 60, %s19
      %s278 = ssub.s32 125, %s277
      %p279 = scmp.lt.s32.totalorder %s278, 60
      %s280 = scalar_select %p279, %s278, 60
      %s281 = smul.u32 8, %s280
      %s282 = sadd.s32 %s19, 1
      %s283 = smul.u32 %s282, 12
      %s284 = smul.u32 5, %s283
      %p285 = scmp.lt.s32.totalorder %s284, 124
      %s286 = scalar_select %p285, %s284, 124
      %s287 = smul.addr %s286, 8
      %s288 = scalar_lea.vmem %s1, %s287
      %s289 = sadd.s32 %s19, 1
      %s290 = smul.u32 %s289, 12
      %s291 = smul.u32 5, %s290
      %p292 = scmp.lt.s32.totalorder %s20, 0
      %s293 = scalar_select %p292, %s20, 0
      %s294 = smul.addr %s293, 4
      %s295 = scalar_lea.vmem %s2, %s294
      %p296 = scmp.lt.s32.totalorder %s20, 0
      %s297 = scalar_select %p296, %s20, 0
      %s298 = scalar_lea.vmem %s3, %s297
      %s299 = smul.u32 60, %s19
      %p300 = scmp.lt.s32.totalorder %s299, 119
      %s301 = scalar_select %p300, %s299, 119
      %p302 = scmp.lt.s32.totalorder %s20, 0
      %s303 = scalar_select %p302, %s20, 0
      %s304 = sadd.s32 %s303, %s301
      %s305 = smul.addr %s304, 8
      %s306 = scalar_lea.vmem %s4, %s305
      %s307 = smul.u32 60, %s19
      %p309 = scmp.eq.s32.totalorder %s20, 0
      // Predicated region
      $region37: #{qat_forward.1} parent=35 // pred_check
        %p310 = pneg %p309
      $region38: #{qat_forward.1} parent=35 // pred_check_branch
        %312 = sbr.rel (%p310) target = $region40
      $region39: #{qat_forward.1} parent=35 // pred_region
        %v313 = vld [vmem:[%s276] sm:$0xff]
        %v314 = vld [vmem:[%s276 + $0x8] sm:$0xff]
        %v315 = vld [vmem:[%s276 + $0x10] sm:$0xff]
        %v316 = vld [vmem:[%s276 + $0x18] sm:$0xff]
        %v317 = vld [vmem:[%s276 + $0x20] sm:$0xff]
        %v318 = vld [vmem:[%s276 + $0x28] sm:$0xff]
        %v319 = vld [vmem:[%s276 + $0x30] sm:$0xff]
        %v320 = vld [vmem:[%s276 + $0x38] sm:$0xff]
        %v321 = vld [vmem:[%s276 + $0x40] sm:$0xff]
        %v322 = vld [vmem:[%s276 + $0x48] sm:$0xff]
        %v323 = vld [vmem:[%s276 + $0x50] sm:$0xff]
        %v324 = vld [vmem:[%s276 + $0x58] sm:$0xff]
        %v325 = vld [vmem:[%s276 + $0x60] sm:$0xff]
        %v326 = vld [vmem:[%s276 + $0x68] sm:$0xff]
        %v327 = vld [vmem:[%s276 + $0x70] sm:$0xff]
        %v328 = vld [vmem:[%s276 + $0x78] sm:$0xff]
        %v329 = vld [vmem:[%s276 + $0x80] sm:$0xff]
        %v330 = vld [vmem:[%s276 + $0x88] sm:$0xff]
        %v331 = vld [vmem:[%s276 + $0x90] sm:$0xff]
        %v332 = vld [vmem:[%s276 + $0x98] sm:$0xff]
        %v333 = vld [vmem:[%s276 + $0xa0] sm:$0xff]
        %v334 = vld [vmem:[%s276 + $0xa8] sm:$0xff]
        %v335 = vld [vmem:[%s276 + $0xb0] sm:$0xff]
        %v336 = vld [vmem:[%s276 + $0xb8] sm:$0xff]
        %v337 = vld [vmem:[%s276 + $0xc0] sm:$0xff]
        %v338 = vld [vmem:[%s276 + $0xc8] sm:$0xff]
        %v339 = vld [vmem:[%s276 + $0xd0] sm:$0xff]
        %v340 = vld [vmem:[%s276 + $0xd8] sm:$0xff]
        %v341 = vld [vmem:[%s276 + $0xe0] sm:$0xff]
        %v342 = vld [vmem:[%s276 + $0xe8] sm:$0xff]
        %v343 = vld [vmem:[%s276 + $0xf0] sm:$0xff]
        %v344 = vld [vmem:[%s276 + $0xf8] sm:$0xff]
        %v345 = vld [vmem:[%s276 + $0x100] sm:$0xff]
        %v346 = vld [vmem:[%s276 + $0x108] sm:$0xff]
        %v347 = vld [vmem:[%s276 + $0x110] sm:$0xff]
        %v348 = vld [vmem:[%s276 + $0x118] sm:$0xff]
        %v349 = vld [vmem:[%s276 + $0x120] sm:$0xff]
        %v350 = vld [vmem:[%s276 + $0x128] sm:$0xff]
        %v351 = vld [vmem:[%s276 + $0x130] sm:$0xff]
        %v352 = vld [vmem:[%s276 + $0x138] sm:$0xff]
        %v353 = vld [vmem:[%s276 + $0x140] sm:$0xff]
        %v354 = vld [vmem:[%s276 + $0x148] sm:$0xff]
        %v355 = vld [vmem:[%s276 + $0x150] sm:$0xff]
        %v356 = vld [vmem:[%s276 + $0x158] sm:$0xff]
        %v357 = vld [vmem:[%s276 + $0x160] sm:$0xff]
        %v358 = vld [vmem:[%s276 + $0x168] sm:$0xff]
        %v359 = vld [vmem:[%s276 + $0x170] sm:$0xff]
        %v360 = vld [vmem:[%s276 + $0x178] sm:$0xff]
        %v361 = vld [vmem:[%s276 + $0x180] sm:$0xff]
        %v362 = vld [vmem:[%s276 + $0x188] sm:$0xff]
        %v363 = vld [vmem:[%s276 + $0x190] sm:$0xff]
        %v364 = vld [vmem:[%s276 + $0x198] sm:$0xff]
        %v365 = vld [vmem:[%s276 + $0x1a0] sm:$0xff]
        %v366 = vld [vmem:[%s276 + $0x1a8] sm:$0xff]
        %v367 = vld [vmem:[%s276 + $0x1b0] sm:$0xff]
        %v368 = vld [vmem:[%s276 + $0x1b8] sm:$0xff]
        %v369 = vld [vmem:[%s276 + $0x1c0] sm:$0xff]
        %v370 = vld [vmem:[%s276 + $0x1c8] sm:$0xff]
        %v371 = vld [vmem:[%s276 + $0x1d0] sm:$0xff]
        %v372 = vld [vmem:[%s276 + $0x1d8] sm:$0xff]
        %v373 = vmul.f32 %v313, 20.0
        %v374 = vmul.f32 %v314, 20.0
        %v375 = vmul.f32 %v315, 20.0
        %v376 = vmul.f32 %v316, 20.0
        %v377 = vmul.f32 %v317, 20.0
        %v378 = vmul.f32 %v318, 20.0
        %v379 = vmul.f32 %v319, 20.0
        %v380 = vmul.f32 %v320, 20.0
        %v381 = vmul.f32 %v321, 20.0
        %v382 = vmul.f32 %v322, 20.0
        %v383 = vmul.f32 %v323, 20.0
        %v384 = vmul.f32 %v324, 20.0
        %v385 = vmul.f32 %v325, 20.0
        %v386 = vmul.f32 %v326, 20.0
        %v387 = vmul.f32 %v327, 20.0
        %v388 = vmul.f32 %v328, 20.0
        %v389 = vmul.f32 %v329, 20.0
        %v390 = vmul.f32 %v330, 20.0
        %v391 = vmul.f32 %v331, 20.0
        %v392 = vmul.f32 %v332, 20.0
        %v393 = vmul.f32 %v333, 20.0
        %v394 = vmul.f32 %v334, 20.0
        %v395 = vmul.f32 %v335, 20.0
        %v396 = vmul.f32 %v336, 20.0
        %v397 = vmul.f32 %v337, 20.0
        %v398 = vmul.f32 %v338, 20.0
        %v399 = vmul.f32 %v339, 20.0
        %v400 = vmul.f32 %v340, 20.0
        %v401 = vmul.f32 %v341, 20.0
        %v402 = vmul.f32 %v342, 20.0
        %v403 = vmul.f32 %v343, 20.0
        %v404 = vmul.f32 %v344, 20.0
        %v405 = vmul.f32 %v345, 20.0
        %v406 = vmul.f32 %v346, 20.0
        %v407 = vmul.f32 %v347, 20.0
        %v408 = vmul.f32 %v348, 20.0
        %v409 = vmul.f32 %v349, 20.0
        %v410 = vmul.f32 %v350, 20.0
        %v411 = vmul.f32 %v351, 20.0
        %v412 = vmul.f32 %v352, 20.0
        %v413 = vmul.f32 %v353, 20.0
        %v414 = vmul.f32 %v354, 20.0
        %v415 = vmul.f32 %v355, 20.0
        %v416 = vmul.f32 %v356, 20.0
        %v417 = vmul.f32 %v357, 20.0
        %v418 = vmul.f32 %v358, 20.0
        %v419 = vmul.f32 %v359, 20.0
        %v420 = vmul.f32 %v360, 20.0
        %v421 = vmul.f32 %v361, 20.0
        %v422 = vmul.f32 %v362, 20.0
        %v423 = vmul.f32 %v363, 20.0
        %v424 = vmul.f32 %v364, 20.0
        %v425 = vmul.f32 %v365, 20.0
        %v426 = vmul.f32 %v366, 20.0
        %v427 = vmul.f32 %v367, 20.0
        %v428 = vmul.f32 %v368, 20.0
        %v429 = vmul.f32 %v369, 20.0
        %v430 = vmul.f32 %v370, 20.0
        %v431 = vmul.f32 %v371, 20.0
        %v432 = vmul.f32 %v372, 20.0
        %v433 = vround.ne.pseudo %v373
        %v434 = vround.ne.pseudo %v374
        %v435 = vround.ne.pseudo %v375
        %v436 = vround.ne.pseudo %v376
        %v437 = vround.ne.pseudo %v377
        %v438 = vround.ne.pseudo %v378
        %v439 = vround.ne.pseudo %v379
        %v440 = vround.ne.pseudo %v380
        %v441 = vround.ne.pseudo %v381
        %v442 = vround.ne.pseudo %v382
        %v443 = vround.ne.pseudo %v383
        %v444 = vround.ne.pseudo %v384
        %v445 = vround.ne.pseudo %v385
        %v446 = vround.ne.pseudo %v386
        %v447 = vround.ne.pseudo %v387
        %v448 = vround.ne.pseudo %v388
        %v449 = vround.ne.pseudo %v389
        %v450 = vround.ne.pseudo %v390
        %v451 = vround.ne.pseudo %v391
        %v452 = vround.ne.pseudo %v392
        %v453 = vround.ne.pseudo %v393
        %v454 = vround.ne.pseudo %v394
        %v455 = vround.ne.pseudo %v395
        %v456 = vround.ne.pseudo %v396
        %v457 = vround.ne.pseudo %v397
        %v458 = vround.ne.pseudo %v398
        %v459 = vround.ne.pseudo %v399
        %v460 = vround.ne.pseudo %v400
        %v461 = vround.ne.pseudo %v401
        %v462 = vround.ne.pseudo %v402
        %v463 = vround.ne.pseudo %v403
        %v464 = vround.ne.pseudo %v404
        %v465 = vround.ne.pseudo %v405
        %v466 = vround.ne.pseudo %v406
        %v467 = vround.ne.pseudo %v407
        %v468 = vround.ne.pseudo %v408
        %v469 = vround.ne.pseudo %v409
        %v470 = vround.ne.pseudo %v410
        %v471 = vround.ne.pseudo %v411
        %v472 = vround.ne.pseudo %v412
        %v473 = vround.ne.pseudo %v413
        %v474 = vround.ne.pseudo %v414
        %v475 = vround.ne.pseudo %v415
        %v476 = vround.ne.pseudo %v416
        %v477 = vround.ne.pseudo %v417
        %v478 = vround.ne.pseudo %v418
        %v479 = vround.ne.pseudo %v419
        %v480 = vround.ne.pseudo %v420
        %v481 = vround.ne.pseudo %v421
        %v482 = vround.ne.pseudo %v422
        %v483 = vround.ne.pseudo %v423
        %v484 = vround.ne.pseudo %v424
        %v485 = vround.ne.pseudo %v425
        %v486 = vround.ne.pseudo %v426
        %v487 = vround.ne.pseudo %v427
        %v488 = vround.ne.pseudo %v428
        %v489 = vround.ne.pseudo %v429
        %v490 = vround.ne.pseudo %v430
        %v491 = vround.ne.pseudo %v431
        %v492 = vround.ne.pseudo %v432
        %v493 = vadd.f32 %v433, 128.0
        %v494 = vadd.f32 %v434, 128.0
        %v495 = vadd.f32 %v435, 128.0
        %v496 = vadd.f32 %v436, 128.0
        %v497 = vadd.f32 %v437, 128.0
        %v498 = vadd.f32 %v438, 128.0
        %v499 = vadd.f32 %v439, 128.0
        %v500 = vadd.f32 %v440, 128.0
        %v501 = vadd.f32 %v441, 128.0
        %v502 = vadd.f32 %v442, 128.0
        %v503 = vadd.f32 %v443, 128.0
        %v504 = vadd.f32 %v444, 128.0
        %v505 = vadd.f32 %v445, 128.0
        %v506 = vadd.f32 %v446, 128.0
        %v507 = vadd.f32 %v447, 128.0
        %v508 = vadd.f32 %v448, 128.0
        %v509 = vadd.f32 %v449, 128.0
        %v510 = vadd.f32 %v450, 128.0
        %v511 = vadd.f32 %v451, 128.0
        %v512 = vadd.f32 %v452, 128.0
        %v513 = vadd.f32 %v453, 128.0
        %v514 = vadd.f32 %v454, 128.0
        %v515 = vadd.f32 %v455, 128.0
        %v516 = vadd.f32 %v456, 128.0
        %v517 = vadd.f32 %v457, 128.0
        %v518 = vadd.f32 %v458, 128.0
        %v519 = vadd.f32 %v459, 128.0
        %v520 = vadd.f32 %v460, 128.0
        %v521 = vadd.f32 %v461, 128.0
        %v522 = vadd.f32 %v462, 128.0
        %v523 = vadd.f32 %v463, 128.0
        %v524 = vadd.f32 %v464, 128.0
        %v525 = vadd.f32 %v465, 128.0
        %v526 = vadd.f32 %v466, 128.0
        %v527 = vadd.f32 %v467, 128.0
        %v528 = vadd.f32 %v468, 128.0
        %v529 = vadd.f32 %v469, 128.0
        %v530 = vadd.f32 %v470, 128.0
        %v531 = vadd.f32 %v471, 128.0
        %v532 = vadd.f32 %v472, 128.0
        %v533 = vadd.f32 %v473, 128.0
        %v534 = vadd.f32 %v474, 128.0
        %v535 = vadd.f32 %v475, 128.0
        %v536 = vadd.f32 %v476, 128.0
        %v537 = vadd.f32 %v477, 128.0
        %v538 = vadd.f32 %v478, 128.0
        %v539 = vadd.f32 %v479, 128.0
        %v540 = vadd.f32 %v480, 128.0
        %v541 = vadd.f32 %v481, 128.0
        %v542 = vadd.f32 %v482, 128.0
        %v543 = vadd.f32 %v483, 128.0
        %v544 = vadd.f32 %v484, 128.0
        %v545 = vadd.f32 %v485, 128.0
        %v546 = vadd.f32 %v486, 128.0
        %v547 = vadd.f32 %v487, 128.0
        %v548 = vadd.f32 %v488, 128.0
        %v549 = vadd.f32 %v489, 128.0
        %v550 = vadd.f32 %v490, 128.0
        %v551 = vadd.f32 %v491, 128.0
        %v552 = vadd.f32 %v492, 128.0
        %v553 = vmax.f32 %v493, 0.0
        %v554 = vmax.f32 %v494, 0.0
        %v555 = vmax.f32 %v495, 0.0
        %v556 = vmax.f32 %v496, 0.0
        %v557 = vmax.f32 %v497, 0.0
        %v558 = vmax.f32 %v498, 0.0
        %v559 = vmax.f32 %v499, 0.0
        %v560 = vmax.f32 %v500, 0.0
        %v561 = vmax.f32 %v501, 0.0
        %v562 = vmax.f32 %v502, 0.0
        %v563 = vmax.f32 %v503, 0.0
        %v564 = vmax.f32 %v504, 0.0
        %v565 = vmax.f32 %v505, 0.0
        %v566 = vmax.f32 %v506, 0.0
        %v567 = vmax.f32 %v507, 0.0
        %v568 = vmax.f32 %v508, 0.0
        %v569 = vmax.f32 %v509, 0.0
        %v570 = vmax.f32 %v510, 0.0
        %v571 = vmax.f32 %v511, 0.0
        %v572 = vmax.f32 %v512, 0.0
        %v573 = vmax.f32 %v513, 0.0
        %v574 = vmax.f32 %v514, 0.0
        %v575 = vmax.f32 %v515, 0.0
        %v576 = vmax.f32 %v516, 0.0
        %v577 = vmax.f32 %v517, 0.0
        %v578 = vmax.f32 %v518, 0.0
        %v579 = vmax.f32 %v519, 0.0
        %v580 = vmax.f32 %v520, 0.0
        %v581 = vmax.f32 %v521, 0.0
        %v582 = vmax.f32 %v522, 0.0
        %v583 = vmax.f32 %v523, 0.0
        %v584 = vmax.f32 %v524, 0.0
        %v585 = vmax.f32 %v525, 0.0
        %v586 = vmax.f32 %v526, 0.0
        %v587 = vmax.f32 %v527, 0.0
        %v588 = vmax.f32 %v528, 0.0
        %v589 = vmax.f32 %v529, 0.0
        %v590 = vmax.f32 %v530, 0.0
        %v591 = vmax.f32 %v531, 0.0
        %v592 = vmax.f32 %v532, 0.0
        %v593 = vmax.f32 %v533, 0.0
        %v594 = vmax.f32 %v534, 0.0
        %v595 = vmax.f32 %v535, 0.0
        %v596 = vmax.f32 %v536, 0.0
        %v597 = vmax.f32 %v537, 0.0
        %v598 = vmax.f32 %v538, 0.0
        %v599 = vmax.f32 %v539, 0.0
        %v600 = vmax.f32 %v540, 0.0
        %v601 = vmax.f32 %v541, 0.0
        %v602 = vmax.f32 %v542, 0.0
        %v603 = vmax.f32 %v543, 0.0
        %v604 = vmax.f32 %v544, 0.0
        %v605 = vmax.f32 %v545, 0.0
        %v606 = vmax.f32 %v546, 0.0
        %v607 = vmax.f32 %v547, 0.0
        %v608 = vmax.f32 %v548, 0.0
        %v609 = vmax.f32 %v549, 0.0
        %v610 = vmax.f32 %v550, 0.0
        %v611 = vmax.f32 %v551, 0.0
        %v612 = vmax.f32 %v552, 0.0
        %v613 = vmin.f32 %v553, 255.0
        %v614 = vmin.f32 %v554, 255.0
        %v615 = vmin.f32 %v555, 255.0
        %v616 = vmin.f32 %v556, 255.0
        %v617 = vmin.f32 %v557, 255.0
        %v618 = vmin.f32 %v558, 255.0
        %v619 = vmin.f32 %v559, 255.0
        %v620 = vmin.f32 %v560, 255.0
        %v621 = vmin.f32 %v561, 255.0
        %v622 = vmin.f32 %v562, 255.0
        %v623 = vmin.f32 %v563, 255.0
        %v624 = vmin.f32 %v564, 255.0
        %v625 = vmin.f32 %v565, 255.0
        %v626 = vmin.f32 %v566, 255.0
        %v627 = vmin.f32 %v567, 255.0
        %v628 = vmin.f32 %v568, 255.0
        %v629 = vmin.f32 %v569, 255.0
        %v630 = vmin.f32 %v570, 255.0
        %v631 = vmin.f32 %v571, 255.0
        %v632 = vmin.f32 %v572, 255.0
        %v633 = vmin.f32 %v573, 255.0
        %v634 = vmin.f32 %v574, 255.0
        %v635 = vmin.f32 %v575, 255.0
        %v636 = vmin.f32 %v576, 255.0
        %v637 = vmin.f32 %v577, 255.0
        %v638 = vmin.f32 %v578, 255.0
        %v639 = vmin.f32 %v579, 255.0
        %v640 = vmin.f32 %v580, 255.0
        %v641 = vmin.f32 %v581, 255.0
        %v642 = vmin.f32 %v582, 255.0
        %v643 = vmin.f32 %v583, 255.0
        %v644 = vmin.f32 %v584, 255.0
        %v645 = vmin.f32 %v585, 255.0
        %v646 = vmin.f32 %v586, 255.0
        %v647 = vmin.f32 %v587, 255.0
        %v648 = vmin.f32 %v588, 255.0
        %v649 = vmin.f32 %v589, 255.0
        %v650 = vmin.f32 %v590, 255.0
        %v651 = vmin.f32 %v591, 255.0
        %v652 = vmin.f32 %v592, 255.0
        %v653 = vmin.f32 %v593, 255.0
        %v654 = vmin.f32 %v594, 255.0
        %v655 = vmin.f32 %v595, 255.0
        %v656 = vmin.f32 %v596, 255.0
        %v657 = vmin.f32 %v597, 255.0
        %v658 = vmin.f32 %v598, 255.0
        %v659 = vmin.f32 %v599, 255.0
        %v660 = vmin.f32 %v600, 255.0
        %v661 = vmin.f32 %v601, 255.0
        %v662 = vmin.f32 %v602, 255.0
        %v663 = vmin.f32 %v603, 255.0
        %v664 = vmin.f32 %v604, 255.0
        %v665 = vmin.f32 %v605, 255.0
        %v666 = vmin.f32 %v606, 255.0
        %v667 = vmin.f32 %v607, 255.0
        %v668 = vmin.f32 %v608, 255.0
        %v669 = vmin.f32 %v609, 255.0
        %v670 = vmin.f32 %v610, 255.0
        %v671 = vmin.f32 %v611, 255.0
        %v672 = vmin.f32 %v612, 255.0
        %v673 = vsub.f32 %v613, 128.0
        %v674 = vsub.f32 %v614, 128.0
        %v675 = vsub.f32 %v615, 128.0
        %v676 = vsub.f32 %v616, 128.0
        %v677 = vsub.f32 %v617, 128.0
        %v678 = vsub.f32 %v618, 128.0
        %v679 = vsub.f32 %v619, 128.0
        %v680 = vsub.f32 %v620, 128.0
        %v681 = vsub.f32 %v621, 128.0
        %v682 = vsub.f32 %v622, 128.0
        %v683 = vsub.f32 %v623, 128.0
        %v684 = vsub.f32 %v624, 128.0
        %v685 = vsub.f32 %v625, 128.0
        %v686 = vsub.f32 %v626, 128.0
        %v687 = vsub.f32 %v627, 128.0
        %v688 = vsub.f32 %v628, 128.0
        %v689 = vsub.f32 %v629, 128.0
        %v690 = vsub.f32 %v630, 128.0
        %v691 = vsub.f32 %v631, 128.0
        %v692 = vsub.f32 %v632, 128.0
        %v693 = vsub.f32 %v633, 128.0
        %v694 = vsub.f32 %v634, 128.0
        %v695 = vsub.f32 %v635, 128.0
        %v696 = vsub.f32 %v636, 128.0
        %v697 = vsub.f32 %v637, 128.0
        %v698 = vsub.f32 %v638, 128.0
        %v699 = vsub.f32 %v639, 128.0
        %v700 = vsub.f32 %v640, 128.0
        %v701 = vsub.f32 %v641, 128.0
        %v702 = vsub.f32 %v642, 128.0
        %v703 = vsub.f32 %v643, 128.0
        %v704 = vsub.f32 %v644, 128.0
        %v705 = vsub.f32 %v645, 128.0
        %v706 = vsub.f32 %v646, 128.0
        %v707 = vsub.f32 %v647, 128.0
        %v708 = vsub.f32 %v648, 128.0
        %v709 = vsub.f32 %v649, 128.0
        %v710 = vsub.f32 %v650, 128.0
        %v711 = vsub.f32 %v651, 128.0
        %v712 = vsub.f32 %v652, 128.0
        %v713 = vsub.f32 %v653, 128.0
        %v714 = vsub.f32 %v654, 128.0
        %v715 = vsub.f32 %v655, 128.0
        %v716 = vsub.f32 %v656, 128.0
        %v717 = vsub.f32 %v657, 128.0
        %v718 = vsub.f32 %v658, 128.0
        %v719 = vsub.f32 %v659, 128.0
        %v720 = vsub.f32 %v660, 128.0
        %v721 = vsub.f32 %v661, 128.0
        %v722 = vsub.f32 %v662, 128.0
        %v723 = vsub.f32 %v663, 128.0
        %v724 = vsub.f32 %v664, 128.0
        %v725 = vsub.f32 %v665, 128.0
        %v726 = vsub.f32 %v666, 128.0
        %v727 = vsub.f32 %v667, 128.0
        %v728 = vsub.f32 %v668, 128.0
        %v729 = vsub.f32 %v669, 128.0
        %v730 = vsub.f32 %v670, 128.0
        %v731 = vsub.f32 %v671, 128.0
        %v732 = vsub.f32 %v672, 128.0
        %v733 = vmul.f32 %v673, 0.05
        %v734 = vmul.f32 %v674, 0.05
        %v735 = vmul.f32 %v675, 0.05
        %v736 = vmul.f32 %v676, 0.05
        %v737 = vmul.f32 %v677, 0.05
        %v738 = vmul.f32 %v678, 0.05
        %v739 = vmul.f32 %v679, 0.05
        %v740 = vmul.f32 %v680, 0.05
        %v741 = vmul.f32 %v681, 0.05
        %v742 = vmul.f32 %v682, 0.05
        %v743 = vmul.f32 %v683, 0.05
        %v744 = vmul.f32 %v684, 0.05
        %v745 = vmul.f32 %v685, 0.05
        %v746 = vmul.f32 %v686, 0.05
        %v747 = vmul.f32 %v687, 0.05
        %v748 = vmul.f32 %v688, 0.05
        %v749 = vmul.f32 %v689, 0.05
        %v750 = vmul.f32 %v690, 0.05
        %v751 = vmul.f32 %v691, 0.05
        %v752 = vmul.f32 %v692, 0.05
        %v753 = vmul.f32 %v693, 0.05
        %v754 = vmul.f32 %v694, 0.05
        %v755 = vmul.f32 %v695, 0.05
        %v756 = vmul.f32 %v696, 0.05
        %v757 = vmul.f32 %v697, 0.05
        %v758 = vmul.f32 %v698, 0.05
        %v759 = vmul.f32 %v699, 0.05
        %v760 = vmul.f32 %v700, 0.05
        %v761 = vmul.f32 %v701, 0.05
        %v762 = vmul.f32 %v702, 0.05
        %v763 = vmul.f32 %v703, 0.05
        %v764 = vmul.f32 %v704, 0.05
        %v765 = vmul.f32 %v705, 0.05
        %v766 = vmul.f32 %v706, 0.05
        %v767 = vmul.f32 %v707, 0.05
        %v768 = vmul.f32 %v708, 0.05
        %v769 = vmul.f32 %v709, 0.05
        %v770 = vmul.f32 %v710, 0.05
        %v771 = vmul.f32 %v711, 0.05
        %v772 = vmul.f32 %v712, 0.05
        %v773 = vmul.f32 %v713, 0.05
        %v774 = vmul.f32 %v714, 0.05
        %v775 = vmul.f32 %v715, 0.05
        %v776 = vmul.f32 %v716, 0.05
        %v777 = vmul.f32 %v717, 0.05
        %v778 = vmul.f32 %v718, 0.05
        %v779 = vmul.f32 %v719, 0.05
        %v780 = vmul.f32 %v720, 0.05
        %v781 = vmul.f32 %v721, 0.05
        %v782 = vmul.f32 %v722, 0.05
        %v783 = vmul.f32 %v723, 0.05
        %v784 = vmul.f32 %v724, 0.05
        %v785 = vmul.f32 %v725, 0.05
        %v786 = vmul.f32 %v726, 0.05
        %v787 = vmul.f32 %v727, 0.05
        %v788 = vmul.f32 %v728, 0.05
        %v789 = vmul.f32 %v729, 0.05
        %v790 = vmul.f32 %v730, 0.05
        %v791 = vmul.f32 %v731, 0.05
        %v792 = vmul.f32 %v732, 0.05
        %v793 = vpack.c.bf16 %v733, %v733
        %v794 = vpack.c.bf16 %v734, %v734
        %v795 = vpack.c.bf16 %v735, %v735
        %v796 = vpack.c.bf16 %v736, %v736
        %v797 = vpack.c.bf16 %v737, %v737
        %v798 = vpack.c.bf16 %v738, %v738
        %v799 = vpack.c.bf16 %v739, %v739
        %v800 = vpack.c.bf16 %v740, %v740
        %v801 = vpack.c.bf16 %v741, %v741
        %v802 = vpack.c.bf16 %v742, %v742
        %v803 = vpack.c.bf16 %v743, %v743
        %v804 = vpack.c.bf16 %v744, %v744
        %v805 = vpack.c.bf16 %v745, %v745
        %v806 = vpack.c.bf16 %v746, %v746
        %v807 = vpack.c.bf16 %v747, %v747
        %v808 = vpack.c.bf16 %v748, %v748
        %v809 = vpack.c.bf16 %v749, %v749
        %v810 = vpack.c.bf16 %v750, %v750
        %v811 = vpack.c.bf16 %v751, %v751
        %v812 = vpack.c.bf16 %v752, %v752
        %v813 = vpack.c.bf16 %v753, %v753
        %v814 = vpack.c.bf16 %v754, %v754
        %v815 = vpack.c.bf16 %v755, %v755
        %v816 = vpack.c.bf16 %v756, %v756
        %v817 = vpack.c.bf16 %v757, %v757
        %v818 = vpack.c.bf16 %v758, %v758
        %v819 = vpack.c.bf16 %v759, %v759
        %v820 = vpack.c.bf16 %v760, %v760
        %v821 = vpack.c.bf16 %v761, %v761
        %v822 = vpack.c.bf16 %v762, %v762
        %v823 = vpack.c.bf16 %v763, %v763
        %v824 = vpack.c.bf16 %v764, %v764
        %v825 = vpack.c.bf16 %v765, %v765
        %v826 = vpack.c.bf16 %v766, %v766
        %v827 = vpack.c.bf16 %v767, %v767
        %v828 = vpack.c.bf16 %v768, %v768
        %v829 = vpack.c.bf16 %v769, %v769
        %v830 = vpack.c.bf16 %v770, %v770
        %v831 = vpack.c.bf16 %v771, %v771
        %v832 = vpack.c.bf16 %v772, %v772
        %v833 = vpack.c.bf16 %v773, %v773
        %v834 = vpack.c.bf16 %v774, %v774
        %v835 = vpack.c.bf16 %v775, %v775
        %v836 = vpack.c.bf16 %v776, %v776
        %v837 = vpack.c.bf16 %v777, %v777
        %v838 = vpack.c.bf16 %v778, %v778
        %v839 = vpack.c.bf16 %v779, %v779
        %v840 = vpack.c.bf16 %v780, %v780
        %v841 = vpack.c.bf16 %v781, %v781
        %v842 = vpack.c.bf16 %v782, %v782
        %v843 = vpack.c.bf16 %v783, %v783
        %v844 = vpack.c.bf16 %v784, %v784
        %v845 = vpack.c.bf16 %v785, %v785
        %v846 = vpack.c.bf16 %v786, %v786
        %v847 = vpack.c.bf16 %v787, %v787
        %v848 = vpack.c.bf16 %v788, %v788
        %v849 = vpack.c.bf16 %v789, %v789
        %v850 = vpack.c.bf16 %v790, %v790
        %v851 = vpack.c.bf16 %v791, %v791
        %v852 = vpack.c.bf16 %v792, %v792
        %vm853 = vcmask 27648
        %854 = vst.msk [vmem:[#allocation2] sm:$0xf] %vm853, %v793
        %855 = vst.msk [vmem:[#allocation2 + $0x4] sm:$0xf] %vm853, %v794
        %856 = vst.msk [vmem:[#allocation2 + $0x8] sm:$0xf] %vm853, %v795
        %857 = vst.msk [vmem:[#allocation2 + $0xc] sm:$0xf] %vm853, %v796
        %858 = vst.msk [vmem:[#allocation2 + $0x10] sm:$0xf] %vm853, %v797
        %859 = vst.msk [vmem:[#allocation2 + $0x14] sm:$0xf] %vm853, %v798
        %860 = vst.msk [vmem:[#allocation2 + $0x18] sm:$0xf] %vm853, %v799
        %861 = vst.msk [vmem:[#allocation2 + $0x1c] sm:$0xf] %vm853, %v800
        %862 = vst.msk [vmem:[#allocation2 + $0x20] sm:$0xf] %vm853, %v801
        %863 = vst.msk [vmem:[#allocation2 + $0x24] sm:$0xf] %vm853, %v802
        %864 = vst.msk [vmem:[#allocation2 + $0x28] sm:$0xf] %vm853, %v803
        %865 = vst.msk [vmem:[#allocation2 + $0x2c] sm:$0xf] %vm853, %v804
        %866 = vst.msk [vmem:[#allocation2 + $0x30] sm:$0xf] %vm853, %v805
        %867 = vst.msk [vmem:[#allocation2 + $0x34] sm:$0xf] %vm853, %v806
        %868 = vst.msk [vmem:[#allocation2 + $0x38] sm:$0xf] %vm853, %v807
        %869 = vst.msk [vmem:[#allocation2 + $0x3c] sm:$0xf] %vm853, %v808
        %870 = vst.msk [vmem:[#allocation2 + $0x40] sm:$0xf] %vm853, %v809
        %871 = vst.msk [vmem:[#allocation2 + $0x44] sm:$0xf] %vm853, %v810
        %872 = vst.msk [vmem:[#allocation2 + $0x48] sm:$0xf] %vm853, %v811
        %873 = vst.msk [vmem:[#allocation2 + $0x4c] sm:$0xf] %vm853, %v812
        %874 = vst.msk [vmem:[#allocation2 + $0x50] sm:$0xf] %vm853, %v813
        %875 = vst.msk [vmem:[#allocation2 + $0x54] sm:$0xf] %vm853, %v814
        %876 = vst.msk [vmem:[#allocation2 + $0x58] sm:$0xf] %vm853, %v815
        %877 = vst.msk [vmem:[#allocation2 + $0x5c] sm:$0xf] %vm853, %v816
        %878 = vst.msk [vmem:[#allocation2 + $0x60] sm:$0xf] %vm853, %v817
        %879 = vst.msk [vmem:[#allocation2 + $0x64] sm:$0xf] %vm853, %v818
        %880 = vst.msk [vmem:[#allocation2 + $0x68] sm:$0xf] %vm853, %v819
        %881 = vst.msk [vmem:[#allocation2 + $0x6c] sm:$0xf] %vm853, %v820
        %882 = vst.msk [vmem:[#allocation2 + $0x70] sm:$0xf] %vm853, %v821
        %883 = vst.msk [vmem:[#allocation2 + $0x74] sm:$0xf] %vm853, %v822
        %884 = vst.msk [vmem:[#allocation2 + $0x78] sm:$0xf] %vm853, %v823
        %885 = vst.msk [vmem:[#allocation2 + $0x7c] sm:$0xf] %vm853, %v824
        %886 = vst.msk [vmem:[#allocation2 + $0x80] sm:$0xf] %vm853, %v825
        %887 = vst.msk [vmem:[#allocation2 + $0x84] sm:$0xf] %vm853, %v826
        %888 = vst.msk [vmem:[#allocation2 + $0x88] sm:$0xf] %vm853, %v827
        %889 = vst.msk [vmem:[#allocation2 + $0x8c] sm:$0xf] %vm853, %v828
        %890 = vst.msk [vmem:[#allocation2 + $0x90] sm:$0xf] %vm853, %v829
        %891 = vst.msk [vmem:[#allocation2 + $0x94] sm:$0xf] %vm853, %v830
        %892 = vst.msk [vmem:[#allocation2 + $0x98] sm:$0xf] %vm853, %v831
        %893 = vst.msk [vmem:[#allocation2 + $0x9c] sm:$0xf] %vm853, %v832
        %894 = vst.msk [vmem:[#allocation2 + $0xa0] sm:$0xf] %vm853, %v833
        %895 = vst.msk [vmem:[#allocation2 + $0xa4] sm:$0xf] %vm853, %v834
        %896 = vst.msk [vmem:[#allocation2 + $0xa8] sm:$0xf] %vm853, %v835
        %897 = vst.msk [vmem:[#allocation2 + $0xac] sm:$0xf] %vm853, %v836
        %898 = vst.msk [vmem:[#allocation2 + $0xb0] sm:$0xf] %vm853, %v837
        %899 = vst.msk [vmem:[#allocation2 + $0xb4] sm:$0xf] %vm853, %v838
        %900 = vst.msk [vmem:[#allocation2 + $0xb8] sm:$0xf] %vm853, %v839
        %901 = vst.msk [vmem:[#allocation2 + $0xbc] sm:$0xf] %vm853, %v840
        %902 = vst.msk [vmem:[#allocation2 + $0xc0] sm:$0xf] %vm853, %v841
        %903 = vst.msk [vmem:[#allocation2 + $0xc4] sm:$0xf] %vm853, %v842
        %904 = vst.msk [vmem:[#allocation2 + $0xc8] sm:$0xf] %vm853, %v843
        %905 = vst.msk [vmem:[#allocation2 + $0xcc] sm:$0xf] %vm853, %v844
        %906 = vst.msk [vmem:[#allocation2 + $0xd0] sm:$0xf] %vm853, %v845
        %907 = vst.msk [vmem:[#allocation2 + $0xd4] sm:$0xf] %vm853, %v846
        %908 = vst.msk [vmem:[#allocation2 + $0xd8] sm:$0xf] %vm853, %v847
        %909 = vst.msk [vmem:[#allocation2 + $0xdc] sm:$0xf] %vm853, %v848
        %910 = vst.msk [vmem:[#allocation2 + $0xe0] sm:$0xf] %vm853, %v849
        %911 = vst.msk [vmem:[#allocation2 + $0xe4] sm:$0xf] %vm853, %v850
        %912 = vst.msk [vmem:[#allocation2 + $0xe8] sm:$0xf] %vm853, %v851
        %913 = vst.msk [vmem:[#allocation2 + $0xec] sm:$0xf] %vm853, %v852
        %v914 = vld [vmem:[%s288] sm:$0xff]
        %v915 = vld [vmem:[%s288 + $0x8] sm:$0xff]
        %v916 = vld [vmem:[%s288 + $0x10] sm:$0xff]
        %v917 = vld [vmem:[%s288 + $0x18] sm:$0xff]
        %v918 = vld [vmem:[%s288 + $0x20] sm:$0xff]
        %v919 = vmul.f32 %v914, 20.0
        %v920 = vmul.f32 %v915, 20.0
        %v921 = vmul.f32 %v916, 20.0
        %v922 = vmul.f32 %v917, 20.0
        %v923 = vmul.f32 %v918, 20.0
        %v924 = vround.ne.pseudo %v919
        %v925 = vround.ne.pseudo %v920
        %v926 = vround.ne.pseudo %v921
        %v927 = vround.ne.pseudo %v922
        %v928 = vround.ne.pseudo %v923
        %v929 = vadd.f32 %v924, 128.0
        %v930 = vadd.f32 %v925, 128.0
        %v931 = vadd.f32 %v926, 128.0
        %v932 = vadd.f32 %v927, 128.0
        %v933 = vadd.f32 %v928, 128.0
        %v934 = vmax.f32 %v929, 0.0
        %v935 = vmax.f32 %v930, 0.0
        %v936 = vmax.f32 %v931, 0.0
        %v937 = vmax.f32 %v932, 0.0
        %v938 = vmax.f32 %v933, 0.0
        %v939 = vmin.f32 %v934, 255.0
        %v940 = vmin.f32 %v935, 255.0
        %v941 = vmin.f32 %v936, 255.0
        %v942 = vmin.f32 %v937, 255.0
        %v943 = vmin.f32 %v938, 255.0
        %v944 = vsub.f32 %v939, 128.0
        %v945 = vsub.f32 %v940, 128.0
        %v946 = vsub.f32 %v941, 128.0
        %v947 = vsub.f32 %v942, 128.0
        %v948 = vsub.f32 %v943, 128.0
        %v949 = vmul.f32 %v944, 0.05
        %v950 = vmul.f32 %v945, 0.05
        %v951 = vmul.f32 %v946, 0.05
        %v952 = vmul.f32 %v947, 0.05
        %v953 = vmul.f32 %v948, 0.05
        %v954 = vpack.c.bf16 %v949, %v949
        %v955 = vpack.c.bf16 %v950, %v950
        %v956 = vpack.c.bf16 %v951, %v951
        %v957 = vpack.c.bf16 %v952, %v952
        %v958 = vpack.c.bf16 %v953, %v953
        %959 = vst.msk [vmem:[#allocation2 + $0xf0] sm:$0xf] %vm853, %v954
        %960 = vst.msk [vmem:[#allocation2 + $0xf4] sm:$0xf] %vm853, %v955
        %961 = vst.msk [vmem:[#allocation2 + $0xf8] sm:$0xf] %vm853, %v956
        %962 = vst.msk [vmem:[#allocation2 + $0xfc] sm:$0xf] %vm853, %v957
        %963 = vst.msk [vmem:[#allocation2 + $0x100] sm:$0xf] %vm853, %v958
        %vm964 = vcmask 1043744
        %965 = vst.msk [vmem:[#allocation3] sm:$0xf] %vm964, 0
        %966 = vst.msk [vmem:[#allocation3 + $0x4] sm:$0xf] %vm964, 0
        %967 = vst.msk [vmem:[#allocation3 + $0x8] sm:$0xf] %vm964, 0
        %968 = vst.msk [vmem:[#allocation3 + $0xc] sm:$0xf] %vm964, 0
        %969 = vst.msk [vmem:[#allocation3 + $0x10] sm:$0xf] %vm964, 0
        %970 = vst.msk [vmem:[#allocation3 + $0x14] sm:$0xf] %vm964, 0
        %971 = vst.msk [vmem:[#allocation3 + $0x18] sm:$0xf] %vm964, 0
        %972 = vst.msk [vmem:[#allocation3 + $0x1c] sm:$0xf] %vm964, 0
        %973 = vst.msk [vmem:[#allocation3 + $0x20] sm:$0xf] %vm964, 0
        %974 = vst.msk [vmem:[#allocation3 + $0x24] sm:$0xf] %vm964, 0
        %975 = vst.msk [vmem:[#allocation3 + $0x28] sm:$0xf] %vm964, 0
        %976 = vst.msk [vmem:[#allocation3 + $0x2c] sm:$0xf] %vm964, 0
        %977 = vst.msk [vmem:[#allocation3 + $0x30] sm:$0xf] %vm964, 0
        %978 = vst.msk [vmem:[#allocation3 + $0x34] sm:$0xf] %vm964, 0
        %979 = vst.msk [vmem:[#allocation3 + $0x38] sm:$0xf] %vm964, 0
        %980 = vst.msk [vmem:[#allocation3 + $0x3c] sm:$0xf] %vm964, 0
        %981 = vst.msk [vmem:[#allocation3 + $0x40] sm:$0xf] %vm964, 0
        %982 = vst.msk [vmem:[#allocation3 + $0x44] sm:$0xf] %vm964, 0
        %983 = vst.msk [vmem:[#allocation3 + $0x48] sm:$0xf] %vm964, 0
        %984 = vst.msk [vmem:[#allocation3 + $0x4c] sm:$0xf] %vm964, 0
        %985 = vst.msk [vmem:[#allocation3 + $0x50] sm:$0xf] %vm964, 0
        %986 = vst.msk [vmem:[#allocation3 + $0x54] sm:$0xf] %vm964, 0
        %987 = vst.msk [vmem:[#allocation3 + $0x58] sm:$0xf] %vm964, 0
        %988 = vst.msk [vmem:[#allocation3 + $0x5c] sm:$0xf] %vm964, 0
        %989 = vst.msk [vmem:[#allocation3 + $0x60] sm:$0xf] %vm964, 0
        %990 = vst.msk [vmem:[#allocation3 + $0x64] sm:$0xf] %vm964, 0
        %991 = vst.msk [vmem:[#allocation3 + $0x68] sm:$0xf] %vm964, 0
        %992 = vst.msk [vmem:[#allocation3 + $0x6c] sm:$0xf] %vm964, 0
        %993 = vst.msk [vmem:[#allocation3 + $0x70] sm:$0xf] %vm964, 0
        %994 = vst.msk [vmem:[#allocation3 + $0x74] sm:$0xf] %vm964, 0
        %995 = vst.msk [vmem:[#allocation3 + $0x78] sm:$0xf] %vm964, 0
        %996 = vst.msk [vmem:[#allocation3 + $0x7c] sm:$0xf] %vm964, 0
        %997 = vst.msk [vmem:[#allocation3 + $0x80] sm:$0xf] %vm964, 0
        %998 = vst.msk [vmem:[#allocation3 + $0x84] sm:$0xf] %vm964, 0
        %999 = vst.msk [vmem:[#allocation3 + $0x88] sm:$0xf] %vm964, 0
        %1000 = vst.msk [vmem:[#allocation3 + $0x8c] sm:$0xf] %vm964, 0
        %1001 = vst.msk [vmem:[#allocation3 + $0x90] sm:$0xf] %vm964, 0
        %1002 = vst.msk [vmem:[#allocation3 + $0x94] sm:$0xf] %vm964, 0
        %1003 = vst.msk [vmem:[#allocation3 + $0x98] sm:$0xf] %vm964, 0
        %1004 = vst.msk [vmem:[#allocation3 + $0x9c] sm:$0xf] %vm964, 0
        %1005 = vst.msk [vmem:[#allocation3 + $0xa0] sm:$0xf] %vm964, 0
        %1006 = vst.msk [vmem:[#allocation3 + $0xa4] sm:$0xf] %vm964, 0
        %1007 = vst.msk [vmem:[#allocation3 + $0xa8] sm:$0xf] %vm964, 0
        %1008 = vst.msk [vmem:[#allocation3 + $0xac] sm:$0xf] %vm964, 0
        %1009 = vst.msk [vmem:[#allocation3 + $0xb0] sm:$0xf] %vm964, 0
        %1010 = vst.msk [vmem:[#allocation3 + $0xb4] sm:$0xf] %vm964, 0
        %1011 = vst.msk [vmem:[#allocation3 + $0xb8] sm:$0xf] %vm964, 0
        %1012 = vst.msk [vmem:[#allocation3 + $0xbc] sm:$0xf] %vm964, 0
        %1013 = vst.msk [vmem:[#allocation3 + $0xc0] sm:$0xf] %vm964, 0
        %1014 = vst.msk [vmem:[#allocation3 + $0xc4] sm:$0xf] %vm964, 0
        %1015 = vst.msk [vmem:[#allocation3 + $0xc8] sm:$0xf] %vm964, 0
        %1016 = vst.msk [vmem:[#allocation3 + $0xcc] sm:$0xf] %vm964, 0
        %1017 = vst.msk [vmem:[#allocation3 + $0xd0] sm:$0xf] %vm964, 0
        %1018 = vst.msk [vmem:[#allocation3 + $0xd4] sm:$0xf] %vm964, 0
        %1019 = vst.msk [vmem:[#allocation3 + $0xd8] sm:$0xf] %vm964, 0
        %1020 = vst.msk [vmem:[#allocation3 + $0xdc] sm:$0xf] %vm964, 0
        %1021 = vst.msk [vmem:[#allocation3 + $0xe0] sm:$0xf] %vm964, 0
        %1022 = vst.msk [vmem:[#allocation3 + $0xe4] sm:$0xf] %vm964, 0
        %1023 = vst.msk [vmem:[#allocation3 + $0xe8] sm:$0xf] %vm964, 0
        %1024 = vst.msk [vmem:[#allocation3 + $0xec] sm:$0xf] %vm964, 0
        %v1025 = vld [vmem:[#allocation2] sm:$0xf]
        %v1026 = vld [vmem:[#allocation2 + $0x4] sm:$0xf]
        %v1027 = vld [vmem:[#allocation2 + $0x8] sm:$0xf]
        %v1028 = vld [vmem:[#allocation2 + $0xc] sm:$0xf]
        %v1029 = vld [vmem:[#allocation2 + $0x10] sm:$0xf]
        %v1030 = vld [vmem:[#allocation2 + $0x14] sm:$0xf]
        %v1031 = vld [vmem:[#allocation2 + $0x18] sm:$0xf]
        %v1032 = vld [vmem:[#allocation2 + $0x1c] sm:$0xf]
        %v1033 = vld [vmem:[#allocation2 + $0x20] sm:$0xf]
        %v1034 = vld [vmem:[#allocation2 + $0x24] sm:$0xf]
        %v1035 = vld [vmem:[#allocation2 + $0x28] sm:$0xf]
        %v1036 = vld [vmem:[#allocation2 + $0x2c] sm:$0xf]
        %v1037 = vld [vmem:[#allocation2 + $0x30] sm:$0xf]
        %v1038 = vld [vmem:[#allocation2 + $0x34] sm:$0xf]
        %v1039 = vld [vmem:[#allocation2 + $0x38] sm:$0xf]
        %v1040 = vld [vmem:[#allocation2 + $0x3c] sm:$0xf]
        %v1041 = vld [vmem:[#allocation2 + $0x40] sm:$0xf]
        %v1042 = vld [vmem:[#allocation2 + $0x44] sm:$0xf]
        %v1043 = vld [vmem:[#allocation2 + $0x48] sm:$0xf]
        %v1044 = vld [vmem:[#allocation2 + $0x4c] sm:$0xf]
        %v1045 = vld [vmem:[#allocation2 + $0x50] sm:$0xf]
        %v1046 = vld [vmem:[#allocation2 + $0x54] sm:$0xf]
        %v1047 = vld [vmem:[#allocation2 + $0x58] sm:$0xf]
        %v1048 = vld [vmem:[#allocation2 + $0x5c] sm:$0xf]
        %v1049 = vld [vmem:[#allocation2 + $0x60] sm:$0xf]
        %v1050 = vld [vmem:[#allocation2 + $0x64] sm:$0xf]
        %v1051 = vld [vmem:[#allocation2 + $0x68] sm:$0xf]
        %v1052 = vld [vmem:[#allocation2 + $0x6c] sm:$0xf]
        %v1053 = vld [vmem:[#allocation2 + $0x70] sm:$0xf]
        %v1054 = vld [vmem:[#allocation2 + $0x74] sm:$0xf]
        %v1055 = vld [vmem:[#allocation2 + $0x78] sm:$0xf]
        %v1056 = vld [vmem:[#allocation2 + $0x7c] sm:$0xf]
        %v1057 = vld [vmem:[#allocation2 + $0x80] sm:$0xf]
        %v1058 = vld [vmem:[#allocation2 + $0x84] sm:$0xf]
        %v1059 = vld [vmem:[#allocation2 + $0x88] sm:$0xf]
        %v1060 = vld [vmem:[#allocation2 + $0x8c] sm:$0xf]
        %v1061 = vld [vmem:[#allocation2 + $0x90] sm:$0xf]
        %v1062 = vld [vmem:[#allocation2 + $0x94] sm:$0xf]
        %v1063 = vld [vmem:[#allocation2 + $0x98] sm:$0xf]
        %v1064 = vld [vmem:[#allocation2 + $0x9c] sm:$0xf]
        %v1065 = vld [vmem:[#allocation2 + $0xa0] sm:$0xf]
        %v1066 = vld [vmem:[#allocation2 + $0xa4] sm:$0xf]
        %v1067 = vld [vmem:[#allocation2 + $0xa8] sm:$0xf]
        %v1068 = vld [vmem:[#allocation2 + $0xac] sm:$0xf]
        %v1069 = vld [vmem:[#allocation2 + $0xb0] sm:$0xf]
        %v1070 = vld [vmem:[#allocation2 + $0xb4] sm:$0xf]
        %v1071 = vld [vmem:[#allocation2 + $0xb8] sm:$0xf]
        %v1072 = vld [vmem:[#allocation2 + $0xbc] sm:$0xf]
        %v1073 = vld [vmem:[#allocation2 + $0xc0] sm:$0xf]
        %v1074 = vld [vmem:[#allocation2 + $0xc4] sm:$0xf]
        %v1075 = vld [vmem:[#allocation2 + $0xc8] sm:$0xf]
        %v1076 = vld [vmem:[#allocation2 + $0xcc] sm:$0xf]
        %v1077 = vld [vmem:[#allocation2 + $0xd0] sm:$0xf]
        %v1078 = vld [vmem:[#allocation2 + $0xd4] sm:$0xf]
        %v1079 = vld [vmem:[#allocation2 + $0xd8] sm:$0xf]
        %v1080 = vld [vmem:[#allocation2 + $0xdc] sm:$0xf]
        %v1081 = vld [vmem:[#allocation2 + $0xe0] sm:$0xf]
        %v1082 = vld [vmem:[#allocation2 + $0xe4] sm:$0xf]
        %v1083 = vld [vmem:[#allocation2 + $0xe8] sm:$0xf]
        %v1084 = vld [vmem:[#allocation2 + $0xec] sm:$0xf]
        %1085 = vst.msk [vmem:[#allocation3] sm:$0xf] %vm853, %v1025
        %1086 = vst.msk [vmem:[#allocation3 + $0x4] sm:$0xf] %vm853, %v1026
        %1087 = vst.msk [vmem:[#allocation3 + $0x8] sm:$0xf] %vm853, %v1027
        %1088 = vst.msk [vmem:[#allocation3 + $0xc] sm:$0xf] %vm853, %v1028
        %1089 = vst.msk [vmem:[#allocation3 + $0x10] sm:$0xf] %vm853, %v1029
        %1090 = vst.msk [vmem:[#allocation3 + $0x14] sm:$0xf] %vm853, %v1030
        %1091 = vst.msk [vmem:[#allocation3 + $0x18] sm:$0xf] %vm853, %v1031
        %1092 = vst.msk [vmem:[#allocation3 + $0x1c] sm:$0xf] %vm853, %v1032
        %1093 = vst.msk [vmem:[#allocation3 + $0x20] sm:$0xf] %vm853, %v1033
        %1094 = vst.msk [vmem:[#allocation3 + $0x24] sm:$0xf] %vm853, %v1034
        %1095 = vst.msk [vmem:[#allocation3 + $0x28] sm:$0xf] %vm853, %v1035
        %1096 = vst.msk [vmem:[#allocation3 + $0x2c] sm:$0xf] %vm853, %v1036
        %1097 = vst.msk [vmem:[#allocation3 + $0x30] sm:$0xf] %vm853, %v1037
        %1098 = vst.msk [vmem:[#allocation3 + $0x34] sm:$0xf] %vm853, %v1038
        %1099 = vst.msk [vmem:[#allocation3 + $0x38] sm:$0xf] %vm853, %v1039
        %1100 = vst.msk [vmem:[#allocation3 + $0x3c] sm:$0xf] %vm853, %v1040
        %1101 = vst.msk [vmem:[#allocation3 + $0x40] sm:$0xf] %vm853, %v1041
        %1102 = vst.msk [vmem:[#allocation3 + $0x44] sm:$0xf] %vm853, %v1042
        %1103 = vst.msk [vmem:[#allocation3 + $0x48] sm:$0xf] %vm853, %v1043
        %1104 = vst.msk [vmem:[#allocation3 + $0x4c] sm:$0xf] %vm853, %v1044
        %1105 = vst.msk [vmem:[#allocation3 + $0x50] sm:$0xf] %vm853, %v1045
        %1106 = vst.msk [vmem:[#allocation3 + $0x54] sm:$0xf] %vm853, %v1046
        %1107 = vst.msk [vmem:[#allocation3 + $0x58] sm:$0xf] %vm853, %v1047
        %1108 = vst.msk [vmem:[#allocation3 + $0x5c] sm:$0xf] %vm853, %v1048
        %1109 = vst.msk [vmem:[#allocation3 + $0x60] sm:$0xf] %vm853, %v1049
        %1110 = vst.msk [vmem:[#allocation3 + $0x64] sm:$0xf] %vm853, %v1050
        %1111 = vst.msk [vmem:[#allocation3 + $0x68] sm:$0xf] %vm853, %v1051
        %1112 = vst.msk [vmem:[#allocation3 + $0x6c] sm:$0xf] %vm853, %v1052
        %1113 = vst.msk [vmem:[#allocation3 + $0x70] sm:$0xf] %vm853, %v1053
        %1114 = vst.msk [vmem:[#allocation3 + $0x74] sm:$0xf] %vm853, %v1054
        %1115 = vst.msk [vmem:[#allocation3 + $0x78] sm:$0xf] %vm853, %v1055
        %1116 = vst.msk [vmem:[#allocation3 + $0x7c] sm:$0xf] %vm853, %v1056
        %1117 = vst.msk [vmem:[#allocation3 + $0x80] sm:$0xf] %vm853, %v1057
        %1118 = vst.msk [vmem:[#allocation3 + $0x84] sm:$0xf] %vm853, %v1058
        %1119 = vst.msk [vmem:[#allocation3 + $0x88] sm:$0xf] %vm853, %v1059
        %1120 = vst.msk [vmem:[#allocation3 + $0x8c] sm:$0xf] %vm853, %v1060
        %1121 = vst.msk [vmem:[#allocation3 + $0x90] sm:$0xf] %vm853, %v1061
        %1122 = vst.msk [vmem:[#allocation3 + $0x94] sm:$0xf] %vm853, %v1062
        %1123 = vst.msk [vmem:[#allocation3 + $0x98] sm:$0xf] %vm853, %v1063
        %1124 = vst.msk [vmem:[#allocation3 + $0x9c] sm:$0xf] %vm853, %v1064
        %1125 = vst.msk [vmem:[#allocation3 + $0xa0] sm:$0xf] %vm853, %v1065
        %1126 = vst.msk [vmem:[#allocation3 + $0xa4] sm:$0xf] %vm853, %v1066
        %1127 = vst.msk [vmem:[#allocation3 + $0xa8] sm:$0xf] %vm853, %v1067
        %1128 = vst.msk [vmem:[#allocation3 + $0xac] sm:$0xf] %vm853, %v1068
        %1129 = vst.msk [vmem:[#allocation3 + $0xb0] sm:$0xf] %vm853, %v1069
        %1130 = vst.msk [vmem:[#allocation3 + $0xb4] sm:$0xf] %vm853, %v1070
        %1131 = vst.msk [vmem:[#allocation3 + $0xb8] sm:$0xf] %vm853, %v1071
        %1132 = vst.msk [vmem:[#allocation3 + $0xbc] sm:$0xf] %vm853, %v1072
        %1133 = vst.msk [vmem:[#allocation3 + $0xc0] sm:$0xf] %vm853, %v1073
        %1134 = vst.msk [vmem:[#allocation3 + $0xc4] sm:$0xf] %vm853, %v1074
        %1135 = vst.msk [vmem:[#allocation3 + $0xc8] sm:$0xf] %vm853, %v1075
        %1136 = vst.msk [vmem:[#allocation3 + $0xcc] sm:$0xf] %vm853, %v1076
        %1137 = vst.msk [vmem:[#allocation3 + $0xd0] sm:$0xf] %vm853, %v1077
        %1138 = vst.msk [vmem:[#allocation3 + $0xd4] sm:$0xf] %vm853, %v1078
        %1139 = vst.msk [vmem:[#allocation3 + $0xd8] sm:$0xf] %vm853, %v1079
        %1140 = vst.msk [vmem:[#allocation3 + $0xdc] sm:$0xf] %vm853, %v1080
        %1141 = vst.msk [vmem:[#allocation3 + $0xe0] sm:$0xf] %vm853, %v1081
        %1142 = vst.msk [vmem:[#allocation3 + $0xe4] sm:$0xf] %vm853, %v1082
        %1143 = vst.msk [vmem:[#allocation3 + $0xe8] sm:$0xf] %vm853, %v1083
        %1144 = vst.msk [vmem:[#allocation3 + $0xec] sm:$0xf] %vm853, %v1084
        %v1145 = vld [vmem:[#allocation2] sm:$0xf]
        %v1146 = vld [vmem:[#allocation2 + $0x4] sm:$0xf]
        %v1147 = vld [vmem:[#allocation2 + $0x8] sm:$0xf]
        %v1148 = vld [vmem:[#allocation2 + $0xc] sm:$0xf]
        %v1149 = vld [vmem:[#allocation2 + $0x10] sm:$0xf]
        %v1150 = vld [vmem:[#allocation2 + $0x14] sm:$0xf]
        %v1151 = vld [vmem:[#allocation2 + $0x18] sm:$0xf]
        %v1152 = vld [vmem:[#allocation2 + $0x1c] sm:$0xf]
        %v1153 = vld [vmem:[#allocation2 + $0x20] sm:$0xf]
        %v1154 = vld [vmem:[#allocation2 + $0x24] sm:$0xf]
        %v1155 = vld [vmem:[#allocation2 + $0x28] sm:$0xf]
        %v1156 = vld [vmem:[#allocation2 + $0x2c] sm:$0xf]
        %v1157 = vld [vmem:[#allocation2 + $0x30] sm:$0xf]
        %v1158 = vld [vmem:[#allocation2 + $0x34] sm:$0xf]
        %v1159 = vld [vmem:[#allocation2 + $0x38] sm:$0xf]
        %v1160 = vld [vmem:[#allocation2 + $0x3c] sm:$0xf]
        %v1161 = vld [vmem:[#allocation2 + $0x40] sm:$0xf]
        %v1162 = vld [vmem:[#allocation2 + $0x44] sm:$0xf]
        %v1163 = vld [vmem:[#allocation2 + $0x48] sm:$0xf]
        %v1164 = vld [vmem:[#allocation2 + $0x4c] sm:$0xf]
        %v1165 = vld [vmem:[#allocation2 + $0x50] sm:$0xf]
        %v1166 = vld [vmem:[#allocation2 + $0x54] sm:$0xf]
        %v1167 = vld [vmem:[#allocation2 + $0x58] sm:$0xf]
        %v1168 = vld [vmem:[#allocation2 + $0x5c] sm:$0xf]
        %v1169 = vld [vmem:[#allocation2 + $0x60] sm:$0xf]
        %v1170 = vld [vmem:[#allocation2 + $0x64] sm:$0xf]
        %v1171 = vld [vmem:[#allocation2 + $0x68] sm:$0xf]
        %v1172 = vld [vmem:[#allocation2 + $0x6c] sm:$0xf]
        %v1173 = vld [vmem:[#allocation2 + $0x70] sm:$0xf]
        %v1174 = vld [vmem:[#allocation2 + $0x74] sm:$0xf]
        %v1175 = vld [vmem:[#allocation2 + $0x78] sm:$0xf]
        %v1176 = vld [vmem:[#allocation2 + $0x7c] sm:$0xf]
        %v1177 = vld [vmem:[#allocation2 + $0x80] sm:$0xf]
        %v1178 = vld [vmem:[#allocation2 + $0x84] sm:$0xf]
        %v1179 = vld [vmem:[#allocation2 + $0x88] sm:$0xf]
        %v1180 = vld [vmem:[#allocation2 + $0x8c] sm:$0xf]
        %v1181 = vld [vmem:[#allocation2 + $0x90] sm:$0xf]
        %v1182 = vld [vmem:[#allocation2 + $0x94] sm:$0xf]
        %v1183 = vld [vmem:[#allocation2 + $0x98] sm:$0xf]
        %v1184 = vld [vmem:[#allocation2 + $0x9c] sm:$0xf]
        %v1185 = vld [vmem:[#allocation2 + $0xa0] sm:$0xf]
        %v1186 = vld [vmem:[#allocation2 + $0xa4] sm:$0xf]
        %v1187 = vld [vmem:[#allocation2 + $0xa8] sm:$0xf]
        %v1188 = vld [vmem:[#allocation2 + $0xac] sm:$0xf]
        %v1189 = vld [vmem:[#allocation2 + $0xb0] sm:$0xf]
        %v1190 = vld [vmem:[#allocation2 + $0xb4] sm:$0xf]
        %v1191 = vld [vmem:[#allocation2 + $0xb8] sm:$0xf]
        %v1192 = vld [vmem:[#allocation2 + $0xbc] sm:$0xf]
        %v1193 = vld [vmem:[#allocation2 + $0xc0] sm:$0xf]
        %v1194 = vld [vmem:[#allocation2 + $0xc4] sm:$0xf]
        %v1195 = vld [vmem:[#allocation2 + $0xc8] sm:$0xf]
        %v1196 = vld [vmem:[#allocation2 + $0xcc] sm:$0xf]
        %v1197 = vld [vmem:[#allocation2 + $0xd0] sm:$0xf]
        %v1198 = vld [vmem:[#allocation2 + $0xd4] sm:$0xf]
        %v1199 = vld [vmem:[#allocation2 + $0xd8] sm:$0xf]
        %v1200 = vld [vmem:[#allocation2 + $0xdc] sm:$0xf]
        %v1201 = vld [vmem:[#allocation2 + $0xe0] sm:$0xf]
        %v1202 = vld [vmem:[#allocation2 + $0xe4] sm:$0xf]
        %v1203 = vld [vmem:[#allocation2 + $0xe8] sm:$0xf]
        %v1204 = vld [vmem:[#allocation2 + $0xec] sm:$0xf]
        %v1205 = vld [vmem:[#allocation2 + $0xf0] sm:$0x1]
        %vm1206 = vsmask.f32 3328
        %vm1207 = vsmask.f32 7440
        %vm1208 = vmor %vm1206, %vm1207
        %v1210 = vshrl.u32 %v1145, 16
        %v1212 = vrot.slane %v1210, 4
        %v1213 = vshll.u32 %v1145, 16
        %v1215 = vrot.slane %v1213, 5
        %v1216 = vor.u32 %v1212, %v1215
        %v1217 = vrot.slane %v1216, 4
        %v1219 = vshll.u32 %v1146, 16
        %v1221 = vrot.slane %v1219, 5
        %v1222 = vsel %vm1208, %v1217, %v1221
        %v1223 = vshrl.u32 %v1146, 16
        %v1225 = vrot.slane %v1223, 4
        %v1226 = vor.u32 %v1225, %v1221
        %v1227 = vrot.slane %v1226, 4
        %v1229 = vshll.u32 %v1147, 16
        %v1231 = vrot.slane %v1229, 5
        %v1232 = vsel %vm1208, %v1227, %v1231
        %v1233 = vshrl.u32 %v1147, 16
        %v1235 = vrot.slane %v1233, 4
        %v1236 = vor.u32 %v1235, %v1231
        %v1237 = vrot.slane %v1236, 4
        %v1239 = vshll.u32 %v1148, 16
        %v1241 = vrot.slane %v1239, 5
        %v1242 = vsel %vm1208, %v1237, %v1241
        %v1243 = vshrl.u32 %v1148, 16
        %v1245 = vrot.slane %v1243, 4
        %v1246 = vor.u32 %v1245, %v1241
        %v1247 = vrot.slane %v1246, 4
        %v1249 = vshll.u32 %v1149, 16
        %v1251 = vrot.slane %v1249, 5
        %v1252 = vsel %vm1208, %v1247, %v1251
        %v1253 = vshrl.u32 %v1149, 16
        %v1255 = vrot.slane %v1253, 4
        %v1256 = vor.u32 %v1255, %v1251
        %v1257 = vrot.slane %v1256, 4
        %v1259 = vshll.u32 %v1150, 16
        %v1261 = vrot.slane %v1259, 5
        %v1262 = vsel %vm1208, %v1257, %v1261
        %v1263 = vshrl.u32 %v1150, 16
        %v1265 = vrot.slane %v1263, 4
        %v1266 = vor.u32 %v1265, %v1261
        %v1267 = vrot.slane %v1266, 4
        %v1269 = vshll.u32 %v1151, 16
        %v1271 = vrot.slane %v1269, 5
        %v1272 = vsel %vm1208, %v1267, %v1271
        %v1273 = vshrl.u32 %v1151, 16
        %v1275 = vrot.slane %v1273, 4
        %v1276 = vor.u32 %v1275, %v1271
        %v1277 = vrot.slane %v1276, 4
        %v1279 = vshll.u32 %v1152, 16
        %v1281 = vrot.slane %v1279, 5
        %v1282 = vsel %vm1208, %v1277, %v1281
        %v1283 = vshrl.u32 %v1152, 16
        %v1285 = vrot.slane %v1283, 4
        %v1286 = vor.u32 %v1285, %v1281
        %v1287 = vrot.slane %v1286, 4
        %v1289 = vshll.u32 %v1153, 16
        %v1291 = vrot.slane %v1289, 5
        %v1292 = vsel %vm1208, %v1287, %v1291
        %v1293 = vshrl.u32 %v1153, 16
        %v1295 = vrot.slane %v1293, 4
        %v1296 = vor.u32 %v1295, %v1291
        %v1297 = vrot.slane %v1296, 4
        %v1299 = vshll.u32 %v1154, 16
        %v1301 = vrot.slane %v1299, 5
        %v1302 = vsel %vm1208, %v1297, %v1301
        %v1303 = vshrl.u32 %v1154, 16
        %v1305 = vrot.slane %v1303, 4
        %v1306 = vor.u32 %v1305, %v1301
        %v1307 = vrot.slane %v1306, 4
        %v1309 = vshll.u32 %v1155, 16
        %v1311 = vrot.slane %v1309, 5
        %v1312 = vsel %vm1208, %v1307, %v1311
        %v1313 = vshrl.u32 %v1155, 16
        %v1315 = vrot.slane %v1313, 4
        %v1316 = vor.u32 %v1315, %v1311
        %v1317 = vrot.slane %v1316, 4
        %v1319 = vshll.u32 %v1156, 16
        %v1321 = vrot.slane %v1319, 5
        %v1322 = vsel %vm1208, %v1317, %v1321
        %v1323 = vshrl.u32 %v1156, 16
        %v1325 = vrot.slane %v1323, 4
        %v1326 = vor.u32 %v1325, %v1321
        %v1327 = vrot.slane %v1326, 4
        %v1329 = vshll.u32 %v1157, 16
        %v1331 = vrot.slane %v1329, 5
        %v1332 = vsel %vm1208, %v1327, %v1331
        %v1333 = vshrl.u32 %v1157, 16
        %v1335 = vrot.slane %v1333, 4
        %v1336 = vor.u32 %v1335, %v1331
        %v1337 = vrot.slane %v1336, 4
        %v1339 = vshll.u32 %v1158, 16
        %v1341 = vrot.slane %v1339, 5
        %v1342 = vsel %vm1208, %v1337, %v1341
        %v1343 = vshrl.u32 %v1158, 16
        %v1345 = vrot.slane %v1343, 4
        %v1346 = vor.u32 %v1345, %v1341
        %v1347 = vrot.slane %v1346, 4
        %v1349 = vshll.u32 %v1159, 16
        %v1351 = vrot.slane %v1349, 5
        %v1352 = vsel %vm1208, %v1347, %v1351
        %v1353 = vshrl.u32 %v1159, 16
        %v1355 = vrot.slane %v1353, 4
        %v1356 = vor.u32 %v1355, %v1351
        %v1357 = vrot.slane %v1356, 4
        %v1359 = vshll.u32 %v1160, 16
        %v1361 = vrot.slane %v1359, 5
        %v1362 = vsel %vm1208, %v1357, %v1361
        %v1363 = vshrl.u32 %v1160, 16
        %v1365 = vrot.slane %v1363, 4
        %v1366 = vor.u32 %v1365, %v1361
        %v1367 = vrot.slane %v1366, 4
        %v1369 = vshll.u32 %v1161, 16
        %v1371 = vrot.slane %v1369, 5
        %v1372 = vsel %vm1208, %v1367, %v1371
        %v1373 = vshrl.u32 %v1161, 16
        %v1375 = vrot.slane %v1373, 4
        %v1376 = vor.u32 %v1375, %v1371
        %v1377 = vrot.slane %v1376, 4
        %v1379 = vshll.u32 %v1162, 16
        %v1381 = vrot.slane %v1379, 5
        %v1382 = vsel %vm1208, %v1377, %v1381
        %v1383 = vshrl.u32 %v1162, 16
        %v1385 = vrot.slane %v1383, 4
        %v1386 = vor.u32 %v1385, %v1381
        %v1387 = vrot.slane %v1386, 4
        %v1389 = vshll.u32 %v1163, 16
        %v1391 = vrot.slane %v1389, 5
        %v1392 = vsel %vm1208, %v1387, %v1391
        %v1393 = vshrl.u32 %v1163, 16
        %v1395 = vrot.slane %v1393, 4
        %v1396 = vor.u32 %v1395, %v1391
        %v1397 = vrot.slane %v1396, 4
        %v1399 = vshll.u32 %v1164, 16
        %v1401 = vrot.slane %v1399, 5
        %v1402 = vsel %vm1208, %v1397, %v1401
        %v1403 = vshrl.u32 %v1164, 16
        %v1405 = vrot.slane %v1403, 4
        %v1406 = vor.u32 %v1405, %v1401
        %v1407 = vrot.slane %v1406, 4
        %v1409 = vshll.u32 %v1165, 16
        %v1411 = vrot.slane %v1409, 5
        %v1412 = vsel %vm1208, %v1407, %v1411
        %v1413 = vshrl.u32 %v1165, 16
        %v1415 = vrot.slane %v1413, 4
        %v1416 = vor.u32 %v1415, %v1411
        %v1417 = vrot.slane %v1416, 4
        %v1419 = vshll.u32 %v1166, 16
        %v1421 = vrot.slane %v1419, 5
        %v1422 = vsel %vm1208, %v1417, %v1421
        %v1423 = vshrl.u32 %v1166, 16
        %v1425 = vrot.slane %v1423, 4
        %v1426 = vor.u32 %v1425, %v1421
        %v1427 = vrot.slane %v1426, 4
        %v1429 = vshll.u32 %v1167, 16
        %v1431 = vrot.slane %v1429, 5
        %v1432 = vsel %vm1208, %v1427, %v1431
        %v1433 = vshrl.u32 %v1167, 16
        %v1435 = vrot.slane %v1433, 4
        %v1436 = vor.u32 %v1435, %v1431
        %v1437 = vrot.slane %v1436, 4
        %v1439 = vshll.u32 %v1168, 16
        %v1441 = vrot.slane %v1439, 5
        %v1442 = vsel %vm1208, %v1437, %v1441
        %v1443 = vshrl.u32 %v1168, 16
        %v1445 = vrot.slane %v1443, 4
        %v1446 = vor.u32 %v1445, %v1441
        %v1447 = vrot.slane %v1446, 4
        %v1449 = vshll.u32 %v1169, 16
        %v1451 = vrot.slane %v1449, 5
        %v1452 = vsel %vm1208, %v1447, %v1451
        %v1453 = vshrl.u32 %v1169, 16
        %v1455 = vrot.slane %v1453, 4
        %v1456 = vor.u32 %v1455, %v1451
        %v1457 = vrot.slane %v1456, 4
        %v1459 = vshll.u32 %v1170, 16
        %v1461 = vrot.slane %v1459, 5
        %v1462 = vsel %vm1208, %v1457, %v1461
        %v1463 = vshrl.u32 %v1170, 16
        %v1465 = vrot.slane %v1463, 4
        %v1466 = vor.u32 %v1465, %v1461
        %v1467 = vrot.slane %v1466, 4
        %v1469 = vshll.u32 %v1171, 16
        %v1471 = vrot.slane %v1469, 5
        %v1472 = vsel %vm1208, %v1467, %v1471
        %v1473 = vshrl.u32 %v1171, 16
        %v1475 = vrot.slane %v1473, 4
        %v1476 = vor.u32 %v1475, %v1471
        %v1477 = vrot.slane %v1476, 4
        %v1479 = vshll.u32 %v1172, 16
        %v1481 = vrot.slane %v1479, 5
        %v1482 = vsel %vm1208, %v1477, %v1481
        %v1483 = vshrl.u32 %v1172, 16
        %v1485 = vrot.slane %v1483, 4
        %v1486 = vor.u32 %v1485, %v1481
        %v1487 = vrot.slane %v1486, 4
        %v1489 = vshll.u32 %v1173, 16
        %v1491 = vrot.slane %v1489, 5
        %v1492 = vsel %vm1208, %v1487, %v1491
        %v1493 = vshrl.u32 %v1173, 16
        %v1495 = vrot.slane %v1493, 4
        %v1496 = vor.u32 %v1495, %v1491
        %v1497 = vrot.slane %v1496, 4
        %v1499 = vshll.u32 %v1174, 16
        %v1501 = vrot.slane %v1499, 5
        %v1502 = vsel %vm1208, %v1497, %v1501
        %v1503 = vshrl.u32 %v1174, 16
        %v1505 = vrot.slane %v1503, 4
        %v1506 = vor.u32 %v1505, %v1501
        %v1507 = vrot.slane %v1506, 4
        %v1509 = vshll.u32 %v1175, 16
        %v1511 = vrot.slane %v1509, 5
        %v1512 = vsel %vm1208, %v1507, %v1511
        %v1513 = vshrl.u32 %v1175, 16
        %v1515 = vrot.slane %v1513, 4
        %v1516 = vor.u32 %v1515, %v1511
        %v1517 = vrot.slane %v1516, 4
        %v1519 = vshll.u32 %v1176, 16
        %v1521 = vrot.slane %v1519, 5
        %v1522 = vsel %vm1208, %v1517, %v1521
        %v1523 = vshrl.u32 %v1176, 16
        %v1525 = vrot.slane %v1523, 4
        %v1526 = vor.u32 %v1525, %v1521
        %v1527 = vrot.slane %v1526, 4
        %v1529 = vshll.u32 %v1177, 16
        %v1531 = vrot.slane %v1529, 5
        %v1532 = vsel %vm1208, %v1527, %v1531
        %v1533 = vshrl.u32 %v1177, 16
        %v1535 = vrot.slane %v1533, 4
        %v1536 = vor.u32 %v1535, %v1531
        %v1537 = vrot.slane %v1536, 4
        %v1539 = vshll.u32 %v1178, 16
        %v1541 = vrot.slane %v1539, 5
        %v1542 = vsel %vm1208, %v1537, %v1541
        %v1543 = vshrl.u32 %v1178, 16
        %v1545 = vrot.slane %v1543, 4
        %v1546 = vor.u32 %v1545, %v1541
        %v1547 = vrot.slane %v1546, 4
        %v1549 = vshll.u32 %v1179, 16
        %v1551 = vrot.slane %v1549, 5
        %v1552 = vsel %vm1208, %v1547, %v1551
        %v1553 = vshrl.u32 %v1179, 16
        %v1555 = vrot.slane %v1553, 4
        %v1556 = vor.u32 %v1555, %v1551
        %v1557 = vrot.slane %v1556, 4
        %v1559 = vshll.u32 %v1180, 16
        %v1561 = vrot.slane %v1559, 5
        %v1562 = vsel %vm1208, %v1557, %v1561
        %v1563 = vshrl.u32 %v1180, 16
        %v1565 = vrot.slane %v1563, 4
        %v1566 = vor.u32 %v1565, %v1561
        %v1567 = vrot.slane %v1566, 4
        %v1569 = vshll.u32 %v1181, 16
        %v1571 = vrot.slane %v1569, 5
        %v1572 = vsel %vm1208, %v1567, %v1571
        %v1573 = vshrl.u32 %v1181, 16
        %v1575 = vrot.slane %v1573, 4
        %v1576 = vor.u32 %v1575, %v1571
        %v1577 = vrot.slane %v1576, 4
        %v1579 = vshll.u32 %v1182, 16
        %v1581 = vrot.slane %v1579, 5
        %v1582 = vsel %vm1208, %v1577, %v1581
        %v1583 = vshrl.u32 %v1182, 16
        %v1585 = vrot.slane %v1583, 4
        %v1586 = vor.u32 %v1585, %v1581
        %v1587 = vrot.slane %v1586, 4
        %v1589 = vshll.u32 %v1183, 16
        %v1591 = vrot.slane %v1589, 5
        %v1592 = vsel %vm1208, %v1587, %v1591
        %v1593 = vshrl.u32 %v1183, 16
        %v1595 = vrot.slane %v1593, 4
        %v1596 = vor.u32 %v1595, %v1591
        %v1597 = vrot.slane %v1596, 4
        %v1599 = vshll.u32 %v1184, 16
        %v1601 = vrot.slane %v1599, 5
        %v1602 = vsel %vm1208, %v1597, %v1601
        %v1603 = vshrl.u32 %v1184, 16
        %v1605 = vrot.slane %v1603, 4
        %v1606 = vor.u32 %v1605, %v1601
        %v1607 = vrot.slane %v1606, 4
        %v1609 = vshll.u32 %v1185, 16
        %v1611 = vrot.slane %v1609, 5
        %v1612 = vsel %vm1208, %v1607, %v1611
        %v1613 = vshrl.u32 %v1185, 16
        %v1615 = vrot.slane %v1613, 4
        %v1616 = vor.u32 %v1615, %v1611
        %v1617 = vrot.slane %v1616, 4
        %v1619 = vshll.u32 %v1186, 16
        %v1621 = vrot.slane %v1619, 5
        %v1622 = vsel %vm1208, %v1617, %v1621
        %v1623 = vshrl.u32 %v1186, 16
        %v1625 = vrot.slane %v1623, 4
        %v1626 = vor.u32 %v1625, %v1621
        %v1627 = vrot.slane %v1626, 4
        %v1629 = vshll.u32 %v1187, 16
        %v1631 = vrot.slane %v1629, 5
        %v1632 = vsel %vm1208, %v1627, %v1631
        %v1633 = vshrl.u32 %v1187, 16
        %v1635 = vrot.slane %v1633, 4
        %v1636 = vor.u32 %v1635, %v1631
        %v1637 = vrot.slane %v1636, 4
        %v1639 = vshll.u32 %v1188, 16
        %v1641 = vrot.slane %v1639, 5
        %v1642 = vsel %vm1208, %v1637, %v1641
        %v1643 = vshrl.u32 %v1188, 16
        %v1645 = vrot.slane %v1643, 4
        %v1646 = vor.u32 %v1645, %v1641
        %v1647 = vrot.slane %v1646, 4
        %v1649 = vshll.u32 %v1189, 16
        %v1651 = vrot.slane %v1649, 5
        %v1652 = vsel %vm1208, %v1647, %v1651
        %v1653 = vshrl.u32 %v1189, 16
        %v1655 = vrot.slane %v1653, 4
        %v1656 = vor.u32 %v1655, %v1651
        %v1657 = vrot.slane %v1656, 4
        %v1659 = vshll.u32 %v1190, 16
        %v1661 = vrot.slane %v1659, 5
        %v1662 = vsel %vm1208, %v1657, %v1661
        %v1663 = vshrl.u32 %v1190, 16
        %v1665 = vrot.slane %v1663, 4
        %v1666 = vor.u32 %v1665, %v1661
        %v1667 = vrot.slane %v1666, 4
        %v1669 = vshll.u32 %v1191, 16
        %v1671 = vrot.slane %v1669, 5
        %v1672 = vsel %vm1208, %v1667, %v1671
        %v1673 = vshrl.u32 %v1191, 16
        %v1675 = vrot.slane %v1673, 4
        %v1676 = vor.u32 %v1675, %v1671
        %v1677 = vrot.slane %v1676, 4
        %v1679 = vshll.u32 %v1192, 16
        %v1681 = vrot.slane %v1679, 5
        %v1682 = vsel %vm1208, %v1677, %v1681
        %v1683 = vshrl.u32 %v1192, 16
        %v1685 = vrot.slane %v1683, 4
        %v1686 = vor.u32 %v1685, %v1681
        %v1687 = vrot.slane %v1686, 4
        %v1689 = vshll.u32 %v1193, 16
        %v1691 = vrot.slane %v1689, 5
        %v1692 = vsel %vm1208, %v1687, %v1691
        %v1693 = vshrl.u32 %v1193, 16
        %v1695 = vrot.slane %v1693, 4
        %v1696 = vor.u32 %v1695, %v1691
        %v1697 = vrot.slane %v1696, 4
        %v1699 = vshll.u32 %v1194, 16
        %v1701 = vrot.slane %v1699, 5
        %v1702 = vsel %vm1208, %v1697, %v1701
        %v1703 = vshrl.u32 %v1194, 16
        %v1705 = vrot.slane %v1703, 4
        %v1706 = vor.u32 %v1705, %v1701
        %v1707 = vrot.slane %v1706, 4
        %v1709 = vshll.u32 %v1195, 16
        %v1711 = vrot.slane %v1709, 5
        %v1712 = vsel %vm1208, %v1707, %v1711
        %v1713 = vshrl.u32 %v1195, 16
        %v1715 = vrot.slane %v1713, 4
        %v1716 = vor.u32 %v1715, %v1711
        %v1717 = vrot.slane %v1716, 4
        %v1719 = vshll.u32 %v1196, 16
        %v1721 = vrot.slane %v1719, 5
        %v1722 = vsel %vm1208, %v1717, %v1721
        %v1723 = vshrl.u32 %v1196, 16
        %v1725 = vrot.slane %v1723, 4
        %v1726 = vor.u32 %v1725, %v1721
        %v1727 = vrot.slane %v1726, 4
        %v1729 = vshll.u32 %v1197, 16
        %v1731 = vrot.slane %v1729, 5
        %v1732 = vsel %vm1208, %v1727, %v1731
        %v1733 = vshrl.u32 %v1197, 16
        %v1735 = vrot.slane %v1733, 4
        %v1736 = vor.u32 %v1735, %v1731
        %v1737 = vrot.slane %v1736, 4
        %v1739 = vshll.u32 %v1198, 16
        %v1741 = vrot.slane %v1739, 5
        %v1742 = vsel %vm1208, %v1737, %v1741
        %v1743 = vshrl.u32 %v1198, 16
        %v1745 = vrot.slane %v1743, 4
        %v1746 = vor.u32 %v1745, %v1741
        %v1747 = vrot.slane %v1746, 4
        %v1749 = vshll.u32 %v1199, 16
        %v1751 = vrot.slane %v1749, 5
        %v1752 = vsel %vm1208, %v1747, %v1751
        %v1753 = vshrl.u32 %v1199, 16
        %v1755 = vrot.slane %v1753, 4
        %v1756 = vor.u32 %v1755, %v1751
        %v1757 = vrot.slane %v1756, 4
        %v1759 = vshll.u32 %v1200, 16
        %v1761 = vrot.slane %v1759, 5
        %v1762 = vsel %vm1208, %v1757, %v1761
        %v1763 = vshrl.u32 %v1200, 16
        %v1765 = vrot.slane %v1763, 4
        %v1766 = vor.u32 %v1765, %v1761
        %v1767 = vrot.slane %v1766, 4
        %v1769 = vshll.u32 %v1201, 16
        %v1771 = vrot.slane %v1769, 5
        %v1772 = vsel %vm1208, %v1767, %v1771
        %v1773 = vshrl.u32 %v1201, 16
        %v1775 = vrot.slane %v1773, 4
        %v1776 = vor.u32 %v1775, %v1771
        %v1777 = vrot.slane %v1776, 4
        %v1779 = vshll.u32 %v1202, 16
        %v1781 = vrot.slane %v1779, 5
        %v1782 = vsel %vm1208, %v1777, %v1781
        %v1783 = vshrl.u32 %v1202, 16
        %v1785 = vrot.slane %v1783, 4
        %v1786 = vor.u32 %v1785, %v1781
        %v1787 = vrot.slane %v1786, 4
        %v1789 = vshll.u32 %v1203, 16
        %v1791 = vrot.slane %v1789, 5
        %v1792 = vsel %vm1208, %v1787, %v1791
        %v1793 = vshrl.u32 %v1203, 16
        %v1795 = vrot.slane %v1793, 4
        %v1796 = vor.u32 %v1795, %v1791
        %v1797 = vrot.slane %v1796, 4
        %v1799 = vshll.u32 %v1204, 16
        %v1801 = vrot.slane %v1799, 5
        %v1802 = vsel %vm1208, %v1797, %v1801
        %v1803 = vshrl.u32 %v1204, 16
        %v1805 = vrot.slane %v1803, 4
        %v1806 = vor.u32 %v1805, %v1801
        %v1807 = vrot.slane %v1806, 4
        %v1809 = vshll.u32 %v1205, 16
        %v1811 = vrot.slane %v1809, 5
        %v1812 = vsel %vm1208, %v1807, %v1811
        %1813 = vrot.lane.b32.xlu0 %v1222, 4
        %v1814 = vpop.permute.xlu0 %1813
        %1815 = vrot.lane.b32.xlu0 %v1232, 4
        %v1816 = vpop.permute.xlu0 %1815
        %1817 = vrot.lane.b32.xlu0 %v1242, 4
        %v1818 = vpop.permute.xlu0 %1817
        %1819 = vrot.lane.b32.xlu0 %v1252, 4
        %v1820 = vpop.permute.xlu0 %1819
        %1821 = vrot.lane.b32.xlu0 %v1262, 4
        %v1822 = vpop.permute.xlu0 %1821
        %1823 = vrot.lane.b32.xlu0 %v1272, 4
        %v1824 = vpop.permute.xlu0 %1823
        %1825 = vrot.lane.b32.xlu0 %v1282, 4
        %v1826 = vpop.permute.xlu0 %1825
        %1827 = vrot.lane.b32.xlu0 %v1292, 4
        %v1828 = vpop.permute.xlu0 %1827
        %1829 = vrot.lane.b32.xlu0 %v1302, 4
        %v1830 = vpop.permute.xlu0 %1829
        %1831 = vrot.lane.b32.xlu0 %v1312, 4
        %v1832 = vpop.permute.xlu0 %1831
        %1833 = vrot.lane.b32.xlu0 %v1322, 4
        %v1834 = vpop.permute.xlu0 %1833
        %1835 = vrot.lane.b32.xlu0 %v1332, 4
        %v1836 = vpop.permute.xlu0 %1835
        %1837 = vrot.lane.b32.xlu0 %v1342, 4
        %v1838 = vpop.permute.xlu0 %1837
        %1839 = vrot.lane.b32.xlu0 %v1352, 4
        %v1840 = vpop.permute.xlu0 %1839
        %1841 = vrot.lane.b32.xlu0 %v1362, 4
        %v1842 = vpop.permute.xlu0 %1841
        %1843 = vrot.lane.b32.xlu0 %v1372, 4
        %v1844 = vpop.permute.xlu0 %1843
        %1845 = vrot.lane.b32.xlu0 %v1382, 4
        %v1846 = vpop.permute.xlu0 %1845
        %1847 = vrot.lane.b32.xlu0 %v1392, 4
        %v1848 = vpop.permute.xlu0 %1847
        %1849 = vrot.lane.b32.xlu0 %v1402, 4
        %v1850 = vpop.permute.xlu0 %1849
        %1851 = vrot.lane.b32.xlu0 %v1412, 4
        %v1852 = vpop.permute.xlu0 %1851
        %1853 = vrot.lane.b32.xlu0 %v1422, 4
        %v1854 = vpop.permute.xlu0 %1853
        %1855 = vrot.lane.b32.xlu0 %v1432, 4
        %v1856 = vpop.permute.xlu0 %1855
        %1857 = vrot.lane.b32.xlu0 %v1442, 4
        %v1858 = vpop.permute.xlu0 %1857
        %1859 = vrot.lane.b32.xlu0 %v1452, 4
        %v1860 = vpop.permute.xlu0 %1859
        %1861 = vrot.lane.b32.xlu0 %v1462, 4
        %v1862 = vpop.permute.xlu0 %1861
        %1863 = vrot.lane.b32.xlu0 %v1472, 4
        %v1864 = vpop.permute.xlu0 %1863
        %1865 = vrot.lane.b32.xlu0 %v1482, 4
        %v1866 = vpop.permute.xlu0 %1865
        %1867 = vrot.lane.b32.xlu0 %v1492, 4
        %v1868 = vpop.permute.xlu0 %1867
        %1869 = vrot.lane.b32.xlu0 %v1502, 4
        %v1870 = vpop.permute.xlu0 %1869
        %1871 = vrot.lane.b32.xlu0 %v1512, 4
        %v1872 = vpop.permute.xlu0 %1871
        %1873 = vrot.lane.b32.xlu0 %v1522, 4
        %v1874 = vpop.permute.xlu0 %1873
        %1875 = vrot.lane.b32.xlu0 %v1532, 4
        %v1876 = vpop.permute.xlu0 %1875
        %1877 = vrot.lane.b32.xlu0 %v1542, 4
        %v1878 = vpop.permute.xlu0 %1877
        %1879 = vrot.lane.b32.xlu0 %v1552, 4
        %v1880 = vpop.permute.xlu0 %1879
        %1881 = vrot.lane.b32.xlu0 %v1562, 4
        %v1882 = vpop.permute.xlu0 %1881
        %1883 = vrot.lane.b32.xlu0 %v1572, 4
        %v1884 = vpop.permute.xlu0 %1883
        %1885 = vrot.lane.b32.xlu0 %v1582, 4
        %v1886 = vpop.permute.xlu0 %1885
        %1887 = vrot.lane.b32.xlu0 %v1592, 4
        %v1888 = vpop.permute.xlu0 %1887
        %1889 = vrot.lane.b32.xlu0 %v1602, 4
        %v1890 = vpop.permute.xlu0 %1889
        %1891 = vrot.lane.b32.xlu0 %v1612, 4
        %v1892 = vpop.permute.xlu0 %1891
        %1893 = vrot.lane.b32.xlu0 %v1622, 4
        %v1894 = vpop.permute.xlu0 %1893
        %1895 = vrot.lane.b32.xlu0 %v1632, 4
        %v1896 = vpop.permute.xlu0 %1895
        %1897 = vrot.lane.b32.xlu0 %v1642, 4
        %v1898 = vpop.permute.xlu0 %1897
        %1899 = vrot.lane.b32.xlu0 %v1652, 4
        %v1900 = vpop.permute.xlu0 %1899
        %1901 = vrot.lane.b32.xlu0 %v1662, 4
        %v1902 = vpop.permute.xlu0 %1901
        %1903 = vrot.lane.b32.xlu0 %v1672, 4
        %v1904 = vpop.permute.xlu0 %1903
        %1905 = vrot.lane.b32.xlu0 %v1682, 4
        %v1906 = vpop.permute.xlu0 %1905
        %1907 = vrot.lane.b32.xlu0 %v1692, 4
        %v1908 = vpop.permute.xlu0 %1907
        %1909 = vrot.lane.b32.xlu0 %v1702, 4
        %v1910 = vpop.permute.xlu0 %1909
        %1911 = vrot.lane.b32.xlu0 %v1712, 4
        %v1912 = vpop.permute.xlu0 %1911
        %1913 = vrot.lane.b32.xlu0 %v1722, 4
        %v1914 = vpop.permute.xlu0 %1913
        %1915 = vrot.lane.b32.xlu0 %v1732, 4
        %v1916 = vpop.permute.xlu0 %1915
        %1917 = vrot.lane.b32.xlu0 %v1742, 4
        %v1918 = vpop.permute.xlu0 %1917
        %1919 = vrot.lane.b32.xlu0 %v1752, 4
        %v1920 = vpop.permute.xlu0 %1919
        %1921 = vrot.lane.b32.xlu0 %v1762, 4
        %v1922 = vpop.permute.xlu0 %1921
        %1923 = vrot.lane.b32.xlu0 %v1772, 4
        %v1924 = vpop.permute.xlu0 %1923
        %1925 = vrot.lane.b32.xlu0 %v1782, 4
        %v1926 = vpop.permute.xlu0 %1925
        %1927 = vrot.lane.b32.xlu0 %v1792, 4
        %v1928 = vpop.permute.xlu0 %1927
        %1929 = vrot.lane.b32.xlu0 %v1802, 4
        %v1930 = vpop.permute.xlu0 %1929
        %1931 = vrot.lane.b32.xlu0 %v1812, 4
        %v1932 = vpop.permute.xlu0 %1931
        %vm1993 = vcmask 60448
        %1994 = vst.msk [vmem:[#allocation3] sm:$0xf] %vm1993, %v1814
        %1995 = vst.msk [vmem:[#allocation3 + $0x4] sm:$0xf] %vm1993, %v1816
        %1996 = vst.msk [vmem:[#allocation3 + $0x8] sm:$0xf] %vm1993, %v1818
        %1997 = vst.msk [vmem:[#allocation3 + $0xc] sm:$0xf] %vm1993, %v1820
        %1998 = vst.msk [vmem:[#allocation3 + $0x10] sm:$0xf] %vm1993, %v1822
        %1999 = vst.msk [vmem:[#allocation3 + $0x14] sm:$0xf] %vm1993, %v1824
        %2000 = vst.msk [vmem:[#allocation3 + $0x18] sm:$0xf] %vm1993, %v1826
        %2001 = vst.msk [vmem:[#allocation3 + $0x1c] sm:$0xf] %vm1993, %v1828
        %2002 = vst.msk [vmem:[#allocation3 + $0x20] sm:$0xf] %vm1993, %v1830
        %2003 = vst.msk [vmem:[#allocation3 + $0x24] sm:$0xf] %vm1993, %v1832
        %2004 = vst.msk [vmem:[#allocation3 + $0x28] sm:$0xf] %vm1993, %v1834
        %2005 = vst.msk [vmem:[#allocation3 + $0x2c] sm:$0xf] %vm1993, %v1836
        %2006 = vst.msk [vmem:[#allocation3 + $0x30] sm:$0xf] %vm1993, %v1838
        %2007 = vst.msk [vmem:[#allocation3 + $0x34] sm:$0xf] %vm1993, %v1840
        %2008 = vst.msk [vmem:[#allocation3 + $0x38] sm:$0xf] %vm1993, %v1842
        %2009 = vst.msk [vmem:[#allocation3 + $0x3c] sm:$0xf] %vm1993, %v1844
        %2010 = vst.msk [vmem:[#allocation3 + $0x40] sm:$0xf] %vm1993, %v1846
        %2011 = vst.msk [vmem:[#allocation3 + $0x44] sm:$0xf] %vm1993, %v1848
        %2012 = vst.msk [vmem:[#allocation3 + $0x48] sm:$0xf] %vm1993, %v1850
        %2013 = vst.msk [vmem:[#allocation3 + $0x4c] sm:$0xf] %vm1993, %v1852
        %2014 = vst.msk [vmem:[#allocation3 + $0x50] sm:$0xf] %vm1993, %v1854
        %2015 = vst.msk [vmem:[#allocation3 + $0x54] sm:$0xf] %vm1993, %v1856
        %2016 = vst.msk [vmem:[#allocation3 + $0x58] sm:$0xf] %vm1993, %v1858
        %2017 = vst.msk [vmem:[#allocation3 + $0x5c] sm:$0xf] %vm1993, %v1860
        %2018 = vst.msk [vmem:[#allocation3 + $0x60] sm:$0xf] %vm1993, %v1862
        %2019 = vst.msk [vmem:[#allocation3 + $0x64] sm:$0xf] %vm1993, %v1864
        %2020 = vst.msk [vmem:[#allocation3 + $0x68] sm:$0xf] %vm1993, %v1866
        %2021 = vst.msk [vmem:[#allocation3 + $0x6c] sm:$0xf] %vm1993, %v1868
        %2022 = vst.msk [vmem:[#allocation3 + $0x70] sm:$0xf] %vm1993, %v1870
        %2023 = vst.msk [vmem:[#allocation3 + $0x74] sm:$0xf] %vm1993, %v1872
        %2024 = vst.msk [vmem:[#allocation3 + $0x78] sm:$0xf] %vm1993, %v1874
        %2025 = vst.msk [vmem:[#allocation3 + $0x7c] sm:$0xf] %vm1993, %v1876
        %2026 = vst.msk [vmem:[#allocation3 + $0x80] sm:$0xf] %vm1993, %v1878
        %2027 = vst.msk [vmem:[#allocation3 + $0x84] sm:$0xf] %vm1993, %v1880
        %2028 = vst.msk [vmem:[#allocation3 + $0x88] sm:$0xf] %vm1993, %v1882
        %2029 = vst.msk [vmem:[#allocation3 + $0x8c] sm:$0xf] %vm1993, %v1884
        %2030 = vst.msk [vmem:[#allocation3 + $0x90] sm:$0xf] %vm1993, %v1886
        %2031 = vst.msk [vmem:[#allocation3 + $0x94] sm:$0xf] %vm1993, %v1888
        %2032 = vst.msk [vmem:[#allocation3 + $0x98] sm:$0xf] %vm1993, %v1890
        %2033 = vst.msk [vmem:[#allocation3 + $0x9c] sm:$0xf] %vm1993, %v1892
        %2034 = vst.msk [vmem:[#allocation3 + $0xa0] sm:$0xf] %vm1993, %v1894
        %2035 = vst.msk [vmem:[#allocation3 + $0xa4] sm:$0xf] %vm1993, %v1896
        %2036 = vst.msk [vmem:[#allocation3 + $0xa8] sm:$0xf] %vm1993, %v1898
        %2037 = vst.msk [vmem:[#allocation3 + $0xac] sm:$0xf] %vm1993, %v1900
        %2038 = vst.msk [vmem:[#allocation3 + $0xb0] sm:$0xf] %vm1993, %v1902
        %2039 = vst.msk [vmem:[#allocation3 + $0xb4] sm:$0xf] %vm1993, %v1904
        %2040 = vst.msk [vmem:[#allocation3 + $0xb8] sm:$0xf] %vm1993, %v1906
        %2041 = vst.msk [vmem:[#allocation3 + $0xbc] sm:$0xf] %vm1993, %v1908
        %2042 = vst.msk [vmem:[#allocation3 + $0xc0] sm:$0xf] %vm1993, %v1910
        %2043 = vst.msk [vmem:[#allocation3 + $0xc4] sm:$0xf] %vm1993, %v1912
        %2044 = vst.msk [vmem:[#allocation3 + $0xc8] sm:$0xf] %vm1993, %v1914
        %2045 = vst.msk [vmem:[#allocation3 + $0xcc] sm:$0xf] %vm1993, %v1916
        %2046 = vst.msk [vmem:[#allocation3 + $0xd0] sm:$0xf] %vm1993, %v1918
        %2047 = vst.msk [vmem:[#allocation3 + $0xd4] sm:$0xf] %vm1993, %v1920
        %2048 = vst.msk [vmem:[#allocation3 + $0xd8] sm:$0xf] %vm1993, %v1922
        %2049 = vst.msk [vmem:[#allocation3 + $0xdc] sm:$0xf] %vm1993, %v1924
        %2050 = vst.msk [vmem:[#allocation3 + $0xe0] sm:$0xf] %vm1993, %v1926
        %2051 = vst.msk [vmem:[#allocation3 + $0xe4] sm:$0xf] %vm1993, %v1928
        %2052 = vst.msk [vmem:[#allocation3 + $0xe8] sm:$0xf] %vm1993, %v1930
        %2053 = vst.msk [vmem:[#allocation3 + $0xec] sm:$0xf] %vm1993, %v1932
        %v2054 = vld [vmem:[#allocation2] sm:$0xe]
        %v2055 = vld [vmem:[#allocation2 + $0x4] sm:$0xf]
        %v2056 = vld [vmem:[#allocation2 + $0x8] sm:$0xf]
        %v2057 = vld [vmem:[#allocation2 + $0xc] sm:$0xf]
        %v2058 = vld [vmem:[#allocation2 + $0x10] sm:$0xf]
        %v2059 = vld [vmem:[#allocation2 + $0x14] sm:$0xf]
        %v2060 = vld [vmem:[#allocation2 + $0x18] sm:$0xf]
        %v2061 = vld [vmem:[#allocation2 + $0x1c] sm:$0xf]
        %v2062 = vld [vmem:[#allocation2 + $0x20] sm:$0xf]
        %v2063 = vld [vmem:[#allocation2 + $0x24] sm:$0xf]
        %v2064 = vld [vmem:[#allocation2 + $0x28] sm:$0xf]
        %v2065 = vld [vmem:[#allocation2 + $0x2c] sm:$0xf]
        %v2066 = vld [vmem:[#allocation2 + $0x30] sm:$0xf]
        %v2067 = vld [vmem:[#allocation2 + $0x34] sm:$0xf]
        %v2068 = vld [vmem:[#allocation2 + $0x38] sm:$0xf]
        %v2069 = vld [vmem:[#allocation2 + $0x3c] sm:$0xf]
        %v2070 = vld [vmem:[#allocation2 + $0x40] sm:$0xf]
        %v2071 = vld [vmem:[#allocation2 + $0x44] sm:$0xf]
        %v2072 = vld [vmem:[#allocation2 + $0x48] sm:$0xf]
        %v2073 = vld [vmem:[#allocation2 + $0x4c] sm:$0xf]
        %v2074 = vld [vmem:[#allocation2 + $0x50] sm:$0xf]
        %v2075 = vld [vmem:[#allocation2 + $0x54] sm:$0xf]
        %v2076 = vld [vmem:[#allocation2 + $0x58] sm:$0xf]
        %v2077 = vld [vmem:[#allocation2 + $0x5c] sm:$0xf]
        %v2078 = vld [vmem:[#allocation2 + $0x60] sm:$0xf]
        %v2079 = vld [vmem:[#allocation2 + $0x64] sm:$0xf]
        %v2080 = vld [vmem:[#allocation2 + $0x68] sm:$0xf]
        %v2081 = vld [vmem:[#allocation2 + $0x6c] sm:$0xf]
        %v2082 = vld [vmem:[#allocation2 + $0x70] sm:$0xf]
        %v2083 = vld [vmem:[#allocation2 + $0x74] sm:$0xf]
        %v2084 = vld [vmem:[#allocation2 + $0x78] sm:$0xf]
        %v2085 = vld [vmem:[#allocation2 + $0x7c] sm:$0xf]
        %v2086 = vld [vmem:[#allocation2 + $0x80] sm:$0xf]
        %v2087 = vld [vmem:[#allocation2 + $0x84] sm:$0xf]
        %v2088 = vld [vmem:[#allocation2 + $0x88] sm:$0xf]
        %v2089 = vld [vmem:[#allocation2 + $0x8c] sm:$0xf]
        %v2090 = vld [vmem:[#allocation2 + $0x90] sm:$0xf]
        %v2091 = vld [vmem:[#allocation2 + $0x94] sm:$0xf]
        %v2092 = vld [vmem:[#allocation2 + $0x98] sm:$0xf]
        %v2093 = vld [vmem:[#allocation2 + $0x9c] sm:$0xf]
        %v2094 = vld [vmem:[#allocation2 + $0xa0] sm:$0xf]
        %v2095 = vld [vmem:[#allocation2 + $0xa4] sm:$0xf]
        %v2096 = vld [vmem:[#allocation2 + $0xa8] sm:$0xf]
        %v2097 = vld [vmem:[#allocation2 + $0xac] sm:$0xf]
        %v2098 = vld [vmem:[#allocation2 + $0xb0] sm:$0xf]
        %v2099 = vld [vmem:[#allocation2 + $0xb4] sm:$0xf]
        %v2100 = vld [vmem:[#allocation2 + $0xb8] sm:$0xf]
        %v2101 = vld [vmem:[#allocation2 + $0xbc] sm:$0xf]
        %v2102 = vld [vmem:[#allocation2 + $0xc0] sm:$0xf]
        %v2103 = vld [vmem:[#allocation2 + $0xc4] sm:$0xf]
        %v2104 = vld [vmem:[#allocation2 + $0xc8] sm:$0xf]
        %v2105 = vld [vmem:[#allocation2 + $0xcc] sm:$0xf]
        %v2106 = vld [vmem:[#allocation2 + $0xd0] sm:$0xf]
        %v2107 = vld [vmem:[#allocation2 + $0xd4] sm:$0xf]
        %v2108 = vld [vmem:[#allocation2 + $0xd8] sm:$0xf]
        %v2109 = vld [vmem:[#allocation2 + $0xdc] sm:$0xf]
        %v2110 = vld [vmem:[#allocation2 + $0xe0] sm:$0xf]
        %v2111 = vld [vmem:[#allocation2 + $0xe4] sm:$0xf]
        %v2112 = vld [vmem:[#allocation2 + $0xe8] sm:$0xf]
        %v2113 = vld [vmem:[#allocation2 + $0xec] sm:$0xf]
        %v2114 = vld [vmem:[#allocation2 + $0xf0] sm:$0x1]
        %vm2176 = vcmask 1042432
        %vm2177 = vcmask 1046532
        %vm2178 = vmor %vm2176, %vm2177
        %v2179 = vrot.slane %v2054, 5
        %v2180 = vrot.slane %v2179, 4
        %v2181 = vrot.slane %v2055, 5
        %v2182 = vsel %vm2178, %v2180, %v2181
        %v2183 = vrot.slane %v2181, 4
        %v2184 = vrot.slane %v2056, 5
        %v2185 = vsel %vm2178, %v2183, %v2184
        %v2186 = vrot.slane %v2184, 4
        %v2187 = vrot.slane %v2057, 5
        %v2188 = vsel %vm2178, %v2186, %v2187
        %v2189 = vrot.slane %v2187, 4
        %v2190 = vrot.slane %v2058, 5
        %v2191 = vsel %vm2178, %v2189, %v2190
        %v2192 = vrot.slane %v2190, 4
        %v2193 = vrot.slane %v2059, 5
        %v2194 = vsel %vm2178, %v2192, %v2193
        %v2195 = vrot.slane %v2193, 4
        %v2196 = vrot.slane %v2060, 5
        %v2197 = vsel %vm2178, %v2195, %v2196
        %v2198 = vrot.slane %v2196, 4
        %v2199 = vrot.slane %v2061, 5
        %v2200 = vsel %vm2178, %v2198, %v2199
        %v2201 = vrot.slane %v2199, 4
        %v2202 = vrot.slane %v2062, 5
        %v2203 = vsel %vm2178, %v2201, %v2202
        %v2204 = vrot.slane %v2202, 4
        %v2205 = vrot.slane %v2063, 5
        %v2206 = vsel %vm2178, %v2204, %v2205
        %v2207 = vrot.slane %v2205, 4
        %v2208 = vrot.slane %v2064, 5
        %v2209 = vsel %vm2178, %v2207, %v2208
        %v2210 = vrot.slane %v2208, 4
        %v2211 = vrot.slane %v2065, 5
        %v2212 = vsel %vm2178, %v2210, %v2211
        %v2213 = vrot.slane %v2211, 4
        %v2214 = vrot.slane %v2066, 5
        %v2215 = vsel %vm2178, %v2213, %v2214
        %v2216 = vrot.slane %v2214, 4
        %v2217 = vrot.slane %v2067, 5
        %v2218 = vsel %vm2178, %v2216, %v2217
        %v2219 = vrot.slane %v2217, 4
        %v2220 = vrot.slane %v2068, 5
        %v2221 = vsel %vm2178, %v2219, %v2220
        %v2222 = vrot.slane %v2220, 4
        %v2223 = vrot.slane %v2069, 5
        %v2224 = vsel %vm2178, %v2222, %v2223
        %v2225 = vrot.slane %v2223, 4
        %v2226 = vrot.slane %v2070, 5
        %v2227 = vsel %vm2178, %v2225, %v2226
        %v2228 = vrot.slane %v2226, 4
        %v2229 = vrot.slane %v2071, 5
        %v2230 = vsel %vm2178, %v2228, %v2229
        %v2231 = vrot.slane %v2229, 4
        %v2232 = vrot.slane %v2072, 5
        %v2233 = vsel %vm2178, %v2231, %v2232
        %v2234 = vrot.slane %v2232, 4
        %v2235 = vrot.slane %v2073, 5
        %v2236 = vsel %vm2178, %v2234, %v2235
        %v2237 = vrot.slane %v2235, 4
        %v2238 = vrot.slane %v2074, 5
        %v2239 = vsel %vm2178, %v2237, %v2238
        %v2240 = vrot.slane %v2238, 4
        %v2241 = vrot.slane %v2075, 5
        %v2242 = vsel %vm2178, %v2240, %v2241
        %v2243 = vrot.slane %v2241, 4
        %v2244 = vrot.slane %v2076, 5
        %v2245 = vsel %vm2178, %v2243, %v2244
        %v2246 = vrot.slane %v2244, 4
        %v2247 = vrot.slane %v2077, 5
        %v2248 = vsel %vm2178, %v2246, %v2247
        %v2249 = vrot.slane %v2247, 4
        %v2250 = vrot.slane %v2078, 5
        %v2251 = vsel %vm2178, %v2249, %v2250
        %v2252 = vrot.slane %v2250, 4
        %v2253 = vrot.slane %v2079, 5
        %v2254 = vsel %vm2178, %v2252, %v2253
        %v2255 = vrot.slane %v2253, 4
        %v2256 = vrot.slane %v2080, 5
        %v2257 = vsel %vm2178, %v2255, %v2256
        %v2258 = vrot.slane %v2256, 4
        %v2259 = vrot.slane %v2081, 5
        %v2260 = vsel %vm2178, %v2258, %v2259
        %v2261 = vrot.slane %v2259, 4
        %v2262 = vrot.slane %v2082, 5
        %v2263 = vsel %vm2178, %v2261, %v2262
        %v2264 = vrot.slane %v2262, 4
        %v2265 = vrot.slane %v2083, 5
        %v2266 = vsel %vm2178, %v2264, %v2265
        %v2267 = vrot.slane %v2265, 4
        %v2268 = vrot.slane %v2084, 5
        %v2269 = vsel %vm2178, %v2267, %v2268
        %v2270 = vrot.slane %v2268, 4
        %v2271 = vrot.slane %v2085, 5
        %v2272 = vsel %vm2178, %v2270, %v2271
        %v2273 = vrot.slane %v2271, 4
        %v2274 = vrot.slane %v2086, 5
        %v2275 = vsel %vm2178, %v2273, %v2274
        %v2276 = vrot.slane %v2274, 4
        %v2277 = vrot.slane %v2087, 5
        %v2278 = vsel %vm2178, %v2276, %v2277
        %v2279 = vrot.slane %v2277, 4
        %v2280 = vrot.slane %v2088, 5
        %v2281 = vsel %vm2178, %v2279, %v2280
        %v2282 = vrot.slane %v2280, 4
        %v2283 = vrot.slane %v2089, 5
        %v2284 = vsel %vm2178, %v2282, %v2283
        %v2285 = vrot.slane %v2283, 4
        %v2286 = vrot.slane %v2090, 5
        %v2287 = vsel %vm2178, %v2285, %v2286
        %v2288 = vrot.slane %v2286, 4
        %v2289 = vrot.slane %v2091, 5
        %v2290 = vsel %vm2178, %v2288, %v2289
        %v2291 = vrot.slane %v2289, 4
        %v2292 = vrot.slane %v2092, 5
        %v2293 = vsel %vm2178, %v2291, %v2292
        %v2294 = vrot.slane %v2292, 4
        %v2295 = vrot.slane %v2093, 5
        %v2296 = vsel %vm2178, %v2294, %v2295
        %v2297 = vrot.slane %v2295, 4
        %v2298 = vrot.slane %v2094, 5
        %v2299 = vsel %vm2178, %v2297, %v2298
        %v2300 = vrot.slane %v2298, 4
        %v2301 = vrot.slane %v2095, 5
        %v2302 = vsel %vm2178, %v2300, %v2301
        %v2303 = vrot.slane %v2301, 4
        %v2304 = vrot.slane %v2096, 5
        %v2305 = vsel %vm2178, %v2303, %v2304
        %v2306 = vrot.slane %v2304, 4
        %v2307 = vrot.slane %v2097, 5
        %v2308 = vsel %vm2178, %v2306, %v2307
        %v2309 = vrot.slane %v2307, 4
        %v2310 = vrot.slane %v2098, 5
        %v2311 = vsel %vm2178, %v2309, %v2310
        %v2312 = vrot.slane %v2310, 4
        %v2313 = vrot.slane %v2099, 5
        %v2314 = vsel %vm2178, %v2312, %v2313
        %v2315 = vrot.slane %v2313, 4
        %v2316 = vrot.slane %v2100, 5
        %v2317 = vsel %vm2178, %v2315, %v2316
        %v2318 = vrot.slane %v2316, 4
        %v2319 = vrot.slane %v2101, 5
        %v2320 = vsel %vm2178, %v2318, %v2319
        %v2321 = vrot.slane %v2319, 4
        %v2322 = vrot.slane %v2102, 5
        %v2323 = vsel %vm2178, %v2321, %v2322
        %v2324 = vrot.slane %v2322, 4
        %v2325 = vrot.slane %v2103, 5
        %v2326 = vsel %vm2178, %v2324, %v2325
        %v2327 = vrot.slane %v2325, 4
        %v2328 = vrot.slane %v2104, 5
        %v2329 = vsel %vm2178, %v2327, %v2328
        %v2330 = vrot.slane %v2328, 4
        %v2331 = vrot.slane %v2105, 5
        %v2332 = vsel %vm2178, %v2330, %v2331
        %v2333 = vrot.slane %v2331, 4
        %v2334 = vrot.slane %v2106, 5
        %v2335 = vsel %vm2178, %v2333, %v2334
        %v2336 = vrot.slane %v2334, 4
        %v2337 = vrot.slane %v2107, 5
        %v2338 = vsel %vm2178, %v2336, %v2337
        %v2339 = vrot.slane %v2337, 4
        %v2340 = vrot.slane %v2108, 5
        %v2341 = vsel %vm2178, %v2339, %v2340
        %v2342 = vrot.slane %v2340, 4
        %v2343 = vrot.slane %v2109, 5
        %v2344 = vsel %vm2178, %v2342, %v2343
        %v2345 = vrot.slane %v2343, 4
        %v2346 = vrot.slane %v2110, 5
        %v2347 = vsel %vm2178, %v2345, %v2346
        %v2348 = vrot.slane %v2346, 4
        %v2349 = vrot.slane %v2111, 5
        %v2350 = vsel %vm2178, %v2348, %v2349
        %v2351 = vrot.slane %v2349, 4
        %v2352 = vrot.slane %v2112, 5
        %v2353 = vsel %vm2178, %v2351, %v2352
        %v2354 = vrot.slane %v2352, 4
        %v2355 = vrot.slane %v2113, 5
        %v2356 = vsel %vm2178, %v2354, %v2355
        %v2357 = vrot.slane %v2355, 4
        %v2358 = vrot.slane %v2114, 5
        %v2359 = vsel %vm2178, %v2357, %v2358
        %2360 = vrot.lane.b32.xlu0 %v2182, 8
        %v2361 = vpop.permute.xlu0 %2360
        %2362 = vrot.lane.b32.xlu0 %v2185, 8
        %v2363 = vpop.permute.xlu0 %2362
        %2364 = vrot.lane.b32.xlu0 %v2188, 8
        %v2365 = vpop.permute.xlu0 %2364
        %2366 = vrot.lane.b32.xlu0 %v2191, 8
        %v2367 = vpop.permute.xlu0 %2366
        %2368 = vrot.lane.b32.xlu0 %v2194, 8
        %v2369 = vpop.permute.xlu0 %2368
        %2370 = vrot.lane.b32.xlu0 %v2197, 8
        %v2371 = vpop.permute.xlu0 %2370
        %2372 = vrot.lane.b32.xlu0 %v2200, 8
        %v2373 = vpop.permute.xlu0 %2372
        %2374 = vrot.lane.b32.xlu0 %v2203, 8
        %v2375 = vpop.permute.xlu0 %2374
        %2376 = vrot.lane.b32.xlu0 %v2206, 8
        %v2377 = vpop.permute.xlu0 %2376
        %2378 = vrot.lane.b32.xlu0 %v2209, 8
        %v2379 = vpop.permute.xlu0 %2378
        %2380 = vrot.lane.b32.xlu0 %v2212, 8
        %v2381 = vpop.permute.xlu0 %2380
        %2382 = vrot.lane.b32.xlu0 %v2215, 8
        %v2383 = vpop.permute.xlu0 %2382
        %2384 = vrot.lane.b32.xlu0 %v2218, 8
        %v2385 = vpop.permute.xlu0 %2384
        %2386 = vrot.lane.b32.xlu0 %v2221, 8
        %v2387 = vpop.permute.xlu0 %2386
        %2388 = vrot.lane.b32.xlu0 %v2224, 8
        %v2389 = vpop.permute.xlu0 %2388
        %2390 = vrot.lane.b32.xlu0 %v2227, 8
        %v2391 = vpop.permute.xlu0 %2390
        %2392 = vrot.lane.b32.xlu0 %v2230, 8
        %v2393 = vpop.permute.xlu0 %2392
        %2394 = vrot.lane.b32.xlu0 %v2233, 8
        %v2395 = vpop.permute.xlu0 %2394
        %2396 = vrot.lane.b32.xlu0 %v2236, 8
        %v2397 = vpop.permute.xlu0 %2396
        %2398 = vrot.lane.b32.xlu0 %v2239, 8
        %v2399 = vpop.permute.xlu0 %2398
        %2400 = vrot.lane.b32.xlu0 %v2242, 8
        %v2401 = vpop.permute.xlu0 %2400
        %2402 = vrot.lane.b32.xlu0 %v2245, 8
        %v2403 = vpop.permute.xlu0 %2402
        %2404 = vrot.lane.b32.xlu0 %v2248, 8
        %v2405 = vpop.permute.xlu0 %2404
        %2406 = vrot.lane.b32.xlu0 %v2251, 8
        %v2407 = vpop.permute.xlu0 %2406
        %2408 = vrot.lane.b32.xlu0 %v2254, 8
        %v2409 = vpop.permute.xlu0 %2408
        %2410 = vrot.lane.b32.xlu0 %v2257, 8
        %v2411 = vpop.permute.xlu0 %2410
        %2412 = vrot.lane.b32.xlu0 %v2260, 8
        %v2413 = vpop.permute.xlu0 %2412
        %2414 = vrot.lane.b32.xlu0 %v2263, 8
        %v2415 = vpop.permute.xlu0 %2414
        %2416 = vrot.lane.b32.xlu0 %v2266, 8
        %v2417 = vpop.permute.xlu0 %2416
        %2418 = vrot.lane.b32.xlu0 %v2269, 8
        %v2419 = vpop.permute.xlu0 %2418
        %2420 = vrot.lane.b32.xlu0 %v2272, 8
        %v2421 = vpop.permute.xlu0 %2420
        %2422 = vrot.lane.b32.xlu0 %v2275, 8
        %v2423 = vpop.permute.xlu0 %2422
        %2424 = vrot.lane.b32.xlu0 %v2278, 8
        %v2425 = vpop.permute.xlu0 %2424
        %2426 = vrot.lane.b32.xlu0 %v2281, 8
        %v2427 = vpop.permute.xlu0 %2426
        %2428 = vrot.lane.b32.xlu0 %v2284, 8
        %v2429 = vpop.permute.xlu0 %2428
        %2430 = vrot.lane.b32.xlu0 %v2287, 8
        %v2431 = vpop.permute.xlu0 %2430
        %2432 = vrot.lane.b32.xlu0 %v2290, 8
        %v2433 = vpop.permute.xlu0 %2432
        %2434 = vrot.lane.b32.xlu0 %v2293, 8
        %v2435 = vpop.permute.xlu0 %2434
        %2436 = vrot.lane.b32.xlu0 %v2296, 8
        %v2437 = vpop.permute.xlu0 %2436
        %2438 = vrot.lane.b32.xlu0 %v2299, 8
        %v2439 = vpop.permute.xlu0 %2438
        %2440 = vrot.lane.b32.xlu0 %v2302, 8
        %v2441 = vpop.permute.xlu0 %2440
        %2442 = vrot.lane.b32.xlu0 %v2305, 8
        %v2443 = vpop.permute.xlu0 %2442
        %2444 = vrot.lane.b32.xlu0 %v2308, 8
        %v2445 = vpop.permute.xlu0 %2444
        %2446 = vrot.lane.b32.xlu0 %v2311, 8
        %v2447 = vpop.permute.xlu0 %2446
        %2448 = vrot.lane.b32.xlu0 %v2314, 8
        %v2449 = vpop.permute.xlu0 %2448
        %2450 = vrot.lane.b32.xlu0 %v2317, 8
        %v2451 = vpop.permute.xlu0 %2450
        %2452 = vrot.lane.b32.xlu0 %v2320, 8
        %v2453 = vpop.permute.xlu0 %2452
        %2454 = vrot.lane.b32.xlu0 %v2323, 8
        %v2455 = vpop.permute.xlu0 %2454
        %2456 = vrot.lane.b32.xlu0 %v2326, 8
        %v2457 = vpop.permute.xlu0 %2456
        %2458 = vrot.lane.b32.xlu0 %v2329, 8
        %v2459 = vpop.permute.xlu0 %2458
        %2460 = vrot.lane.b32.xlu0 %v2332, 8
        %v2461 = vpop.permute.xlu0 %2460
        %2462 = vrot.lane.b32.xlu0 %v2335, 8
        %v2463 = vpop.permute.xlu0 %2462
        %2464 = vrot.lane.b32.xlu0 %v2338, 8
        %v2465 = vpop.permute.xlu0 %2464
        %2466 = vrot.lane.b32.xlu0 %v2341, 8
        %v2467 = vpop.permute.xlu0 %2466
        %2468 = vrot.lane.b32.xlu0 %v2344, 8
        %v2469 = vpop.permute.xlu0 %2468
        %2470 = vrot.lane.b32.xlu0 %v2347, 8
        %v2471 = vpop.permute.xlu0 %2470
        %2472 = vrot.lane.b32.xlu0 %v2350, 8
        %v2473 = vpop.permute.xlu0 %2472
        %2474 = vrot.lane.b32.xlu0 %v2353, 8
        %v2475 = vpop.permute.xlu0 %2474
        %2476 = vrot.lane.b32.xlu0 %v2356, 8
        %v2477 = vpop.permute.xlu0 %2476
        %2478 = vrot.lane.b32.xlu0 %v2359, 8
        %v2479 = vpop.permute.xlu0 %2478
        %vm2540 = vcmask 93248
        %2541 = vst.msk [vmem:[#allocation3] sm:$0xf] %vm2540, %v2361
        %2542 = vst.msk [vmem:[#allocation3 + $0x4] sm:$0xf] %vm2540, %v2363
        %2543 = vst.msk [vmem:[#allocation3 + $0x8] sm:$0xf] %vm2540, %v2365
        %2544 = vst.msk [vmem:[#allocation3 + $0xc] sm:$0xf] %vm2540, %v2367
        %2545 = vst.msk [vmem:[#allocation3 + $0x10] sm:$0xf] %vm2540, %v2369
        %2546 = vst.msk [vmem:[#allocation3 + $0x14] sm:$0xf] %vm2540, %v2371
        %2547 = vst.msk [vmem:[#allocation3 + $0x18] sm:$0xf] %vm2540, %v2373
        %2548 = vst.msk [vmem:[#allocation3 + $0x1c] sm:$0xf] %vm2540, %v2375
        %2549 = vst.msk [vmem:[#allocation3 + $0x20] sm:$0xf] %vm2540, %v2377
        %2550 = vst.msk [vmem:[#allocation3 + $0x24] sm:$0xf] %vm2540, %v2379
        %2551 = vst.msk [vmem:[#allocation3 + $0x28] sm:$0xf] %vm2540, %v2381
        %2552 = vst.msk [vmem:[#allocation3 + $0x2c] sm:$0xf] %vm2540, %v2383
        %2553 = vst.msk [vmem:[#allocation3 + $0x30] sm:$0xf] %vm2540, %v2385
        %2554 = vst.msk [vmem:[#allocation3 + $0x34] sm:$0xf] %vm2540, %v2387
        %2555 = vst.msk [vmem:[#allocation3 + $0x38] sm:$0xf] %vm2540, %v2389
        %2556 = vst.msk [vmem:[#allocation3 + $0x3c] sm:$0xf] %vm2540, %v2391
        %2557 = vst.msk [vmem:[#allocation3 + $0x40] sm:$0xf] %vm2540, %v2393
        %2558 = vst.msk [vmem:[#allocation3 + $0x44] sm:$0xf] %vm2540, %v2395
        %2559 = vst.msk [vmem:[#allocation3 + $0x48] sm:$0xf] %vm2540, %v2397
        %2560 = vst.msk [vmem:[#allocation3 + $0x4c] sm:$0xf] %vm2540, %v2399
        %2561 = vst.msk [vmem:[#allocation3 + $0x50] sm:$0xf] %vm2540, %v2401
        %2562 = vst.msk [vmem:[#allocation3 + $0x54] sm:$0xf] %vm2540, %v2403
        %2563 = vst.msk [vmem:[#allocation3 + $0x58] sm:$0xf] %vm2540, %v2405
        %2564 = vst.msk [vmem:[#allocation3 + $0x5c] sm:$0xf] %vm2540, %v2407
        %2565 = vst.msk [vmem:[#allocation3 + $0x60] sm:$0xf] %vm2540, %v2409
        %2566 = vst.msk [vmem:[#allocation3 + $0x64] sm:$0xf] %vm2540, %v2411
        %2567 = vst.msk [vmem:[#allocation3 + $0x68] sm:$0xf] %vm2540, %v2413
        %2568 = vst.msk [vmem:[#allocation3 + $0x6c] sm:$0xf] %vm2540, %v2415
        %2569 = vst.msk [vmem:[#allocation3 + $0x70] sm:$0xf] %vm2540, %v2417
        %2570 = vst.msk [vmem:[#allocation3 + $0x74] sm:$0xf] %vm2540, %v2419
        %2571 = vst.msk [vmem:[#allocation3 + $0x78] sm:$0xf] %vm2540, %v2421
        %2572 = vst.msk [vmem:[#allocation3 + $0x7c] sm:$0xf] %vm2540, %v2423
        %2573 = vst.msk [vmem:[#allocation3 + $0x80] sm:$0xf] %vm2540, %v2425
        %2574 = vst.msk [vmem:[#allocation3 + $0x84] sm:$0xf] %vm2540, %v2427
        %2575 = vst.msk [vmem:[#allocation3 + $0x88] sm:$0xf] %vm2540, %v2429
        %2576 = vst.msk [vmem:[#allocation3 + $0x8c] sm:$0xf] %vm2540, %v2431
        %2577 = vst.msk [vmem:[#allocation3 + $0x90] sm:$0xf] %vm2540, %v2433
        %2578 = vst.msk [vmem:[#allocation3 + $0x94] sm:$0xf] %vm2540, %v2435
        %2579 = vst.msk [vmem:[#allocation3 + $0x98] sm:$0xf] %vm2540, %v2437
        %2580 = vst.msk [vmem:[#allocation3 + $0x9c] sm:$0xf] %vm2540, %v2439
        %2581 = vst.msk [vmem:[#allocation3 + $0xa0] sm:$0xf] %vm2540, %v2441
        %2582 = vst.msk [vmem:[#allocation3 + $0xa4] sm:$0xf] %vm2540, %v2443
        %2583 = vst.msk [vmem:[#allocation3 + $0xa8] sm:$0xf] %vm2540, %v2445
        %2584 = vst.msk [vmem:[#allocation3 + $0xac] sm:$0xf] %vm2540, %v2447
        %2585 = vst.msk [vmem:[#allocation3 + $0xb0] sm:$0xf] %vm2540, %v2449
        %2586 = vst.msk [vmem:[#allocation3 + $0xb4] sm:$0xf] %vm2540, %v2451
        %2587 = vst.msk [vmem:[#allocation3 + $0xb8] sm:$0xf] %vm2540, %v2453
        %2588 = vst.msk [vmem:[#allocation3 + $0xbc] sm:$0xf] %vm2540, %v2455
        %2589 = vst.msk [vmem:[#allocation3 + $0xc0] sm:$0xf] %vm2540, %v2457
        %2590 = vst.msk [vmem:[#allocation3 + $0xc4] sm:$0xf] %vm2540, %v2459
        %2591 = vst.msk [vmem:[#allocation3 + $0xc8] sm:$0xf] %vm2540, %v2461
        %2592 = vst.msk [vmem:[#allocation3 + $0xcc] sm:$0xf] %vm2540, %v2463
        %2593 = vst.msk [vmem:[#allocation3 + $0xd0] sm:$0xf] %vm2540, %v2465
        %2594 = vst.msk [vmem:[#allocation3 + $0xd4] sm:$0xf] %vm2540, %v2467
        %2595 = vst.msk [vmem:[#allocation3 + $0xd8] sm:$0xf] %vm2540, %v2469
        %2596 = vst.msk [vmem:[#allocation3 + $0xdc] sm:$0xf] %vm2540, %v2471
        %2597 = vst.msk [vmem:[#allocation3 + $0xe0] sm:$0xf] %vm2540, %v2473
        %2598 = vst.msk [vmem:[#allocation3 + $0xe4] sm:$0xf] %vm2540, %v2475
        %2599 = vst.msk [vmem:[#allocation3 + $0xe8] sm:$0xf] %vm2540, %v2477
        %2600 = vst.msk [vmem:[#allocation3 + $0xec] sm:$0xf] %vm2540, %v2479
        %v2601 = vld [vmem:[#allocation2 + $0x8] sm:$0xe]
        %v2602 = vld [vmem:[#allocation2 + $0xc] sm:$0xf]
        %v2603 = vld [vmem:[#allocation2 + $0x10] sm:$0xf]
        %v2604 = vld [vmem:[#allocation2 + $0x14] sm:$0xf]
        %v2605 = vld [vmem:[#allocation2 + $0x18] sm:$0xf]
        %v2606 = vld [vmem:[#allocation2 + $0x1c] sm:$0xf]
        %v2607 = vld [vmem:[#allocation2 + $0x20] sm:$0xf]
        %v2608 = vld [vmem:[#allocation2 + $0x24] sm:$0xf]
        %v2609 = vld [vmem:[#allocation2 + $0x28] sm:$0xf]
        %v2610 = vld [vmem:[#allocation2 + $0x2c] sm:$0xf]
        %v2611 = vld [vmem:[#allocation2 + $0x30] sm:$0xf]
        %v2612 = vld [vmem:[#allocation2 + $0x34] sm:$0xf]
        %v2613 = vld [vmem:[#allocation2 + $0x38] sm:$0xf]
        %v2614 = vld [vmem:[#allocation2 + $0x3c] sm:$0xf]
        %v2615 = vld [vmem:[#allocation2 + $0x40] sm:$0xf]
        %v2616 = vld [vmem:[#allocation2 + $0x44] sm:$0xf]
        %v2617 = vld [vmem:[#allocation2 + $0x48] sm:$0xf]
        %v2618 = vld [vmem:[#allocation2 + $0x4c] sm:$0xf]
        %v2619 = vld [vmem:[#allocation2 + $0x50] sm:$0xf]
        %v2620 = vld [vmem:[#allocation2 + $0x54] sm:$0xf]
        %v2621 = vld [vmem:[#allocation2 + $0x58] sm:$0xf]
        %v2622 = vld [vmem:[#allocation2 + $0x5c] sm:$0xf]
        %v2623 = vld [vmem:[#allocation2 + $0x60] sm:$0xf]
        %v2624 = vld [vmem:[#allocation2 + $0x64] sm:$0xf]
        %v2625 = vld [vmem:[#allocation2 + $0x68] sm:$0xf]
        %v2626 = vld [vmem:[#allocation2 + $0x6c] sm:$0xf]
        %v2627 = vld [vmem:[#allocation2 + $0x70] sm:$0xf]
        %v2628 = vld [vmem:[#allocation2 + $0x74] sm:$0xf]
        %v2629 = vld [vmem:[#allocation2 + $0x78] sm:$0xf]
        %v2630 = vld [vmem:[#allocation2 + $0x7c] sm:$0xf]
        %v2631 = vld [vmem:[#allocation2 + $0x80] sm:$0xf]
        %v2632 = vld [vmem:[#allocation2 + $0x84] sm:$0xf]
        %v2633 = vld [vmem:[#allocation2 + $0x88] sm:$0xf]
        %v2634 = vld [vmem:[#allocation2 + $0x8c] sm:$0xf]
        %v2635 = vld [vmem:[#allocation2 + $0x90] sm:$0xf]
        %v2636 = vld [vmem:[#allocation2 + $0x94] sm:$0xf]
        %v2637 = vld [vmem:[#allocation2 + $0x98] sm:$0xf]
        %v2638 = vld [vmem:[#allocation2 + $0x9c] sm:$0xf]
        %v2639 = vld [vmem:[#allocation2 + $0xa0] sm:$0xf]
        %v2640 = vld [vmem:[#allocation2 + $0xa4] sm:$0xf]
        %v2641 = vld [vmem:[#allocation2 + $0xa8] sm:$0xf]
        %v2642 = vld [vmem:[#allocation2 + $0xac] sm:$0xf]
        %v2643 = vld [vmem:[#allocation2 + $0xb0] sm:$0xf]
        %v2644 = vld [vmem:[#allocation2 + $0xb4] sm:$0xf]
        %v2645 = vld [vmem:[#allocation2 + $0xb8] sm:$0xf]
        %v2646 = vld [vmem:[#allocation2 + $0xbc] sm:$0xf]
        %v2647 = vld [vmem:[#allocation2 + $0xc0] sm:$0xf]
        %v2648 = vld [vmem:[#allocation2 + $0xc4] sm:$0xf]
        %v2649 = vld [vmem:[#allocation2 + $0xc8] sm:$0xf]
        %v2650 = vld [vmem:[#allocation2 + $0xcc] sm:$0xf]
        %v2651 = vld [vmem:[#allocation2 + $0xd0] sm:$0xf]
        %v2652 = vld [vmem:[#allocation2 + $0xd4] sm:$0xf]
        %v2653 = vld [vmem:[#allocation2 + $0xd8] sm:$0xf]
        %v2654 = vld [vmem:[#allocation2 + $0xdc] sm:$0xf]
        %v2655 = vld [vmem:[#allocation2 + $0xe0] sm:$0xf]
        %v2656 = vld [vmem:[#allocation2 + $0xe4] sm:$0xf]
        %v2657 = vld [vmem:[#allocation2 + $0xe8] sm:$0xf]
        %v2658 = vld [vmem:[#allocation2 + $0xec] sm:$0xf]
        %v2659 = vld [vmem:[#allocation2 + $0xf0] sm:$0xf]
        %v2660 = vld [vmem:[#allocation2 + $0xf4] sm:$0xf]
        %v2661 = vld [vmem:[#allocation2 + $0xf8] sm:$0x1]
        %v2723 = vrot.slane %v2601, 5
        %v2724 = vrot.slane %v2723, 4
        %v2725 = vrot.slane %v2602, 5
        %v2726 = vsel %vm2178, %v2724, %v2725
        %v2727 = vrot.slane %v2725, 4
        %v2728 = vrot.slane %v2603, 5
        %v2729 = vsel %vm2178, %v2727, %v2728
        %v2730 = vrot.slane %v2728, 4
        %v2731 = vrot.slane %v2604, 5
        %v2732 = vsel %vm2178, %v2730, %v2731
        %v2733 = vrot.slane %v2731, 4
        %v2734 = vrot.slane %v2605, 5
        %v2735 = vsel %vm2178, %v2733, %v2734
        %v2736 = vrot.slane %v2734, 4
        %v2737 = vrot.slane %v2606, 5
        %v2738 = vsel %vm2178, %v2736, %v2737
        %v2739 = vrot.slane %v2737, 4
        %v2740 = vrot.slane %v2607, 5
        %v2741 = vsel %vm2178, %v2739, %v2740
        %v2742 = vrot.slane %v2740, 4
        %v2743 = vrot.slane %v2608, 5
        %v2744 = vsel %vm2178, %v2742, %v2743
        %v2745 = vrot.slane %v2743, 4
        %v2746 = vrot.slane %v2609, 5
        %v2747 = vsel %vm2178, %v2745, %v2746
        %v2748 = vrot.slane %v2746, 4
        %v2749 = vrot.slane %v2610, 5
        %v2750 = vsel %vm2178, %v2748, %v2749
        %v2751 = vrot.slane %v2749, 4
        %v2752 = vrot.slane %v2611, 5
        %v2753 = vsel %vm2178, %v2751, %v2752
        %v2754 = vrot.slane %v2752, 4
        %v2755 = vrot.slane %v2612, 5
        %v2756 = vsel %vm2178, %v2754, %v2755
        %v2757 = vrot.slane %v2755, 4
        %v2758 = vrot.slane %v2613, 5
        %v2759 = vsel %vm2178, %v2757, %v2758
        %v2760 = vrot.slane %v2758, 4
        %v2761 = vrot.slane %v2614, 5
        %v2762 = vsel %vm2178, %v2760, %v2761
        %v2763 = vrot.slane %v2761, 4
        %v2764 = vrot.slane %v2615, 5
        %v2765 = vsel %vm2178, %v2763, %v2764
        %v2766 = vrot.slane %v2764, 4
        %v2767 = vrot.slane %v2616, 5
        %v2768 = vsel %vm2178, %v2766, %v2767
        %v2769 = vrot.slane %v2767, 4
        %v2770 = vrot.slane %v2617, 5
        %v2771 = vsel %vm2178, %v2769, %v2770
        %v2772 = vrot.slane %v2770, 4
        %v2773 = vrot.slane %v2618, 5
        %v2774 = vsel %vm2178, %v2772, %v2773
        %v2775 = vrot.slane %v2773, 4
        %v2776 = vrot.slane %v2619, 5
        %v2777 = vsel %vm2178, %v2775, %v2776
        %v2778 = vrot.slane %v2776, 4
        %v2779 = vrot.slane %v2620, 5
        %v2780 = vsel %vm2178, %v2778, %v2779
        %v2781 = vrot.slane %v2779, 4
        %v2782 = vrot.slane %v2621, 5
        %v2783 = vsel %vm2178, %v2781, %v2782
        %v2784 = vrot.slane %v2782, 4
        %v2785 = vrot.slane %v2622, 5
        %v2786 = vsel %vm2178, %v2784, %v2785
        %v2787 = vrot.slane %v2785, 4
        %v2788 = vrot.slane %v2623, 5
        %v2789 = vsel %vm2178, %v2787, %v2788
        %v2790 = vrot.slane %v2788, 4
        %v2791 = vrot.slane %v2624, 5
        %v2792 = vsel %vm2178, %v2790, %v2791
        %v2793 = vrot.slane %v2791, 4
        %v2794 = vrot.slane %v2625, 5
        %v2795 = vsel %vm2178, %v2793, %v2794
        %v2796 = vrot.slane %v2794, 4
        %v2797 = vrot.slane %v2626, 5
        %v2798 = vsel %vm2178, %v2796, %v2797
        %v2799 = vrot.slane %v2797, 4
        %v2800 = vrot.slane %v2627, 5
        %v2801 = vsel %vm2178, %v2799, %v2800
        %v2802 = vrot.slane %v2800, 4
        %v2803 = vrot.slane %v2628, 5
        %v2804 = vsel %vm2178, %v2802, %v2803
        %v2805 = vrot.slane %v2803, 4
        %v2806 = vrot.slane %v2629, 5
        %v2807 = vsel %vm2178, %v2805, %v2806
        %v2808 = vrot.slane %v2806, 4
        %v2809 = vrot.slane %v2630, 5
        %v2810 = vsel %vm2178, %v2808, %v2809
        %v2811 = vrot.slane %v2809, 4
        %v2812 = vrot.slane %v2631, 5
        %v2813 = vsel %vm2178, %v2811, %v2812
        %v2814 = vrot.slane %v2812, 4
        %v2815 = vrot.slane %v2632, 5
        %v2816 = vsel %vm2178, %v2814, %v2815
        %v2817 = vrot.slane %v2815, 4
        %v2818 = vrot.slane %v2633, 5
        %v2819 = vsel %vm2178, %v2817, %v2818
        %v2820 = vrot.slane %v2818, 4
        %v2821 = vrot.slane %v2634, 5
        %v2822 = vsel %vm2178, %v2820, %v2821
        %v2823 = vrot.slane %v2821, 4
        %v2824 = vrot.slane %v2635, 5
        %v2825 = vsel %vm2178, %v2823, %v2824
        %v2826 = vrot.slane %v2824, 4
        %v2827 = vrot.slane %v2636, 5
        %v2828 = vsel %vm2178, %v2826, %v2827
        %v2829 = vrot.slane %v2827, 4
        %v2830 = vrot.slane %v2637, 5
        %v2831 = vsel %vm2178, %v2829, %v2830
        %v2832 = vrot.slane %v2830, 4
        %v2833 = vrot.slane %v2638, 5
        %v2834 = vsel %vm2178, %v2832, %v2833
        %v2835 = vrot.slane %v2833, 4
        %v2836 = vrot.slane %v2639, 5
        %v2837 = vsel %vm2178, %v2835, %v2836
        %v2838 = vrot.slane %v2836, 4
        %v2839 = vrot.slane %v2640, 5
        %v2840 = vsel %vm2178, %v2838, %v2839
        %v2841 = vrot.slane %v2839, 4
        %v2842 = vrot.slane %v2641, 5
        %v2843 = vsel %vm2178, %v2841, %v2842
        %v2844 = vrot.slane %v2842, 4
        %v2845 = vrot.slane %v2642, 5
        %v2846 = vsel %vm2178, %v2844, %v2845
        %v2847 = vrot.slane %v2845, 4
        %v2848 = vrot.slane %v2643, 5
        %v2849 = vsel %vm2178, %v2847, %v2848
        %v2850 = vrot.slane %v2848, 4
        %v2851 = vrot.slane %v2644, 5
        %v2852 = vsel %vm2178, %v2850, %v2851
        %v2853 = vrot.slane %v2851, 4
        %v2854 = vrot.slane %v2645, 5
        %v2855 = vsel %vm2178, %v2853, %v2854
        %v2856 = vrot.slane %v2854, 4
        %v2857 = vrot.slane %v2646, 5
        %v2858 = vsel %vm2178, %v2856, %v2857
        %v2859 = vrot.slane %v2857, 4
        %v2860 = vrot.slane %v2647, 5
        %v2861 = vsel %vm2178, %v2859, %v2860
        %v2862 = vrot.slane %v2860, 4
        %v2863 = vrot.slane %v2648, 5
        %v2864 = vsel %vm2178, %v2862, %v2863
        %v2865 = vrot.slane %v2863, 4
        %v2866 = vrot.slane %v2649, 5
        %v2867 = vsel %vm2178, %v2865, %v2866
        %v2868 = vrot.slane %v2866, 4
        %v2869 = vrot.slane %v2650, 5
        %v2870 = vsel %vm2178, %v2868, %v2869
        %v2871 = vrot.slane %v2869, 4
        %v2872 = vrot.slane %v2651, 5
        %v2873 = vsel %vm2178, %v2871, %v2872
        %v2874 = vrot.slane %v2872, 4
        %v2875 = vrot.slane %v2652, 5
        %v2876 = vsel %vm2178, %v2874, %v2875
        %v2877 = vrot.slane %v2875, 4
        %v2878 = vrot.slane %v2653, 5
        %v2879 = vsel %vm2178, %v2877, %v2878
        %v2880 = vrot.slane %v2878, 4
        %v2881 = vrot.slane %v2654, 5
        %v2882 = vsel %vm2178, %v2880, %v2881
        %v2883 = vrot.slane %v2881, 4
        %v2884 = vrot.slane %v2655, 5
        %v2885 = vsel %vm2178, %v2883, %v2884
        %v2886 = vrot.slane %v2884, 4
        %v2887 = vrot.slane %v2656, 5
        %v2888 = vsel %vm2178, %v2886, %v2887
        %v2889 = vrot.slane %v2887, 4
        %v2890 = vrot.slane %v2657, 5
        %v2891 = vsel %vm2178, %v2889, %v2890
        %v2892 = vrot.slane %v2890, 4
        %v2893 = vrot.slane %v2658, 5
        %v2894 = vsel %vm2178, %v2892, %v2893
        %v2895 = vrot.slane %v2893, 4
        %v2896 = vrot.slane %v2659, 5
        %v2897 = vsel %vm2178, %v2895, %v2896
        %v2898 = vrot.slane %v2896, 4
        %v2899 = vrot.slane %v2660, 5
        %v2900 = vsel %vm2178, %v2898, %v2899
        %v2901 = vrot.slane %v2899, 4
        %v2902 = vrot.slane %v2661, 5
        %v2903 = vsel %vm2178, %v2901, %v2902
        %2904 = vrot.lane.b32.xlu0 %v2726, 12
        %v2905 = vpop.permute.xlu0 %2904
        %2906 = vrot.lane.b32.xlu0 %v2729, 12
        %v2907 = vpop.permute.xlu0 %2906
        %2908 = vrot.lane.b32.xlu0 %v2732, 12
        %v2909 = vpop.permute.xlu0 %2908
        %2910 = vrot.lane.b32.xlu0 %v2735, 12
        %v2911 = vpop.permute.xlu0 %2910
        %2912 = vrot.lane.b32.xlu0 %v2738, 12
        %v2913 = vpop.permute.xlu0 %2912
        %2914 = vrot.lane.b32.xlu0 %v2741, 12
        %v2915 = vpop.permute.xlu0 %2914
        %2916 = vrot.lane.b32.xlu0 %v2744, 12
        %v2917 = vpop.permute.xlu0 %2916
        %2918 = vrot.lane.b32.xlu0 %v2747, 12
        %v2919 = vpop.permute.xlu0 %2918
        %2920 = vrot.lane.b32.xlu0 %v2750, 12
        %v2921 = vpop.permute.xlu0 %2920
        %2922 = vrot.lane.b32.xlu0 %v2753, 12
        %v2923 = vpop.permute.xlu0 %2922
        %2924 = vrot.lane.b32.xlu0 %v2756, 12
        %v2925 = vpop.permute.xlu0 %2924
        %2926 = vrot.lane.b32.xlu0 %v2759, 12
        %v2927 = vpop.permute.xlu0 %2926
        %2928 = vrot.lane.b32.xlu0 %v2762, 12
        %v2929 = vpop.permute.xlu0 %2928
        %2930 = vrot.lane.b32.xlu0 %v2765, 12
        %v2931 = vpop.permute.xlu0 %2930
        %2932 = vrot.lane.b32.xlu0 %v2768, 12
        %v2933 = vpop.permute.xlu0 %2932
        %2934 = vrot.lane.b32.xlu0 %v2771, 12
        %v2935 = vpop.permute.xlu0 %2934
        %2936 = vrot.lane.b32.xlu0 %v2774, 12
        %v2937 = vpop.permute.xlu0 %2936
        %2938 = vrot.lane.b32.xlu0 %v2777, 12
        %v2939 = vpop.permute.xlu0 %2938
        %2940 = vrot.lane.b32.xlu0 %v2780, 12
        %v2941 = vpop.permute.xlu0 %2940
        %2942 = vrot.lane.b32.xlu0 %v2783, 12
        %v2943 = vpop.permute.xlu0 %2942
        %2944 = vrot.lane.b32.xlu0 %v2786, 12
        %v2945 = vpop.permute.xlu0 %2944
        %2946 = vrot.lane.b32.xlu0 %v2789, 12
        %v2947 = vpop.permute.xlu0 %2946
        %2948 = vrot.lane.b32.xlu0 %v2792, 12
        %v2949 = vpop.permute.xlu0 %2948
        %2950 = vrot.lane.b32.xlu0 %v2795, 12
        %v2951 = vpop.permute.xlu0 %2950
        %2952 = vrot.lane.b32.xlu0 %v2798, 12
        %v2953 = vpop.permute.xlu0 %2952
        %2954 = vrot.lane.b32.xlu0 %v2801, 12
        %v2955 = vpop.permute.xlu0 %2954
        %2956 = vrot.lane.b32.xlu0 %v2804, 12
        %v2957 = vpop.permute.xlu0 %2956
        %2958 = vrot.lane.b32.xlu0 %v2807, 12
        %v2959 = vpop.permute.xlu0 %2958
        %2960 = vrot.lane.b32.xlu0 %v2810, 12
        %v2961 = vpop.permute.xlu0 %2960
        %2962 = vrot.lane.b32.xlu0 %v2813, 12
        %v2963 = vpop.permute.xlu0 %2962
        %2964 = vrot.lane.b32.xlu0 %v2816, 12
        %v2965 = vpop.permute.xlu0 %2964
        %2966 = vrot.lane.b32.xlu0 %v2819, 12
        %v2967 = vpop.permute.xlu0 %2966
        %2968 = vrot.lane.b32.xlu0 %v2822, 12
        %v2969 = vpop.permute.xlu0 %2968
        %2970 = vrot.lane.b32.xlu0 %v2825, 12
        %v2971 = vpop.permute.xlu0 %2970
        %2972 = vrot.lane.b32.xlu0 %v2828, 12
        %v2973 = vpop.permute.xlu0 %2972
        %2974 = vrot.lane.b32.xlu0 %v2831, 12
        %v2975 = vpop.permute.xlu0 %2974
        %2976 = vrot.lane.b32.xlu0 %v2834, 12
        %v2977 = vpop.permute.xlu0 %2976
        %2978 = vrot.lane.b32.xlu0 %v2837, 12
        %v2979 = vpop.permute.xlu0 %2978
        %2980 = vrot.lane.b32.xlu0 %v2840, 12
        %v2981 = vpop.permute.xlu0 %2980
        %2982 = vrot.lane.b32.xlu0 %v2843, 12
        %v2983 = vpop.permute.xlu0 %2982
        %2984 = vrot.lane.b32.xlu0 %v2846, 12
        %v2985 = vpop.permute.xlu0 %2984
        %2986 = vrot.lane.b32.xlu0 %v2849, 12
        %v2987 = vpop.permute.xlu0 %2986
        %2988 = vrot.lane.b32.xlu0 %v2852, 12
        %v2989 = vpop.permute.xlu0 %2988
        %2990 = vrot.lane.b32.xlu0 %v2855, 12
        %v2991 = vpop.permute.xlu0 %2990
        %2992 = vrot.lane.b32.xlu0 %v2858, 12
        %v2993 = vpop.permute.xlu0 %2992
        %2994 = vrot.lane.b32.xlu0 %v2861, 12
        %v2995 = vpop.permute.xlu0 %2994
        %2996 = vrot.lane.b32.xlu0 %v2864, 12
        %v2997 = vpop.permute.xlu0 %2996
        %2998 = vrot.lane.b32.xlu0 %v2867, 12
        %v2999 = vpop.permute.xlu0 %2998
        %3000 = vrot.lane.b32.xlu0 %v2870, 12
        %v3001 = vpop.permute.xlu0 %3000
        %3002 = vrot.lane.b32.xlu0 %v2873, 12
        %v3003 = vpop.permute.xlu0 %3002
        %3004 = vrot.lane.b32.xlu0 %v2876, 12
        %v3005 = vpop.permute.xlu0 %3004
        %3006 = vrot.lane.b32.xlu0 %v2879, 12
        %v3007 = vpop.permute.xlu0 %3006
        %3008 = vrot.lane.b32.xlu0 %v2882, 12
        %v3009 = vpop.permute.xlu0 %3008
        %3010 = vrot.lane.b32.xlu0 %v2885, 12
        %v3011 = vpop.permute.xlu0 %3010
        %3012 = vrot.lane.b32.xlu0 %v2888, 12
        %v3013 = vpop.permute.xlu0 %3012
        %3014 = vrot.lane.b32.xlu0 %v2891, 12
        %v3015 = vpop.permute.xlu0 %3014
        %3016 = vrot.lane.b32.xlu0 %v2894, 12
        %v3017 = vpop.permute.xlu0 %3016
        %3018 = vrot.lane.b32.xlu0 %v2897, 12
        %v3019 = vpop.permute.xlu0 %3018
        %3020 = vrot.lane.b32.xlu0 %v2900, 12
        %v3021 = vpop.permute.xlu0 %3020
        %3022 = vrot.lane.b32.xlu0 %v2903, 12
        %v3023 = vpop.permute.xlu0 %3022
        %vm3084 = vcmask 126048
        %3085 = vst.msk [vmem:[#allocation3] sm:$0xf] %vm3084, %v2905
        %3086 = vst.msk [vmem:[#allocation3 + $0x4] sm:$0xf] %vm3084, %v2907
        %3087 = vst.msk [vmem:[#allocation3 + $0x8] sm:$0xf] %vm3084, %v2909
        %3088 = vst.msk [vmem:[#allocation3 + $0xc] sm:$0xf] %vm3084, %v2911
        %3089 = vst.msk [vmem:[#allocation3 + $0x10] sm:$0xf] %vm3084, %v2913
        %3090 = vst.msk [vmem:[#allocation3 + $0x14] sm:$0xf] %vm3084, %v2915
        %3091 = vst.msk [vmem:[#allocation3 + $0x18] sm:$0xf] %vm3084, %v2917
        %3092 = vst.msk [vmem:[#allocation3 + $0x1c] sm:$0xf] %vm3084, %v2919
        %3093 = vst.msk [vmem:[#allocation3 + $0x20] sm:$0xf] %vm3084, %v2921
        %3094 = vst.msk [vmem:[#allocation3 + $0x24] sm:$0xf] %vm3084, %v2923
        %3095 = vst.msk [vmem:[#allocation3 + $0x28] sm:$0xf] %vm3084, %v2925
        %3096 = vst.msk [vmem:[#allocation3 + $0x2c] sm:$0xf] %vm3084, %v2927
        %3097 = vst.msk [vmem:[#allocation3 + $0x30] sm:$0xf] %vm3084, %v2929
        %3098 = vst.msk [vmem:[#allocation3 + $0x34] sm:$0xf] %vm3084, %v2931
        %3099 = vst.msk [vmem:[#allocation3 + $0x38] sm:$0xf] %vm3084, %v2933
        %3100 = vst.msk [vmem:[#allocation3 + $0x3c] sm:$0xf] %vm3084, %v2935
        %3101 = vst.msk [vmem:[#allocation3 + $0x40] sm:$0xf] %vm3084, %v2937
        %3102 = vst.msk [vmem:[#allocation3 + $0x44] sm:$0xf] %vm3084, %v2939
        %3103 = vst.msk [vmem:[#allocation3 + $0x48] sm:$0xf] %vm3084, %v2941
        %3104 = vst.msk [vmem:[#allocation3 + $0x4c] sm:$0xf] %vm3084, %v2943
        %3105 = vst.msk [vmem:[#allocation3 + $0x50] sm:$0xf] %vm3084, %v2945
        %3106 = vst.msk [vmem:[#allocation3 + $0x54] sm:$0xf] %vm3084, %v2947
        %3107 = vst.msk [vmem:[#allocation3 + $0x58] sm:$0xf] %vm3084, %v2949
        %3108 = vst.msk [vmem:[#allocation3 + $0x5c] sm:$0xf] %vm3084, %v2951
        %3109 = vst.msk [vmem:[#allocation3 + $0x60] sm:$0xf] %vm3084, %v2953
        %3110 = vst.msk [vmem:[#allocation3 + $0x64] sm:$0xf] %vm3084, %v2955
        %3111 = vst.msk [vmem:[#allocation3 + $0x68] sm:$0xf] %vm3084, %v2957
        %3112 = vst.msk [vmem:[#allocation3 + $0x6c] sm:$0xf] %vm3084, %v2959
        %3113 = vst.msk [vmem:[#allocation3 + $0x70] sm:$0xf] %vm3084, %v2961
        %3114 = vst.msk [vmem:[#allocation3 + $0x74] sm:$0xf] %vm3084, %v2963
        %3115 = vst.msk [vmem:[#allocation3 + $0x78] sm:$0xf] %vm3084, %v2965
        %3116 = vst.msk [vmem:[#allocation3 + $0x7c] sm:$0xf] %vm3084, %v2967
        %3117 = vst.msk [vmem:[#allocation3 + $0x80] sm:$0xf] %vm3084, %v2969
        %3118 = vst.msk [vmem:[#allocation3 + $0x84] sm:$0xf] %vm3084, %v2971
        %3119 = vst.msk [vmem:[#allocation3 + $0x88] sm:$0xf] %vm3084, %v2973
        %3120 = vst.msk [vmem:[#allocation3 + $0x8c] sm:$0xf] %vm3084, %v2975
        %3121 = vst.msk [vmem:[#allocation3 + $0x90] sm:$0xf] %vm3084, %v2977
        %3122 = vst.msk [vmem:[#allocation3 + $0x94] sm:$0xf] %vm3084, %v2979
        %3123 = vst.msk [vmem:[#allocation3 + $0x98] sm:$0xf] %vm3084, %v2981
        %3124 = vst.msk [vmem:[#allocation3 + $0x9c] sm:$0xf] %vm3084, %v2983
        %3125 = vst.msk [vmem:[#allocation3 + $0xa0] sm:$0xf] %vm3084, %v2985
        %3126 = vst.msk [vmem:[#allocation3 + $0xa4] sm:$0xf] %vm3084, %v2987
        %3127 = vst.msk [vmem:[#allocation3 + $0xa8] sm:$0xf] %vm3084, %v2989
        %3128 = vst.msk [vmem:[#allocation3 + $0xac] sm:$0xf] %vm3084, %v2991
        %3129 = vst.msk [vmem:[#allocation3 + $0xb0] sm:$0xf] %vm3084, %v2993
        %3130 = vst.msk [vmem:[#allocation3 + $0xb4] sm:$0xf] %vm3084, %v2995
        %3131 = vst.msk [vmem:[#allocation3 + $0xb8] sm:$0xf] %vm3084, %v2997
        %3132 = vst.msk [vmem:[#allocation3 + $0xbc] sm:$0xf] %vm3084, %v2999
        %3133 = vst.msk [vmem:[#allocation3 + $0xc0] sm:$0xf] %vm3084, %v3001
        %3134 = vst.msk [vmem:[#allocation3 + $0xc4] sm:$0xf] %vm3084, %v3003
        %3135 = vst.msk [vmem:[#allocation3 + $0xc8] sm:$0xf] %vm3084, %v3005
        %3136 = vst.msk [vmem:[#allocation3 + $0xcc] sm:$0xf] %vm3084, %v3007
        %3137 = vst.msk [vmem:[#allocation3 + $0xd0] sm:$0xf] %vm3084, %v3009
        %3138 = vst.msk [vmem:[#allocation3 + $0xd4] sm:$0xf] %vm3084, %v3011
        %3139 = vst.msk [vmem:[#allocation3 + $0xd8] sm:$0xf] %vm3084, %v3013
        %3140 = vst.msk [vmem:[#allocation3 + $0xdc] sm:$0xf] %vm3084, %v3015
        %3141 = vst.msk [vmem:[#allocation3 + $0xe0] sm:$0xf] %vm3084, %v3017
        %3142 = vst.msk [vmem:[#allocation3 + $0xe4] sm:$0xf] %vm3084, %v3019
        %3143 = vst.msk [vmem:[#allocation3 + $0xe8] sm:$0xf] %vm3084, %v3021
        %3144 = vst.msk [vmem:[#allocation3 + $0xec] sm:$0xf] %vm3084, %v3023
        %v3145 = vld [vmem:[#allocation2 + $0x8] sm:$0xe]
        %v3146 = vld [vmem:[#allocation2 + $0xc] sm:$0xf]
        %v3147 = vld [vmem:[#allocation2 + $0x10] sm:$0xf]
        %v3148 = vld [vmem:[#allocation2 + $0x14] sm:$0xf]
        %v3149 = vld [vmem:[#allocation2 + $0x18] sm:$0xf]
        %v3150 = vld [vmem:[#allocation2 + $0x1c] sm:$0xf]
        %v3151 = vld [vmem:[#allocation2 + $0x20] sm:$0xf]
        %v3152 = vld [vmem:[#allocation2 + $0x24] sm:$0xf]
        %v3153 = vld [vmem:[#allocation2 + $0x28] sm:$0xf]
        %v3154 = vld [vmem:[#allocation2 + $0x2c] sm:$0xf]
        %v3155 = vld [vmem:[#allocation2 + $0x30] sm:$0xf]
        %v3156 = vld [vmem:[#allocation2 + $0x34] sm:$0xf]
        %v3157 = vld [vmem:[#allocation2 + $0x38] sm:$0xf]
        %v3158 = vld [vmem:[#allocation2 + $0x3c] sm:$0xf]
        %v3159 = vld [vmem:[#allocation2 + $0x40] sm:$0xf]
        %v3160 = vld [vmem:[#allocation2 + $0x44] sm:$0xf]
        %v3161 = vld [vmem:[#allocation2 + $0x48] sm:$0xf]
        %v3162 = vld [vmem:[#allocation2 + $0x4c] sm:$0xf]
        %v3163 = vld [vmem:[#allocation2 + $0x50] sm:$0xf]
        %v3164 = vld [vmem:[#allocation2 + $0x54] sm:$0xf]
        %v3165 = vld [vmem:[#allocation2 + $0x58] sm:$0xf]
        %v3166 = vld [vmem:[#allocation2 + $0x5c] sm:$0xf]
        %v3167 = vld [vmem:[#allocation2 + $0x60] sm:$0xf]
        %v3168 = vld [vmem:[#allocation2 + $0x64] sm:$0xf]
        %v3169 = vld [vmem:[#allocation2 + $0x68] sm:$0xf]
        %v3170 = vld [vmem:[#allocation2 + $0x6c] sm:$0xf]
        %v3171 = vld [vmem:[#allocation2 + $0x70] sm:$0xf]
        %v3172 = vld [vmem:[#allocation2 + $0x74] sm:$0xf]
        %v3173 = vld [vmem:[#allocation2 + $0x78] sm:$0xf]
        %v3174 = vld [vmem:[#allocation2 + $0x7c] sm:$0xf]
        %v3175 = vld [vmem:[#allocation2 + $0x80] sm:$0xf]
        %v3176 = vld [vmem:[#allocation2 + $0x84] sm:$0xf]
        %v3177 = vld [vmem:[#allocation2 + $0x88] sm:$0xf]
        %v3178 = vld [vmem:[#allocation2 + $0x8c] sm:$0xf]
        %v3179 = vld [vmem:[#allocation2 + $0x90] sm:$0xf]
        %v3180 = vld [vmem:[#allocation2 + $0x94] sm:$0xf]
        %v3181 = vld [vmem:[#allocation2 + $0x98] sm:$0xf]
        %v3182 = vld [vmem:[#allocation2 + $0x9c] sm:$0xf]
        %v3183 = vld [vmem:[#allocation2 + $0xa0] sm:$0xf]
        %v3184 = vld [vmem:[#allocation2 + $0xa4] sm:$0xf]
        %v3185 = vld [vmem:[#allocation2 + $0xa8] sm:$0xf]
        %v3186 = vld [vmem:[#allocation2 + $0xac] sm:$0xf]
        %v3187 = vld [vmem:[#allocation2 + $0xb0] sm:$0xf]
        %v3188 = vld [vmem:[#allocation2 + $0xb4] sm:$0xf]
        %v3189 = vld [vmem:[#allocation2 + $0xb8] sm:$0xf]
        %v3190 = vld [vmem:[#allocation2 + $0xbc] sm:$0xf]
        %v3191 = vld [vmem:[#allocation2 + $0xc0] sm:$0xf]
        %v3192 = vld [vmem:[#allocation2 + $0xc4] sm:$0xf]
        %v3193 = vld [vmem:[#allocation2 + $0xc8] sm:$0xf]
        %v3194 = vld [vmem:[#allocation2 + $0xcc] sm:$0xf]
        %v3195 = vld [vmem:[#allocation2 + $0xd0] sm:$0xf]
        %v3196 = vld [vmem:[#allocation2 + $0xd4] sm:$0xf]
        %v3197 = vld [vmem:[#allocation2 + $0xd8] sm:$0xf]
        %v3198 = vld [vmem:[#allocation2 + $0xdc] sm:$0xf]
        %v3199 = vld [vmem:[#allocation2 + $0xe0] sm:$0xf]
        %v3200 = vld [vmem:[#allocation2 + $0xe4] sm:$0xf]
        %v3201 = vld [vmem:[#allocation2 + $0xe8] sm:$0xf]
        %v3202 = vld [vmem:[#allocation2 + $0xec] sm:$0xf]
        %v3203 = vld [vmem:[#allocation2 + $0xf0] sm:$0xf]
        %v3204 = vld [vmem:[#allocation2 + $0xf4] sm:$0xf]
        %v3205 = vld [vmem:[#allocation2 + $0xf8] sm:$0x3]
        %vm3206 = vsmask.f32 2304
        %vm3207 = vsmask.f32 6416
        %vm3208 = vmor %vm3206, %vm3207
        %v3210 = vshrl.u32 %v3145, 16
        %v3212 = vrot.slane %v3210, 5
        %v3213 = vshll.u32 %v3145, 16
        %v3215 = vrot.slane %v3213, 6
        %v3216 = vor.u32 %v3212, %v3215
        %v3217 = vrot.slane %v3216, 4
        %v3219 = vshrl.u32 %v3146, 16
        %v3221 = vrot.slane %v3219, 5
        %v3222 = vshll.u32 %v3146, 16
        %v3224 = vrot.slane %v3222, 6
        %v3225 = vor.u32 %v3221, %v3224
        %v3226 = vsel %vm3208, %v3217, %v3225
        %v3227 = vrot.slane %v3225, 4
        %v3229 = vshrl.u32 %v3147, 16
        %v3231 = vrot.slane %v3229, 5
        %v3232 = vshll.u32 %v3147, 16
        %v3234 = vrot.slane %v3232, 6
        %v3235 = vor.u32 %v3231, %v3234
        %v3236 = vsel %vm3208, %v3227, %v3235
        %v3237 = vrot.slane %v3235, 4
        %v3239 = vshrl.u32 %v3148, 16
        %v3241 = vrot.slane %v3239, 5
        %v3242 = vshll.u32 %v3148, 16
        %v3244 = vrot.slane %v3242, 6
        %v3245 = vor.u32 %v3241, %v3244
        %v3246 = vsel %vm3208, %v3237, %v3245
        %v3247 = vrot.slane %v3245, 4
        %v3249 = vshrl.u32 %v3149, 16
        %v3251 = vrot.slane %v3249, 5
        %v3252 = vshll.u32 %v3149, 16
        %v3254 = vrot.slane %v3252, 6
        %v3255 = vor.u32 %v3251, %v3254
        %v3256 = vsel %vm3208, %v3247, %v3255
        %v3257 = vrot.slane %v3255, 4
        %v3259 = vshrl.u32 %v3150, 16
        %v3261 = vrot.slane %v3259, 5
        %v3262 = vshll.u32 %v3150, 16
        %v3264 = vrot.slane %v3262, 6
        %v3265 = vor.u32 %v3261, %v3264
        %v3266 = vsel %vm3208, %v3257, %v3265
        %v3267 = vrot.slane %v3265, 4
        %v3269 = vshrl.u32 %v3151, 16
        %v3271 = vrot.slane %v3269, 5
        %v3272 = vshll.u32 %v3151, 16
        %v3274 = vrot.slane %v3272, 6
        %v3275 = vor.u32 %v3271, %v3274
        %v3276 = vsel %vm3208, %v3267, %v3275
        %v3277 = vrot.slane %v3275, 4
        %v3279 = vshrl.u32 %v3152, 16
        %v3281 = vrot.slane %v3279, 5
        %v3282 = vshll.u32 %v3152, 16
        %v3284 = vrot.slane %v3282, 6
        %v3285 = vor.u32 %v3281, %v3284
        %v3286 = vsel %vm3208, %v3277, %v3285
        %v3287 = vrot.slane %v3285, 4
        %v3289 = vshrl.u32 %v3153, 16
        %v3291 = vrot.slane %v3289, 5
        %v3292 = vshll.u32 %v3153, 16
        %v3294 = vrot.slane %v3292, 6
        %v3295 = vor.u32 %v3291, %v3294
        %v3296 = vsel %vm3208, %v3287, %v3295
        %v3297 = vrot.slane %v3295, 4
        %v3299 = vshrl.u32 %v3154, 16
        %v3301 = vrot.slane %v3299, 5
        %v3302 = vshll.u32 %v3154, 16
        %v3304 = vrot.slane %v3302, 6
        %v3305 = vor.u32 %v3301, %v3304
        %v3306 = vsel %vm3208, %v3297, %v3305
        %v3307 = vrot.slane %v3305, 4
        %v3309 = vshrl.u32 %v3155, 16
        %v3311 = vrot.slane %v3309, 5
        %v3312 = vshll.u32 %v3155, 16
        %v3314 = vrot.slane %v3312, 6
        %v3315 = vor.u32 %v3311, %v3314
        %v3316 = vsel %vm3208, %v3307, %v3315
        %v3317 = vrot.slane %v3315, 4
        %v3319 = vshrl.u32 %v3156, 16
        %v3321 = vrot.slane %v3319, 5
        %v3322 = vshll.u32 %v3156, 16
        %v3324 = vrot.slane %v3322, 6
        %v3325 = vor.u32 %v3321, %v3324
        %v3326 = vsel %vm3208, %v3317, %v3325
        %v3327 = vrot.slane %v3325, 4
        %v3329 = vshrl.u32 %v3157, 16
        %v3331 = vrot.slane %v3329, 5
        %v3332 = vshll.u32 %v3157, 16
        %v3334 = vrot.slane %v3332, 6
        %v3335 = vor.u32 %v3331, %v3334
        %v3336 = vsel %vm3208, %v3327, %v3335
        %v3337 = vrot.slane %v3335, 4
        %v3339 = vshrl.u32 %v3158, 16
        %v3341 = vrot.slane %v3339, 5
        %v3342 = vshll.u32 %v3158, 16
        %v3344 = vrot.slane %v3342, 6
        %v3345 = vor.u32 %v3341, %v3344
        %v3346 = vsel %vm3208, %v3337, %v3345
        %v3347 = vrot.slane %v3345, 4
        %v3349 = vshrl.u32 %v3159, 16
        %v3351 = vrot.slane %v3349, 5
        %v3352 = vshll.u32 %v3159, 16
        %v3354 = vrot.slane %v3352, 6
        %v3355 = vor.u32 %v3351, %v3354
        %v3356 = vsel %vm3208, %v3347, %v3355
        %v3357 = vrot.slane %v3355, 4
        %v3359 = vshrl.u32 %v3160, 16
        %v3361 = vrot.slane %v3359, 5
        %v3362 = vshll.u32 %v3160, 16
        %v3364 = vrot.slane %v3362, 6
        %v3365 = vor.u32 %v3361, %v3364
        %v3366 = vsel %vm3208, %v3357, %v3365
        %v3367 = vrot.slane %v3365, 4
        %v3369 = vshrl.u32 %v3161, 16
        %v3371 = vrot.slane %v3369, 5
        %v3372 = vshll.u32 %v3161, 16
        %v3374 = vrot.slane %v3372, 6
        %v3375 = vor.u32 %v3371, %v3374
        %v3376 = vsel %vm3208, %v3367, %v3375
        %v3377 = vrot.slane %v3375, 4
        %v3379 = vshrl.u32 %v3162, 16
        %v3381 = vrot.slane %v3379, 5
        %v3382 = vshll.u32 %v3162, 16
        %v3384 = vrot.slane %v3382, 6
        %v3385 = vor.u32 %v3381, %v3384
        %v3386 = vsel %vm3208, %v3377, %v3385
        %v3387 = vrot.slane %v3385, 4
        %v3389 = vshrl.u32 %v3163, 16
        %v3391 = vrot.slane %v3389, 5
        %v3392 = vshll.u32 %v3163, 16
        %v3394 = vrot.slane %v3392, 6
        %v3395 = vor.u32 %v3391, %v3394
        %v3396 = vsel %vm3208, %v3387, %v3395
        %v3397 = vrot.slane %v3395, 4
        %v3399 = vshrl.u32 %v3164, 16
        %v3401 = vrot.slane %v3399, 5
        %v3402 = vshll.u32 %v3164, 16
        %v3404 = vrot.slane %v3402, 6
        %v3405 = vor.u32 %v3401, %v3404
        %v3406 = vsel %vm3208, %v3397, %v3405
        %v3407 = vrot.slane %v3405, 4
        %v3409 = vshrl.u32 %v3165, 16
        %v3411 = vrot.slane %v3409, 5
        %v3412 = vshll.u32 %v3165, 16
        %v3414 = vrot.slane %v3412, 6
        %v3415 = vor.u32 %v3411, %v3414
        %v3416 = vsel %vm3208, %v3407, %v3415
        %v3417 = vrot.slane %v3415, 4
        %v3419 = vshrl.u32 %v3166, 16
        %v3421 = vrot.slane %v3419, 5
        %v3422 = vshll.u32 %v3166, 16
        %v3424 = vrot.slane %v3422, 6
        %v3425 = vor.u32 %v3421, %v3424
        %v3426 = vsel %vm3208, %v3417, %v3425
        %v3427 = vrot.slane %v3425, 4
        %v3429 = vshrl.u32 %v3167, 16
        %v3431 = vrot.slane %v3429, 5
        %v3432 = vshll.u32 %v3167, 16
        %v3434 = vrot.slane %v3432, 6
        %v3435 = vor.u32 %v3431, %v3434
        %v3436 = vsel %vm3208, %v3427, %v3435
        %v3437 = vrot.slane %v3435, 4
        %v3439 = vshrl.u32 %v3168, 16
        %v3441 = vrot.slane %v3439, 5
        %v3442 = vshll.u32 %v3168, 16
        %v3444 = vrot.slane %v3442, 6
        %v3445 = vor.u32 %v3441, %v3444
        %v3446 = vsel %vm3208, %v3437, %v3445
        %v3447 = vrot.slane %v3445, 4
        %v3449 = vshrl.u32 %v3169, 16
        %v3451 = vrot.slane %v3449, 5
        %v3452 = vshll.u32 %v3169, 16
        %v3454 = vrot.slane %v3452, 6
        %v3455 = vor.u32 %v3451, %v3454
        %v3456 = vsel %vm3208, %v3447, %v3455
        %v3457 = vrot.slane %v3455, 4
        %v3459 = vshrl.u32 %v3170, 16
        %v3461 = vrot.slane %v3459, 5
        %v3462 = vshll.u32 %v3170, 16
        %v3464 = vrot.slane %v3462, 6
        %v3465 = vor.u32 %v3461, %v3464
        %v3466 = vsel %vm3208, %v3457, %v3465
        %v3467 = vrot.slane %v3465, 4
        %v3469 = vshrl.u32 %v3171, 16
        %v3471 = vrot.slane %v3469, 5
        %v3472 = vshll.u32 %v3171, 16
        %v3474 = vrot.slane %v3472, 6
        %v3475 = vor.u32 %v3471, %v3474
        %v3476 = vsel %vm3208, %v3467, %v3475
        %v3477 = vrot.slane %v3475, 4
        %v3479 = vshrl.u32 %v3172, 16
        %v3481 = vrot.slane %v3479, 5
        %v3482 = vshll.u32 %v3172, 16
        %v3484 = vrot.slane %v3482, 6
        %v3485 = vor.u32 %v3481, %v3484
        %v3486 = vsel %vm3208, %v3477, %v3485
        %v3487 = vrot.slane %v3485, 4
        %v3489 = vshrl.u32 %v3173, 16
        %v3491 = vrot.slane %v3489, 5
        %v3492 = vshll.u32 %v3173, 16
        %v3494 = vrot.slane %v3492, 6
        %v3495 = vor.u32 %v3491, %v3494
        %v3496 = vsel %vm3208, %v3487, %v3495
        %v3497 = vrot.slane %v3495, 4
        %v3499 = vshrl.u32 %v3174, 16
        %v3501 = vrot.slane %v3499, 5
        %v3502 = vshll.u32 %v3174, 16
        %v3504 = vrot.slane %v3502, 6
        %v3505 = vor.u32 %v3501, %v3504
        %v3506 = vsel %vm3208, %v3497, %v3505
        %v3507 = vrot.slane %v3505, 4
        %v3509 = vshrl.u32 %v3175, 16
        %v3511 = vrot.slane %v3509, 5
        %v3512 = vshll.u32 %v3175, 16
        %v3514 = vrot.slane %v3512, 6
        %v3515 = vor.u32 %v3511, %v3514
        %v3516 = vsel %vm3208, %v3507, %v3515
        %v3517 = vrot.slane %v3515, 4
        %v3519 = vshrl.u32 %v3176, 16
        %v3521 = vrot.slane %v3519, 5
        %v3522 = vshll.u32 %v3176, 16
        %v3524 = vrot.slane %v3522, 6
        %v3525 = vor.u32 %v3521, %v3524
        %v3526 = vsel %vm3208, %v3517, %v3525
        %v3527 = vrot.slane %v3525, 4
        %v3529 = vshrl.u32 %v3177, 16
        %v3531 = vrot.slane %v3529, 5
        %v3532 = vshll.u32 %v3177, 16
        %v3534 = vrot.slane %v3532, 6
        %v3535 = vor.u32 %v3531, %v3534
        %v3536 = vsel %vm3208, %v3527, %v3535
        %v3537 = vrot.slane %v3535, 4
        %v3539 = vshrl.u32 %v3178, 16
        %v3541 = vrot.slane %v3539, 5
        %v3542 = vshll.u32 %v3178, 16
        %v3544 = vrot.slane %v3542, 6
        %v3545 = vor.u32 %v3541, %v3544
        %v3546 = vsel %vm3208, %v3537, %v3545
        %v3547 = vrot.slane %v3545, 4
        %v3549 = vshrl.u32 %v3179, 16
        %v3551 = vrot.slane %v3549, 5
        %v3552 = vshll.u32 %v3179, 16
        %v3554 = vrot.slane %v3552, 6
        %v3555 = vor.u32 %v3551, %v3554
        %v3556 = vsel %vm3208, %v3547, %v3555
        %v3557 = vrot.slane %v3555, 4
        %v3559 = vshrl.u32 %v3180, 16
        %v3561 = vrot.slane %v3559, 5
        %v3562 = vshll.u32 %v3180, 16
        %v3564 = vrot.slane %v3562, 6
        %v3565 = vor.u32 %v3561, %v3564
        %v3566 = vsel %vm3208, %v3557, %v3565
        %v3567 = vrot.slane %v3565, 4
        %v3569 = vshrl.u32 %v3181, 16
        %v3571 = vrot.slane %v3569, 5
        %v3572 = vshll.u32 %v3181, 16
        %v3574 = vrot.slane %v3572, 6
        %v3575 = vor.u32 %v3571, %v3574
        %v3576 = vsel %vm3208, %v3567, %v3575
        %v3577 = vrot.slane %v3575, 4
        %v3579 = vshrl.u32 %v3182, 16
        %v3581 = vrot.slane %v3579, 5
        %v3582 = vshll.u32 %v3182, 16
        %v3584 = vrot.slane %v3582, 6
        %v3585 = vor.u32 %v3581, %v3584
        %v3586 = vsel %vm3208, %v3577, %v3585
        %v3587 = vrot.slane %v3585, 4
        %v3589 = vshrl.u32 %v3183, 16
        %v3591 = vrot.slane %v3589, 5
        %v3592 = vshll.u32 %v3183, 16
        %v3594 = vrot.slane %v3592, 6
        %v3595 = vor.u32 %v3591, %v3594
        %v3596 = vsel %vm3208, %v3587, %v3595
        %v3597 = vrot.slane %v3595, 4
        %v3599 = vshrl.u32 %v3184, 16
        %v3601 = vrot.slane %v3599, 5
        %v3602 = vshll.u32 %v3184, 16
        %v3604 = vrot.slane %v3602, 6
        %v3605 = vor.u32 %v3601, %v3604
        %v3606 = vsel %vm3208, %v3597, %v3605
        %v3607 = vrot.slane %v3605, 4
        %v3609 = vshrl.u32 %v3185, 16
        %v3611 = vrot.slane %v3609, 5
        %v3612 = vshll.u32 %v3185, 16
        %v3614 = vrot.slane %v3612, 6
        %v3615 = vor.u32 %v3611, %v3614
        %v3616 = vsel %vm3208, %v3607, %v3615
        %v3617 = vrot.slane %v3615, 4
        %v3619 = vshrl.u32 %v3186, 16
        %v3621 = vrot.slane %v3619, 5
        %v3622 = vshll.u32 %v3186, 16
        %v3624 = vrot.slane %v3622, 6
        %v3625 = vor.u32 %v3621, %v3624
        %v3626 = vsel %vm3208, %v3617, %v3625
        %v3627 = vrot.slane %v3625, 4
        %v3629 = vshrl.u32 %v3187, 16
        %v3631 = vrot.slane %v3629, 5
        %v3632 = vshll.u32 %v3187, 16
        %v3634 = vrot.slane %v3632, 6
        %v3635 = vor.u32 %v3631, %v3634
        %v3636 = vsel %vm3208, %v3627, %v3635
        %v3637 = vrot.slane %v3635, 4
        %v3639 = vshrl.u32 %v3188, 16
        %v3641 = vrot.slane %v3639, 5
        %v3642 = vshll.u32 %v3188, 16
        %v3644 = vrot.slane %v3642, 6
        %v3645 = vor.u32 %v3641, %v3644
        %v3646 = vsel %vm3208, %v3637, %v3645
        %v3647 = vrot.slane %v3645, 4
        %v3649 = vshrl.u32 %v3189, 16
        %v3651 = vrot.slane %v3649, 5
        %v3652 = vshll.u32 %v3189, 16
        %v3654 = vrot.slane %v3652, 6
        %v3655 = vor.u32 %v3651, %v3654
        %v3656 = vsel %vm3208, %v3647, %v3655
        %v3657 = vrot.slane %v3655, 4
        %v3659 = vshrl.u32 %v3190, 16
        %v3661 = vrot.slane %v3659, 5
        %v3662 = vshll.u32 %v3190, 16
        %v3664 = vrot.slane %v3662, 6
        %v3665 = vor.u32 %v3661, %v3664
        %v3666 = vsel %vm3208, %v3657, %v3665
        %v3667 = vrot.slane %v3665, 4
        %v3669 = vshrl.u32 %v3191, 16
        %v3671 = vrot.slane %v3669, 5
        %v3672 = vshll.u32 %v3191, 16
        %v3674 = vrot.slane %v3672, 6
        %v3675 = vor.u32 %v3671, %v3674
        %v3676 = vsel %vm3208, %v3667, %v3675
        %v3677 = vrot.slane %v3675, 4
        %v3679 = vshrl.u32 %v3192, 16
        %v3681 = vrot.slane %v3679, 5
        %v3682 = vshll.u32 %v3192, 16
        %v3684 = vrot.slane %v3682, 6
        %v3685 = vor.u32 %v3681, %v3684
        %v3686 = vsel %vm3208, %v3677, %v3685
        %v3687 = vrot.slane %v3685, 4
        %v3689 = vshrl.u32 %v3193, 16
        %v3691 = vrot.slane %v3689, 5
        %v3692 = vshll.u32 %v3193, 16
        %v3694 = vrot.slane %v3692, 6
        %v3695 = vor.u32 %v3691, %v3694
        %v3696 = vsel %vm3208, %v3687, %v3695
        %v3697 = vrot.slane %v3695, 4
        %v3699 = vshrl.u32 %v3194, 16
        %v3701 = vrot.slane %v3699, 5
        %v3702 = vshll.u32 %v3194, 16
        %v3704 = vrot.slane %v3702, 6
        %v3705 = vor.u32 %v3701, %v3704
        %v3706 = vsel %vm3208, %v3697, %v3705
        %v3707 = vrot.slane %v3705, 4
        %v3709 = vshrl.u32 %v3195, 16
        %v3711 = vrot.slane %v3709, 5
        %v3712 = vshll.u32 %v3195, 16
        %v3714 = vrot.slane %v3712, 6
        %v3715 = vor.u32 %v3711, %v3714
        %v3716 = vsel %vm3208, %v3707, %v3715
        %v3717 = vrot.slane %v3715, 4
        %v3719 = vshrl.u32 %v3196, 16
        %v3721 = vrot.slane %v3719, 5
        %v3722 = vshll.u32 %v3196, 16
        %v3724 = vrot.slane %v3722, 6
        %v3725 = vor.u32 %v3721, %v3724
        %v3726 = vsel %vm3208, %v3717, %v3725
        %v3727 = vrot.slane %v3725, 4
        %v3729 = vshrl.u32 %v3197, 16
        %v3731 = vrot.slane %v3729, 5
        %v3732 = vshll.u32 %v3197, 16
        %v3734 = vrot.slane %v3732, 6
        %v3735 = vor.u32 %v3731, %v3734
        %v3736 = vsel %vm3208, %v3727, %v3735
        %v3737 = vrot.slane %v3735, 4
        %v3739 = vshrl.u32 %v3198, 16
        %v3741 = vrot.slane %v3739, 5
        %v3742 = vshll.u32 %v3198, 16
        %v3744 = vrot.slane %v3742, 6
        %v3745 = vor.u32 %v3741, %v3744
        %v3746 = vsel %vm3208, %v3737, %v3745
        %v3747 = vrot.slane %v3745, 4
        %v3749 = vshrl.u32 %v3199, 16
        %v3751 = vrot.slane %v3749, 5
        %v3752 = vshll.u32 %v3199, 16
        %v3754 = vrot.slane %v3752, 6
        %v3755 = vor.u32 %v3751, %v3754
        %v3756 = vsel %vm3208, %v3747, %v3755
        %v3757 = vrot.slane %v3755, 4
        %v3759 = vshrl.u32 %v3200, 16
        %v3761 = vrot.slane %v3759, 5
        %v3762 = vshll.u32 %v3200, 16
        %v3764 = vrot.slane %v3762, 6
        %v3765 = vor.u32 %v3761, %v3764
        %v3766 = vsel %vm3208, %v3757, %v3765
        %v3767 = vrot.slane %v3765, 4
        %v3769 = vshrl.u32 %v3201, 16
        %v3771 = vrot.slane %v3769, 5
        %v3772 = vshll.u32 %v3201, 16
        %v3774 = vrot.slane %v3772, 6
        %v3775 = vor.u32 %v3771, %v3774
        %v3776 = vsel %vm3208, %v3767, %v3775
        %v3777 = vrot.slane %v3775, 4
        %v3779 = vshrl.u32 %v3202, 16
        %v3781 = vrot.slane %v3779, 5
        %v3782 = vshll.u32 %v3202, 16
        %v3784 = vrot.slane %v3782, 6
        %v3785 = vor.u32 %v3781, %v3784
        %v3786 = vsel %vm3208, %v3777, %v3785
        %v3787 = vrot.slane %v3785, 4
        %v3789 = vshrl.u32 %v3203, 16
        %v3791 = vrot.slane %v3789, 5
        %v3792 = vshll.u32 %v3203, 16
        %v3794 = vrot.slane %v3792, 6
        %v3795 = vor.u32 %v3791, %v3794
        %v3796 = vsel %vm3208, %v3787, %v3795
        %v3797 = vrot.slane %v3795, 4
        %v3799 = vshrl.u32 %v3204, 16
        %v3801 = vrot.slane %v3799, 5
        %v3802 = vshll.u32 %v3204, 16
        %v3804 = vrot.slane %v3802, 6
        %v3805 = vor.u32 %v3801, %v3804
        %v3806 = vsel %vm3208, %v3797, %v3805
        %v3807 = vrot.slane %v3805, 4
        %v3809 = vshrl.u32 %v3205, 16
        %v3811 = vrot.slane %v3809, 5
        %v3812 = vshll.u32 %v3205, 16
        %v3814 = vrot.slane %v3812, 6
        %v3815 = vor.u32 %v3811, %v3814
        %v3816 = vsel %vm3208, %v3807, %v3815
        %3817 = vrot.lane.b32.xlu0 %v3226, 16
        %v3818 = vpop.permute.xlu0 %3817
        %3819 = vrot.lane.b32.xlu0 %v3236, 16
        %v3820 = vpop.permute.xlu0 %3819
        %3821 = vrot.lane.b32.xlu0 %v3246, 16
        %v3822 = vpop.permute.xlu0 %3821
        %3823 = vrot.lane.b32.xlu0 %v3256, 16
        %v3824 = vpop.permute.xlu0 %3823
        %3825 = vrot.lane.b32.xlu0 %v3266, 16
        %v3826 = vpop.permute.xlu0 %3825
        %3827 = vrot.lane.b32.xlu0 %v3276, 16
        %v3828 = vpop.permute.xlu0 %3827
        %3829 = vrot.lane.b32.xlu0 %v3286, 16
        %v3830 = vpop.permute.xlu0 %3829
        %3831 = vrot.lane.b32.xlu0 %v3296, 16
        %v3832 = vpop.permute.xlu0 %3831
        %3833 = vrot.lane.b32.xlu0 %v3306, 16
        %v3834 = vpop.permute.xlu0 %3833
        %3835 = vrot.lane.b32.xlu0 %v3316, 16
        %v3836 = vpop.permute.xlu0 %3835
        %3837 = vrot.lane.b32.xlu0 %v3326, 16
        %v3838 = vpop.permute.xlu0 %3837
        %3839 = vrot.lane.b32.xlu0 %v3336, 16
        %v3840 = vpop.permute.xlu0 %3839
        %3841 = vrot.lane.b32.xlu0 %v3346, 16
        %v3842 = vpop.permute.xlu0 %3841
        %3843 = vrot.lane.b32.xlu0 %v3356, 16
        %v3844 = vpop.permute.xlu0 %3843
        %3845 = vrot.lane.b32.xlu0 %v3366, 16
        %v3846 = vpop.permute.xlu0 %3845
        %3847 = vrot.lane.b32.xlu0 %v3376, 16
        %v3848 = vpop.permute.xlu0 %3847
        %3849 = vrot.lane.b32.xlu0 %v3386, 16
        %v3850 = vpop.permute.xlu0 %3849
        %3851 = vrot.lane.b32.xlu0 %v3396, 16
        %v3852 = vpop.permute.xlu0 %3851
        %3853 = vrot.lane.b32.xlu0 %v3406, 16
        %v3854 = vpop.permute.xlu0 %3853
        %3855 = vrot.lane.b32.xlu0 %v3416, 16
        %v3856 = vpop.permute.xlu0 %3855
        %3857 = vrot.lane.b32.xlu0 %v3426, 16
        %v3858 = vpop.permute.xlu0 %3857
        %3859 = vrot.lane.b32.xlu0 %v3436, 16
        %v3860 = vpop.permute.xlu0 %3859
        %3861 = vrot.lane.b32.xlu0 %v3446, 16
        %v3862 = vpop.permute.xlu0 %3861
        %3863 = vrot.lane.b32.xlu0 %v3456, 16
        %v3864 = vpop.permute.xlu0 %3863
        %3865 = vrot.lane.b32.xlu0 %v3466, 16
        %v3866 = vpop.permute.xlu0 %3865
        %3867 = vrot.lane.b32.xlu0 %v3476, 16
        %v3868 = vpop.permute.xlu0 %3867
        %3869 = vrot.lane.b32.xlu0 %v3486, 16
        %v3870 = vpop.permute.xlu0 %3869
        %3871 = vrot.lane.b32.xlu0 %v3496, 16
        %v3872 = vpop.permute.xlu0 %3871
        %3873 = vrot.lane.b32.xlu0 %v3506, 16
        %v3874 = vpop.permute.xlu0 %3873
        %3875 = vrot.lane.b32.xlu0 %v3516, 16
        %v3876 = vpop.permute.xlu0 %3875
        %3877 = vrot.lane.b32.xlu0 %v3526, 16
        %v3878 = vpop.permute.xlu0 %3877
        %3879 = vrot.lane.b32.xlu0 %v3536, 16
        %v3880 = vpop.permute.xlu0 %3879
        %3881 = vrot.lane.b32.xlu0 %v3546, 16
        %v3882 = vpop.permute.xlu0 %3881
        %3883 = vrot.lane.b32.xlu0 %v3556, 16
        %v3884 = vpop.permute.xlu0 %3883
        %3885 = vrot.lane.b32.xlu0 %v3566, 16
        %v3886 = vpop.permute.xlu0 %3885
        %3887 = vrot.lane.b32.xlu0 %v3576, 16
        %v3888 = vpop.permute.xlu0 %3887
        %3889 = vrot.lane.b32.xlu0 %v3586, 16
        %v3890 = vpop.permute.xlu0 %3889
        %3891 = vrot.lane.b32.xlu0 %v3596, 16
        %v3892 = vpop.permute.xlu0 %3891
        %3893 = vrot.lane.b32.xlu0 %v3606, 16
        %v3894 = vpop.permute.xlu0 %3893
        %3895 = vrot.lane.b32.xlu0 %v3616, 16
        %v3896 = vpop.permute.xlu0 %3895
        %3897 = vrot.lane.b32.xlu0 %v3626, 16
        %v3898 = vpop.permute.xlu0 %3897
        %3899 = vrot.lane.b32.xlu0 %v3636, 16
        %v3900 = vpop.permute.xlu0 %3899
        %3901 = vrot.lane.b32.xlu0 %v3646, 16
        %v3902 = vpop.permute.xlu0 %3901
        %3903 = vrot.lane.b32.xlu0 %v3656, 16
        %v3904 = vpop.permute.xlu0 %3903
        %3905 = vrot.lane.b32.xlu0 %v3666, 16
        %v3906 = vpop.permute.xlu0 %3905
        %3907 = vrot.lane.b32.xlu0 %v3676, 16
        %v3908 = vpop.permute.xlu0 %3907
        %3909 = vrot.lane.b32.xlu0 %v3686, 16
        %v3910 = vpop.permute.xlu0 %3909
        %3911 = vrot.lane.b32.xlu0 %v3696, 16
        %v3912 = vpop.permute.xlu0 %3911
        %3913 = vrot.lane.b32.xlu0 %v3706, 16
        %v3914 = vpop.permute.xlu0 %3913
        %3915 = vrot.lane.b32.xlu0 %v3716, 16
        %v3916 = vpop.permute.xlu0 %3915
        %3917 = vrot.lane.b32.xlu0 %v3726, 16
        %v3918 = vpop.permute.xlu0 %3917
        %3919 = vrot.lane.b32.xlu0 %v3736, 16
        %v3920 = vpop.permute.xlu0 %3919
        %3921 = vrot.lane.b32.xlu0 %v3746, 16
        %v3922 = vpop.permute.xlu0 %3921
        %3923 = vrot.lane.b32.xlu0 %v3756, 16
        %v3924 = vpop.permute.xlu0 %3923
        %3925 = vrot.lane.b32.xlu0 %v3766, 16
        %v3926 = vpop.permute.xlu0 %3925
        %3927 = vrot.lane.b32.xlu0 %v3776, 16
        %v3928 = vpop.permute.xlu0 %3927
        %3929 = vrot.lane.b32.xlu0 %v3786, 16
        %v3930 = vpop.permute.xlu0 %3929
        %3931 = vrot.lane.b32.xlu0 %v3796, 16
        %v3932 = vpop.permute.xlu0 %3931
        %3933 = vrot.lane.b32.xlu0 %v3806, 16
        %v3934 = vpop.permute.xlu0 %3933
        %3935 = vrot.lane.b32.xlu0 %v3816, 16
        %v3936 = vpop.permute.xlu0 %3935
        %vm3997 = vcmask 158848
        %3998 = vst.msk [vmem:[#allocation3] sm:$0xf] %vm3997, %v3818
        %3999 = vst.msk [vmem:[#allocation3 + $0x4] sm:$0xf] %vm3997, %v3820
        %4000 = vst.msk [vmem:[#allocation3 + $0x8] sm:$0xf] %vm3997, %v3822
        %4001 = vst.msk [vmem:[#allocation3 + $0xc] sm:$0xf] %vm3997, %v3824
        %4002 = vst.msk [vmem:[#allocation3 + $0x10] sm:$0xf] %vm3997, %v3826
        %4003 = vst.msk [vmem:[#allocation3 + $0x14] sm:$0xf] %vm3997, %v3828
        %4004 = vst.msk [vmem:[#allocation3 + $0x18] sm:$0xf] %vm3997, %v3830
        %4005 = vst.msk [vmem:[#allocation3 + $0x1c] sm:$0xf] %vm3997, %v3832
        %4006 = vst.msk [vmem:[#allocation3 + $0x20] sm:$0xf] %vm3997, %v3834
        %4007 = vst.msk [vmem:[#allocation3 + $0x24] sm:$0xf] %vm3997, %v3836
        %4008 = vst.msk [vmem:[#allocation3 + $0x28] sm:$0xf] %vm3997, %v3838
        %4009 = vst.msk [vmem:[#allocation3 + $0x2c] sm:$0xf] %vm3997, %v3840
        %4010 = vst.msk [vmem:[#allocation3 + $0x30] sm:$0xf] %vm3997, %v3842
        %4011 = vst.msk [vmem:[#allocation3 + $0x34] sm:$0xf] %vm3997, %v3844
        %4012 = vst.msk [vmem:[#allocation3 + $0x38] sm:$0xf] %vm3997, %v3846
        %4013 = vst.msk [vmem:[#allocation3 + $0x3c] sm:$0xf] %vm3997, %v3848
        %4014 = vst.msk [vmem:[#allocation3 + $0x40] sm:$0xf] %vm3997, %v3850
        %4015 = vst.msk [vmem:[#allocation3 + $0x44] sm:$0xf] %vm3997, %v3852
        %4016 = vst.msk [vmem:[#allocation3 + $0x48] sm:$0xf] %vm3997, %v3854
        %4017 = vst.msk [vmem:[#allocation3 + $0x4c] sm:$0xf] %vm3997, %v3856
        %4018 = vst.msk [vmem:[#allocation3 + $0x50] sm:$0xf] %vm3997, %v3858
        %4019 = vst.msk [vmem:[#allocation3 + $0x54] sm:$0xf] %vm3997, %v3860
        %4020 = vst.msk [vmem:[#allocation3 + $0x58] sm:$0xf] %vm3997, %v3862
        %4021 = vst.msk [vmem:[#allocation3 + $0x5c] sm:$0xf] %vm3997, %v3864
        %4022 = vst.msk [vmem:[#allocation3 + $0x60] sm:$0xf] %vm3997, %v3866
        %4023 = vst.msk [vmem:[#allocation3 + $0x64] sm:$0xf] %vm3997, %v3868
        %4024 = vst.msk [vmem:[#allocation3 + $0x68] sm:$0xf] %vm3997, %v3870
        %4025 = vst.msk [vmem:[#allocation3 + $0x6c] sm:$0xf] %vm3997, %v3872
        %4026 = vst.msk [vmem:[#allocation3 + $0x70] sm:$0xf] %vm3997, %v3874
        %4027 = vst.msk [vmem:[#allocation3 + $0x74] sm:$0xf] %vm3997, %v3876
        %4028 = vst.msk [vmem:[#allocation3 + $0x78] sm:$0xf] %vm3997, %v3878
        %4029 = vst.msk [vmem:[#allocation3 + $0x7c] sm:$0xf] %vm3997, %v3880
        %4030 = vst.msk [vmem:[#allocation3 + $0x80] sm:$0xf] %vm3997, %v3882
        %4031 = vst.msk [vmem:[#allocation3 + $0x84] sm:$0xf] %vm3997, %v3884
        %4032 = vst.msk [vmem:[#allocation3 + $0x88] sm:$0xf] %vm3997, %v3886
        %4033 = vst.msk [vmem:[#allocation3 + $0x8c] sm:$0xf] %vm3997, %v3888
        %4034 = vst.msk [vmem:[#allocation3 + $0x90] sm:$0xf] %vm3997, %v3890
        %4035 = vst.msk [vmem:[#allocation3 + $0x94] sm:$0xf] %vm3997, %v3892
        %4036 = vst.msk [vmem:[#allocation3 + $0x98] sm:$0xf] %vm3997, %v3894
        %4037 = vst.msk [vmem:[#allocation3 + $0x9c] sm:$0xf] %vm3997, %v3896
        %4038 = vst.msk [vmem:[#allocation3 + $0xa0] sm:$0xf] %vm3997, %v3898
        %4039 = vst.msk [vmem:[#allocation3 + $0xa4] sm:$0xf] %vm3997, %v3900
        %4040 = vst.msk [vmem:[#allocation3 + $0xa8] sm:$0xf] %vm3997, %v3902
        %4041 = vst.msk [vmem:[#allocation3 + $0xac] sm:$0xf] %vm3997, %v3904
        %4042 = vst.msk [vmem:[#allocation3 + $0xb0] sm:$0xf] %vm3997, %v3906
        %4043 = vst.msk [vmem:[#allocation3 + $0xb4] sm:$0xf] %vm3997, %v3908
        %4044 = vst.msk [vmem:[#allocation3 + $0xb8] sm:$0xf] %vm3997, %v3910
        %4045 = vst.msk [vmem:[#allocation3 + $0xbc] sm:$0xf] %vm3997, %v3912
        %4046 = vst.msk [vmem:[#allocation3 + $0xc0] sm:$0xf] %vm3997, %v3914
        %4047 = vst.msk [vmem:[#allocation3 + $0xc4] sm:$0xf] %vm3997, %v3916
        %4048 = vst.msk [vmem:[#allocation3 + $0xc8] sm:$0xf] %vm3997, %v3918
        %4049 = vst.msk [vmem:[#allocation3 + $0xcc] sm:$0xf] %vm3997, %v3920
        %4050 = vst.msk [vmem:[#allocation3 + $0xd0] sm:$0xf] %vm3997, %v3922
        %4051 = vst.msk [vmem:[#allocation3 + $0xd4] sm:$0xf] %vm3997, %v3924
        %4052 = vst.msk [vmem:[#allocation3 + $0xd8] sm:$0xf] %vm3997, %v3926
        %4053 = vst.msk [vmem:[#allocation3 + $0xdc] sm:$0xf] %vm3997, %v3928
        %4054 = vst.msk [vmem:[#allocation3 + $0xe0] sm:$0xf] %vm3997, %v3930
        %4055 = vst.msk [vmem:[#allocation3 + $0xe4] sm:$0xf] %vm3997, %v3932
        %4056 = vst.msk [vmem:[#allocation3 + $0xe8] sm:$0xf] %vm3997, %v3934
        %4057 = vst.msk [vmem:[#allocation3 + $0xec] sm:$0xf] %vm3997, %v3936
        %v4058 = vld [vmem:[#allocation2 + $0x8] sm:$0xc]
        %v4059 = vld [vmem:[#allocation2 + $0xc] sm:$0xf]
        %v4060 = vld [vmem:[#allocation2 + $0x10] sm:$0xf]
        %v4061 = vld [vmem:[#allocation2 + $0x14] sm:$0xf]
        %v4062 = vld [vmem:[#allocation2 + $0x18] sm:$0xf]
        %v4063 = vld [vmem:[#allocation2 + $0x1c] sm:$0xf]
        %v4064 = vld [vmem:[#allocation2 + $0x20] sm:$0xf]
        %v4065 = vld [vmem:[#allocation2 + $0x24] sm:$0xf]
        %v4066 = vld [vmem:[#allocation2 + $0x28] sm:$0xf]
        %v4067 = vld [vmem:[#allocation2 + $0x2c] sm:$0xf]
        %v4068 = vld [vmem:[#allocation2 + $0x30] sm:$0xf]
        %v4069 = vld [vmem:[#allocation2 + $0x34] sm:$0xf]
        %v4070 = vld [vmem:[#allocation2 + $0x38] sm:$0xf]
        %v4071 = vld [vmem:[#allocation2 + $0x3c] sm:$0xf]
        %v4072 = vld [vmem:[#allocation2 + $0x40] sm:$0xf]
        %v4073 = vld [vmem:[#allocation2 + $0x44] sm:$0xf]
        %v4074 = vld [vmem:[#allocation2 + $0x48] sm:$0xf]
        %v4075 = vld [vmem:[#allocation2 + $0x4c] sm:$0xf]
        %v4076 = vld [vmem:[#allocation2 + $0x50] sm:$0xf]
        %v4077 = vld [vmem:[#allocation2 + $0x54] sm:$0xf]
        %v4078 = vld [vmem:[#allocation2 + $0x58] sm:$0xf]
        %v4079 = vld [vmem:[#allocation2 + $0x5c] sm:$0xf]
        %v4080 = vld [vmem:[#allocation2 + $0x60] sm:$0xf]
        %v4081 = vld [vmem:[#allocation2 + $0x64] sm:$0xf]
        %v4082 = vld [vmem:[#allocation2 + $0x68] sm:$0xf]
        %v4083 = vld [vmem:[#allocation2 + $0x6c] sm:$0xf]
        %v4084 = vld [vmem:[#allocation2 + $0x70] sm:$0xf]
        %v4085 = vld [vmem:[#allocation2 + $0x74] sm:$0xf]
        %v4086 = vld [vmem:[#allocation2 + $0x78] sm:$0xf]
        %v4087 = vld [vmem:[#allocation2 + $0x7c] sm:$0xf]
        %v4088 = vld [vmem:[#allocation2 + $0x80] sm:$0xf]
        %v4089 = vld [vmem:[#allocation2 + $0x84] sm:$0xf]
        %v4090 = vld [vmem:[#allocation2 + $0x88] sm:$0xf]
        %v4091 = vld [vmem:[#allocation2 + $0x8c] sm:$0xf]
        %v4092 = vld [vmem:[#allocation2 + $0x90] sm:$0xf]
        %v4093 = vld [vmem:[#allocation2 + $0x94] sm:$0xf]
        %v4094 = vld [vmem:[#allocation2 + $0x98] sm:$0xf]
        %v4095 = vld [vmem:[#allocation2 + $0x9c] sm:$0xf]
        %v4096 = vld [vmem:[#allocation2 + $0xa0] sm:$0xf]
        %v4097 = vld [vmem:[#allocation2 + $0xa4] sm:$0xf]
        %v4098 = vld [vmem:[#allocation2 + $0xa8] sm:$0xf]
        %v4099 = vld [vmem:[#allocation2 + $0xac] sm:$0xf]
        %v4100 = vld [vmem:[#allocation2 + $0xb0] sm:$0xf]
        %v4101 = vld [vmem:[#allocation2 + $0xb4] sm:$0xf]
        %v4102 = vld [vmem:[#allocation2 + $0xb8] sm:$0xf]
        %v4103 = vld [vmem:[#allocation2 + $0xbc] sm:$0xf]
        %v4104 = vld [vmem:[#allocation2 + $0xc0] sm:$0xf]
        %v4105 = vld [vmem:[#allocation2 + $0xc4] sm:$0xf]
        %v4106 = vld [vmem:[#allocation2 + $0xc8] sm:$0xf]
        %v4107 = vld [vmem:[#allocation2 + $0xcc] sm:$0xf]
        %v4108 = vld [vmem:[#allocation2 + $0xd0] sm:$0xf]
        %v4109 = vld [vmem:[#allocation2 + $0xd4] sm:$0xf]
        %v4110 = vld [vmem:[#allocation2 + $0xd8] sm:$0xf]
        %v4111 = vld [vmem:[#allocation2 + $0xdc] sm:$0xf]
        %v4112 = vld [vmem:[#allocation2 + $0xe0] sm:$0xf]
        %v4113 = vld [vmem:[#allocation2 + $0xe4] sm:$0xf]
        %v4114 = vld [vmem:[#allocation2 + $0xe8] sm:$0xf]
        %v4115 = vld [vmem:[#allocation2 + $0xec] sm:$0xf]
        %v4116 = vld [vmem:[#allocation2 + $0xf0] sm:$0xf]
        %v4117 = vld [vmem:[#allocation2 + $0xf4] sm:$0xf]
        %v4118 = vld [vmem:[#allocation2 + $0xf8] sm:$0x3]
        %vm4180 = vcmask 1041408
        %vm4181 = vcmask 1045508
        %vm4182 = vmor %vm4180, %vm4181
        %v4183 = vrot.slane %v4058, 6
        %v4184 = vrot.slane %v4183, 4
        %v4185 = vrot.slane %v4059, 6
        %v4186 = vsel %vm4182, %v4184, %v4185
        %v4187 = vrot.slane %v4185, 4
        %v4188 = vrot.slane %v4060, 6
        %v4189 = vsel %vm4182, %v4187, %v4188
        %v4190 = vrot.slane %v4188, 4
        %v4191 = vrot.slane %v4061, 6
        %v4192 = vsel %vm4182, %v4190, %v4191
        %v4193 = vrot.slane %v4191, 4
        %v4194 = vrot.slane %v4062, 6
        %v4195 = vsel %vm4182, %v4193, %v4194
        %v4196 = vrot.slane %v4194, 4
        %v4197 = vrot.slane %v4063, 6
        %v4198 = vsel %vm4182, %v4196, %v4197
        %v4199 = vrot.slane %v4197, 4
        %v4200 = vrot.slane %v4064, 6
        %v4201 = vsel %vm4182, %v4199, %v4200
        %v4202 = vrot.slane %v4200, 4
        %v4203 = vrot.slane %v4065, 6
        %v4204 = vsel %vm4182, %v4202, %v4203
        %v4205 = vrot.slane %v4203, 4
        %v4206 = vrot.slane %v4066, 6
        %v4207 = vsel %vm4182, %v4205, %v4206
        %v4208 = vrot.slane %v4206, 4
        %v4209 = vrot.slane %v4067, 6
        %v4210 = vsel %vm4182, %v4208, %v4209
        %v4211 = vrot.slane %v4209, 4
        %v4212 = vrot.slane %v4068, 6
        %v4213 = vsel %vm4182, %v4211, %v4212
        %v4214 = vrot.slane %v4212, 4
        %v4215 = vrot.slane %v4069, 6
        %v4216 = vsel %vm4182, %v4214, %v4215
        %v4217 = vrot.slane %v4215, 4
        %v4218 = vrot.slane %v4070, 6
        %v4219 = vsel %vm4182, %v4217, %v4218
        %v4220 = vrot.slane %v4218, 4
        %v4221 = vrot.slane %v4071, 6
        %v4222 = vsel %vm4182, %v4220, %v4221
        %v4223 = vrot.slane %v4221, 4
        %v4224 = vrot.slane %v4072, 6
        %v4225 = vsel %vm4182, %v4223, %v4224
        %v4226 = vrot.slane %v4224, 4
        %v4227 = vrot.slane %v4073, 6
        %v4228 = vsel %vm4182, %v4226, %v4227
        %v4229 = vrot.slane %v4227, 4
        %v4230 = vrot.slane %v4074, 6
        %v4231 = vsel %vm4182, %v4229, %v4230
        %v4232 = vrot.slane %v4230, 4
        %v4233 = vrot.slane %v4075, 6
        %v4234 = vsel %vm4182, %v4232, %v4233
        %v4235 = vrot.slane %v4233, 4
        %v4236 = vrot.slane %v4076, 6
        %v4237 = vsel %vm4182, %v4235, %v4236
        %v4238 = vrot.slane %v4236, 4
        %v4239 = vrot.slane %v4077, 6
        %v4240 = vsel %vm4182, %v4238, %v4239
        %v4241 = vrot.slane %v4239, 4
        %v4242 = vrot.slane %v4078, 6
        %v4243 = vsel %vm4182, %v4241, %v4242
        %v4244 = vrot.slane %v4242, 4
        %v4245 = vrot.slane %v4079, 6
        %v4246 = vsel %vm4182, %v4244, %v4245
        %v4247 = vrot.slane %v4245, 4
        %v4248 = vrot.slane %v4080, 6
        %v4249 = vsel %vm4182, %v4247, %v4248
        %v4250 = vrot.slane %v4248, 4
        %v4251 = vrot.slane %v4081, 6
        %v4252 = vsel %vm4182, %v4250, %v4251
        %v4253 = vrot.slane %v4251, 4
        %v4254 = vrot.slane %v4082, 6
        %v4255 = vsel %vm4182, %v4253, %v4254
        %v4256 = vrot.slane %v4254, 4
        %v4257 = vrot.slane %v4083, 6
        %v4258 = vsel %vm4182, %v4256, %v4257
        %v4259 = vrot.slane %v4257, 4
        %v4260 = vrot.slane %v4084, 6
        %v4261 = vsel %vm4182, %v4259, %v4260
        %v4262 = vrot.slane %v4260, 4
        %v4263 = vrot.slane %v4085, 6
        %v4264 = vsel %vm4182, %v4262, %v4263
        %v4265 = vrot.slane %v4263, 4
        %v4266 = vrot.slane %v4086, 6
        %v4267 = vsel %vm4182, %v4265, %v4266
        %v4268 = vrot.slane %v4266, 4
        %v4269 = vrot.slane %v4087, 6
        %v4270 = vsel %vm4182, %v4268, %v4269
        %v4271 = vrot.slane %v4269, 4
        %v4272 = vrot.slane %v4088, 6
        %v4273 = vsel %vm4182, %v4271, %v4272
        %v4274 = vrot.slane %v4272, 4
        %v4275 = vrot.slane %v4089, 6
        %v4276 = vsel %vm4182, %v4274, %v4275
        %v4277 = vrot.slane %v4275, 4
        %v4278 = vrot.slane %v4090, 6
        %v4279 = vsel %vm4182, %v4277, %v4278
        %v4280 = vrot.slane %v4278, 4
        %v4281 = vrot.slane %v4091, 6
        %v4282 = vsel %vm4182, %v4280, %v4281
        %v4283 = vrot.slane %v4281, 4
        %v4284 = vrot.slane %v4092, 6
        %v4285 = vsel %vm4182, %v4283, %v4284
        %v4286 = vrot.slane %v4284, 4
        %v4287 = vrot.slane %v4093, 6
        %v4288 = vsel %vm4182, %v4286, %v4287
        %v4289 = vrot.slane %v4287, 4
        %v4290 = vrot.slane %v4094, 6
        %v4291 = vsel %vm4182, %v4289, %v4290
        %v4292 = vrot.slane %v4290, 4
        %v4293 = vrot.slane %v4095, 6
        %v4294 = vsel %vm4182, %v4292, %v4293
        %v4295 = vrot.slane %v4293, 4
        %v4296 = vrot.slane %v4096, 6
        %v4297 = vsel %vm4182, %v4295, %v4296
        %v4298 = vrot.slane %v4296, 4
        %v4299 = vrot.slane %v4097, 6
        %v4300 = vsel %vm4182, %v4298, %v4299
        %v4301 = vrot.slane %v4299, 4
        %v4302 = vrot.slane %v4098, 6
        %v4303 = vsel %vm4182, %v4301, %v4302
        %v4304 = vrot.slane %v4302, 4
        %v4305 = vrot.slane %v4099, 6
        %v4306 = vsel %vm4182, %v4304, %v4305
        %v4307 = vrot.slane %v4305, 4
        %v4308 = vrot.slane %v4100, 6
        %v4309 = vsel %vm4182, %v4307, %v4308
        %v4310 = vrot.slane %v4308, 4
        %v4311 = vrot.slane %v4101, 6
        %v4312 = vsel %vm4182, %v4310, %v4311
        %v4313 = vrot.slane %v4311, 4
        %v4314 = vrot.slane %v4102, 6
        %v4315 = vsel %vm4182, %v4313, %v4314
        %v4316 = vrot.slane %v4314, 4
        %v4317 = vrot.slane %v4103, 6
        %v4318 = vsel %vm4182, %v4316, %v4317
        %v4319 = vrot.slane %v4317, 4
        %v4320 = vrot.slane %v4104, 6
        %v4321 = vsel %vm4182, %v4319, %v4320
        %v4322 = vrot.slane %v4320, 4
        %v4323 = vrot.slane %v4105, 6
        %v4324 = vsel %vm4182, %v4322, %v4323
        %v4325 = vrot.slane %v4323, 4
        %v4326 = vrot.slane %v4106, 6
        %v4327 = vsel %vm4182, %v4325, %v4326
        %v4328 = vrot.slane %v4326, 4
        %v4329 = vrot.slane %v4107, 6
        %v4330 = vsel %vm4182, %v4328, %v4329
        %v4331 = vrot.slane %v4329, 4
        %v4332 = vrot.slane %v4108, 6
        %v4333 = vsel %vm4182, %v4331, %v4332
        %v4334 = vrot.slane %v4332, 4
        %v4335 = vrot.slane %v4109, 6
        %v4336 = vsel %vm4182, %v4334, %v4335
        %v4337 = vrot.slane %v4335, 4
        %v4338 = vrot.slane %v4110, 6
        %v4339 = vsel %vm4182, %v4337, %v4338
        %v4340 = vrot.slane %v4338, 4
        %v4341 = vrot.slane %v4111, 6
        %v4342 = vsel %vm4182, %v4340, %v4341
        %v4343 = vrot.slane %v4341, 4
        %v4344 = vrot.slane %v4112, 6
        %v4345 = vsel %vm4182, %v4343, %v4344
        %v4346 = vrot.slane %v4344, 4
        %v4347 = vrot.slane %v4113, 6
        %v4348 = vsel %vm4182, %v4346, %v4347
        %v4349 = vrot.slane %v4347, 4
        %v4350 = vrot.slane %v4114, 6
        %v4351 = vsel %vm4182, %v4349, %v4350
        %v4352 = vrot.slane %v4350, 4
        %v4353 = vrot.slane %v4115, 6
        %v4354 = vsel %vm4182, %v4352, %v4353
        %v4355 = vrot.slane %v4353, 4
        %v4356 = vrot.slane %v4116, 6
        %v4357 = vsel %vm4182, %v4355, %v4356
        %v4358 = vrot.slane %v4356, 4
        %v4359 = vrot.slane %v4117, 6
        %v4360 = vsel %vm4182, %v4358, %v4359
        %v4361 = vrot.slane %v4359, 4
        %v4362 = vrot.slane %v4118, 6
        %v4363 = vsel %vm4182, %v4361, %v4362
        %4364 = vrot.lane.b32.xlu0 %v4186, 20
        %v4365 = vpop.permute.xlu0 %4364
        %4366 = vrot.lane.b32.xlu0 %v4189, 20
        %v4367 = vpop.permute.xlu0 %4366
        %4368 = vrot.lane.b32.xlu0 %v4192, 20
        %v4369 = vpop.permute.xlu0 %4368
        %4370 = vrot.lane.b32.xlu0 %v4195, 20
        %v4371 = vpop.permute.xlu0 %4370
        %4372 = vrot.lane.b32.xlu0 %v4198, 20
        %v4373 = vpop.permute.xlu0 %4372
        %4374 = vrot.lane.b32.xlu0 %v4201, 20
        %v4375 = vpop.permute.xlu0 %4374
        %4376 = vrot.lane.b32.xlu0 %v4204, 20
        %v4377 = vpop.permute.xlu0 %4376
        %4378 = vrot.lane.b32.xlu0 %v4207, 20
        %v4379 = vpop.permute.xlu0 %4378
        %4380 = vrot.lane.b32.xlu0 %v4210, 20
        %v4381 = vpop.permute.xlu0 %4380
        %4382 = vrot.lane.b32.xlu0 %v4213, 20
        %v4383 = vpop.permute.xlu0 %4382
        %4384 = vrot.lane.b32.xlu0 %v4216, 20
        %v4385 = vpop.permute.xlu0 %4384
        %4386 = vrot.lane.b32.xlu0 %v4219, 20
        %v4387 = vpop.permute.xlu0 %4386
        %4388 = vrot.lane.b32.xlu0 %v4222, 20
        %v4389 = vpop.permute.xlu0 %4388
        %4390 = vrot.lane.b32.xlu0 %v4225, 20
        %v4391 = vpop.permute.xlu0 %4390
        %4392 = vrot.lane.b32.xlu0 %v4228, 20
        %v4393 = vpop.permute.xlu0 %4392
        %4394 = vrot.lane.b32.xlu0 %v4231, 20
        %v4395 = vpop.permute.xlu0 %4394
        %4396 = vrot.lane.b32.xlu0 %v4234, 20
        %v4397 = vpop.permute.xlu0 %4396
        %4398 = vrot.lane.b32.xlu0 %v4237, 20
        %v4399 = vpop.permute.xlu0 %4398
        %4400 = vrot.lane.b32.xlu0 %v4240, 20
        %v4401 = vpop.permute.xlu0 %4400
        %4402 = vrot.lane.b32.xlu0 %v4243, 20
        %v4403 = vpop.permute.xlu0 %4402
        %4404 = vrot.lane.b32.xlu0 %v4246, 20
        %v4405 = vpop.permute.xlu0 %4404
        %4406 = vrot.lane.b32.xlu0 %v4249, 20
        %v4407 = vpop.permute.xlu0 %4406
        %4408 = vrot.lane.b32.xlu0 %v4252, 20
        %v4409 = vpop.permute.xlu0 %4408
        %4410 = vrot.lane.b32.xlu0 %v4255, 20
        %v4411 = vpop.permute.xlu0 %4410
        %4412 = vrot.lane.b32.xlu0 %v4258, 20
        %v4413 = vpop.permute.xlu0 %4412
        %4414 = vrot.lane.b32.xlu0 %v4261, 20
        %v4415 = vpop.permute.xlu0 %4414
        %4416 = vrot.lane.b32.xlu0 %v4264, 20
        %v4417 = vpop.permute.xlu0 %4416
        %4418 = vrot.lane.b32.xlu0 %v4267, 20
        %v4419 = vpop.permute.xlu0 %4418
        %4420 = vrot.lane.b32.xlu0 %v4270, 20
        %v4421 = vpop.permute.xlu0 %4420
        %4422 = vrot.lane.b32.xlu0 %v4273, 20
        %v4423 = vpop.permute.xlu0 %4422
        %4424 = vrot.lane.b32.xlu0 %v4276, 20
        %v4425 = vpop.permute.xlu0 %4424
        %4426 = vrot.lane.b32.xlu0 %v4279, 20
        %v4427 = vpop.permute.xlu0 %4426
        %4428 = vrot.lane.b32.xlu0 %v4282, 20
        %v4429 = vpop.permute.xlu0 %4428
        %4430 = vrot.lane.b32.xlu0 %v4285, 20
        %v4431 = vpop.permute.xlu0 %4430
        %4432 = vrot.lane.b32.xlu0 %v4288, 20
        %v4433 = vpop.permute.xlu0 %4432
        %4434 = vrot.lane.b32.xlu0 %v4291, 20
        %v4435 = vpop.permute.xlu0 %4434
        %4436 = vrot.lane.b32.xlu0 %v4294, 20
        %v4437 = vpop.permute.xlu0 %4436
        %4438 = vrot.lane.b32.xlu0 %v4297, 20
        %v4439 = vpop.permute.xlu0 %4438
        %4440 = vrot.lane.b32.xlu0 %v4300, 20
        %v4441 = vpop.permute.xlu0 %4440
        %4442 = vrot.lane.b32.xlu0 %v4303, 20
        %v4443 = vpop.permute.xlu0 %4442
        %4444 = vrot.lane.b32.xlu0 %v4306, 20
        %v4445 = vpop.permute.xlu0 %4444
        %4446 = vrot.lane.b32.xlu0 %v4309, 20
        %v4447 = vpop.permute.xlu0 %4446
        %4448 = vrot.lane.b32.xlu0 %v4312, 20
        %v4449 = vpop.permute.xlu0 %4448
        %4450 = vrot.lane.b32.xlu0 %v4315, 20
        %v4451 = vpop.permute.xlu0 %4450
        %4452 = vrot.lane.b32.xlu0 %v4318, 20
        %v4453 = vpop.permute.xlu0 %4452
        %4454 = vrot.lane.b32.xlu0 %v4321, 20
        %v4455 = vpop.permute.xlu0 %4454
        %4456 = vrot.lane.b32.xlu0 %v4324, 20
        %v4457 = vpop.permute.xlu0 %4456
        %4458 = vrot.lane.b32.xlu0 %v4327, 20
        %v4459 = vpop.permute.xlu0 %4458
        %4460 = vrot.lane.b32.xlu0 %v4330, 20
        %v4461 = vpop.permute.xlu0 %4460
        %4462 = vrot.lane.b32.xlu0 %v4333, 20
        %v4463 = vpop.permute.xlu0 %4462
        %4464 = vrot.lane.b32.xlu0 %v4336, 20
        %v4465 = vpop.permute.xlu0 %4464
        %4466 = vrot.lane.b32.xlu0 %v4339, 20
        %v4467 = vpop.permute.xlu0 %4466
        %4468 = vrot.lane.b32.xlu0 %v4342, 20
        %v4469 = vpop.permute.xlu0 %4468
        %4470 = vrot.lane.b32.xlu0 %v4345, 20
        %v4471 = vpop.permute.xlu0 %4470
        %4472 = vrot.lane.b32.xlu0 %v4348, 20
        %v4473 = vpop.permute.xlu0 %4472
        %4474 = vrot.lane.b32.xlu0 %v4351, 20
        %v4475 = vpop.permute.xlu0 %4474
        %4476 = vrot.lane.b32.xlu0 %v4354, 20
        %v4477 = vpop.permute.xlu0 %4476
        %4478 = vrot.lane.b32.xlu0 %v4357, 20
        %v4479 = vpop.permute.xlu0 %4478
        %4480 = vrot.lane.b32.xlu0 %v4360, 20
        %v4481 = vpop.permute.xlu0 %4480
        %4482 = vrot.lane.b32.xlu0 %v4363, 20
        %v4483 = vpop.permute.xlu0 %4482
        %vm4544 = vcmask 191648
        %4545 = vst.msk [vmem:[#allocation3] sm:$0xf] %vm4544, %v4365
        %4546 = vst.msk [vmem:[#allocation3 + $0x4] sm:$0xf] %vm4544, %v4367
        %4547 = vst.msk [vmem:[#allocation3 + $0x8] sm:$0xf] %vm4544, %v4369
        %4548 = vst.msk [vmem:[#allocation3 + $0xc] sm:$0xf] %vm4544, %v4371
        %4549 = vst.msk [vmem:[#allocation3 + $0x10] sm:$0xf] %vm4544, %v4373
        %4550 = vst.msk [vmem:[#allocation3 + $0x14] sm:$0xf] %vm4544, %v4375
        %4551 = vst.msk [vmem:[#allocation3 + $0x18] sm:$0xf] %vm4544, %v4377
        %4552 = vst.msk [vmem:[#allocation3 + $0x1c] sm:$0xf] %vm4544, %v4379
        %4553 = vst.msk [vmem:[#allocation3 + $0x20] sm:$0xf] %vm4544, %v4381
        %4554 = vst.msk [vmem:[#allocation3 + $0x24] sm:$0xf] %vm4544, %v4383
        %4555 = vst.msk [vmem:[#allocation3 + $0x28] sm:$0xf] %vm4544, %v4385
        %4556 = vst.msk [vmem:[#allocation3 + $0x2c] sm:$0xf] %vm4544, %v4387
        %4557 = vst.msk [vmem:[#allocation3 + $0x30] sm:$0xf] %vm4544, %v4389
        %4558 = vst.msk [vmem:[#allocation3 + $0x34] sm:$0xf] %vm4544, %v4391
        %4559 = vst.msk [vmem:[#allocation3 + $0x38] sm:$0xf] %vm4544, %v4393
        %4560 = vst.msk [vmem:[#allocation3 + $0x3c] sm:$0xf] %vm4544, %v4395
        %4561 = vst.msk [vmem:[#allocation3 + $0x40] sm:$0xf] %vm4544, %v4397
        %4562 = vst.msk [vmem:[#allocation3 + $0x44] sm:$0xf] %vm4544, %v4399
        %4563 = vst.msk [vmem:[#allocation3 + $0x48] sm:$0xf] %vm4544, %v4401
        %4564 = vst.msk [vmem:[#allocation3 + $0x4c] sm:$0xf] %vm4544, %v4403
        %4565 = vst.msk [vmem:[#allocation3 + $0x50] sm:$0xf] %vm4544, %v4405
        %4566 = vst.msk [vmem:[#allocation3 + $0x54] sm:$0xf] %vm4544, %v4407
        %4567 = vst.msk [vmem:[#allocation3 + $0x58] sm:$0xf] %vm4544, %v4409
        %4568 = vst.msk [vmem:[#allocation3 + $0x5c] sm:$0xf] %vm4544, %v4411
        %4569 = vst.msk [vmem:[#allocation3 + $0x60] sm:$0xf] %vm4544, %v4413
        %4570 = vst.msk [vmem:[#allocation3 + $0x64] sm:$0xf] %vm4544, %v4415
        %4571 = vst.msk [vmem:[#allocation3 + $0x68] sm:$0xf] %vm4544, %v4417
        %4572 = vst.msk [vmem:[#allocation3 + $0x6c] sm:$0xf] %vm4544, %v4419
        %4573 = vst.msk [vmem:[#allocation3 + $0x70] sm:$0xf] %vm4544, %v4421
        %4574 = vst.msk [vmem:[#allocation3 + $0x74] sm:$0xf] %vm4544, %v4423
        %4575 = vst.msk [vmem:[#allocation3 + $0x78] sm:$0xf] %vm4544, %v4425
        %4576 = vst.msk [vmem:[#allocation3 + $0x7c] sm:$0xf] %vm4544, %v4427
        %4577 = vst.msk [vmem:[#allocation3 + $0x80] sm:$0xf] %vm4544, %v4429
        %4578 = vst.msk [vmem:[#allocation3 + $0x84] sm:$0xf] %vm4544, %v4431
        %4579 = vst.msk [vmem:[#allocation3 + $0x88] sm:$0xf] %vm4544, %v4433
        %4580 = vst.msk [vmem:[#allocation3 + $0x8c] sm:$0xf] %vm4544, %v4435
        %4581 = vst.msk [vmem:[#allocation3 + $0x90] sm:$0xf] %vm4544, %v4437
        %4582 = vst.msk [vmem:[#allocation3 + $0x94] sm:$0xf] %vm4544, %v4439
        %4583 = vst.msk [vmem:[#allocation3 + $0x98] sm:$0xf] %vm4544, %v4441
        %4584 = vst.msk [vmem:[#allocation3 + $0x9c] sm:$0xf] %vm4544, %v4443
        %4585 = vst.msk [vmem:[#allocation3 + $0xa0] sm:$0xf] %vm4544, %v4445
        %4586 = vst.msk [vmem:[#allocation3 + $0xa4] sm:$0xf] %vm4544, %v4447
        %4587 = vst.msk [vmem:[#allocation3 + $0xa8] sm:$0xf] %vm4544, %v4449
        %4588 = vst.msk [vmem:[#allocation3 + $0xac] sm:$0xf] %vm4544, %v4451
        %4589 = vst.msk [vmem:[#allocation3 + $0xb0] sm:$0xf] %vm4544, %v4453
        %4590 = vst.msk [vmem:[#allocation3 + $0xb4] sm:$0xf] %vm4544, %v4455
        %4591 = vst.msk [vmem:[#allocation3 + $0xb8] sm:$0xf] %vm4544, %v4457
        %4592 = vst.msk [vmem:[#allocation3 + $0xbc] sm:$0xf] %vm4544, %v4459
        %4593 = vst.msk [vmem:[#allocation3 + $0xc0] sm:$0xf] %vm4544, %v4461
        %4594 = vst.msk [vmem:[#allocation3 + $0xc4] sm:$0xf] %vm4544, %v4463
        %4595 = vst.msk [vmem:[#allocation3 + $0xc8] sm:$0xf] %vm4544, %v4465
        %4596 = vst.msk [vmem:[#allocation3 + $0xcc] sm:$0xf] %vm4544, %v4467
        %4597 = vst.msk [vmem:[#allocation3 + $0xd0] sm:$0xf] %vm4544, %v4469
        %4598 = vst.msk [vmem:[#allocation3 + $0xd4] sm:$0xf] %vm4544, %v4471
        %4599 = vst.msk [vmem:[#allocation3 + $0xd8] sm:$0xf] %vm4544, %v4473
        %4600 = vst.msk [vmem:[#allocation3 + $0xdc] sm:$0xf] %vm4544, %v4475
        %4601 = vst.msk [vmem:[#allocation3 + $0xe0] sm:$0xf] %vm4544, %v4477
        %4602 = vst.msk [vmem:[#allocation3 + $0xe4] sm:$0xf] %vm4544, %v4479
        %4603 = vst.msk [vmem:[#allocation3 + $0xe8] sm:$0xf] %vm4544, %v4481
        %4604 = vst.msk [vmem:[#allocation3 + $0xec] sm:$0xf] %vm4544, %v4483
        %v4605 = vld [vmem:[#allocation2 + $0x10] sm:$0xc]
        %v4606 = vld [vmem:[#allocation2 + $0x14] sm:$0xf]
        %v4607 = vld [vmem:[#allocation2 + $0x18] sm:$0xf]
        %v4608 = vld [vmem:[#allocation2 + $0x1c] sm:$0xf]
        %v4609 = vld [vmem:[#allocation2 + $0x20] sm:$0xf]
        %v4610 = vld [vmem:[#allocation2 + $0x24] sm:$0xf]
        %v4611 = vld [vmem:[#allocation2 + $0x28] sm:$0xf]
        %v4612 = vld [vmem:[#allocation2 + $0x2c] sm:$0xf]
        %v4613 = vld [vmem:[#allocation2 + $0x30] sm:$0xf]
        %v4614 = vld [vmem:[#allocation2 + $0x34] sm:$0xf]
        %v4615 = vld [vmem:[#allocation2 + $0x38] sm:$0xf]
        %v4616 = vld [vmem:[#allocation2 + $0x3c] sm:$0xf]
        %v4617 = vld [vmem:[#allocation2 + $0x40] sm:$0xf]
        %v4618 = vld [vmem:[#allocation2 + $0x44] sm:$0xf]
        %v4619 = vld [vmem:[#allocation2 + $0x48] sm:$0xf]
        %v4620 = vld [vmem:[#allocation2 + $0x4c] sm:$0xf]
        %v4621 = vld [vmem:[#allocation2 + $0x50] sm:$0xf]
        %v4622 = vld [vmem:[#allocation2 + $0x54] sm:$0xf]
        %v4623 = vld [vmem:[#allocation2 + $0x58] sm:$0xf]
        %v4624 = vld [vmem:[#allocation2 + $0x5c] sm:$0xf]
        %v4625 = vld [vmem:[#allocation2 + $0x60] sm:$0xf]
        %v4626 = vld [vmem:[#allocation2 + $0x64] sm:$0xf]
        %v4627 = vld [vmem:[#allocation2 + $0x68] sm:$0xf]
        %v4628 = vld [vmem:[#allocation2 + $0x6c] sm:$0xf]
        %v4629 = vld [vmem:[#allocation2 + $0x70] sm:$0xf]
        %v4630 = vld [vmem:[#allocation2 + $0x74] sm:$0xf]
        %v4631 = vld [vmem:[#allocation2 + $0x78] sm:$0xf]
        %v4632 = vld [vmem:[#allocation2 + $0x7c] sm:$0xf]
        %v4633 = vld [vmem:[#allocation2 + $0x80] sm:$0xf]
        %v4634 = vld [vmem:[#allocation2 + $0x84] sm:$0xf]
        %v4635 = vld [vmem:[#allocation2 + $0x88] sm:$0xf]
        %v4636 = vld [vmem:[#allocation2 + $0x8c] sm:$0xf]
        %v4637 = vld [vmem:[#allocation2 + $0x90] sm:$0xf]
        %v4638 = vld [vmem:[#allocation2 + $0x94] sm:$0xf]
        %v4639 = vld [vmem:[#allocation2 + $0x98] sm:$0xf]
        %v4640 = vld [vmem:[#allocation2 + $0x9c] sm:$0xf]
        %v4641 = vld [vmem:[#allocation2 + $0xa0] sm:$0xf]
        %v4642 = vld [vmem:[#allocation2 + $0xa4] sm:$0xf]
        %v4643 = vld [vmem:[#allocation2 + $0xa8] sm:$0xf]
        %v4644 = vld [vmem:[#allocation2 + $0xac] sm:$0xf]
        %v4645 = vld [vmem:[#allocation2 + $0xb0] sm:$0xf]
        %v4646 = vld [vmem:[#allocation2 + $0xb4] sm:$0xf]
        %v4647 = vld [vmem:[#allocation2 + $0xb8] sm:$0xf]
        %v4648 = vld [vmem:[#allocation2 + $0xbc] sm:$0xf]
        %v4649 = vld [vmem:[#allocation2 + $0xc0] sm:$0xf]
        %v4650 = vld [vmem:[#allocation2 + $0xc4] sm:$0xf]
        %v4651 = vld [vmem:[#allocation2 + $0xc8] sm:$0xf]
        %v4652 = vld [vmem:[#allocation2 + $0xcc] sm:$0xf]
        %v4653 = vld [vmem:[#allocation2 + $0xd0] sm:$0xf]
        %v4654 = vld [vmem:[#allocation2 + $0xd4] sm:$0xf]
        %v4655 = vld [vmem:[#allocation2 + $0xd8] sm:$0xf]
        %v4656 = vld [vmem:[#allocation2 + $0xdc] sm:$0xf]
        %v4657 = vld [vmem:[#allocation2 + $0xe0] sm:$0xf]
        %v4658 = vld [vmem:[#allocation2 + $0xe4] sm:$0xf]
        %v4659 = vld [vmem:[#allocation2 + $0xe8] sm:$0xf]
        %v4660 = vld [vmem:[#allocation2 + $0xec] sm:$0xf]
        %v4661 = vld [vmem:[#allocation2 + $0xf0] sm:$0xf]
        %v4662 = vld [vmem:[#allocation2 + $0xf4] sm:$0xf]
        %v4663 = vld [vmem:[#allocation2 + $0xf8] sm:$0xf]
        %v4664 = vld [vmem:[#allocation2 + $0xfc] sm:$0xf]
        %v4665 = vld [vmem:[#allocation2 + $0x100] sm:$0x3]
        %v4727 = vrot.slane %v4605, 6
        %v4728 = vrot.slane %v4727, 4
        %v4729 = vrot.slane %v4606, 6
        %v4730 = vsel %vm4182, %v4728, %v4729
        %v4731 = vrot.slane %v4729, 4
        %v4732 = vrot.slane %v4607, 6
        %v4733 = vsel %vm4182, %v4731, %v4732
        %v4734 = vrot.slane %v4732, 4
        %v4735 = vrot.slane %v4608, 6
        %v4736 = vsel %vm4182, %v4734, %v4735
        %v4737 = vrot.slane %v4735, 4
        %v4738 = vrot.slane %v4609, 6
        %v4739 = vsel %vm4182, %v4737, %v4738
        %v4740 = vrot.slane %v4738, 4
        %v4741 = vrot.slane %v4610, 6
        %v4742 = vsel %vm4182, %v4740, %v4741
        %v4743 = vrot.slane %v4741, 4
        %v4744 = vrot.slane %v4611, 6
        %v4745 = vsel %vm4182, %v4743, %v4744
        %v4746 = vrot.slane %v4744, 4
        %v4747 = vrot.slane %v4612, 6
        %v4748 = vsel %vm4182, %v4746, %v4747
        %v4749 = vrot.slane %v4747, 4
        %v4750 = vrot.slane %v4613, 6
        %v4751 = vsel %vm4182, %v4749, %v4750
        %v4752 = vrot.slane %v4750, 4
        %v4753 = vrot.slane %v4614, 6
        %v4754 = vsel %vm4182, %v4752, %v4753
        %v4755 = vrot.slane %v4753, 4
        %v4756 = vrot.slane %v4615, 6
        %v4757 = vsel %vm4182, %v4755, %v4756
        %v4758 = vrot.slane %v4756, 4
        %v4759 = vrot.slane %v4616, 6
        %v4760 = vsel %vm4182, %v4758, %v4759
        %v4761 = vrot.slane %v4759, 4
        %v4762 = vrot.slane %v4617, 6
        %v4763 = vsel %vm4182, %v4761, %v4762
        %v4764 = vrot.slane %v4762, 4
        %v4765 = vrot.slane %v4618, 6
        %v4766 = vsel %vm4182, %v4764, %v4765
        %v4767 = vrot.slane %v4765, 4
        %v4768 = vrot.slane %v4619, 6
        %v4769 = vsel %vm4182, %v4767, %v4768
        %v4770 = vrot.slane %v4768, 4
        %v4771 = vrot.slane %v4620, 6
        %v4772 = vsel %vm4182, %v4770, %v4771
        %v4773 = vrot.slane %v4771, 4
        %v4774 = vrot.slane %v4621, 6
        %v4775 = vsel %vm4182, %v4773, %v4774
        %v4776 = vrot.slane %v4774, 4
        %v4777 = vrot.slane %v4622, 6
        %v4778 = vsel %vm4182, %v4776, %v4777
        %v4779 = vrot.slane %v4777, 4
        %v4780 = vrot.slane %v4623, 6
        %v4781 = vsel %vm4182, %v4779, %v4780
        %v4782 = vrot.slane %v4780, 4
        %v4783 = vrot.slane %v4624, 6
        %v4784 = vsel %vm4182, %v4782, %v4783
        %v4785 = vrot.slane %v4783, 4
        %v4786 = vrot.slane %v4625, 6
        %v4787 = vsel %vm4182, %v4785, %v4786
        %v4788 = vrot.slane %v4786, 4
        %v4789 = vrot.slane %v4626, 6
        %v4790 = vsel %vm4182, %v4788, %v4789
        %v4791 = vrot.slane %v4789, 4
        %v4792 = vrot.slane %v4627, 6
        %v4793 = vsel %vm4182, %v4791, %v4792
        %v4794 = vrot.slane %v4792, 4
        %v4795 = vrot.slane %v4628, 6
        %v4796 = vsel %vm4182, %v4794, %v4795
        %v4797 = vrot.slane %v4795, 4
        %v4798 = vrot.slane %v4629, 6
        %v4799 = vsel %vm4182, %v4797, %v4798
        %v4800 = vrot.slane %v4798, 4
        %v4801 = vrot.slane %v4630, 6
        %v4802 = vsel %vm4182, %v4800, %v4801
        %v4803 = vrot.slane %v4801, 4
        %v4804 = vrot.slane %v4631, 6
        %v4805 = vsel %vm4182, %v4803, %v4804
        %v4806 = vrot.slane %v4804, 4
        %v4807 = vrot.slane %v4632, 6
        %v4808 = vsel %vm4182, %v4806, %v4807
        %v4809 = vrot.slane %v4807, 4
        %v4810 = vrot.slane %v4633, 6
        %v4811 = vsel %vm4182, %v4809, %v4810
        %v4812 = vrot.slane %v4810, 4
        %v4813 = vrot.slane %v4634, 6
        %v4814 = vsel %vm4182, %v4812, %v4813
        %v4815 = vrot.slane %v4813, 4
        %v4816 = vrot.slane %v4635, 6
        %v4817 = vsel %vm4182, %v4815, %v4816
        %v4818 = vrot.slane %v4816, 4
        %v4819 = vrot.slane %v4636, 6
        %v4820 = vsel %vm4182, %v4818, %v4819
        %v4821 = vrot.slane %v4819, 4
        %v4822 = vrot.slane %v4637, 6
        %v4823 = vsel %vm4182, %v4821, %v4822
        %v4824 = vrot.slane %v4822, 4
        %v4825 = vrot.slane %v4638, 6
        %v4826 = vsel %vm4182, %v4824, %v4825
        %v4827 = vrot.slane %v4825, 4
        %v4828 = vrot.slane %v4639, 6
        %v4829 = vsel %vm4182, %v4827, %v4828
        %v4830 = vrot.slane %v4828, 4
        %v4831 = vrot.slane %v4640, 6
        %v4832 = vsel %vm4182, %v4830, %v4831
        %v4833 = vrot.slane %v4831, 4
        %v4834 = vrot.slane %v4641, 6
        %v4835 = vsel %vm4182, %v4833, %v4834
        %v4836 = vrot.slane %v4834, 4
        %v4837 = vrot.slane %v4642, 6
        %v4838 = vsel %vm4182, %v4836, %v4837
        %v4839 = vrot.slane %v4837, 4
        %v4840 = vrot.slane %v4643, 6
        %v4841 = vsel %vm4182, %v4839, %v4840
        %v4842 = vrot.slane %v4840, 4
        %v4843 = vrot.slane %v4644, 6
        %v4844 = vsel %vm4182, %v4842, %v4843
        %v4845 = vrot.slane %v4843, 4
        %v4846 = vrot.slane %v4645, 6
        %v4847 = vsel %vm4182, %v4845, %v4846
        %v4848 = vrot.slane %v4846, 4
        %v4849 = vrot.slane %v4646, 6
        %v4850 = vsel %vm4182, %v4848, %v4849
        %v4851 = vrot.slane %v4849, 4
        %v4852 = vrot.slane %v4647, 6
        %v4853 = vsel %vm4182, %v4851, %v4852
        %v4854 = vrot.slane %v4852, 4
        %v4855 = vrot.slane %v4648, 6
        %v4856 = vsel %vm4182, %v4854, %v4855
        %v4857 = vrot.slane %v4855, 4
        %v4858 = vrot.slane %v4649, 6
        %v4859 = vsel %vm4182, %v4857, %v4858
        %v4860 = vrot.slane %v4858, 4
        %v4861 = vrot.slane %v4650, 6
        %v4862 = vsel %vm4182, %v4860, %v4861
        %v4863 = vrot.slane %v4861, 4
        %v4864 = vrot.slane %v4651, 6
        %v4865 = vsel %vm4182, %v4863, %v4864
        %v4866 = vrot.slane %v4864, 4
        %v4867 = vrot.slane %v4652, 6
        %v4868 = vsel %vm4182, %v4866, %v4867
        %v4869 = vrot.slane %v4867, 4
        %v4870 = vrot.slane %v4653, 6
        %v4871 = vsel %vm4182, %v4869, %v4870
        %v4872 = vrot.slane %v4870, 4
        %v4873 = vrot.slane %v4654, 6
        %v4874 = vsel %vm4182, %v4872, %v4873
        %v4875 = vrot.slane %v4873, 4
        %v4876 = vrot.slane %v4655, 6
        %v4877 = vsel %vm4182, %v4875, %v4876
        %v4878 = vrot.slane %v4876, 4
        %v4879 = vrot.slane %v4656, 6
        %v4880 = vsel %vm4182, %v4878, %v4879
        %v4881 = vrot.slane %v4879, 4
        %v4882 = vrot.slane %v4657, 6
        %v4883 = vsel %vm4182, %v4881, %v4882
        %v4884 = vrot.slane %v4882, 4
        %v4885 = vrot.slane %v4658, 6
        %v4886 = vsel %vm4182, %v4884, %v4885
        %v4887 = vrot.slane %v4885, 4
        %v4888 = vrot.slane %v4659, 6
        %v4889 = vsel %vm4182, %v4887, %v4888
        %v4890 = vrot.slane %v4888, 4
        %v4891 = vrot.slane %v4660, 6
        %v4892 = vsel %vm4182, %v4890, %v4891
        %v4893 = vrot.slane %v4891, 4
        %v4894 = vrot.slane %v4661, 6
        %v4895 = vsel %vm4182, %v4893, %v4894
        %v4896 = vrot.slane %v4894, 4
        %v4897 = vrot.slane %v4662, 6
        %v4898 = vsel %vm4182, %v4896, %v4897
        %v4899 = vrot.slane %v4897, 4
        %v4900 = vrot.slane %v4663, 6
        %v4901 = vsel %vm4182, %v4899, %v4900
        %v4902 = vrot.slane %v4900, 4
        %v4903 = vrot.slane %v4664, 6
        %v4904 = vsel %vm4182, %v4902, %v4903
        %v4905 = vrot.slane %v4903, 4
        %v4906 = vrot.slane %v4665, 6
        %v4907 = vsel %vm4182, %v4905, %v4906
        %4908 = vrot.lane.b32.xlu0 %v4730, 24
        %v4909 = vpop.permute.xlu0 %4908
        %4910 = vrot.lane.b32.xlu0 %v4733, 24
        %v4911 = vpop.permute.xlu0 %4910
        %4912 = vrot.lane.b32.xlu0 %v4736, 24
        %v4913 = vpop.permute.xlu0 %4912
        %4914 = vrot.lane.b32.xlu0 %v4739, 24
        %v4915 = vpop.permute.xlu0 %4914
        %4916 = vrot.lane.b32.xlu0 %v4742, 24
        %v4917 = vpop.permute.xlu0 %4916
        %4918 = vrot.lane.b32.xlu0 %v4745, 24
        %v4919 = vpop.permute.xlu0 %4918
        %4920 = vrot.lane.b32.xlu0 %v4748, 24
        %v4921 = vpop.permute.xlu0 %4920
        %4922 = vrot.lane.b32.xlu0 %v4751, 24
        %v4923 = vpop.permute.xlu0 %4922
        %4924 = vrot.lane.b32.xlu0 %v4754, 24
        %v4925 = vpop.permute.xlu0 %4924
        %4926 = vrot.lane.b32.xlu0 %v4757, 24
        %v4927 = vpop.permute.xlu0 %4926
        %4928 = vrot.lane.b32.xlu0 %v4760, 24
        %v4929 = vpop.permute.xlu0 %4928
        %4930 = vrot.lane.b32.xlu0 %v4763, 24
        %v4931 = vpop.permute.xlu0 %4930
        %4932 = vrot.lane.b32.xlu0 %v4766, 24
        %v4933 = vpop.permute.xlu0 %4932
        %4934 = vrot.lane.b32.xlu0 %v4769, 24
        %v4935 = vpop.permute.xlu0 %4934
        %4936 = vrot.lane.b32.xlu0 %v4772, 24
        %v4937 = vpop.permute.xlu0 %4936
        %4938 = vrot.lane.b32.xlu0 %v4775, 24
        %v4939 = vpop.permute.xlu0 %4938
        %4940 = vrot.lane.b32.xlu0 %v4778, 24
        %v4941 = vpop.permute.xlu0 %4940
        %4942 = vrot.lane.b32.xlu0 %v4781, 24
        %v4943 = vpop.permute.xlu0 %4942
        %4944 = vrot.lane.b32.xlu0 %v4784, 24
        %v4945 = vpop.permute.xlu0 %4944
        %4946 = vrot.lane.b32.xlu0 %v4787, 24
        %v4947 = vpop.permute.xlu0 %4946
        %4948 = vrot.lane.b32.xlu0 %v4790, 24
        %v4949 = vpop.permute.xlu0 %4948
        %4950 = vrot.lane.b32.xlu0 %v4793, 24
        %v4951 = vpop.permute.xlu0 %4950
        %4952 = vrot.lane.b32.xlu0 %v4796, 24
        %v4953 = vpop.permute.xlu0 %4952
        %4954 = vrot.lane.b32.xlu0 %v4799, 24
        %v4955 = vpop.permute.xlu0 %4954
        %4956 = vrot.lane.b32.xlu0 %v4802, 24
        %v4957 = vpop.permute.xlu0 %4956
        %4958 = vrot.lane.b32.xlu0 %v4805, 24
        %v4959 = vpop.permute.xlu0 %4958
        %4960 = vrot.lane.b32.xlu0 %v4808, 24
        %v4961 = vpop.permute.xlu0 %4960
        %4962 = vrot.lane.b32.xlu0 %v4811, 24
        %v4963 = vpop.permute.xlu0 %4962
        %4964 = vrot.lane.b32.xlu0 %v4814, 24
        %v4965 = vpop.permute.xlu0 %4964
        %4966 = vrot.lane.b32.xlu0 %v4817, 24
        %v4967 = vpop.permute.xlu0 %4966
        %4968 = vrot.lane.b32.xlu0 %v4820, 24
        %v4969 = vpop.permute.xlu0 %4968
        %4970 = vrot.lane.b32.xlu0 %v4823, 24
        %v4971 = vpop.permute.xlu0 %4970
        %4972 = vrot.lane.b32.xlu0 %v4826, 24
        %v4973 = vpop.permute.xlu0 %4972
        %4974 = vrot.lane.b32.xlu0 %v4829, 24
        %v4975 = vpop.permute.xlu0 %4974
        %4976 = vrot.lane.b32.xlu0 %v4832, 24
        %v4977 = vpop.permute.xlu0 %4976
        %4978 = vrot.lane.b32.xlu0 %v4835, 24
        %v4979 = vpop.permute.xlu0 %4978
        %4980 = vrot.lane.b32.xlu0 %v4838, 24
        %v4981 = vpop.permute.xlu0 %4980
        %4982 = vrot.lane.b32.xlu0 %v4841, 24
        %v4983 = vpop.permute.xlu0 %4982
        %4984 = vrot.lane.b32.xlu0 %v4844, 24
        %v4985 = vpop.permute.xlu0 %4984
        %4986 = vrot.lane.b32.xlu0 %v4847, 24
        %v4987 = vpop.permute.xlu0 %4986
        %4988 = vrot.lane.b32.xlu0 %v4850, 24
        %v4989 = vpop.permute.xlu0 %4988
        %4990 = vrot.lane.b32.xlu0 %v4853, 24
        %v4991 = vpop.permute.xlu0 %4990
        %4992 = vrot.lane.b32.xlu0 %v4856, 24
        %v4993 = vpop.permute.xlu0 %4992
        %4994 = vrot.lane.b32.xlu0 %v4859, 24
        %v4995 = vpop.permute.xlu0 %4994
        %4996 = vrot.lane.b32.xlu0 %v4862, 24
        %v4997 = vpop.permute.xlu0 %4996
        %4998 = vrot.lane.b32.xlu0 %v4865, 24
        %v4999 = vpop.permute.xlu0 %4998
        %5000 = vrot.lane.b32.xlu0 %v4868, 24
        %v5001 = vpop.permute.xlu0 %5000
        %5002 = vrot.lane.b32.xlu0 %v4871, 24
        %v5003 = vpop.permute.xlu0 %5002
        %5004 = vrot.lane.b32.xlu0 %v4874, 24
        %v5005 = vpop.permute.xlu0 %5004
        %5006 = vrot.lane.b32.xlu0 %v4877, 24
        %v5007 = vpop.permute.xlu0 %5006
        %5008 = vrot.lane.b32.xlu0 %v4880, 24
        %v5009 = vpop.permute.xlu0 %5008
        %5010 = vrot.lane.b32.xlu0 %v4883, 24
        %v5011 = vpop.permute.xlu0 %5010
        %5012 = vrot.lane.b32.xlu0 %v4886, 24
        %v5013 = vpop.permute.xlu0 %5012
        %5014 = vrot.lane.b32.xlu0 %v4889, 24
        %v5015 = vpop.permute.xlu0 %5014
        %5016 = vrot.lane.b32.xlu0 %v4892, 24
        %v5017 = vpop.permute.xlu0 %5016
        %5018 = vrot.lane.b32.xlu0 %v4895, 24
        %v5019 = vpop.permute.xlu0 %5018
        %5020 = vrot.lane.b32.xlu0 %v4898, 24
        %v5021 = vpop.permute.xlu0 %5020
        %5022 = vrot.lane.b32.xlu0 %v4901, 24
        %v5023 = vpop.permute.xlu0 %5022
        %5024 = vrot.lane.b32.xlu0 %v4904, 24
        %v5025 = vpop.permute.xlu0 %5024
        %5026 = vrot.lane.b32.xlu0 %v4907, 24
        %v5027 = vpop.permute.xlu0 %5026
        %vm5088 = vcmask 224448
        %5089 = vst.msk [vmem:[#allocation3] sm:$0xf] %vm5088, %v4909
        %5090 = vst.msk [vmem:[#allocation3 + $0x4] sm:$0xf] %vm5088, %v4911
        %5091 = vst.msk [vmem:[#allocation3 + $0x8] sm:$0xf] %vm5088, %v4913
        %5092 = vst.msk [vmem:[#allocation3 + $0xc] sm:$0xf] %vm5088, %v4915
        %5093 = vst.msk [vmem:[#allocation3 + $0x10] sm:$0xf] %vm5088, %v4917
        %5094 = vst.msk [vmem:[#allocation3 + $0x14] sm:$0xf] %vm5088, %v4919
        %5095 = vst.msk [vmem:[#allocation3 + $0x18] sm:$0xf] %vm5088, %v4921
        %5096 = vst.msk [vmem:[#allocation3 + $0x1c] sm:$0xf] %vm5088, %v4923
        %5097 = vst.msk [vmem:[#allocation3 + $0x20] sm:$0xf] %vm5088, %v4925
        %5098 = vst.msk [vmem:[#allocation3 + $0x24] sm:$0xf] %vm5088, %v4927
        %5099 = vst.msk [vmem:[#allocation3 + $0x28] sm:$0xf] %vm5088, %v4929
        %5100 = vst.msk [vmem:[#allocation3 + $0x2c] sm:$0xf] %vm5088, %v4931
        %5101 = vst.msk [vmem:[#allocation3 + $0x30] sm:$0xf] %vm5088, %v4933
        %5102 = vst.msk [vmem:[#allocation3 + $0x34] sm:$0xf] %vm5088, %v4935
        %5103 = vst.msk [vmem:[#allocation3 + $0x38] sm:$0xf] %vm5088, %v4937
        %5104 = vst.msk [vmem:[#allocation3 + $0x3c] sm:$0xf] %vm5088, %v4939
        %5105 = vst.msk [vmem:[#allocation3 + $0x40] sm:$0xf] %vm5088, %v4941
        %5106 = vst.msk [vmem:[#allocation3 + $0x44] sm:$0xf] %vm5088, %v4943
        %5107 = vst.msk [vmem:[#allocation3 + $0x48] sm:$0xf] %vm5088, %v4945
        %5108 = vst.msk [vmem:[#allocation3 + $0x4c] sm:$0xf] %vm5088, %v4947
        %5109 = vst.msk [vmem:[#allocation3 + $0x50] sm:$0xf] %vm5088, %v4949
        %5110 = vst.msk [vmem:[#allocation3 + $0x54] sm:$0xf] %vm5088, %v4951
        %5111 = vst.msk [vmem:[#allocation3 + $0x58] sm:$0xf] %vm5088, %v4953
        %5112 = vst.msk [vmem:[#allocation3 + $0x5c] sm:$0xf] %vm5088, %v4955
        %5113 = vst.msk [vmem:[#allocation3 + $0x60] sm:$0xf] %vm5088, %v4957
        %5114 = vst.msk [vmem:[#allocation3 + $0x64] sm:$0xf] %vm5088, %v4959
        %5115 = vst.msk [vmem:[#allocation3 + $0x68] sm:$0xf] %vm5088, %v4961
        %5116 = vst.msk [vmem:[#allocation3 + $0x6c] sm:$0xf] %vm5088, %v4963
        %5117 = vst.msk [vmem:[#allocation3 + $0x70] sm:$0xf] %vm5088, %v4965
        %5118 = vst.msk [vmem:[#allocation3 + $0x74] sm:$0xf] %vm5088, %v4967
        %5119 = vst.msk [vmem:[#allocation3 + $0x78] sm:$0xf] %vm5088, %v4969
        %5120 = vst.msk [vmem:[#allocation3 + $0x7c] sm:$0xf] %vm5088, %v4971
        %5121 = vst.msk [vmem:[#allocation3 + $0x80] sm:$0xf] %vm5088, %v4973
        %5122 = vst.msk [vmem:[#allocation3 + $0x84] sm:$0xf] %vm5088, %v4975
        %5123 = vst.msk [vmem:[#allocation3 + $0x88] sm:$0xf] %vm5088, %v4977
        %5124 = vst.msk [vmem:[#allocation3 + $0x8c] sm:$0xf] %vm5088, %v4979
        %5125 = vst.msk [vmem:[#allocation3 + $0x90] sm:$0xf] %vm5088, %v4981
        %5126 = vst.msk [vmem:[#allocation3 + $0x94] sm:$0xf] %vm5088, %v4983
        %5127 = vst.msk [vmem:[#allocation3 + $0x98] sm:$0xf] %vm5088, %v4985
        %5128 = vst.msk [vmem:[#allocation3 + $0x9c] sm:$0xf] %vm5088, %v4987
        %5129 = vst.msk [vmem:[#allocation3 + $0xa0] sm:$0xf] %vm5088, %v4989
        %5130 = vst.msk [vmem:[#allocation3 + $0xa4] sm:$0xf] %vm5088, %v4991
        %5131 = vst.msk [vmem:[#allocation3 + $0xa8] sm:$0xf] %vm5088, %v4993
        %5132 = vst.msk [vmem:[#allocation3 + $0xac] sm:$0xf] %vm5088, %v4995
        %5133 = vst.msk [vmem:[#allocation3 + $0xb0] sm:$0xf] %vm5088, %v4997
        %5134 = vst.msk [vmem:[#allocation3 + $0xb4] sm:$0xf] %vm5088, %v4999
        %5135 = vst.msk [vmem:[#allocation3 + $0xb8] sm:$0xf] %vm5088, %v5001
        %5136 = vst.msk [vmem:[#allocation3 + $0xbc] sm:$0xf] %vm5088, %v5003
        %5137 = vst.msk [vmem:[#allocation3 + $0xc0] sm:$0xf] %vm5088, %v5005
        %5138 = vst.msk [vmem:[#allocation3 + $0xc4] sm:$0xf] %vm5088, %v5007
        %5139 = vst.msk [vmem:[#allocation3 + $0xc8] sm:$0xf] %vm5088, %v5009
        %5140 = vst.msk [vmem:[#allocation3 + $0xcc] sm:$0xf] %vm5088, %v5011
        %5141 = vst.msk [vmem:[#allocation3 + $0xd0] sm:$0xf] %vm5088, %v5013
        %5142 = vst.msk [vmem:[#allocation3 + $0xd4] sm:$0xf] %vm5088, %v5015
        %5143 = vst.msk [vmem:[#allocation3 + $0xd8] sm:$0xf] %vm5088, %v5017
        %5144 = vst.msk [vmem:[#allocation3 + $0xdc] sm:$0xf] %vm5088, %v5019
        %5145 = vst.msk [vmem:[#allocation3 + $0xe0] sm:$0xf] %vm5088, %v5021
        %5146 = vst.msk [vmem:[#allocation3 + $0xe4] sm:$0xf] %vm5088, %v5023
        %5147 = vst.msk [vmem:[#allocation3 + $0xe8] sm:$0xf] %vm5088, %v5025
        %5148 = vst.msk [vmem:[#allocation3 + $0xec] sm:$0xf] %vm5088, %v5027
        %v5149 = vld [vmem:[#allocation2 + $0x10] sm:$0xc]
        %v5150 = vld [vmem:[#allocation2 + $0x14] sm:$0xf]
        %v5151 = vld [vmem:[#allocation2 + $0x18] sm:$0xf]
        %v5152 = vld [vmem:[#allocation2 + $0x1c] sm:$0xf]
        %v5153 = vld [vmem:[#allocation2 + $0x20] sm:$0xf]
        %v5154 = vld [vmem:[#allocation2 + $0x24] sm:$0xf]
        %v5155 = vld [vmem:[#allocation2 + $0x28] sm:$0xf]
        %v5156 = vld [vmem:[#allocation2 + $0x2c] sm:$0xf]
        %v5157 = vld [vmem:[#allocation2 + $0x30] sm:$0xf]
        %v5158 = vld [vmem:[#allocation2 + $0x34] sm:$0xf]
        %v5159 = vld [vmem:[#allocation2 + $0x38] sm:$0xf]
        %v5160 = vld [vmem:[#allocation2 + $0x3c] sm:$0xf]
        %v5161 = vld [vmem:[#allocation2 + $0x40] sm:$0xf]
        %v5162 = vld [vmem:[#allocation2 + $0x44] sm:$0xf]
        %v5163 = vld [vmem:[#allocation2 + $0x48] sm:$0xf]
        %v5164 = vld [vmem:[#allocation2 + $0x4c] sm:$0xf]
        %v5165 = vld [vmem:[#allocation2 + $0x50] sm:$0xf]
        %v5166 = vld [vmem:[#allocation2 + $0x54] sm:$0xf]
        %v5167 = vld [vmem:[#allocation2 + $0x58] sm:$0xf]
        %v5168 = vld [vmem:[#allocation2 + $0x5c] sm:$0xf]
        %v5169 = vld [vmem:[#allocation2 + $0x60] sm:$0xf]
        %v5170 = vld [vmem:[#allocation2 + $0x64] sm:$0xf]
        %v5171 = vld [vmem:[#allocation2 + $0x68] sm:$0xf]
        %v5172 = vld [vmem:[#allocation2 + $0x6c] sm:$0xf]
        %v5173 = vld [vmem:[#allocation2 + $0x70] sm:$0xf]
        %v5174 = vld [vmem:[#allocation2 + $0x74] sm:$0xf]
        %v5175 = vld [vmem:[#allocation2 + $0x78] sm:$0xf]
        %v5176 = vld [vmem:[#allocation2 + $0x7c] sm:$0xf]
        %v5177 = vld [vmem:[#allocation2 + $0x80] sm:$0xf]
        %v5178 = vld [vmem:[#allocation2 + $0x84] sm:$0xf]
        %v5179 = vld [vmem:[#allocation2 + $0x88] sm:$0xf]
        %v5180 = vld [vmem:[#allocation2 + $0x8c] sm:$0xf]
        %v5181 = vld [vmem:[#allocation2 + $0x90] sm:$0xf]
        %v5182 = vld [vmem:[#allocation2 + $0x94] sm:$0xf]
        %v5183 = vld [vmem:[#allocation2 + $0x98] sm:$0xf]
        %v5184 = vld [vmem:[#allocation2 + $0x9c] sm:$0xf]
        %v5185 = vld [vmem:[#allocation2 + $0xa0] sm:$0xf]
        %v5186 = vld [vmem:[#allocation2 + $0xa4] sm:$0xf]
        %v5187 = vld [vmem:[#allocation2 + $0xa8] sm:$0xf]
        %v5188 = vld [vmem:[#allocation2 + $0xac] sm:$0xf]
        %v5189 = vld [vmem:[#allocation2 + $0xb0] sm:$0xf]
        %v5190 = vld [vmem:[#allocation2 + $0xb4] sm:$0xf]
        %v5191 = vld [vmem:[#allocation2 + $0xb8] sm:$0xf]
        %v5192 = vld [vmem:[#allocation2 + $0xbc] sm:$0xf]
        %v5193 = vld [vmem:[#allocation2 + $0xc0] sm:$0xf]
        %v5194 = vld [vmem:[#allocation2 + $0xc4] sm:$0xf]
        %v5195 = vld [vmem:[#allocation2 + $0xc8] sm:$0xf]
        %v5196 = vld [vmem:[#allocation2 + $0xcc] sm:$0xf]
        %v5197 = vld [vmem:[#allocation2 + $0xd0] sm:$0xf]
        %v5198 = vld [vmem:[#allocation2 + $0xd4] sm:$0xf]
        %v5199 = vld [vmem:[#allocation2 + $0xd8] sm:$0xf]
        %v5200 = vld [vmem:[#allocation2 + $0xdc] sm:$0xf]
        %v5201 = vld [vmem:[#allocation2 + $0xe0] sm:$0xf]
        %v5202 = vld [vmem:[#allocation2 + $0xe4] sm:$0xf]
        %v5203 = vld [vmem:[#allocation2 + $0xe8] sm:$0xf]
        %v5204 = vld [vmem:[#allocation2 + $0xec] sm:$0xf]
        %v5205 = vld [vmem:[#allocation2 + $0xf0] sm:$0xf]
        %v5206 = vld [vmem:[#allocation2 + $0xf4] sm:$0xf]
        %v5207 = vld [vmem:[#allocation2 + $0xf8] sm:$0xf]
        %v5208 = vld [vmem:[#allocation2 + $0xfc] sm:$0xf]
        %v5209 = vld [vmem:[#allocation2 + $0x100] sm:$0x7]
        %vm5210 = vsmask.f32 1280
        %vm5211 = vsmask.f32 5392
        %vm5212 = vmor %vm5210, %vm5211
        %v5214 = vshrl.u32 %v5149, 16
        %v5216 = vrot.slane %v5214, 6
        %v5217 = vshll.u32 %v5149, 16
        %v5219 = vrot.slane %v5217, 7
        %v5220 = vor.u32 %v5216, %v5219
        %v5221 = vrot.slane %v5220, 4
        %v5223 = vshrl.u32 %v5150, 16
        %v5225 = vrot.slane %v5223, 6
        %v5226 = vshll.u32 %v5150, 16
        %v5228 = vrot.slane %v5226, 7
        %v5229 = vor.u32 %v5225, %v5228
        %v5230 = vsel %vm5212, %v5221, %v5229
        %v5231 = vrot.slane %v5229, 4
        %v5233 = vshrl.u32 %v5151, 16
        %v5235 = vrot.slane %v5233, 6
        %v5236 = vshll.u32 %v5151, 16
        %v5238 = vrot.slane %v5236, 7
        %v5239 = vor.u32 %v5235, %v5238
        %v5240 = vsel %vm5212, %v5231, %v5239
        %v5241 = vrot.slane %v5239, 4
        %v5243 = vshrl.u32 %v5152, 16
        %v5245 = vrot.slane %v5243, 6
        %v5246 = vshll.u32 %v5152, 16
        %v5248 = vrot.slane %v5246, 7
        %v5249 = vor.u32 %v5245, %v5248
        %v5250 = vsel %vm5212, %v5241, %v5249
        %v5251 = vrot.slane %v5249, 4
        %v5253 = vshrl.u32 %v5153, 16
        %v5255 = vrot.slane %v5253, 6
        %v5256 = vshll.u32 %v5153, 16
        %v5258 = vrot.slane %v5256, 7
        %v5259 = vor.u32 %v5255, %v5258
        %v5260 = vsel %vm5212, %v5251, %v5259
        %v5261 = vrot.slane %v5259, 4
        %v5263 = vshrl.u32 %v5154, 16
        %v5265 = vrot.slane %v5263, 6
        %v5266 = vshll.u32 %v5154, 16
        %v5268 = vrot.slane %v5266, 7
        %v5269 = vor.u32 %v5265, %v5268
        %v5270 = vsel %vm5212, %v5261, %v5269
        %v5271 = vrot.slane %v5269, 4
        %v5273 = vshrl.u32 %v5155, 16
        %v5275 = vrot.slane %v5273, 6
        %v5276 = vshll.u32 %v5155, 16
        %v5278 = vrot.slane %v5276, 7
        %v5279 = vor.u32 %v5275, %v5278
        %v5280 = vsel %vm5212, %v5271, %v5279
        %v5281 = vrot.slane %v5279, 4
        %v5283 = vshrl.u32 %v5156, 16
        %v5285 = vrot.slane %v5283, 6
        %v5286 = vshll.u32 %v5156, 16
        %v5288 = vrot.slane %v5286, 7
        %v5289 = vor.u32 %v5285, %v5288
        %v5290 = vsel %vm5212, %v5281, %v5289
        %v5291 = vrot.slane %v5289, 4
        %v5293 = vshrl.u32 %v5157, 16
        %v5295 = vrot.slane %v5293, 6
        %v5296 = vshll.u32 %v5157, 16
        %v5298 = vrot.slane %v5296, 7
        %v5299 = vor.u32 %v5295, %v5298
        %v5300 = vsel %vm5212, %v5291, %v5299
        %v5301 = vrot.slane %v5299, 4
        %v5303 = vshrl.u32 %v5158, 16
        %v5305 = vrot.slane %v5303, 6
        %v5306 = vshll.u32 %v5158, 16
        %v5308 = vrot.slane %v5306, 7
        %v5309 = vor.u32 %v5305, %v5308
        %v5310 = vsel %vm5212, %v5301, %v5309
        %v5311 = vrot.slane %v5309, 4
        %v5313 = vshrl.u32 %v5159, 16
        %v5315 = vrot.slane %v5313, 6
        %v5316 = vshll.u32 %v5159, 16
        %v5318 = vrot.slane %v5316, 7
        %v5319 = vor.u32 %v5315, %v5318
        %v5320 = vsel %vm5212, %v5311, %v5319
        %v5321 = vrot.slane %v5319, 4
        %v5323 = vshrl.u32 %v5160, 16
        %v5325 = vrot.slane %v5323, 6
        %v5326 = vshll.u32 %v5160, 16
        %v5328 = vrot.slane %v5326, 7
        %v5329 = vor.u32 %v5325, %v5328
        %v5330 = vsel %vm5212, %v5321, %v5329
        %v5331 = vrot.slane %v5329, 4
        %v5333 = vshrl.u32 %v5161, 16
        %v5335 = vrot.slane %v5333, 6
        %v5336 = vshll.u32 %v5161, 16
        %v5338 = vrot.slane %v5336, 7
        %v5339 = vor.u32 %v5335, %v5338
        %v5340 = vsel %vm5212, %v5331, %v5339
        %v5341 = vrot.slane %v5339, 4
        %v5343 = vshrl.u32 %v5162, 16
        %v5345 = vrot.slane %v5343, 6
        %v5346 = vshll.u32 %v5162, 16
        %v5348 = vrot.slane %v5346, 7
        %v5349 = vor.u32 %v5345, %v5348
        %v5350 = vsel %vm5212, %v5341, %v5349
        %v5351 = vrot.slane %v5349, 4
        %v5353 = vshrl.u32 %v5163, 16
        %v5355 = vrot.slane %v5353, 6
        %v5356 = vshll.u32 %v5163, 16
        %v5358 = vrot.slane %v5356, 7
        %v5359 = vor.u32 %v5355, %v5358
        %v5360 = vsel %vm5212, %v5351, %v5359
        %v5361 = vrot.slane %v5359, 4
        %v5363 = vshrl.u32 %v5164, 16
        %v5365 = vrot.slane %v5363, 6
        %v5366 = vshll.u32 %v5164, 16
        %v5368 = vrot.slane %v5366, 7
        %v5369 = vor.u32 %v5365, %v5368
        %v5370 = vsel %vm5212, %v5361, %v5369
        %v5371 = vrot.slane %v5369, 4
        %v5373 = vshrl.u32 %v5165, 16
        %v5375 = vrot.slane %v5373, 6
        %v5376 = vshll.u32 %v5165, 16
        %v5378 = vrot.slane %v5376, 7
        %v5379 = vor.u32 %v5375, %v5378
        %v5380 = vsel %vm5212, %v5371, %v5379
        %v5381 = vrot.slane %v5379, 4
        %v5383 = vshrl.u32 %v5166, 16
        %v5385 = vrot.slane %v5383, 6
        %v5386 = vshll.u32 %v5166, 16
        %v5388 = vrot.slane %v5386, 7
        %v5389 = vor.u32 %v5385, %v5388
        %v5390 = vsel %vm5212, %v5381, %v5389
        %v5391 = vrot.slane %v5389, 4
        %v5393 = vshrl.u32 %v5167, 16
        %v5395 = vrot.slane %v5393, 6
        %v5396 = vshll.u32 %v5167, 16
        %v5398 = vrot.slane %v5396, 7
        %v5399 = vor.u32 %v5395, %v5398
        %v5400 = vsel %vm5212, %v5391, %v5399
        %v5401 = vrot.slane %v5399, 4
        %v5403 = vshrl.u32 %v5168, 16
        %v5405 = vrot.slane %v5403, 6
        %v5406 = vshll.u32 %v5168, 16
        %v5408 = vrot.slane %v5406, 7
        %v5409 = vor.u32 %v5405, %v5408
        %v5410 = vsel %vm5212, %v5401, %v5409
        %v5411 = vrot.slane %v5409, 4
        %v5413 = vshrl.u32 %v5169, 16
        %v5415 = vrot.slane %v5413, 6
        %v5416 = vshll.u32 %v5169, 16
        %v5418 = vrot.slane %v5416, 7
        %v5419 = vor.u32 %v5415, %v5418
        %v5420 = vsel %vm5212, %v5411, %v5419
        %v5421 = vrot.slane %v5419, 4
        %v5423 = vshrl.u32 %v5170, 16
        %v5425 = vrot.slane %v5423, 6
        %v5426 = vshll.u32 %v5170, 16
        %v5428 = vrot.slane %v5426, 7
        %v5429 = vor.u32 %v5425, %v5428
        %v5430 = vsel %vm5212, %v5421, %v5429
        %v5431 = vrot.slane %v5429, 4
        %v5433 = vshrl.u32 %v5171, 16
        %v5435 = vrot.slane %v5433, 6
        %v5436 = vshll.u32 %v5171, 16
        %v5438 = vrot.slane %v5436, 7
        %v5439 = vor.u32 %v5435, %v5438
        %v5440 = vsel %vm5212, %v5431, %v5439
        %v5441 = vrot.slane %v5439, 4
        %v5443 = vshrl.u32 %v5172, 16
        %v5445 = vrot.slane %v5443, 6
        %v5446 = vshll.u32 %v5172, 16
        %v5448 = vrot.slane %v5446, 7
        %v5449 = vor.u32 %v5445, %v5448
        %v5450 = vsel %vm5212, %v5441, %v5449
        %v5451 = vrot.slane %v5449, 4
        %v5453 = vshrl.u32 %v5173, 16
        %v5455 = vrot.slane %v5453, 6
        %v5456 = vshll.u32 %v5173, 16
        %v5458 = vrot.slane %v5456, 7
        %v5459 = vor.u32 %v5455, %v5458
        %v5460 = vsel %vm5212, %v5451, %v5459
        %v5461 = vrot.slane %v5459, 4
        %v5463 = vshrl.u32 %v5174, 16
        %v5465 = vrot.slane %v5463, 6
        %v5466 = vshll.u32 %v5174, 16
        %v5468 = vrot.slane %v5466, 7
        %v5469 = vor.u32 %v5465, %v5468
        %v5470 = vsel %vm5212, %v5461, %v5469
        %v5471 = vrot.slane %v5469, 4
        %v5473 = vshrl.u32 %v5175, 16
        %v5475 = vrot.slane %v5473, 6
        %v5476 = vshll.u32 %v5175, 16
        %v5478 = vrot.slane %v5476, 7
        %v5479 = vor.u32 %v5475, %v5478
        %v5480 = vsel %vm5212, %v5471, %v5479
        %v5481 = vrot.slane %v5479, 4
        %v5483 = vshrl.u32 %v5176, 16
        %v5485 = vrot.slane %v5483, 6
        %v5486 = vshll.u32 %v5176, 16
        %v5488 = vrot.slane %v5486, 7
        %v5489 = vor.u32 %v5485, %v5488
        %v5490 = vsel %vm5212, %v5481, %v5489
        %v5491 = vrot.slane %v5489, 4
        %v5493 = vshrl.u32 %v5177, 16
        %v5495 = vrot.slane %v5493, 6
        %v5496 = vshll.u32 %v5177, 16
        %v5498 = vrot.slane %v5496, 7
        %v5499 = vor.u32 %v5495, %v5498
        %v5500 = vsel %vm5212, %v5491, %v5499
        %v5501 = vrot.slane %v5499, 4
        %v5503 = vshrl.u32 %v5178, 16
        %v5505 = vrot.slane %v5503, 6
        %v5506 = vshll.u32 %v5178, 16
        %v5508 = vrot.slane %v5506, 7
        %v5509 = vor.u32 %v5505, %v5508
        %v5510 = vsel %vm5212, %v5501, %v5509
        %v5511 = vrot.slane %v5509, 4
        %v5513 = vshrl.u32 %v5179, 16
        %v5515 = vrot.slane %v5513, 6
        %v5516 = vshll.u32 %v5179, 16
        %v5518 = vrot.slane %v5516, 7
        %v5519 = vor.u32 %v5515, %v5518
        %v5520 = vsel %vm5212, %v5511, %v5519
        %v5521 = vrot.slane %v5519, 4
        %v5523 = vshrl.u32 %v5180, 16
        %v5525 = vrot.slane %v5523, 6
        %v5526 = vshll.u32 %v5180, 16
        %v5528 = vrot.slane %v5526, 7
        %v5529 = vor.u32 %v5525, %v5528
        %v5530 = vsel %vm5212, %v5521, %v5529
        %v5531 = vrot.slane %v5529, 4
        %v5533 = vshrl.u32 %v5181, 16
        %v5535 = vrot.slane %v5533, 6
        %v5536 = vshll.u32 %v5181, 16
        %v5538 = vrot.slane %v5536, 7
        %v5539 = vor.u32 %v5535, %v5538
        %v5540 = vsel %vm5212, %v5531, %v5539
        %v5541 = vrot.slane %v5539, 4
        %v5543 = vshrl.u32 %v5182, 16
        %v5545 = vrot.slane %v5543, 6
        %v5546 = vshll.u32 %v5182, 16
        %v5548 = vrot.slane %v5546, 7
        %v5549 = vor.u32 %v5545, %v5548
        %v5550 = vsel %vm5212, %v5541, %v5549
        %v5551 = vrot.slane %v5549, 4
        %v5553 = vshrl.u32 %v5183, 16
        %v5555 = vrot.slane %v5553, 6
        %v5556 = vshll.u32 %v5183, 16
        %v5558 = vrot.slane %v5556, 7
        %v5559 = vor.u32 %v5555, %v5558
        %v5560 = vsel %vm5212, %v5551, %v5559
        %v5561 = vrot.slane %v5559, 4
        %v5563 = vshrl.u32 %v5184, 16
        %v5565 = vrot.slane %v5563, 6
        %v5566 = vshll.u32 %v5184, 16
        %v5568 = vrot.slane %v5566, 7
        %v5569 = vor.u32 %v5565, %v5568
        %v5570 = vsel %vm5212, %v5561, %v5569
        %v5571 = vrot.slane %v5569, 4
        %v5573 = vshrl.u32 %v5185, 16
        %v5575 = vrot.slane %v5573, 6
        %v5576 = vshll.u32 %v5185, 16
        %v5578 = vrot.slane %v5576, 7
        %v5579 = vor.u32 %v5575, %v5578
        %v5580 = vsel %vm5212, %v5571, %v5579
        %v5581 = vrot.slane %v5579, 4
        %v5583 = vshrl.u32 %v5186, 16
        %v5585 = vrot.slane %v5583, 6
        %v5586 = vshll.u32 %v5186, 16
        %v5588 = vrot.slane %v5586, 7
        %v5589 = vor.u32 %v5585, %v5588
        %v5590 = vsel %vm5212, %v5581, %v5589
        %v5591 = vrot.slane %v5589, 4
        %v5593 = vshrl.u32 %v5187, 16
        %v5595 = vrot.slane %v5593, 6
        %v5596 = vshll.u32 %v5187, 16
        %v5598 = vrot.slane %v5596, 7
        %v5599 = vor.u32 %v5595, %v5598
        %v5600 = vsel %vm5212, %v5591, %v5599
        %v5601 = vrot.slane %v5599, 4
        %v5603 = vshrl.u32 %v5188, 16
        %v5605 = vrot.slane %v5603, 6
        %v5606 = vshll.u32 %v5188, 16
        %v5608 = vrot.slane %v5606, 7
        %v5609 = vor.u32 %v5605, %v5608
        %v5610 = vsel %vm5212, %v5601, %v5609
        %v5611 = vrot.slane %v5609, 4
        %v5613 = vshrl.u32 %v5189, 16
        %v5615 = vrot.slane %v5613, 6
        %v5616 = vshll.u32 %v5189, 16
        %v5618 = vrot.slane %v5616, 7
        %v5619 = vor.u32 %v5615, %v5618
        %v5620 = vsel %vm5212, %v5611, %v5619
        %v5621 = vrot.slane %v5619, 4
        %v5623 = vshrl.u32 %v5190, 16
        %v5625 = vrot.slane %v5623, 6
        %v5626 = vshll.u32 %v5190, 16
        %v5628 = vrot.slane %v5626, 7
        %v5629 = vor.u32 %v5625, %v5628
        %v5630 = vsel %vm5212, %v5621, %v5629
        %v5631 = vrot.slane %v5629, 4
        %v5633 = vshrl.u32 %v5191, 16
        %v5635 = vrot.slane %v5633, 6
        %v5636 = vshll.u32 %v5191, 16
        %v5638 = vrot.slane %v5636, 7
        %v5639 = vor.u32 %v5635, %v5638
        %v5640 = vsel %vm5212, %v5631, %v5639
        %v5641 = vrot.slane %v5639, 4
        %v5643 = vshrl.u32 %v5192, 16
        %v5645 = vrot.slane %v5643, 6
        %v5646 = vshll.u32 %v5192, 16
        %v5648 = vrot.slane %v5646, 7
        %v5649 = vor.u32 %v5645, %v5648
        %v5650 = vsel %vm5212, %v5641, %v5649
        %v5651 = vrot.slane %v5649, 4
        %v5653 = vshrl.u32 %v5193, 16
        %v5655 = vrot.slane %v5653, 6
        %v5656 = vshll.u32 %v5193, 16
        %v5658 = vrot.slane %v5656, 7
        %v5659 = vor.u32 %v5655, %v5658
        %v5660 = vsel %vm5212, %v5651, %v5659
        %v5661 = vrot.slane %v5659, 4
        %v5663 = vshrl.u32 %v5194, 16
        %v5665 = vrot.slane %v5663, 6
        %v5666 = vshll.u32 %v5194, 16
        %v5668 = vrot.slane %v5666, 7
        %v5669 = vor.u32 %v5665, %v5668
        %v5670 = vsel %vm5212, %v5661, %v5669
        %v5671 = vrot.slane %v5669, 4
        %v5673 = vshrl.u32 %v5195, 16
        %v5675 = vrot.slane %v5673, 6
        %v5676 = vshll.u32 %v5195, 16
        %v5678 = vrot.slane %v5676, 7
        %v5679 = vor.u32 %v5675, %v5678
        %v5680 = vsel %vm5212, %v5671, %v5679
        %v5681 = vrot.slane %v5679, 4
        %v5683 = vshrl.u32 %v5196, 16
        %v5685 = vrot.slane %v5683, 6
        %v5686 = vshll.u32 %v5196, 16
        %v5688 = vrot.slane %v5686, 7
        %v5689 = vor.u32 %v5685, %v5688
        %v5690 = vsel %vm5212, %v5681, %v5689
        %v5691 = vrot.slane %v5689, 4
        %v5693 = vshrl.u32 %v5197, 16
        %v5695 = vrot.slane %v5693, 6
        %v5696 = vshll.u32 %v5197, 16
        %v5698 = vrot.slane %v5696, 7
        %v5699 = vor.u32 %v5695, %v5698
        %v5700 = vsel %vm5212, %v5691, %v5699
        %v5701 = vrot.slane %v5699, 4
        %v5703 = vshrl.u32 %v5198, 16
        %v5705 = vrot.slane %v5703, 6
        %v5706 = vshll.u32 %v5198, 16
        %v5708 = vrot.slane %v5706, 7
        %v5709 = vor.u32 %v5705, %v5708
        %v5710 = vsel %vm5212, %v5701, %v5709
        %v5711 = vrot.slane %v5709, 4
        %v5713 = vshrl.u32 %v5199, 16
        %v5715 = vrot.slane %v5713, 6
        %v5716 = vshll.u32 %v5199, 16
        %v5718 = vrot.slane %v5716, 7
        %v5719 = vor.u32 %v5715, %v5718
        %v5720 = vsel %vm5212, %v5711, %v5719
        %v5721 = vrot.slane %v5719, 4
        %v5723 = vshrl.u32 %v5200, 16
        %v5725 = vrot.slane %v5723, 6
        %v5726 = vshll.u32 %v5200, 16
        %v5728 = vrot.slane %v5726, 7
        %v5729 = vor.u32 %v5725, %v5728
        %v5730 = vsel %vm5212, %v5721, %v5729
        %v5731 = vrot.slane %v5729, 4
        %v5733 = vshrl.u32 %v5201, 16
        %v5735 = vrot.slane %v5733, 6
        %v5736 = vshll.u32 %v5201, 16
        %v5738 = vrot.slane %v5736, 7
        %v5739 = vor.u32 %v5735, %v5738
        %v5740 = vsel %vm5212, %v5731, %v5739
        %v5741 = vrot.slane %v5739, 4
        %v5743 = vshrl.u32 %v5202, 16
        %v5745 = vrot.slane %v5743, 6
        %v5746 = vshll.u32 %v5202, 16
        %v5748 = vrot.slane %v5746, 7
        %v5749 = vor.u32 %v5745, %v5748
        %v5750 = vsel %vm5212, %v5741, %v5749
        %v5751 = vrot.slane %v5749, 4
        %v5753 = vshrl.u32 %v5203, 16
        %v5755 = vrot.slane %v5753, 6
        %v5756 = vshll.u32 %v5203, 16
        %v5758 = vrot.slane %v5756, 7
        %v5759 = vor.u32 %v5755, %v5758
        %v5760 = vsel %vm5212, %v5751, %v5759
        %v5761 = vrot.slane %v5759, 4
        %v5763 = vshrl.u32 %v5204, 16
        %v5765 = vrot.slane %v5763, 6
        %v5766 = vshll.u32 %v5204, 16
        %v5768 = vrot.slane %v5766, 7
        %v5769 = vor.u32 %v5765, %v5768
        %v5770 = vsel %vm5212, %v5761, %v5769
        %v5771 = vrot.slane %v5769, 4
        %v5773 = vshrl.u32 %v5205, 16
        %v5775 = vrot.slane %v5773, 6
        %v5776 = vshll.u32 %v5205, 16
        %v5778 = vrot.slane %v5776, 7
        %v5779 = vor.u32 %v5775, %v5778
        %v5780 = vsel %vm5212, %v5771, %v5779
        %v5781 = vrot.slane %v5779, 4
        %v5783 = vshrl.u32 %v5206, 16
        %v5785 = vrot.slane %v5783, 6
        %v5786 = vshll.u32 %v5206, 16
        %v5788 = vrot.slane %v5786, 7
        %v5789 = vor.u32 %v5785, %v5788
        %v5790 = vsel %vm5212, %v5781, %v5789
        %v5791 = vrot.slane %v5789, 4
        %v5793 = vshrl.u32 %v5207, 16
        %v5795 = vrot.slane %v5793, 6
        %v5796 = vshll.u32 %v5207, 16
        %v5798 = vrot.slane %v5796, 7
        %v5799 = vor.u32 %v5795, %v5798
        %v5800 = vsel %vm5212, %v5791, %v5799
        %v5801 = vrot.slane %v5799, 4
        %v5803 = vshrl.u32 %v5208, 16
        %v5805 = vrot.slane %v5803, 6
        %v5806 = vshll.u32 %v5208, 16
        %v5808 = vrot.slane %v5806, 7
        %v5809 = vor.u32 %v5805, %v5808
        %v5810 = vsel %vm5212, %v5801, %v5809
        %v5811 = vrot.slane %v5809, 4
        %v5813 = vshrl.u32 %v5209, 16
        %v5815 = vrot.slane %v5813, 6
        %v5816 = vshll.u32 %v5209, 16
        %v5818 = vrot.slane %v5816, 7
        %v5819 = vor.u32 %v5815, %v5818
        %v5820 = vsel %vm5212, %v5811, %v5819
        %5821 = vrot.lane.b32.xlu0 %v5230, 28
        %v5822 = vpop.permute.xlu0 %5821
        %5823 = vrot.lane.b32.xlu0 %v5240, 28
        %v5824 = vpop.permute.xlu0 %5823
        %5825 = vrot.lane.b32.xlu0 %v5250, 28
        %v5826 = vpop.permute.xlu0 %5825
        %5827 = vrot.lane.b32.xlu0 %v5260, 28
        %v5828 = vpop.permute.xlu0 %5827
        %5829 = vrot.lane.b32.xlu0 %v5270, 28
        %v5830 = vpop.permute.xlu0 %5829
        %5831 = vrot.lane.b32.xlu0 %v5280, 28
        %v5832 = vpop.permute.xlu0 %5831
        %5833 = vrot.lane.b32.xlu0 %v5290, 28
        %v5834 = vpop.permute.xlu0 %5833
        %5835 = vrot.lane.b32.xlu0 %v5300, 28
        %v5836 = vpop.permute.xlu0 %5835
        %5837 = vrot.lane.b32.xlu0 %v5310, 28
        %v5838 = vpop.permute.xlu0 %5837
        %5839 = vrot.lane.b32.xlu0 %v5320, 28
        %v5840 = vpop.permute.xlu0 %5839
        %5841 = vrot.lane.b32.xlu0 %v5330, 28
        %v5842 = vpop.permute.xlu0 %5841
        %5843 = vrot.lane.b32.xlu0 %v5340, 28
        %v5844 = vpop.permute.xlu0 %5843
        %5845 = vrot.lane.b32.xlu0 %v5350, 28
        %v5846 = vpop.permute.xlu0 %5845
        %5847 = vrot.lane.b32.xlu0 %v5360, 28
        %v5848 = vpop.permute.xlu0 %5847
        %5849 = vrot.lane.b32.xlu0 %v5370, 28
        %v5850 = vpop.permute.xlu0 %5849
        %5851 = vrot.lane.b32.xlu0 %v5380, 28
        %v5852 = vpop.permute.xlu0 %5851
        %5853 = vrot.lane.b32.xlu0 %v5390, 28
        %v5854 = vpop.permute.xlu0 %5853
        %5855 = vrot.lane.b32.xlu0 %v5400, 28
        %v5856 = vpop.permute.xlu0 %5855
        %5857 = vrot.lane.b32.xlu0 %v5410, 28
        %v5858 = vpop.permute.xlu0 %5857
        %5859 = vrot.lane.b32.xlu0 %v5420, 28
        %v5860 = vpop.permute.xlu0 %5859
        %5861 = vrot.lane.b32.xlu0 %v5430, 28
        %v5862 = vpop.permute.xlu0 %5861
        %5863 = vrot.lane.b32.xlu0 %v5440, 28
        %v5864 = vpop.permute.xlu0 %5863
        %5865 = vrot.lane.b32.xlu0 %v5450, 28
        %v5866 = vpop.permute.xlu0 %5865
        %5867 = vrot.lane.b32.xlu0 %v5460, 28
        %v5868 = vpop.permute.xlu0 %5867
        %5869 = vrot.lane.b32.xlu0 %v5470, 28
        %v5870 = vpop.permute.xlu0 %5869
        %5871 = vrot.lane.b32.xlu0 %v5480, 28
        %v5872 = vpop.permute.xlu0 %5871
        %5873 = vrot.lane.b32.xlu0 %v5490, 28
        %v5874 = vpop.permute.xlu0 %5873
        %5875 = vrot.lane.b32.xlu0 %v5500, 28
        %v5876 = vpop.permute.xlu0 %5875
        %5877 = vrot.lane.b32.xlu0 %v5510, 28
        %v5878 = vpop.permute.xlu0 %5877
        %5879 = vrot.lane.b32.xlu0 %v5520, 28
        %v5880 = vpop.permute.xlu0 %5879
        %5881 = vrot.lane.b32.xlu0 %v5530, 28
        %v5882 = vpop.permute.xlu0 %5881
        %5883 = vrot.lane.b32.xlu0 %v5540, 28
        %v5884 = vpop.permute.xlu0 %5883
        %5885 = vrot.lane.b32.xlu0 %v5550, 28
        %v5886 = vpop.permute.xlu0 %5885
        %5887 = vrot.lane.b32.xlu0 %v5560, 28
        %v5888 = vpop.permute.xlu0 %5887
        %5889 = vrot.lane.b32.xlu0 %v5570, 28
        %v5890 = vpop.permute.xlu0 %5889
        %5891 = vrot.lane.b32.xlu0 %v5580, 28
        %v5892 = vpop.permute.xlu0 %5891
        %5893 = vrot.lane.b32.xlu0 %v5590, 28
        %v5894 = vpop.permute.xlu0 %5893
        %5895 = vrot.lane.b32.xlu0 %v5600, 28
        %v5896 = vpop.permute.xlu0 %5895
        %5897 = vrot.lane.b32.xlu0 %v5610, 28
        %v5898 = vpop.permute.xlu0 %5897
        %5899 = vrot.lane.b32.xlu0 %v5620, 28
        %v5900 = vpop.permute.xlu0 %5899
        %5901 = vrot.lane.b32.xlu0 %v5630, 28
        %v5902 = vpop.permute.xlu0 %5901
        %5903 = vrot.lane.b32.xlu0 %v5640, 28
        %v5904 = vpop.permute.xlu0 %5903
        %5905 = vrot.lane.b32.xlu0 %v5650, 28
        %v5906 = vpop.permute.xlu0 %5905
        %5907 = vrot.lane.b32.xlu0 %v5660, 28
        %v5908 = vpop.permute.xlu0 %5907
        %5909 = vrot.lane.b32.xlu0 %v5670, 28
        %v5910 = vpop.permute.xlu0 %5909
        %5911 = vrot.lane.b32.xlu0 %v5680, 28
        %v5912 = vpop.permute.xlu0 %5911
        %5913 = vrot.lane.b32.xlu0 %v5690, 28
        %v5914 = vpop.permute.xlu0 %5913
        %5915 = vrot.lane.b32.xlu0 %v5700, 28
        %v5916 = vpop.permute.xlu0 %5915
        %5917 = vrot.lane.b32.xlu0 %v5710, 28
        %v5918 = vpop.permute.xlu0 %5917
        %5919 = vrot.lane.b32.xlu0 %v5720, 28
        %v5920 = vpop.permute.xlu0 %5919
        %5921 = vrot.lane.b32.xlu0 %v5730, 28
        %v5922 = vpop.permute.xlu0 %5921
        %5923 = vrot.lane.b32.xlu0 %v5740, 28
        %v5924 = vpop.permute.xlu0 %5923
        %5925 = vrot.lane.b32.xlu0 %v5750, 28
        %v5926 = vpop.permute.xlu0 %5925
        %5927 = vrot.lane.b32.xlu0 %v5760, 28
        %v5928 = vpop.permute.xlu0 %5927
        %5929 = vrot.lane.b32.xlu0 %v5770, 28
        %v5930 = vpop.permute.xlu0 %5929
        %5931 = vrot.lane.b32.xlu0 %v5780, 28
        %v5932 = vpop.permute.xlu0 %5931
        %5933 = vrot.lane.b32.xlu0 %v5790, 28
        %v5934 = vpop.permute.xlu0 %5933
        %5935 = vrot.lane.b32.xlu0 %v5800, 28
        %v5936 = vpop.permute.xlu0 %5935
        %5937 = vrot.lane.b32.xlu0 %v5810, 28
        %v5938 = vpop.permute.xlu0 %5937
        %5939 = vrot.lane.b32.xlu0 %v5820, 28
        %v5940 = vpop.permute.xlu0 %5939
        %vm6001 = vcmask 257248
        %6002 = vst.msk [vmem:[#allocation3] sm:$0xf] %vm6001, %v5822
        %6003 = vst.msk [vmem:[#allocation3 + $0x4] sm:$0xf] %vm6001, %v5824
        %6004 = vst.msk [vmem:[#allocation3 + $0x8] sm:$0xf] %vm6001, %v5826
        %6005 = vst.msk [vmem:[#allocation3 + $0xc] sm:$0xf] %vm6001, %v5828
        %6006 = vst.msk [vmem:[#allocation3 + $0x10] sm:$0xf] %vm6001, %v5830
        %6007 = vst.msk [vmem:[#allocation3 + $0x14] sm:$0xf] %vm6001, %v5832
        %6008 = vst.msk [vmem:[#allocation3 + $0x18] sm:$0xf] %vm6001, %v5834
        %6009 = vst.msk [vmem:[#allocation3 + $0x1c] sm:$0xf] %vm6001, %v5836
        %6010 = vst.msk [vmem:[#allocation3 + $0x20] sm:$0xf] %vm6001, %v5838
        %6011 = vst.msk [vmem:[#allocation3 + $0x24] sm:$0xf] %vm6001, %v5840
        %6012 = vst.msk [vmem:[#allocation3 + $0x28] sm:$0xf] %vm6001, %v5842
        %6013 = vst.msk [vmem:[#allocation3 + $0x2c] sm:$0xf] %vm6001, %v5844
        %6014 = vst.msk [vmem:[#allocation3 + $0x30] sm:$0xf] %vm6001, %v5846
        %6015 = vst.msk [vmem:[#allocation3 + $0x34] sm:$0xf] %vm6001, %v5848
        %6016 = vst.msk [vmem:[#allocation3 + $0x38] sm:$0xf] %vm6001, %v5850
        %6017 = vst.msk [vmem:[#allocation3 + $0x3c] sm:$0xf] %vm6001, %v5852
        %6018 = vst.msk [vmem:[#allocation3 + $0x40] sm:$0xf] %vm6001, %v5854
        %6019 = vst.msk [vmem:[#allocation3 + $0x44] sm:$0xf] %vm6001, %v5856
        %6020 = vst.msk [vmem:[#allocation3 + $0x48] sm:$0xf] %vm6001, %v5858
        %6021 = vst.msk [vmem:[#allocation3 + $0x4c] sm:$0xf] %vm6001, %v5860
        %6022 = vst.msk [vmem:[#allocation3 + $0x50] sm:$0xf] %vm6001, %v5862
        %6023 = vst.msk [vmem:[#allocation3 + $0x54] sm:$0xf] %vm6001, %v5864
        %6024 = vst.msk [vmem:[#allocation3 + $0x58] sm:$0xf] %vm6001, %v5866
        %6025 = vst.msk [vmem:[#allocation3 + $0x5c] sm:$0xf] %vm6001, %v5868
        %6026 = vst.msk [vmem:[#allocation3 + $0x60] sm:$0xf] %vm6001, %v5870
        %6027 = vst.msk [vmem:[#allocation3 + $0x64] sm:$0xf] %vm6001, %v5872
        %6028 = vst.msk [vmem:[#allocation3 + $0x68] sm:$0xf] %vm6001, %v5874
        %6029 = vst.msk [vmem:[#allocation3 + $0x6c] sm:$0xf] %vm6001, %v5876
        %6030 = vst.msk [vmem:[#allocation3 + $0x70] sm:$0xf] %vm6001, %v5878
        %6031 = vst.msk [vmem:[#allocation3 + $0x74] sm:$0xf] %vm6001, %v5880
        %6032 = vst.msk [vmem:[#allocation3 + $0x78] sm:$0xf] %vm6001, %v5882
        %6033 = vst.msk [vmem:[#allocation3 + $0x7c] sm:$0xf] %vm6001, %v5884
        %6034 = vst.msk [vmem:[#allocation3 + $0x80] sm:$0xf] %vm6001, %v5886
        %6035 = vst.msk [vmem:[#allocation3 + $0x84] sm:$0xf] %vm6001, %v5888
        %6036 = vst.msk [vmem:[#allocation3 + $0x88] sm:$0xf] %vm6001, %v5890
        %6037 = vst.msk [vmem:[#allocation3 + $0x8c] sm:$0xf] %vm6001, %v5892
        %6038 = vst.msk [vmem:[#allocation3 + $0x90] sm:$0xf] %vm6001, %v5894
        %6039 = vst.msk [vmem:[#allocation3 + $0x94] sm:$0xf] %vm6001, %v5896
        %6040 = vst.msk [vmem:[#allocation3 + $0x98] sm:$0xf] %vm6001, %v5898
        %6041 = vst.msk [vmem:[#allocation3 + $0x9c] sm:$0xf] %vm6001, %v5900
        %6042 = vst.msk [vmem:[#allocation3 + $0xa0] sm:$0xf] %vm6001, %v5902
        %6043 = vst.msk [vmem:[#allocation3 + $0xa4] sm:$0xf] %vm6001, %v5904
        %6044 = vst.msk [vmem:[#allocation3 + $0xa8] sm:$0xf] %vm6001, %v5906
        %6045 = vst.msk [vmem:[#allocation3 + $0xac] sm:$0xf] %vm6001, %v5908
        %6046 = vst.msk [vmem:[#allocation3 + $0xb0] sm:$0xf] %vm6001, %v5910
        %6047 = vst.msk [vmem:[#allocation3 + $0xb4] sm:$0xf] %vm6001, %v5912
        %6048 = vst.msk [vmem:[#allocation3 + $0xb8] sm:$0xf] %vm6001, %v5914
        %6049 = vst.msk [vmem:[#allocation3 + $0xbc] sm:$0xf] %vm6001, %v5916
        %6050 = vst.msk [vmem:[#allocation3 + $0xc0] sm:$0xf] %vm6001, %v5918
        %6051 = vst.msk [vmem:[#allocation3 + $0xc4] sm:$0xf] %vm6001, %v5920
        %6052 = vst.msk [vmem:[#allocation3 + $0xc8] sm:$0xf] %vm6001, %v5922
        %6053 = vst.msk [vmem:[#allocation3 + $0xcc] sm:$0xf] %vm6001, %v5924
        %6054 = vst.msk [vmem:[#allocation3 + $0xd0] sm:$0xf] %vm6001, %v5926
        %6055 = vst.msk [vmem:[#allocation3 + $0xd4] sm:$0xf] %vm6001, %v5928
        %6056 = vst.msk [vmem:[#allocation3 + $0xd8] sm:$0xf] %vm6001, %v5930
        %6057 = vst.msk [vmem:[#allocation3 + $0xdc] sm:$0xf] %vm6001, %v5932
        %6058 = vst.msk [vmem:[#allocation3 + $0xe0] sm:$0xf] %vm6001, %v5934
        %6059 = vst.msk [vmem:[#allocation3 + $0xe4] sm:$0xf] %vm6001, %v5936
        %6060 = vst.msk [vmem:[#allocation3 + $0xe8] sm:$0xf] %vm6001, %v5938
        %6061 = vst.msk [vmem:[#allocation3 + $0xec] sm:$0xf] %vm6001, %v5940
        %v6062 = vld [vmem:[#allocation2 + $0x10] sm:$0x8]
        %v6063 = vld [vmem:[#allocation2 + $0x14] sm:$0xf]
        %v6064 = vld [vmem:[#allocation2 + $0x18] sm:$0xf]
        %v6065 = vld [vmem:[#allocation2 + $0x1c] sm:$0xf]
        %v6066 = vld [vmem:[#allocation2 + $0x20] sm:$0xf]
        %v6067 = vld [vmem:[#allocation2 + $0x24] sm:$0xf]
        %v6068 = vld [vmem:[#allocation2 + $0x28] sm:$0xf]
        %v6069 = vld [vmem:[#allocation2 + $0x2c] sm:$0xf]
        %v6070 = vld [vmem:[#allocation2 + $0x30] sm:$0xf]
        %v6071 = vld [vmem:[#allocation2 + $0x34] sm:$0xf]
        %v6072 = vld [vmem:[#allocation2 + $0x38] sm:$0xf]
        %v6073 = vld [vmem:[#allocation2 + $0x3c] sm:$0xf]
        %v6074 = vld [vmem:[#allocation2 + $0x40] sm:$0xf]
        %v6075 = vld [vmem:[#allocation2 + $0x44] sm:$0xf]
        %v6076 = vld [vmem:[#allocation2 + $0x48] sm:$0xf]
        %v6077 = vld [vmem:[#allocation2 + $0x4c] sm:$0xf]
        %v6078 = vld [vmem:[#allocation2 + $0x50] sm:$0xf]
        %v6079 = vld [vmem:[#allocation2 + $0x54] sm:$0xf]
        %v6080 = vld [vmem:[#allocation2 + $0x58] sm:$0xf]
        %v6081 = vld [vmem:[#allocation2 + $0x5c] sm:$0xf]
        %v6082 = vld [vmem:[#allocation2 + $0x60] sm:$0xf]
        %v6083 = vld [vmem:[#allocation2 + $0x64] sm:$0xf]
        %v6084 = vld [vmem:[#allocation2 + $0x68] sm:$0xf]
        %v6085 = vld [vmem:[#allocation2 + $0x6c] sm:$0xf]
        %v6086 = vld [vmem:[#allocation2 + $0x70] sm:$0xf]
        %v6087 = vld [vmem:[#allocation2 + $0x74] sm:$0xf]
        %v6088 = vld [vmem:[#allocation2 + $0x78] sm:$0xf]
        %v6089 = vld [vmem:[#allocation2 + $0x7c] sm:$0xf]
        %v6090 = vld [vmem:[#allocation2 + $0x80] sm:$0xf]
        %v6091 = vld [vmem:[#allocation2 + $0x84] sm:$0xf]
        %v6092 = vld [vmem:[#allocation2 + $0x88] sm:$0xf]
        %v6093 = vld [vmem:[#allocation2 + $0x8c] sm:$0xf]
        %v6094 = vld [vmem:[#allocation2 + $0x90] sm:$0xf]
        %v6095 = vld [vmem:[#allocation2 + $0x94] sm:$0xf]
        %v6096 = vld [vmem:[#allocation2 + $0x98] sm:$0xf]
        %v6097 = vld [vmem:[#allocation2 + $0x9c] sm:$0xf]
        %v6098 = vld [vmem:[#allocation2 + $0xa0] sm:$0xf]
        %v6099 = vld [vmem:[#allocation2 + $0xa4] sm:$0xf]
        %v6100 = vld [vmem:[#allocation2 + $0xa8] sm:$0xf]
        %v6101 = vld [vmem:[#allocation2 + $0xac] sm:$0xf]
        %v6102 = vld [vmem:[#allocation2 + $0xb0] sm:$0xf]
        %v6103 = vld [vmem:[#allocation2 + $0xb4] sm:$0xf]
        %v6104 = vld [vmem:[#allocation2 + $0xb8] sm:$0xf]
        %v6105 = vld [vmem:[#allocation2 + $0xbc] sm:$0xf]
        %v6106 = vld [vmem:[#allocation2 + $0xc0] sm:$0xf]
        %v6107 = vld [vmem:[#allocation2 + $0xc4] sm:$0xf]
        %v6108 = vld [vmem:[#allocation2 + $0xc8] sm:$0xf]
        %v6109 = vld [vmem:[#allocation2 + $0xcc] sm:$0xf]
        %v6110 = vld [vmem:[#allocation2 + $0xd0] sm:$0xf]
        %v6111 = vld [vmem:[#allocation2 + $0xd4] sm:$0xf]
        %v6112 = vld [vmem:[#allocation2 + $0xd8] sm:$0xf]
        %v6113 = vld [vmem:[#allocation2 + $0xdc] sm:$0xf]
        %v6114 = vld [vmem:[#allocation2 + $0xe0] sm:$0xf]
        %v6115 = vld [vmem:[#allocation2 + $0xe4] sm:$0xf]
        %v6116 = vld [vmem:[#allocation2 + $0xe8] sm:$0xf]
        %v6117 = vld [vmem:[#allocation2 + $0xec] sm:$0xf]
        %v6118 = vld [vmem:[#allocation2 + $0xf0] sm:$0xf]
        %v6119 = vld [vmem:[#allocation2 + $0xf4] sm:$0xf]
        %v6120 = vld [vmem:[#allocation2 + $0xf8] sm:$0xf]
        %v6121 = vld [vmem:[#allocation2 + $0xfc] sm:$0xf]
        %v6122 = vld [vmem:[#allocation2 + $0x100] sm:$0x7]
        %vm6184 = vcmask 1040384
        %vm6185 = vcmask 1044484
        %vm6186 = vmor %vm6184, %vm6185
        %v6187 = vrot.slane %v6062, 7
        %v6188 = vrot.slane %v6187, 4
        %v6189 = vrot.slane %v6063, 7
        %v6190 = vsel %vm6186, %v6188, %v6189
        %v6191 = vrot.slane %v6189, 4
        %v6192 = vrot.slane %v6064, 7
        %v6193 = vsel %vm6186, %v6191, %v6192
        %v6194 = vrot.slane %v6192, 4
        %v6195 = vrot.slane %v6065, 7
        %v6196 = vsel %vm6186, %v6194, %v6195
        %v6197 = vrot.slane %v6195, 4
        %v6198 = vrot.slane %v6066, 7
        %v6199 = vsel %vm6186, %v6197, %v6198
        %v6200 = vrot.slane %v6198, 4
        %v6201 = vrot.slane %v6067, 7
        %v6202 = vsel %vm6186, %v6200, %v6201
        %v6203 = vrot.slane %v6201, 4
        %v6204 = vrot.slane %v6068, 7
        %v6205 = vsel %vm6186, %v6203, %v6204
        %v6206 = vrot.slane %v6204, 4
        %v6207 = vrot.slane %v6069, 7
        %v6208 = vsel %vm6186, %v6206, %v6207
        %v6209 = vrot.slane %v6207, 4
        %v6210 = vrot.slane %v6070, 7
        %v6211 = vsel %vm6186, %v6209, %v6210
        %v6212 = vrot.slane %v6210, 4
        %v6213 = vrot.slane %v6071, 7
        %v6214 = vsel %vm6186, %v6212, %v6213
        %v6215 = vrot.slane %v6213, 4
        %v6216 = vrot.slane %v6072, 7
        %v6217 = vsel %vm6186, %v6215, %v6216
        %v6218 = vrot.slane %v6216, 4
        %v6219 = vrot.slane %v6073, 7
        %v6220 = vsel %vm6186, %v6218, %v6219
        %v6221 = vrot.slane %v6219, 4
        %v6222 = vrot.slane %v6074, 7
        %v6223 = vsel %vm6186, %v6221, %v6222
        %v6224 = vrot.slane %v6222, 4
        %v6225 = vrot.slane %v6075, 7
        %v6226 = vsel %vm6186, %v6224, %v6225
        %v6227 = vrot.slane %v6225, 4
        %v6228 = vrot.slane %v6076, 7
        %v6229 = vsel %vm6186, %v6227, %v6228
        %v6230 = vrot.slane %v6228, 4
        %v6231 = vrot.slane %v6077, 7
        %v6232 = vsel %vm6186, %v6230, %v6231
        %v6233 = vrot.slane %v6231, 4
        %v6234 = vrot.slane %v6078, 7
        %v6235 = vsel %vm6186, %v6233, %v6234
        %v6236 = vrot.slane %v6234, 4
        %v6237 = vrot.slane %v6079, 7
        %v6238 = vsel %vm6186, %v6236, %v6237
        %v6239 = vrot.slane %v6237, 4
        %v6240 = vrot.slane %v6080, 7
        %v6241 = vsel %vm6186, %v6239, %v6240
        %v6242 = vrot.slane %v6240, 4
        %v6243 = vrot.slane %v6081, 7
        %v6244 = vsel %vm6186, %v6242, %v6243
        %v6245 = vrot.slane %v6243, 4
        %v6246 = vrot.slane %v6082, 7
        %v6247 = vsel %vm6186, %v6245, %v6246
        %v6248 = vrot.slane %v6246, 4
        %v6249 = vrot.slane %v6083, 7
        %v6250 = vsel %vm6186, %v6248, %v6249
        %v6251 = vrot.slane %v6249, 4
        %v6252 = vrot.slane %v6084, 7
        %v6253 = vsel %vm6186, %v6251, %v6252
        %v6254 = vrot.slane %v6252, 4
        %v6255 = vrot.slane %v6085, 7
        %v6256 = vsel %vm6186, %v6254, %v6255
        %v6257 = vrot.slane %v6255, 4
        %v6258 = vrot.slane %v6086, 7
        %v6259 = vsel %vm6186, %v6257, %v6258
        %v6260 = vrot.slane %v6258, 4
        %v6261 = vrot.slane %v6087, 7
        %v6262 = vsel %vm6186, %v6260, %v6261
        %v6263 = vrot.slane %v6261, 4
        %v6264 = vrot.slane %v6088, 7
        %v6265 = vsel %vm6186, %v6263, %v6264
        %v6266 = vrot.slane %v6264, 4
        %v6267 = vrot.slane %v6089, 7
        %v6268 = vsel %vm6186, %v6266, %v6267
        %v6269 = vrot.slane %v6267, 4
        %v6270 = vrot.slane %v6090, 7
        %v6271 = vsel %vm6186, %v6269, %v6270
        %v6272 = vrot.slane %v6270, 4
        %v6273 = vrot.slane %v6091, 7
        %v6274 = vsel %vm6186, %v6272, %v6273
        %v6275 = vrot.slane %v6273, 4
        %v6276 = vrot.slane %v6092, 7
        %v6277 = vsel %vm6186, %v6275, %v6276
        %v6278 = vrot.slane %v6276, 4
        %v6279 = vrot.slane %v6093, 7
        %v6280 = vsel %vm6186, %v6278, %v6279
        %v6281 = vrot.slane %v6279, 4
        %v6282 = vrot.slane %v6094, 7
        %v6283 = vsel %vm6186, %v6281, %v6282
        %v6284 = vrot.slane %v6282, 4
        %v6285 = vrot.slane %v6095, 7
        %v6286 = vsel %vm6186, %v6284, %v6285
        %v6287 = vrot.slane %v6285, 4
        %v6288 = vrot.slane %v6096, 7
        %v6289 = vsel %vm6186, %v6287, %v6288
        %v6290 = vrot.slane %v6288, 4
        %v6291 = vrot.slane %v6097, 7
        %v6292 = vsel %vm6186, %v6290, %v6291
        %v6293 = vrot.slane %v6291, 4
        %v6294 = vrot.slane %v6098, 7
        %v6295 = vsel %vm6186, %v6293, %v6294
        %v6296 = vrot.slane %v6294, 4
        %v6297 = vrot.slane %v6099, 7
        %v6298 = vsel %vm6186, %v6296, %v6297
        %v6299 = vrot.slane %v6297, 4
        %v6300 = vrot.slane %v6100, 7
        %v6301 = vsel %vm6186, %v6299, %v6300
        %v6302 = vrot.slane %v6300, 4
        %v6303 = vrot.slane %v6101, 7
        %v6304 = vsel %vm6186, %v6302, %v6303
        %v6305 = vrot.slane %v6303, 4
        %v6306 = vrot.slane %v6102, 7
        %v6307 = vsel %vm6186, %v6305, %v6306
        %v6308 = vrot.slane %v6306, 4
        %v6309 = vrot.slane %v6103, 7
        %v6310 = vsel %vm6186, %v6308, %v6309
        %v6311 = vrot.slane %v6309, 4
        %v6312 = vrot.slane %v6104, 7
        %v6313 = vsel %vm6186, %v6311, %v6312
        %v6314 = vrot.slane %v6312, 4
        %v6315 = vrot.slane %v6105, 7
        %v6316 = vsel %vm6186, %v6314, %v6315
        %v6317 = vrot.slane %v6315, 4
        %v6318 = vrot.slane %v6106, 7
        %v6319 = vsel %vm6186, %v6317, %v6318
        %v6320 = vrot.slane %v6318, 4
        %v6321 = vrot.slane %v6107, 7
        %v6322 = vsel %vm6186, %v6320, %v6321
        %v6323 = vrot.slane %v6321, 4
        %v6324 = vrot.slane %v6108, 7
        %v6325 = vsel %vm6186, %v6323, %v6324
        %v6326 = vrot.slane %v6324, 4
        %v6327 = vrot.slane %v6109, 7
        %v6328 = vsel %vm6186, %v6326, %v6327
        %v6329 = vrot.slane %v6327, 4
        %v6330 = vrot.slane %v6110, 7
        %v6331 = vsel %vm6186, %v6329, %v6330
        %v6332 = vrot.slane %v6330, 4
        %v6333 = vrot.slane %v6111, 7
        %v6334 = vsel %vm6186, %v6332, %v6333
        %v6335 = vrot.slane %v6333, 4
        %v6336 = vrot.slane %v6112, 7
        %v6337 = vsel %vm6186, %v6335, %v6336
        %v6338 = vrot.slane %v6336, 4
        %v6339 = vrot.slane %v6113, 7
        %v6340 = vsel %vm6186, %v6338, %v6339
        %v6341 = vrot.slane %v6339, 4
        %v6342 = vrot.slane %v6114, 7
        %v6343 = vsel %vm6186, %v6341, %v6342
        %v6344 = vrot.slane %v6342, 4
        %v6345 = vrot.slane %v6115, 7
        %v6346 = vsel %vm6186, %v6344, %v6345
        %v6347 = vrot.slane %v6345, 4
        %v6348 = vrot.slane %v6116, 7
        %v6349 = vsel %vm6186, %v6347, %v6348
        %v6350 = vrot.slane %v6348, 4
        %v6351 = vrot.slane %v6117, 7
        %v6352 = vsel %vm6186, %v6350, %v6351
        %v6353 = vrot.slane %v6351, 4
        %v6354 = vrot.slane %v6118, 7
        %v6355 = vsel %vm6186, %v6353, %v6354
        %v6356 = vrot.slane %v6354, 4
        %v6357 = vrot.slane %v6119, 7
        %v6358 = vsel %vm6186, %v6356, %v6357
        %v6359 = vrot.slane %v6357, 4
        %v6360 = vrot.slane %v6120, 7
        %v6361 = vsel %vm6186, %v6359, %v6360
        %v6362 = vrot.slane %v6360, 4
        %v6363 = vrot.slane %v6121, 7
        %v6364 = vsel %vm6186, %v6362, %v6363
        %v6365 = vrot.slane %v6363, 4
        %v6366 = vrot.slane %v6122, 7
        %v6367 = vsel %vm6186, %v6365, %v6366
        %6368 = vrot.lane.b32.xlu0 %v6190, 32
        %v6369 = vpop.permute.xlu0 %6368
        %6370 = vrot.lane.b32.xlu0 %v6193, 32
        %v6371 = vpop.permute.xlu0 %6370
        %6372 = vrot.lane.b32.xlu0 %v6196, 32
        %v6373 = vpop.permute.xlu0 %6372
        %6374 = vrot.lane.b32.xlu0 %v6199, 32
        %v6375 = vpop.permute.xlu0 %6374
        %6376 = vrot.lane.b32.xlu0 %v6202, 32
        %v6377 = vpop.permute.xlu0 %6376
        %6378 = vrot.lane.b32.xlu0 %v6205, 32
        %v6379 = vpop.permute.xlu0 %6378
        %6380 = vrot.lane.b32.xlu0 %v6208, 32
        %v6381 = vpop.permute.xlu0 %6380
        %6382 = vrot.lane.b32.xlu0 %v6211, 32
        %v6383 = vpop.permute.xlu0 %6382
        %6384 = vrot.lane.b32.xlu0 %v6214, 32
        %v6385 = vpop.permute.xlu0 %6384
        %6386 = vrot.lane.b32.xlu0 %v6217, 32
        %v6387 = vpop.permute.xlu0 %6386
        %6388 = vrot.lane.b32.xlu0 %v6220, 32
        %v6389 = vpop.permute.xlu0 %6388
        %6390 = vrot.lane.b32.xlu0 %v6223, 32
        %v6391 = vpop.permute.xlu0 %6390
        %6392 = vrot.lane.b32.xlu0 %v6226, 32
        %v6393 = vpop.permute.xlu0 %6392
        %6394 = vrot.lane.b32.xlu0 %v6229, 32
        %v6395 = vpop.permute.xlu0 %6394
        %6396 = vrot.lane.b32.xlu0 %v6232, 32
        %v6397 = vpop.permute.xlu0 %6396
        %6398 = vrot.lane.b32.xlu0 %v6235, 32
        %v6399 = vpop.permute.xlu0 %6398
        %6400 = vrot.lane.b32.xlu0 %v6238, 32
        %v6401 = vpop.permute.xlu0 %6400
        %6402 = vrot.lane.b32.xlu0 %v6241, 32
        %v6403 = vpop.permute.xlu0 %6402
        %6404 = vrot.lane.b32.xlu0 %v6244, 32
        %v6405 = vpop.permute.xlu0 %6404
        %6406 = vrot.lane.b32.xlu0 %v6247, 32
        %v6407 = vpop.permute.xlu0 %6406
        %6408 = vrot.lane.b32.xlu0 %v6250, 32
        %v6409 = vpop.permute.xlu0 %6408
        %6410 = vrot.lane.b32.xlu0 %v6253, 32
        %v6411 = vpop.permute.xlu0 %6410
        %6412 = vrot.lane.b32.xlu0 %v6256, 32
        %v6413 = vpop.permute.xlu0 %6412
        %6414 = vrot.lane.b32.xlu0 %v6259, 32
        %v6415 = vpop.permute.xlu0 %6414
        %6416 = vrot.lane.b32.xlu0 %v6262, 32
        %v6417 = vpop.permute.xlu0 %6416
        %6418 = vrot.lane.b32.xlu0 %v6265, 32
        %v6419 = vpop.permute.xlu0 %6418
        %6420 = vrot.lane.b32.xlu0 %v6268, 32
        %v6421 = vpop.permute.xlu0 %6420
        %6422 = vrot.lane.b32.xlu0 %v6271, 32
        %v6423 = vpop.permute.xlu0 %6422
        %6424 = vrot.lane.b32.xlu0 %v6274, 32
        %v6425 = vpop.permute.xlu0 %6424
        %6426 = vrot.lane.b32.xlu0 %v6277, 32
        %v6427 = vpop.permute.xlu0 %6426
        %6428 = vrot.lane.b32.xlu0 %v6280, 32
        %v6429 = vpop.permute.xlu0 %6428
        %6430 = vrot.lane.b32.xlu0 %v6283, 32
        %v6431 = vpop.permute.xlu0 %6430
        %6432 = vrot.lane.b32.xlu0 %v6286, 32
        %v6433 = vpop.permute.xlu0 %6432
        %6434 = vrot.lane.b32.xlu0 %v6289, 32
        %v6435 = vpop.permute.xlu0 %6434
        %6436 = vrot.lane.b32.xlu0 %v6292, 32
        %v6437 = vpop.permute.xlu0 %6436
        %6438 = vrot.lane.b32.xlu0 %v6295, 32
        %v6439 = vpop.permute.xlu0 %6438
        %6440 = vrot.lane.b32.xlu0 %v6298, 32
        %v6441 = vpop.permute.xlu0 %6440
        %6442 = vrot.lane.b32.xlu0 %v6301, 32
        %v6443 = vpop.permute.xlu0 %6442
        %6444 = vrot.lane.b32.xlu0 %v6304, 32
        %v6445 = vpop.permute.xlu0 %6444
        %6446 = vrot.lane.b32.xlu0 %v6307, 32
        %v6447 = vpop.permute.xlu0 %6446
        %6448 = vrot.lane.b32.xlu0 %v6310, 32
        %v6449 = vpop.permute.xlu0 %6448
        %6450 = vrot.lane.b32.xlu0 %v6313, 32
        %v6451 = vpop.permute.xlu0 %6450
        %6452 = vrot.lane.b32.xlu0 %v6316, 32
        %v6453 = vpop.permute.xlu0 %6452
        %6454 = vrot.lane.b32.xlu0 %v6319, 32
        %v6455 = vpop.permute.xlu0 %6454
        %6456 = vrot.lane.b32.xlu0 %v6322, 32
        %v6457 = vpop.permute.xlu0 %6456
        %6458 = vrot.lane.b32.xlu0 %v6325, 32
        %v6459 = vpop.permute.xlu0 %6458
        %6460 = vrot.lane.b32.xlu0 %v6328, 32
        %v6461 = vpop.permute.xlu0 %6460
        %6462 = vrot.lane.b32.xlu0 %v6331, 32
        %v6463 = vpop.permute.xlu0 %6462
        %6464 = vrot.lane.b32.xlu0 %v6334, 32
        %v6465 = vpop.permute.xlu0 %6464
        %6466 = vrot.lane.b32.xlu0 %v6337, 32
        %v6467 = vpop.permute.xlu0 %6466
        %6468 = vrot.lane.b32.xlu0 %v6340, 32
        %v6469 = vpop.permute.xlu0 %6468
        %6470 = vrot.lane.b32.xlu0 %v6343, 32
        %v6471 = vpop.permute.xlu0 %6470
        %6472 = vrot.lane.b32.xlu0 %v6346, 32
        %v6473 = vpop.permute.xlu0 %6472
        %6474 = vrot.lane.b32.xlu0 %v6349, 32
        %v6475 = vpop.permute.xlu0 %6474
        %6476 = vrot.lane.b32.xlu0 %v6352, 32
        %v6477 = vpop.permute.xlu0 %6476
        %6478 = vrot.lane.b32.xlu0 %v6355, 32
        %v6479 = vpop.permute.xlu0 %6478
        %6480 = vrot.lane.b32.xlu0 %v6358, 32
        %v6481 = vpop.permute.xlu0 %6480
        %6482 = vrot.lane.b32.xlu0 %v6361, 32
        %v6483 = vpop.permute.xlu0 %6482
        %6484 = vrot.lane.b32.xlu0 %v6364, 32
        %v6485 = vpop.permute.xlu0 %6484
        %6486 = vrot.lane.b32.xlu0 %v6367, 32
        %v6487 = vpop.permute.xlu0 %6486
        %vm6548 = vcmask 290048
        %6549 = vst.msk [vmem:[#allocation3] sm:$0xf] %vm6548, %v6369
        %6550 = vst.msk [vmem:[#allocation3 + $0x4] sm:$0xf] %vm6548, %v6371
        %6551 = vst.msk [vmem:[#allocation3 + $0x8] sm:$0xf] %vm6548, %v6373
        %6552 = vst.msk [vmem:[#allocation3 + $0xc] sm:$0xf] %vm6548, %v6375
        %6553 = vst.msk [vmem:[#allocation3 + $0x10] sm:$0xf] %vm6548, %v6377
        %6554 = vst.msk [vmem:[#allocation3 + $0x14] sm:$0xf] %vm6548, %v6379
        %6555 = vst.msk [vmem:[#allocation3 + $0x18] sm:$0xf] %vm6548, %v6381
        %6556 = vst.msk [vmem:[#allocation3 + $0x1c] sm:$0xf] %vm6548, %v6383
        %6557 = vst.msk [vmem:[#allocation3 + $0x20] sm:$0xf] %vm6548, %v6385
        %6558 = vst.msk [vmem:[#allocation3 + $0x24] sm:$0xf] %vm6548, %v6387
        %6559 = vst.msk [vmem:[#allocation3 + $0x28] sm:$0xf] %vm6548, %v6389
        %6560 = vst.msk [vmem:[#allocation3 + $0x2c] sm:$0xf] %vm6548, %v6391
        %6561 = vst.msk [vmem:[#allocation3 + $0x30] sm:$0xf] %vm6548, %v6393
        %6562 = vst.msk [vmem:[#allocation3 + $0x34] sm:$0xf] %vm6548, %v6395
        %6563 = vst.msk [vmem:[#allocation3 + $0x38] sm:$0xf] %vm6548, %v6397
        %6564 = vst.msk [vmem:[#allocation3 + $0x3c] sm:$0xf] %vm6548, %v6399
        %6565 = vst.msk [vmem:[#allocation3 + $0x40] sm:$0xf] %vm6548, %v6401
        %6566 = vst.msk [vmem:[#allocation3 + $0x44] sm:$0xf] %vm6548, %v6403
        %6567 = vst.msk [vmem:[#allocation3 + $0x48] sm:$0xf] %vm6548, %v6405
        %6568 = vst.msk [vmem:[#allocation3 + $0x4c] sm:$0xf] %vm6548, %v6407
        %6569 = vst.msk [vmem:[#allocation3 + $0x50] sm:$0xf] %vm6548, %v6409
        %6570 = vst.msk [vmem:[#allocation3 + $0x54] sm:$0xf] %vm6548, %v6411
        %6571 = vst.msk [vmem:[#allocation3 + $0x58] sm:$0xf] %vm6548, %v6413
        %6572 = vst.msk [vmem:[#allocation3 + $0x5c] sm:$0xf] %vm6548, %v6415
        %6573 = vst.msk [vmem:[#allocation3 + $0x60] sm:$0xf] %vm6548, %v6417
        %6574 = vst.msk [vmem:[#allocation3 + $0x64] sm:$0xf] %vm6548, %v6419
        %6575 = vst.msk [vmem:[#allocation3 + $0x68] sm:$0xf] %vm6548, %v6421
        %6576 = vst.msk [vmem:[#allocation3 + $0x6c] sm:$0xf] %vm6548, %v6423
        %6577 = vst.msk [vmem:[#allocation3 + $0x70] sm:$0xf] %vm6548, %v6425
        %6578 = vst.msk [vmem:[#allocation3 + $0x74] sm:$0xf] %vm6548, %v6427
        %6579 = vst.msk [vmem:[#allocation3 + $0x78] sm:$0xf] %vm6548, %v6429
        %6580 = vst.msk [vmem:[#allocation3 + $0x7c] sm:$0xf] %vm6548, %v6431
        %6581 = vst.msk [vmem:[#allocation3 + $0x80] sm:$0xf] %vm6548, %v6433
        %6582 = vst.msk [vmem:[#allocation3 + $0x84] sm:$0xf] %vm6548, %v6435
        %6583 = vst.msk [vmem:[#allocation3 + $0x88] sm:$0xf] %vm6548, %v6437
        %6584 = vst.msk [vmem:[#allocation3 + $0x8c] sm:$0xf] %vm6548, %v6439
        %6585 = vst.msk [vmem:[#allocation3 + $0x90] sm:$0xf] %vm6548, %v6441
        %6586 = vst.msk [vmem:[#allocation3 + $0x94] sm:$0xf] %vm6548, %v6443
        %6587 = vst.msk [vmem:[#allocation3 + $0x98] sm:$0xf] %vm6548, %v6445
        %6588 = vst.msk [vmem:[#allocation3 + $0x9c] sm:$0xf] %vm6548, %v6447
        %6589 = vst.msk [vmem:[#allocation3 + $0xa0] sm:$0xf] %vm6548, %v6449
        %6590 = vst.msk [vmem:[#allocation3 + $0xa4] sm:$0xf] %vm6548, %v6451
        %6591 = vst.msk [vmem:[#allocation3 + $0xa8] sm:$0xf] %vm6548, %v6453
        %6592 = vst.msk [vmem:[#allocation3 + $0xac] sm:$0xf] %vm6548, %v6455
        %6593 = vst.msk [vmem:[#allocation3 + $0xb0] sm:$0xf] %vm6548, %v6457
        %6594 = vst.msk [vmem:[#allocation3 + $0xb4] sm:$0xf] %vm6548, %v6459
        %6595 = vst.msk [vmem:[#allocation3 + $0xb8] sm:$0xf] %vm6548, %v6461
        %6596 = vst.msk [vmem:[#allocation3 + $0xbc] sm:$0xf] %vm6548, %v6463
        %6597 = vst.msk [vmem:[#allocation3 + $0xc0] sm:$0xf] %vm6548, %v6465
        %6598 = vst.msk [vmem:[#allocation3 + $0xc4] sm:$0xf] %vm6548, %v6467
        %6599 = vst.msk [vmem:[#allocation3 + $0xc8] sm:$0xf] %vm6548, %v6469
        %6600 = vst.msk [vmem:[#allocation3 + $0xcc] sm:$0xf] %vm6548, %v6471
        %6601 = vst.msk [vmem:[#allocation3 + $0xd0] sm:$0xf] %vm6548, %v6473
        %6602 = vst.msk [vmem:[#allocation3 + $0xd4] sm:$0xf] %vm6548, %v6475
        %6603 = vst.msk [vmem:[#allocation3 + $0xd8] sm:$0xf] %vm6548, %v6477
        %6604 = vst.msk [vmem:[#allocation3 + $0xdc] sm:$0xf] %vm6548, %v6479
        %6605 = vst.msk [vmem:[#allocation3 + $0xe0] sm:$0xf] %vm6548, %v6481
        %6606 = vst.msk [vmem:[#allocation3 + $0xe4] sm:$0xf] %vm6548, %v6483
        %6607 = vst.msk [vmem:[#allocation3 + $0xe8] sm:$0xf] %vm6548, %v6485
        %6608 = vst.msk [vmem:[#allocation3 + $0xec] sm:$0xf] %vm6548, %v6487
      $region40: #{qat_forward.1} parent=35 // pred_fallthru
        _
      %v6609 = vld [vmem:[#allocation3] sm:$0xf]
      %v6610 = vld [vmem:[#allocation3 + $0x4] sm:$0xf]
      %v6611 = vld [vmem:[#allocation3 + $0x8] sm:$0xf]
      %v6612 = vld [vmem:[#allocation3 + $0xc] sm:$0xf]
      %v6613 = vld [vmem:[#allocation3 + $0x10] sm:$0xf]
      %v6614 = vld [vmem:[#allocation3 + $0x14] sm:$0xf]
      %v6615 = vld [vmem:[#allocation3 + $0x18] sm:$0xf]
      %v6616 = vld [vmem:[#allocation3 + $0x1c] sm:$0xf]
      %v6617 = vld [vmem:[#allocation3 + $0x20] sm:$0xf]
      %v6618 = vld [vmem:[#allocation3 + $0x24] sm:$0xf]
      %v6619 = vld [vmem:[#allocation3 + $0x28] sm:$0xf]
      %v6620 = vld [vmem:[#allocation3 + $0x2c] sm:$0xf]
      %v6621 = vld [vmem:[#allocation3 + $0x30] sm:$0xf]
      %v6622 = vld [vmem:[#allocation3 + $0x34] sm:$0xf]
      %v6623 = vld [vmem:[#allocation3 + $0x38] sm:$0xf]
      %v6624 = vld [vmem:[#allocation3 + $0x3c] sm:$0xf]
      %v6625 = vld [vmem:[#allocation3 + $0x40] sm:$0xf]
      %v6626 = vld [vmem:[#allocation3 + $0x44] sm:$0xf]
      %v6627 = vld [vmem:[#allocation3 + $0x48] sm:$0xf]
      %v6628 = vld [vmem:[#allocation3 + $0x4c] sm:$0xf]
      %v6629 = vld [vmem:[#allocation3 + $0x50] sm:$0xf]
      %v6630 = vld [vmem:[#allocation3 + $0x54] sm:$0xf]
      %v6631 = vld [vmem:[#allocation3 + $0x58] sm:$0xf]
      %v6632 = vld [vmem:[#allocation3 + $0x5c] sm:$0xf]
      %v6633 = vld [vmem:[#allocation3 + $0x60] sm:$0xf]
      %v6634 = vld [vmem:[#allocation3 + $0x64] sm:$0xf]
      %v6635 = vld [vmem:[#allocation3 + $0x68] sm:$0xf]
      %v6636 = vld [vmem:[#allocation3 + $0x6c] sm:$0xf]
      %v6637 = vld [vmem:[#allocation3 + $0x70] sm:$0xf]
      %v6638 = vld [vmem:[#allocation3 + $0x74] sm:$0xf]
      %v6639 = vld [vmem:[#allocation3 + $0x78] sm:$0xf]
      %v6640 = vld [vmem:[#allocation3 + $0x7c] sm:$0xf]
      %v6641 = vld [vmem:[#allocation3 + $0x80] sm:$0xf]
      %v6642 = vld [vmem:[#allocation3 + $0x84] sm:$0xf]
      %v6643 = vld [vmem:[#allocation3 + $0x88] sm:$0xf]
      %v6644 = vld [vmem:[#allocation3 + $0x8c] sm:$0xf]
      %v6645 = vld [vmem:[#allocation3 + $0x90] sm:$0xf]
      %v6646 = vld [vmem:[#allocation3 + $0x94] sm:$0xf]
      %v6647 = vld [vmem:[#allocation3 + $0x98] sm:$0xf]
      %v6648 = vld [vmem:[#allocation3 + $0x9c] sm:$0xf]
      %v6649 = vld [vmem:[#allocation3 + $0xa0] sm:$0xf]
      %v6650 = vld [vmem:[#allocation3 + $0xa4] sm:$0xf]
      %v6651 = vld [vmem:[#allocation3 + $0xa8] sm:$0xf]
      %v6652 = vld [vmem:[#allocation3 + $0xac] sm:$0xf]
      %v6653 = vld [vmem:[#allocation3 + $0xb0] sm:$0xf]
      %v6654 = vld [vmem:[#allocation3 + $0xb4] sm:$0xf]
      %v6655 = vld [vmem:[#allocation3 + $0xb8] sm:$0xf]
      %v6656 = vld [vmem:[#allocation3 + $0xbc] sm:$0xf]
      %v6657 = vld [vmem:[#allocation3 + $0xc0] sm:$0xf]
      %v6658 = vld [vmem:[#allocation3 + $0xc4] sm:$0xf]
      %v6659 = vld [vmem:[#allocation3 + $0xc8] sm:$0xf]
      %v6660 = vld [vmem:[#allocation3 + $0xcc] sm:$0xf]
      %v6661 = vld [vmem:[#allocation3 + $0xd0] sm:$0xf]
      %v6662 = vld [vmem:[#allocation3 + $0xd4] sm:$0xf]
      %v6663 = vld [vmem:[#allocation3 + $0xd8] sm:$0xf]
      %v6664 = vld [vmem:[#allocation3 + $0xdc] sm:$0xf]
      %v6665 = vld [vmem:[#allocation3 + $0xe0] sm:$0xf]
      %v6666 = vld [vmem:[#allocation3 + $0xe4] sm:$0xf]
      %v6667 = vld [vmem:[#allocation3 + $0xe8] sm:$0xf]
      %v6668 = vld [vmem:[#allocation3 + $0xec] sm:$0xf]
      %v6669 = vld [vmem:[%s295] sm:$0xf]
      %v6670 = vld [vmem:[%s295 + $0x4] sm:$0xf]
      %v6671 = vld [vmem:[%s295 + $0x8] sm:$0xf]
      %v6672 = vld [vmem:[%s295 + $0xc] sm:$0xf]
      %v6673 = vld [vmem:[%s295 + $0x10] sm:$0xf]
      %v6674 = vld [vmem:[%s295 + $0x14] sm:$0xf]
      %v6675 = vld [vmem:[%s295 + $0x18] sm:$0xf]
      %v6676 = vld [vmem:[%s295 + $0x1c] sm:$0xf]
      %v6677 = vld [vmem:[%s295 + $0x20] sm:$0xf]
      %v6678 = vld [vmem:[%s295 + $0x24] sm:$0xf]
      %v6679 = vld [vmem:[%s295 + $0x28] sm:$0xf]
      %v6680 = vld [vmem:[%s295 + $0x2c] sm:$0xf]
      %v6681 = vld [vmem:[%s295 + $0x30] sm:$0xf]
      %v6682 = vld [vmem:[%s295 + $0x34] sm:$0xf]
      %v6683 = vld [vmem:[%s295 + $0x38] sm:$0xf]
      %v6684 = vld [vmem:[%s295 + $0x3c] sm:$0xf]
      %v6685 = vld [vmem:[%s298] sm:$0x1]
      %v6687 = vperm.slane %v6685, 0
      %v6749 = vunpack.c.l.b16 %v6609
      %v6750 = vunpack.c.l.b16 %v6610
      %v6751 = vunpack.c.l.b16 %v6611
      %v6752 = vunpack.c.l.b16 %v6612
      %v6753 = vunpack.c.l.b16 %v6613
      %v6754 = vunpack.c.l.b16 %v6614
      %v6755 = vunpack.c.l.b16 %v6615
      %v6756 = vunpack.c.l.b16 %v6616
      %v6757 = vunpack.c.l.b16 %v6617
      %v6758 = vunpack.c.l.b16 %v6618
      %v6759 = vunpack.c.l.b16 %v6619
      %v6760 = vunpack.c.l.b16 %v6620
      %v6761 = vunpack.c.l.b16 %v6621
      %v6762 = vunpack.c.l.b16 %v6622
      %v6763 = vunpack.c.l.b16 %v6623
      %v6764 = vunpack.c.l.b16 %v6624
      %v6765 = vunpack.c.l.b16 %v6625
      %v6766 = vunpack.c.l.b16 %v6626
      %v6767 = vunpack.c.l.b16 %v6627
      %v6768 = vunpack.c.l.b16 %v6628
      %v6769 = vunpack.c.l.b16 %v6629
      %v6770 = vunpack.c.l.b16 %v6630
      %v6771 = vunpack.c.l.b16 %v6631
      %v6772 = vunpack.c.l.b16 %v6632
      %v6773 = vunpack.c.l.b16 %v6633
      %v6774 = vunpack.c.l.b16 %v6634
      %v6775 = vunpack.c.l.b16 %v6635
      %v6776 = vunpack.c.l.b16 %v6636
      %v6777 = vunpack.c.l.b16 %v6637
      %v6778 = vunpack.c.l.b16 %v6638
      %v6779 = vunpack.c.l.b16 %v6639
      %v6780 = vunpack.c.l.b16 %v6640
      %v6781 = vunpack.c.l.b16 %v6641
      %v6782 = vunpack.c.l.b16 %v6642
      %v6783 = vunpack.c.l.b16 %v6643
      %v6784 = vunpack.c.l.b16 %v6644
      %v6785 = vunpack.c.l.b16 %v6645
      %v6786 = vunpack.c.l.b16 %v6646
      %v6787 = vunpack.c.l.b16 %v6647
      %v6788 = vunpack.c.l.b16 %v6648
      %v6789 = vunpack.c.l.b16 %v6649
      %v6790 = vunpack.c.l.b16 %v6650
      %v6791 = vunpack.c.l.b16 %v6651
      %v6792 = vunpack.c.l.b16 %v6652
      %v6793 = vunpack.c.l.b16 %v6653
      %v6794 = vunpack.c.l.b16 %v6654
      %v6795 = vunpack.c.l.b16 %v6655
      %v6796 = vunpack.c.l.b16 %v6656
      %v6797 = vunpack.c.l.b16 %v6657
      %v6798 = vunpack.c.l.b16 %v6658
      %v6799 = vunpack.c.l.b16 %v6659
      %v6800 = vunpack.c.l.b16 %v6660
      %v6801 = vunpack.c.l.b16 %v6661
      %v6802 = vunpack.c.l.b16 %v6662
      %v6803 = vunpack.c.l.b16 %v6663
      %v6804 = vunpack.c.l.b16 %v6664
      %v6805 = vunpack.c.l.b16 %v6665
      %v6806 = vunpack.c.l.b16 %v6666
      %v6807 = vunpack.c.l.b16 %v6667
      %v6808 = vunpack.c.l.b16 %v6668
      %v6809 = vpack.c.b16 %v6750, %v6749
      %v6810 = vpack.c.b16 %v6752, %v6751
      %v6811 = vpack.c.b16 %v6754, %v6753
      %v6812 = vpack.c.b16 %v6756, %v6755
      %v6813 = vpack.c.b16 %v6758, %v6757
      %v6814 = vpack.c.b16 %v6760, %v6759
      %v6815 = vpack.c.b16 %v6762, %v6761
      %v6816 = vpack.c.b16 %v6764, %v6763
      %v6817 = vpack.c.b16 %v6766, %v6765
      %v6818 = vpack.c.b16 %v6768, %v6767
      %v6819 = vpack.c.b16 %v6770, %v6769
      %v6820 = vpack.c.b16 %v6772, %v6771
      %v6821 = vpack.c.b16 %v6774, %v6773
      %v6822 = vpack.c.b16 %v6776, %v6775
      %v6823 = vpack.c.b16 %v6778, %v6777
      %v6824 = vpack.c.b16 %v6780, %v6779
      %v6825 = vpack.c.b16 %v6782, %v6781
      %v6826 = vpack.c.b16 %v6784, %v6783
      %v6827 = vpack.c.b16 %v6786, %v6785
      %v6828 = vpack.c.b16 %v6788, %v6787
      %v6829 = vpack.c.b16 %v6790, %v6789
      %v6830 = vpack.c.b16 %v6792, %v6791
      %v6831 = vpack.c.b16 %v6794, %v6793
      %v6832 = vpack.c.b16 %v6796, %v6795
      %v6833 = vpack.c.b16 %v6798, %v6797
      %v6834 = vpack.c.b16 %v6800, %v6799
      %v6835 = vpack.c.b16 %v6802, %v6801
      %v6836 = vpack.c.b16 %v6804, %v6803
      %v6837 = vpack.c.b16 %v6806, %v6805
      %v6838 = vpack.c.b16 %v6808, %v6807
      %v6885 = vunpack.c.l.b16 %v6669
      %v6886 = vunpack.c.l.b16 %v6670
      %v6887 = vunpack.c.l.b16 %v6671
      %v6888 = vunpack.c.l.b16 %v6672
      %v6889 = vunpack.c.l.b16 %v6673
      %v6890 = vunpack.c.l.b16 %v6674
      %v6891 = vunpack.c.l.b16 %v6675
      %v6892 = vunpack.c.l.b16 %v6676
      %v6893 = vunpack.c.l.b16 %v6677
      %v6894 = vunpack.c.l.b16 %v6678
      %v6895 = vunpack.c.l.b16 %v6679
      %v6896 = vunpack.c.l.b16 %v6680
      %v6897 = vunpack.c.l.b16 %v6681
      %v6898 = vunpack.c.l.b16 %v6682
      %v6899 = vunpack.c.l.b16 %v6683
      %v6900 = vunpack.c.l.b16 %v6684
      %v6901 = vpack.c.b16 %v6886, %v6885
      %v6902 = vpack.c.b16 %v6888, %v6887
      %v6903 = vpack.c.b16 %v6890, %v6889
      %v6904 = vpack.c.b16 %v6892, %v6891
      %v6905 = vpack.c.b16 %v6894, %v6893
      %v6906 = vpack.c.b16 %v6896, %v6895
      %v6907 = vpack.c.b16 %v6898, %v6897
      %v6908 = vpack.c.b16 %v6900, %v6899
      %6917 = vmatpush.bf16.msra.mxu0 %v6908
      %6918 = vmatpush.bf16.msra.mxu0 %v6907
      %6919 = vmatpush.bf16.msra.mxu0 %v6906
      %6920 = vmatpush.bf16.msra.mxu0 %v6905
      %6921 = vmatpush.bf16.msra.mxu0 %v6904
      %6922 = vmatpush.bf16.msra.mxu0 %v6903
      %6923 = vmatpush.bf16.msra.mxu0 %v6902
      %6924 = vmatpush.bf16.msra.mxu0 %v6901
      %6925 = vmatmul.bf16.gmra.mxu0 %v6809
      %v6926 = vpop.f32.mrf.mxu0
      %v6927 = vadd.f32 %v6687, %v6926
      %v6928 = vpop.f32.mrf.mxu0
      %v6929 = vadd.f32 %v6687, %v6928
      %6930 = vmatmul.bf16.gmra.mxu0 %v6810
      %v6931 = vpop.f32.mrf.mxu0
      %v6932 = vadd.f32 %v6687, %v6931
      %v6933 = vpop.f32.mrf.mxu0
      %v6934 = vadd.f32 %v6687, %v6933
      %6935 = vmatmul.bf16.gmra.mxu0 %v6811
      %v6936 = vpop.f32.mrf.mxu0
      %v6937 = vadd.f32 %v6687, %v6936
      %v6938 = vpop.f32.mrf.mxu0
      %v6939 = vadd.f32 %v6687, %v6938
      %6940 = vmatmul.bf16.gmra.mxu0 %v6812
      %v6941 = vpop.f32.mrf.mxu0
      %v6942 = vadd.f32 %v6687, %v6941
      %v6943 = vpop.f32.mrf.mxu0
      %v6944 = vadd.f32 %v6687, %v6943
      %6945 = vmatmul.bf16.gmra.mxu0 %v6813
      %v6946 = vpop.f32.mrf.mxu0
      %v6947 = vadd.f32 %v6687, %v6946
      %v6948 = vpop.f32.mrf.mxu0
      %v6949 = vadd.f32 %v6687, %v6948
      %6950 = vmatmul.bf16.gmra.mxu0 %v6814
      %v6951 = vpop.f32.mrf.mxu0
      %v6952 = vadd.f32 %v6687, %v6951
      %v6953 = vpop.f32.mrf.mxu0
      %v6954 = vadd.f32 %v6687, %v6953
      %6955 = vmatmul.bf16.gmra.mxu0 %v6815
      %v6956 = vpop.f32.mrf.mxu0
      %v6957 = vadd.f32 %v6687, %v6956
      %v6958 = vpop.f32.mrf.mxu0
      %v6959 = vadd.f32 %v6687, %v6958
      %6960 = vmatmul.bf16.gmra.mxu0 %v6816
      %v6961 = vpop.f32.mrf.mxu0
      %v6962 = vadd.f32 %v6687, %v6961
      %v6963 = vpop.f32.mrf.mxu0
      %v6964 = vadd.f32 %v6687, %v6963
      %6965 = vmatmul.bf16.gmra.mxu0 %v6817
      %v6966 = vpop.f32.mrf.mxu0
      %v6967 = vadd.f32 %v6687, %v6966
      %v6968 = vpop.f32.mrf.mxu0
      %v6969 = vadd.f32 %v6687, %v6968
      %6970 = vmatmul.bf16.gmra.mxu0 %v6818
      %v6971 = vpop.f32.mrf.mxu0
      %v6972 = vadd.f32 %v6687, %v6971
      %v6973 = vpop.f32.mrf.mxu0
      %v6974 = vadd.f32 %v6687, %v6973
      %6975 = vmatmul.bf16.gmra.mxu0 %v6819
      %v6976 = vpop.f32.mrf.mxu0
      %v6977 = vadd.f32 %v6687, %v6976
      %v6978 = vpop.f32.mrf.mxu0
      %v6979 = vadd.f32 %v6687, %v6978
      %6980 = vmatmul.bf16.gmra.mxu0 %v6820
      %v6981 = vpop.f32.mrf.mxu0
      %v6982 = vadd.f32 %v6687, %v6981
      %v6983 = vpop.f32.mrf.mxu0
      %v6984 = vadd.f32 %v6687, %v6983
      %6985 = vmatmul.bf16.gmra.mxu0 %v6821
      %v6986 = vpop.f32.mrf.mxu0
      %v6987 = vadd.f32 %v6687, %v6986
      %v6988 = vpop.f32.mrf.mxu0
      %v6989 = vadd.f32 %v6687, %v6988
      %6990 = vmatmul.bf16.gmra.mxu0 %v6822
      %v6991 = vpop.f32.mrf.mxu0
      %v6992 = vadd.f32 %v6687, %v6991
      %v6993 = vpop.f32.mrf.mxu0
      %v6994 = vadd.f32 %v6687, %v6993
      %6995 = vmatmul.bf16.gmra.mxu0 %v6823
      %v6996 = vpop.f32.mrf.mxu0
      %v6997 = vadd.f32 %v6687, %v6996
      %v6998 = vpop.f32.mrf.mxu0
      %v6999 = vadd.f32 %v6687, %v6998
      %7000 = vmatmul.bf16.gmra.mxu0 %v6824
      %v7001 = vpop.f32.mrf.mxu0
      %v7002 = vadd.f32 %v6687, %v7001
      %v7003 = vpop.f32.mrf.mxu0
      %v7004 = vadd.f32 %v6687, %v7003
      %7005 = vmatmul.bf16.gmra.mxu0 %v6825
      %v7006 = vpop.f32.mrf.mxu0
      %v7007 = vadd.f32 %v6687, %v7006
      %v7008 = vpop.f32.mrf.mxu0
      %v7009 = vadd.f32 %v6687, %v7008
      %7010 = vmatmul.bf16.gmra.mxu0 %v6826
      %v7011 = vpop.f32.mrf.mxu0
      %v7012 = vadd.f32 %v6687, %v7011
      %v7013 = vpop.f32.mrf.mxu0
      %v7014 = vadd.f32 %v6687, %v7013
      %7015 = vmatmul.bf16.gmra.mxu0 %v6827
      %v7016 = vpop.f32.mrf.mxu0
      %v7017 = vadd.f32 %v6687, %v7016
      %v7018 = vpop.f32.mrf.mxu0
      %v7019 = vadd.f32 %v6687, %v7018
      %7020 = vmatmul.bf16.gmra.mxu0 %v6828
      %v7021 = vpop.f32.mrf.mxu0
      %v7022 = vadd.f32 %v6687, %v7021
      %v7023 = vpop.f32.mrf.mxu0
      %v7024 = vadd.f32 %v6687, %v7023
      %7025 = vmatmul.bf16.gmra.mxu0 %v6829
      %v7026 = vpop.f32.mrf.mxu0
      %v7027 = vadd.f32 %v6687, %v7026
      %v7028 = vpop.f32.mrf.mxu0
      %v7029 = vadd.f32 %v6687, %v7028
      %7030 = vmatmul.bf16.gmra.mxu0 %v6830
      %v7031 = vpop.f32.mrf.mxu0
      %v7032 = vadd.f32 %v6687, %v7031
      %v7033 = vpop.f32.mrf.mxu0
      %v7034 = vadd.f32 %v6687, %v7033
      %7035 = vmatmul.bf16.gmra.mxu0 %v6831
      %v7036 = vpop.f32.mrf.mxu0
      %v7037 = vadd.f32 %v6687, %v7036
      %v7038 = vpop.f32.mrf.mxu0
      %v7039 = vadd.f32 %v6687, %v7038
      %7040 = vmatmul.bf16.gmra.mxu0 %v6832
      %v7041 = vpop.f32.mrf.mxu0
      %v7042 = vadd.f32 %v6687, %v7041
      %v7043 = vpop.f32.mrf.mxu0
      %v7044 = vadd.f32 %v6687, %v7043
      %7045 = vmatmul.bf16.gmra.mxu0 %v6833
      %v7046 = vpop.f32.mrf.mxu0
      %v7047 = vadd.f32 %v6687, %v7046
      %v7048 = vpop.f32.mrf.mxu0
      %v7049 = vadd.f32 %v6687, %v7048
      %7050 = vmatmul.bf16.gmra.mxu0 %v6834
      %v7051 = vpop.f32.mrf.mxu0
      %v7052 = vadd.f32 %v6687, %v7051
      %v7053 = vpop.f32.mrf.mxu0
      %v7054 = vadd.f32 %v6687, %v7053
      %7055 = vmatmul.bf16.gmra.mxu0 %v6835
      %v7056 = vpop.f32.mrf.mxu0
      %v7057 = vadd.f32 %v6687, %v7056
      %v7058 = vpop.f32.mrf.mxu0
      %v7059 = vadd.f32 %v6687, %v7058
      %7060 = vmatmul.bf16.gmra.mxu0 %v6836
      %v7061 = vpop.f32.mrf.mxu0
      %v7062 = vadd.f32 %v6687, %v7061
      %v7063 = vpop.f32.mrf.mxu0
      %v7064 = vadd.f32 %v6687, %v7063
      %7065 = vmatmul.bf16.gmra.mxu0 %v6837
      %v7066 = vpop.f32.mrf.mxu0
      %v7067 = vadd.f32 %v6687, %v7066
      %v7068 = vpop.f32.mrf.mxu0
      %v7069 = vadd.f32 %v6687, %v7068
      %7070 = vmatmul.bf16.gmra.mxu0 %v6838
      %v7071 = vpop.f32.mrf.mxu0
      %v7072 = vadd.f32 %v6687, %v7071
      %v7073 = vpop.f32.mrf.mxu0
      %v7074 = vadd.f32 %v6687, %v7073
      %7075 = vdwg.mxu0
      %vm7076 = vcmp.ge.f32.partialorder %v6927, 0.0
      %vm7077 = vcmp.ge.f32.partialorder %v6929, 0.0
      %vm7078 = vcmp.ge.f32.partialorder %v6932, 0.0
      %vm7079 = vcmp.ge.f32.partialorder %v6934, 0.0
      %vm7080 = vcmp.ge.f32.partialorder %v6937, 0.0
      %vm7081 = vcmp.ge.f32.partialorder %v6939, 0.0
      %vm7082 = vcmp.ge.f32.partialorder %v6942, 0.0
      %vm7083 = vcmp.ge.f32.partialorder %v6944, 0.0
      %vm7084 = vcmp.ge.f32.partialorder %v6947, 0.0
      %vm7085 = vcmp.ge.f32.partialorder %v6949, 0.0
      %vm7086 = vcmp.ge.f32.partialorder %v6952, 0.0
      %vm7087 = vcmp.ge.f32.partialorder %v6954, 0.0
      %vm7088 = vcmp.ge.f32.partialorder %v6957, 0.0
      %vm7089 = vcmp.ge.f32.partialorder %v6959, 0.0
      %vm7090 = vcmp.ge.f32.partialorder %v6962, 0.0
      %vm7091 = vcmp.ge.f32.partialorder %v6964, 0.0
      %vm7092 = vcmp.ge.f32.partialorder %v6967, 0.0
      %vm7093 = vcmp.ge.f32.partialorder %v6969, 0.0
      %vm7094 = vcmp.ge.f32.partialorder %v6972, 0.0
      %vm7095 = vcmp.ge.f32.partialorder %v6974, 0.0
      %vm7096 = vcmp.ge.f32.partialorder %v6977, 0.0
      %vm7097 = vcmp.ge.f32.partialorder %v6979, 0.0
      %vm7098 = vcmp.ge.f32.partialorder %v6982, 0.0
      %vm7099 = vcmp.ge.f32.partialorder %v6984, 0.0
      %vm7100 = vcmp.ge.f32.partialorder %v6987, 0.0
      %vm7101 = vcmp.ge.f32.partialorder %v6989, 0.0
      %vm7102 = vcmp.ge.f32.partialorder %v6992, 0.0
      %vm7103 = vcmp.ge.f32.partialorder %v6994, 0.0
      %vm7104 = vcmp.ge.f32.partialorder %v6997, 0.0
      %vm7105 = vcmp.ge.f32.partialorder %v6999, 0.0
      %vm7106 = vcmp.ge.f32.partialorder %v7002, 0.0
      %vm7107 = vcmp.ge.f32.partialorder %v7004, 0.0
      %vm7108 = vcmp.ge.f32.partialorder %v7007, 0.0
      %vm7109 = vcmp.ge.f32.partialorder %v7009, 0.0
      %vm7110 = vcmp.ge.f32.partialorder %v7012, 0.0
      %vm7111 = vcmp.ge.f32.partialorder %v7014, 0.0
      %vm7112 = vcmp.ge.f32.partialorder %v7017, 0.0
      %vm7113 = vcmp.ge.f32.partialorder %v7019, 0.0
      %vm7114 = vcmp.ge.f32.partialorder %v7022, 0.0
      %vm7115 = vcmp.ge.f32.partialorder %v7024, 0.0
      %vm7116 = vcmp.ge.f32.partialorder %v7027, 0.0
      %vm7117 = vcmp.ge.f32.partialorder %v7029, 0.0
      %vm7118 = vcmp.ge.f32.partialorder %v7032, 0.0
      %vm7119 = vcmp.ge.f32.partialorder %v7034, 0.0
      %vm7120 = vcmp.ge.f32.partialorder %v7037, 0.0
      %vm7121 = vcmp.ge.f32.partialorder %v7039, 0.0
      %vm7122 = vcmp.ge.f32.partialorder %v7042, 0.0
      %vm7123 = vcmp.ge.f32.partialorder %v7044, 0.0
      %vm7124 = vcmp.ge.f32.partialorder %v7047, 0.0
      %vm7125 = vcmp.ge.f32.partialorder %v7049, 0.0
      %vm7126 = vcmp.ge.f32.partialorder %v7052, 0.0
      %vm7127 = vcmp.ge.f32.partialorder %v7054, 0.0
      %vm7128 = vcmp.ge.f32.partialorder %v7057, 0.0
      %vm7129 = vcmp.ge.f32.partialorder %v7059, 0.0
      %vm7130 = vcmp.ge.f32.partialorder %v7062, 0.0
      %vm7131 = vcmp.ge.f32.partialorder %v7064, 0.0
      %vm7132 = vcmp.ge.f32.partialorder %v7067, 0.0
      %vm7133 = vcmp.ge.f32.partialorder %v7069, 0.0
      %vm7134 = vcmp.ge.f32.partialorder %v7072, 0.0
      %vm7135 = vcmp.ge.f32.partialorder %v7074, 0.0
      %v7136 = vmul.f32 %v6927, 0.1
      %v7137 = vmul.f32 %v6929, 0.1
      %v7138 = vmul.f32 %v6932, 0.1
      %v7139 = vmul.f32 %v6934, 0.1
      %v7140 = vmul.f32 %v6937, 0.1
      %v7141 = vmul.f32 %v6939, 0.1
      %v7142 = vmul.f32 %v6942, 0.1
      %v7143 = vmul.f32 %v6944, 0.1
      %v7144 = vmul.f32 %v6947, 0.1
      %v7145 = vmul.f32 %v6949, 0.1
      %v7146 = vmul.f32 %v6952, 0.1
      %v7147 = vmul.f32 %v6954, 0.1
      %v7148 = vmul.f32 %v6957, 0.1
      %v7149 = vmul.f32 %v6959, 0.1
      %v7150 = vmul.f32 %v6962, 0.1
      %v7151 = vmul.f32 %v6964, 0.1
      %v7152 = vmul.f32 %v6967, 0.1
      %v7153 = vmul.f32 %v6969, 0.1
      %v7154 = vmul.f32 %v6972, 0.1
      %v7155 = vmul.f32 %v6974, 0.1
      %v7156 = vmul.f32 %v6977, 0.1
      %v7157 = vmul.f32 %v6979, 0.1
      %v7158 = vmul.f32 %v6982, 0.1
      %v7159 = vmul.f32 %v6984, 0.1
      %v7160 = vmul.f32 %v6987, 0.1
      %v7161 = vmul.f32 %v6989, 0.1
      %v7162 = vmul.f32 %v6992, 0.1
      %v7163 = vmul.f32 %v6994, 0.1
      %v7164 = vmul.f32 %v6997, 0.1
      %v7165 = vmul.f32 %v6999, 0.1
      %v7166 = vmul.f32 %v7002, 0.1
      %v7167 = vmul.f32 %v7004, 0.1
      %v7168 = vmul.f32 %v7007, 0.1
      %v7169 = vmul.f32 %v7009, 0.1
      %v7170 = vmul.f32 %v7012, 0.1
      %v7171 = vmul.f32 %v7014, 0.1
      %v7172 = vmul.f32 %v7017, 0.1
      %v7173 = vmul.f32 %v7019, 0.1
      %v7174 = vmul.f32 %v7022, 0.1
      %v7175 = vmul.f32 %v7024, 0.1
      %v7176 = vmul.f32 %v7027, 0.1
      %v7177 = vmul.f32 %v7029, 0.1
      %v7178 = vmul.f32 %v7032, 0.1
      %v7179 = vmul.f32 %v7034, 0.1
      %v7180 = vmul.f32 %v7037, 0.1
      %v7181 = vmul.f32 %v7039, 0.1
      %v7182 = vmul.f32 %v7042, 0.1
      %v7183 = vmul.f32 %v7044, 0.1
      %v7184 = vmul.f32 %v7047, 0.1
      %v7185 = vmul.f32 %v7049, 0.1
      %v7186 = vmul.f32 %v7052, 0.1
      %v7187 = vmul.f32 %v7054, 0.1
      %v7188 = vmul.f32 %v7057, 0.1
      %v7189 = vmul.f32 %v7059, 0.1
      %v7190 = vmul.f32 %v7062, 0.1
      %v7191 = vmul.f32 %v7064, 0.1
      %v7192 = vmul.f32 %v7067, 0.1
      %v7193 = vmul.f32 %v7069, 0.1
      %v7194 = vmul.f32 %v7072, 0.1
      %v7195 = vmul.f32 %v7074, 0.1
      %v7196 = vsel %vm7076, %v6927, %v7136
      %v7197 = vsel %vm7077, %v6929, %v7137
      %v7198 = vsel %vm7078, %v6932, %v7138
      %v7199 = vsel %vm7079, %v6934, %v7139
      %v7200 = vsel %vm7080, %v6937, %v7140
      %v7201 = vsel %vm7081, %v6939, %v7141
      %v7202 = vsel %vm7082, %v6942, %v7142
      %v7203 = vsel %vm7083, %v6944, %v7143
      %v7204 = vsel %vm7084, %v6947, %v7144
      %v7205 = vsel %vm7085, %v6949, %v7145
      %v7206 = vsel %vm7086, %v6952, %v7146
      %v7207 = vsel %vm7087, %v6954, %v7147
      %v7208 = vsel %vm7088, %v6957, %v7148
      %v7209 = vsel %vm7089, %v6959, %v7149
      %v7210 = vsel %vm7090, %v6962, %v7150
      %v7211 = vsel %vm7091, %v6964, %v7151
      %v7212 = vsel %vm7092, %v6967, %v7152
      %v7213 = vsel %vm7093, %v6969, %v7153
      %v7214 = vsel %vm7094, %v6972, %v7154
      %v7215 = vsel %vm7095, %v6974, %v7155
      %v7216 = vsel %vm7096, %v6977, %v7156
      %v7217 = vsel %vm7097, %v6979, %v7157
      %v7218 = vsel %vm7098, %v6982, %v7158
      %v7219 = vsel %vm7099, %v6984, %v7159
      %v7220 = vsel %vm7100, %v6987, %v7160
      %v7221 = vsel %vm7101, %v6989, %v7161
      %v7222 = vsel %vm7102, %v6992, %v7162
      %v7223 = vsel %vm7103, %v6994, %v7163
      %v7224 = vsel %vm7104, %v6997, %v7164
      %v7225 = vsel %vm7105, %v6999, %v7165
      %v7226 = vsel %vm7106, %v7002, %v7166
      %v7227 = vsel %vm7107, %v7004, %v7167
      %v7228 = vsel %vm7108, %v7007, %v7168
      %v7229 = vsel %vm7109, %v7009, %v7169
      %v7230 = vsel %vm7110, %v7012, %v7170
      %v7231 = vsel %vm7111, %v7014, %v7171
      %v7232 = vsel %vm7112, %v7017, %v7172
      %v7233 = vsel %vm7113, %v7019, %v7173
      %v7234 = vsel %vm7114, %v7022, %v7174
      %v7235 = vsel %vm7115, %v7024, %v7175
      %v7236 = vsel %vm7116, %v7027, %v7176
      %v7237 = vsel %vm7117, %v7029, %v7177
      %v7238 = vsel %vm7118, %v7032, %v7178
      %v7239 = vsel %vm7119, %v7034, %v7179
      %v7240 = vsel %vm7120, %v7037, %v7180
      %v7241 = vsel %vm7121, %v7039, %v7181
      %v7242 = vsel %vm7122, %v7042, %v7182
      %v7243 = vsel %vm7123, %v7044, %v7183
      %v7244 = vsel %vm7124, %v7047, %v7184
      %v7245 = vsel %vm7125, %v7049, %v7185
      %v7246 = vsel %vm7126, %v7052, %v7186
      %v7247 = vsel %vm7127, %v7054, %v7187
      %v7248 = vsel %vm7128, %v7057, %v7188
      %v7249 = vsel %vm7129, %v7059, %v7189
      %v7250 = vsel %vm7130, %v7062, %v7190
      %v7251 = vsel %vm7131, %v7064, %v7191
      %v7252 = vsel %vm7132, %v7067, %v7192
      %v7253 = vsel %vm7133, %v7069, %v7193
      %v7254 = vsel %vm7134, %v7072, %v7194
      %v7255 = vsel %vm7135, %v7074, %v7195
      %7256 = vst [vmem:[%s306] sm:$0xff] %v7196
      %7257 = vst [vmem:[%s306 + $0x8] sm:$0xff] %v7197
      %7258 = vst [vmem:[%s306 + $0x10] sm:$0xff] %v7198
      %7259 = vst [vmem:[%s306 + $0x18] sm:$0xff] %v7199
      %7260 = vst [vmem:[%s306 + $0x20] sm:$0xff] %v7200
      %7261 = vst [vmem:[%s306 + $0x28] sm:$0xff] %v7201
      %7262 = vst [vmem:[%s306 + $0x30] sm:$0xff] %v7202
      %7263 = vst [vmem:[%s306 + $0x38] sm:$0xff] %v7203
      %7264 = vst [vmem:[%s306 + $0x40] sm:$0xff] %v7204
      %7265 = vst [vmem:[%s306 + $0x48] sm:$0xff] %v7205
      %7266 = vst [vmem:[%s306 + $0x50] sm:$0xff] %v7206
      %7267 = vst [vmem:[%s306 + $0x58] sm:$0xff] %v7207
      %7268 = vst [vmem:[%s306 + $0x60] sm:$0xff] %v7208
      %7269 = vst [vmem:[%s306 + $0x68] sm:$0xff] %v7209
      %7270 = vst [vmem:[%s306 + $0x70] sm:$0xff] %v7210
      %7271 = vst [vmem:[%s306 + $0x78] sm:$0xff] %v7211
      %7272 = vst [vmem:[%s306 + $0x80] sm:$0xff] %v7212
      %7273 = vst [vmem:[%s306 + $0x88] sm:$0xff] %v7213
      %7274 = vst [vmem:[%s306 + $0x90] sm:$0xff] %v7214
      %7275 = vst [vmem:[%s306 + $0x98] sm:$0xff] %v7215
      %7276 = vst [vmem:[%s306 + $0xa0] sm:$0xff] %v7216
      %7277 = vst [vmem:[%s306 + $0xa8] sm:$0xff] %v7217
      %7278 = vst [vmem:[%s306 + $0xb0] sm:$0xff] %v7218
      %7279 = vst [vmem:[%s306 + $0xb8] sm:$0xff] %v7219
      %7280 = vst [vmem:[%s306 + $0xc0] sm:$0xff] %v7220
      %7281 = vst [vmem:[%s306 + $0xc8] sm:$0xff] %v7221
      %7282 = vst [vmem:[%s306 + $0xd0] sm:$0xff] %v7222
      %7283 = vst [vmem:[%s306 + $0xd8] sm:$0xff] %v7223
      %7284 = vst [vmem:[%s306 + $0xe0] sm:$0xff] %v7224
      %7285 = vst [vmem:[%s306 + $0xe8] sm:$0xff] %v7225
      %7286 = vst [vmem:[%s306 + $0xf0] sm:$0xff] %v7226
      %7287 = vst [vmem:[%s306 + $0xf8] sm:$0xff] %v7227
      %7288 = vst [vmem:[%s306 + $0x100] sm:$0xff] %v7228
      %7289 = vst [vmem:[%s306 + $0x108] sm:$0xff] %v7229
      %7290 = vst [vmem:[%s306 + $0x110] sm:$0xff] %v7230
      %7291 = vst [vmem:[%s306 + $0x118] sm:$0xff] %v7231
      %7292 = vst [vmem:[%s306 + $0x120] sm:$0xff] %v7232
      %7293 = vst [vmem:[%s306 + $0x128] sm:$0xff] %v7233
      %7294 = vst [vmem:[%s306 + $0x130] sm:$0xff] %v7234
      %7295 = vst [vmem:[%s306 + $0x138] sm:$0xff] %v7235
      %7296 = vst [vmem:[%s306 + $0x140] sm:$0xff] %v7236
      %7297 = vst [vmem:[%s306 + $0x148] sm:$0xff] %v7237
      %7298 = vst [vmem:[%s306 + $0x150] sm:$0xff] %v7238
      %7299 = vst [vmem:[%s306 + $0x158] sm:$0xff] %v7239
      %7300 = vst [vmem:[%s306 + $0x160] sm:$0xff] %v7240
      %7301 = vst [vmem:[%s306 + $0x168] sm:$0xff] %v7241
      %7302 = vst [vmem:[%s306 + $0x170] sm:$0xff] %v7242
      %7303 = vst [vmem:[%s306 + $0x178] sm:$0xff] %v7243
      %7304 = vst [vmem:[%s306 + $0x180] sm:$0xff] %v7244
      %7305 = vst [vmem:[%s306 + $0x188] sm:$0xff] %v7245
      %7306 = vst [vmem:[%s306 + $0x190] sm:$0xff] %v7246
      %7307 = vst [vmem:[%s306 + $0x198] sm:$0xff] %v7247
      %7308 = vst [vmem:[%s306 + $0x1a0] sm:$0xff] %v7248
      %7309 = vst [vmem:[%s306 + $0x1a8] sm:$0xff] %v7249
      %7310 = vst [vmem:[%s306 + $0x1b0] sm:$0xff] %v7250
      %7311 = vst [vmem:[%s306 + $0x1b8] sm:$0xff] %v7251
      %7312 = vst [vmem:[%s306 + $0x1c0] sm:$0xff] %v7252
      %7313 = vst [vmem:[%s306 + $0x1c8] sm:$0xff] %v7253
      %7314 = vst [vmem:[%s306 + $0x1d0] sm:$0xff] %v7254
      %7315 = vst [vmem:[%s306 + $0x1d8] sm:$0xff] %v7255
      %s7316 = smul.u32 60, %s19
      %p7317 = scmp.lt.s32.totalorder %s7316, 119
      %s7318 = scalar_select %p7317, %s7316, 119
      %p7319 = scmp.lt.s32.totalorder %s20, 0
      %s7320 = scalar_select %p7319, %s20, 0
      %s7321 = sadd.s32 %s7320, %s7318
      %s7322 = smul.addr %s7321, 8
      %s7323 = scalar_lea.vmem %s4, %s7322
      // Predicated region
      $region41: #{qat_forward.1} parent=35 // pred_check
        %p7324 = pneg %p155
      $region42: #{qat_forward.1} parent=35 // pred_check_branch
        %7326 = sbr.rel (%p7324) target = $region44
      $region43: #{qat_forward.1} parent=35 // pred_region
        %s7327 = smul.u32 60, %s19
      $region44: #{qat_forward.1} parent=35 // pred_fallthru
        _
    $region36: #{qat_forward.1} parent=5 // pred_fallthru
      _
    %p7328 = scmp.le.s32.totalorder 2, %s10
    // Predicated region
    $region45: #{qat_forward.1} parent=5 // pred_check
      %p7329 = pneg %p7328
    $region46: #{qat_forward.1} parent=5 // pred_check_branch
      %7331 = sbr.rel (%p7329) target = $region48
    $region47: #{qat_forward.1} parent=5 // pred_region
      %s7332 = ssub.s32 %s10, 2
      // Predicated region
      $region49: #{qat_forward.1} parent=47 // pred_check
        %p7333 = pneg %p161
      $region50: #{qat_forward.1} parent=47 // pred_check_branch
        %7335 = sbr.rel (%p7333) target = $region52
      $region51: #{qat_forward.1} parent=47 // pred_region
        %s7336 = smul.u32 60, %s21
        %p7337 = scmp.lt.s32.totalorder %s7336, 119
        %s7338 = scalar_select %p7337, %s7336, 119
        %p7339 = scmp.lt.s32.totalorder %s22, 0
        %s7340 = scalar_select %p7339, %s22, 0
        %s7341 = sadd.s32 %s7340, %s7338
        %s7342 = smul.addr %s7341, 8
        %s7343 = scalar_lea.vmem %s4, %s7342
      $region52: #{qat_forward.1} parent=47 // pred_fallthru
        _
    $region48: #{qat_forward.1} parent=5 // pred_fallthru
      _
  $region6: #{qat_forward.1} parent=0 // loop_footer
    %s14 = sadd.s32 1, %s10
  $region7: #{qat_forward.1} parent=0 // loop_footer_branch
    %9 = sbr.rel target = $region3
  $region8: #{qat_forward.1} parent=0 // loop_exit
    _

</llo_original>
